<compile_context>
chip_gen: v5e
topology: v5e:2x2
jax: 0.10.0
libtpu: 0.0.40
codegen_flags: <defaults>
</compile_context>

<pallas_src>
import functools

import jax
import jax.numpy as jnp
from jax.experimental import pallas as pl
from jax.experimental.pallas import tpu as pltpu


def _round_up(x, m):
    return (x + m - 1) // m * m


# ----------------------------------------------------------------------------
# Fused Pallas kernel: valid K=2 / stride-1 conv as 4 tap matmuls.
#
# The input arrives row-flattened as (Hin*Win, Cin); tap (dy, dx) of the 2x2
# window is the contiguous row range starting at dy*Win + dx, so each tap is a
# plain (M, Cin) @ (Cin, CoutK) MXU dot.  The kernel computes M = Hout*Win
# rows (one throwaway column per output row, trimmed in the wrapper) so all
# four taps stay contiguous -- no im2col, no in-kernel reshapes.
# ----------------------------------------------------------------------------
def _conv_k2_kernel(x_ref, w_ref, b_ref, o_ref, *, offs, m, relu):
    def tap(t):
        return jnp.dot(x_ref[0, pl.ds(offs[t], m), :], w_ref[t],
                       preferred_element_type=jnp.float32)

    # Tree sum: two independent adds instead of a serial acc += dot chain,
    # so each MXU result pop is not gated on the previous VPU add.
    # TODO(synk): on v7x accumulate the 4 dots in the MXU result buffer (MRB)
    #             instead; on v6e fuse taps along K for a single 4*Cin dot.
    acc = (tap(0) + tap(1)) + (tap(2) + tap(3))
    acc = acc + b_ref[...]                 # fp32 bias on fp32 accumulator
    if relu:
        acc = jnp.maximum(acc, 0.0)
    o_ref[0] = acc.astype(o_ref.dtype)


def conv_k2(xin, taps, bias, relu=True, out_dtype=jnp.bfloat16,
            compute_dtype=jnp.bfloat16):
    """Valid K=2 stride-1 conv.

    xin  : (B, Hin, Win, Cin) NHWC
    taps : (4, Cin, CoutK), tap order [(dy,dx)] = [(0,0),(0,1),(1,0),(1,1)]
    bias : (CoutK,)
    returns (B, Hin-1, Win-1, CoutK)
    """
    B, Hin, Win, Cin = xin.shape
    CoutK = taps.shape[-1]
    Hout, Wout = Hin - 1, Win - 1
    M = Hout * Win                           # includes 1 garbage col per row
    Min = _round_up(Hin * Win + 1, 8)        # flat rows + tap-overrun pad

    xf = xin.reshape(B, Hin * Win, Cin)
    xf = jnp.pad(xf, ((0, 0), (0, Min - Hin * Win), (0, 0)))
    xf = xf.astype(compute_dtype)            # bf16 MXU feed (fp32 for the head)
    taps = taps.astype(compute_dtype)
    bias2 = bias.reshape(1, CoutK).astype(jnp.float32)

    # --- Explicit VMEM budget (double-buffered in/out + resident weights). ---
    isz = jnp.dtype(compute_dtype).itemsize
    osz = jnp.dtype(out_dtype).itemsize
    in_b = _round_up(Min, 8) * _round_up(Cin, 128) * isz
    out_b = _round_up(M, 8) * _round_up(CoutK, 128) * osz
    w_b = 4 * _round_up(Cin, 8) * _round_up(CoutK, 128) * isz
    vmem_est = 2 * (in_b + out_b) + w_b + 4 * _round_up(CoutK, 128)
    vmem_limit = int(min(max(4 * vmem_est, 32 * 2**20), 64 * 2**20))

    flops = 2 * B * M * Cin * CoutK * 4
    bytes_accessed = (B * Min * Cin * isz + 4 * Cin * CoutK * isz
                      + 4 * CoutK + B * M * CoutK * osz)

    kernel = functools.partial(_conv_k2_kernel,
                               offs=(0, 1, Win, Win + 1), m=M, relu=relu)
    out = pl.pallas_call(
        kernel,
        out_shape=jax.ShapeDtypeStruct((B, M, CoutK), out_dtype),
        grid_spec=pltpu.PrefetchScalarGridSpec(
            num_scalar_prefetch=0,
            grid=(B,),                       # batch-parallel (megacore on v7x)
            in_specs=[
                pl.BlockSpec((1, Min, Cin), lambda b: (b, 0, 0)),
                # Constant index_map -> weights/bias stay resident in VMEM.
                pl.BlockSpec((4, Cin, CoutK), lambda b: (0, 0, 0)),
                pl.BlockSpec((1, CoutK), lambda b: (0, 0)),
            ],
            out_specs=pl.BlockSpec((1, M, CoutK), lambda b: (b, 0, 0)),
        ),
        compiler_params=pltpu.CompilerParams(
            dimension_semantics=("parallel",),
            vmem_limit_bytes=vmem_limit,
            # Let XLA fuse the wrapper-side pad / space-to-depth / cast chain
            # into the operand instead of a separate HBM round trip.
            allow_input_fusion=[True, True, True],
        ),
        cost_estimate=pl.CostEstimate(flops=flops, transcendentals=0,
                                      bytes_accessed=bytes_accessed),
    )(xf, taps, bias2)
    # Drop the per-row throwaway column and restore NHWC (fused by XLA into
    # the next layer's input prep).
    return out.reshape(B, Hout, Win, CoutK)[:, :, :Wout, :]
    # TODO(synk): for production spatial sizes, tile M inside the grid (row
    #             groups with a Win+1 halo) instead of whole-image blocks.


# ----------------------------------------------------------------------------
# Layer lowerings (weight repacking + cheap layout glue around the kernel).
# ----------------------------------------------------------------------------
def _conv3x3_s2_taps(w):
    """w: (3,3,Cin,Cout) -> (4, 4*Cin, Cout) taps for the s2d K=2 conv."""
    K, _, Cin, Cout = w.shape
    taps = []
    for dh in range(2):
        for dw in range(2):
            blocks = []
            for ph in range(2):
                for pw in range(2):
                    kh, kw = 2 * dh + ph, 2 * dw + pw
                    if kh < K and kw < K:
                        blocks.append(w[kh, kw])
                    else:
                        blocks.append(jnp.zeros((Cin, Cout), w.dtype))
            taps.append(jnp.concatenate(blocks, axis=0))     # (4*Cin, Cout)
    return jnp.stack(taps, axis=0)                           # (4, 4*Cin, Cout)


def conv3x3_s2(x, w, b, relu=True, out_dtype=jnp.bfloat16):
    """Conv2d(K=3, stride=2, pad=1) (+ReLU) via space-to-depth + fused kernel."""
    B, H, W, C = x.shape
    assert H % 2 == 0 and W % 2 == 0, "even spatial dims required (pad=1, s=2)"
    Ho, Wo = H // 2, W // 2
    xp = jnp.pad(x, ((0, 0), (1, 1), (1, 1), (0, 0)))        # (B, H+2, W+2, C)
    s2d = xp.reshape(B, Ho + 1, 2, Wo + 1, 2, C)
    s2d = s2d.transpose(0, 1, 3, 2, 4, 5).reshape(B, Ho + 1, Wo + 1, 4 * C)
    return conv_k2(s2d, _conv3x3_s2_taps(w), b, relu=relu, out_dtype=out_dtype)


# (phase p/q, tap dy/dx) -> ConvTranspose kernel index (stride=2, pad=1, K=4).
_KY = {(0, 0): 3, (0, 1): 1, (1, 0): 2, (1, 1): 0}


def _deconv4x4_s2_taps(w_t):
    """w_t: (Cin,Cout,4,4) PyTorch ConvTranspose2d -> (4, Cin, 4*Cout) taps."""
    taps = []
    for dy in range(2):
        for dx in range(2):
            blocks = []
            for p in range(2):
                for q in range(2):
                    blocks.append(w_t[:, :, _KY[(p, dy)], _KY[(q, dx)]])
            taps.append(jnp.concatenate(blocks, axis=1))     # (Cin, 4*Cout)
    return jnp.stack(taps, axis=0)                           # (4, Cin, 4*Cout)


def deconv4x4_s2(x, w_t, b, relu=True, out_dtype=jnp.bfloat16,
                 compute_dtype=jnp.bfloat16):
    """ConvTranspose2d(K=4, stride=2, pad=1) (+ReLU) via sub-pixel decomposition."""
    B, Hi, Wi, Cin = x.shape
    Cout = w_t.shape[1]
    xp = jnp.pad(x, ((0, 0), (1, 1), (1, 1), (0, 0)))        # (B, Hi+2, Wi+2, Cin)
    taps = _deconv4x4_s2_taps(w_t)
    y = conv_k2(xp, taps, jnp.tile(b, 4), relu=relu,
                out_dtype=out_dtype, compute_dtype=compute_dtype)
    y = y.reshape(B, Hi + 1, Wi + 1, 2, 2, Cout)
    # Phase-shifted depth-to-space: out[2a+p, 2b+q, :] = y[a+p, b+q, p, q, :]
    # TODO(synk): fold the (p,q) shift into per-phase tap offsets so this
    #             becomes a single contiguous reshape/transpose.
    rows = []
    for p in range(2):
        cols = [y[:, p:p + Hi, q:q + Wi, p, q, :] for q in range(2)]
        rows.append(jnp.stack(cols, axis=3))                 # (B, Hi, Wi, 2, Cout)
    z = jnp.stack(rows, axis=2)                              # (B, Hi, 2, Wi, 2, Cout)
    return z.reshape(B, 2 * Hi, 2 * Wi, Cout)


def haar_ll(x):
    """Orthonormal Haar LL band of the channel-mean image: NHWC -> (B,H/2,W/2,1)."""
    B, H, W, C = x.shape
    g = jnp.mean(x, axis=-1, keepdims=True)
    g = g.reshape(B, H // 2, 2, W // 2, 2, 1)
    return jnp.sum(g, axis=(2, 4)) * 0.5      # (a+b+c+d)/2 = orthonormal LL


# ----------------------------------------------------------------------------
# Parameters (deterministic synthetic init) and the Baseline forward pass.
# ----------------------------------------------------------------------------
def init_params(key):
    ks = jax.random.split(key, 12)
    s = 0.05
    return {
        # conv weights stored as (kH, kW, Cin, Cout)  (HWIO)
        "conv1_w": jax.random.normal(ks[0], (3, 3, 3, 16), jnp.float32) * s,
        "conv1_b": jax.random.normal(ks[1], (16,), jnp.float32) * s,
        "conv2_w": jax.random.normal(ks[2], (3, 3, 16, 32), jnp.float32) * s,
        "conv2_b": jax.random.normal(ks[3], (32,), jnp.float32) * s,
        "conv3_w": jax.random.normal(ks[4], (3, 3, 32, 64), jnp.float32) * s,
        "conv3_b": jax.random.normal(ks[5], (64,), jnp.float32) * s,
        # deconv weights in PyTorch ConvTranspose2d layout (Cin, Cout, kH, kW)
        "deconv2_w": jax.random.normal(ks[6], (64, 32, 4, 4), jnp.float32) * s,
        "deconv2_b": jax.random.normal(ks[7], (32,), jnp.float32) * s,
        "deconv3_w": jax.random.normal(ks[8], (32, 16, 4, 4), jnp.float32) * s,
        "deconv3_b": jax.random.normal(ks[9], (16,), jnp.float32) * s,
        "deconv4_w": jax.random.normal(ks[10], (17, 3, 4, 4), jnp.float32) * s,
        "deconv4_b": jax.random.normal(ks[11], (3,), jnp.float32) * s,
    }


def baseline_forward(params, x_nchw):
    x = jnp.transpose(x_nchw, (0, 2, 3, 1)).astype(jnp.float32)   # NCHW -> NHWC
    # conv1 (wavelet block): features + Haar LL residual
    h = conv3x3_s2(x, params["conv1_w"], params["conv1_b"])
    res = haar_ll(x)                                              # (B, H/2, W/2, 1), fp32
    h = conv3x3_s2(h, params["conv2_w"], params["conv2_b"])
    h = conv3x3_s2(h, params["conv3_w"], params["conv3_b"])
    h = deconv4x4_s2(h, params["deconv2_w"], params["deconv2_b"])
    h = deconv4x4_s2(h, params["deconv3_w"], params["deconv3_b"])
    h = jnp.concatenate([h.astype(jnp.float32), res], axis=-1)    # 16 + 1 = 17 ch
    # Reconstruction head in fp32 so the residual skip keeps full precision.
    h = deconv4x4_s2(h, params["deconv4_w"], params["deconv4_b"],
                     relu=False, out_dtype=jnp.float32,
                     compute_dtype=jnp.float32)
    return jnp.transpose(h, (0, 3, 1, 2))                         # NHWC -> NCHW


# ----------------------------------------------------------------------------
# Pure-JAX (lax) reference to validate the conv / conv-transpose lowerings.
# ----------------------------------------------------------------------------
def reference_forward(params, x_nchw):
    x = jnp.transpose(x_nchw, (0, 2, 3, 1)).astype(jnp.float32)

    def conv(h, w, b, relu=True):
        y = jax.lax.conv_general_dilated(
            h, w, (2, 2), ((1, 1), (1, 1)),
            dimension_numbers=("NHWC", "HWIO", "NHWC"))
        y = y + b
        return jnp.maximum(y, 0.0) if relu else y

    def deconv(h, w_t, b, relu=True):
        # PyTorch ConvTranspose2d(k=4, s=2, p=1) == dilated conv with flipped kernel.
        w = jnp.transpose(w_t[:, :, ::-1, ::-1], (2, 3, 0, 1))    # (kH,kW,Cin,Cout)
        y = jax.lax.conv_general_dilated(
            h, w, (1, 1), ((2, 2), (2, 2)), lhs_dilation=(2, 2),
            dimension_numbers=("NHWC", "HWIO", "NHWC"))
        y = y + b
        return jnp.maximum(y, 0.0) if relu else y

    h = conv(x, params["conv1_w"], params["conv1_b"])
    res = haar_ll(x)
    h = conv(h, params["conv2_w"], params["conv2_b"])
    h = conv(h, params["conv3_w"], params["conv3_b"])
    h = deconv(h, params["deconv2_w"], params["deconv2_b"])
    h = deconv(h, params["deconv3_w"], params["deconv3_b"])
    h = jnp.concatenate([h, res], axis=-1)
    h = deconv(h, params["deconv4_w"], params["deconv4_b"], relu=False)
    return jnp.transpose(h, (0, 3, 1, 2))


if __name__ == "__main__":
    key = jax.random.PRNGKey(0)
    pkey, xkey = jax.random.split(key)
    params = init_params(pkey)

    B, C, H, W = 2, 3, 16, 16
    x = jax.random.normal(xkey, (B, C, H, W), jnp.float32)

    fwd = jax.jit(baseline_forward)
    out = jax.block_until_ready(fwd(params, x))

    assert out.shape == (B, 3, H, W), out.shape
    assert bool(jnp.all(jnp.isfinite(out)))

    # Numerical validation of the tap/phase packing against lax convolutions
    # (body runs bf16 on the MXU, hence the loose tolerance).
    ref = jax.block_until_ready(jax.jit(reference_forward)(params, x))
    max_err = float(jnp.max(jnp.abs(out.astype(jnp.float32) - ref)))
    assert max_err < 5e-2, f"mismatch vs lax reference: max abs err {max_err}"

    print("KERNEL_OK")
</pallas_src>

<mosaic_0001>
module attributes {stable_mosaic.version = 11 : i64} {
  func.func @_conv_k2_kernel(%arg0: i32, %arg1: memref<1x88x12xbf16, #tpu.memory_space<vmem>>, %arg2: memref<4x12x16xbf16, #tpu.memory_space<vmem>>, %arg3: memref<1x16xf32, #tpu.memory_space<vmem>>, %arg4: memref<1x72x16xbf16, #tpu.memory_space<vmem>>) attributes {dimension_semantics = [#tpu.dimension_semantics<parallel>], iteration_bounds = array<i64: 2>, scalar_prefetch = 0 : i64, scratch_operands = 0 : i64, tpu.core_type = #tpu.core_type<tc>, window_params = [{transform_indices = @transform_0, window_bounds = array<i64: 1, 88, 12>}, {pipeline_mode = #tpu.pipeline_mode<synchronous>, transform_indices = @transform_1, window_bounds = array<i64: 4, 12, 16>}, {pipeline_mode = #tpu.pipeline_mode<synchronous>, transform_indices = @transform_2, window_bounds = array<i64: 1, 16>}, {transform_indices = @transform_3, window_bounds = array<i64: 1, 72, 16>}]} {
    %c0 = arith.constant 0 : index
    %c0_0 = arith.constant 0 : index
    %c0_1 = arith.constant 0 : index
    %0 = vector.load %arg1[%c0, %c0_0, %c0_1] : memref<1x88x12xbf16, #tpu.memory_space<vmem>>, vector<1x72x12xbf16>
    %1 = vector.shape_cast %0 : vector<1x72x12xbf16> to vector<72x12xbf16>
    %c0_2 = arith.constant 0 : index
    %c0_3 = arith.constant 0 : index
    %c0_4 = arith.constant 0 : index
    %2 = vector.load %arg2[%c0_2, %c0_3, %c0_4] : memref<4x12x16xbf16, #tpu.memory_space<vmem>>, vector<1x12x16xbf16>
    %3 = vector.shape_cast %2 : vector<1x12x16xbf16> to vector<12x16xbf16>
    %cst = arith.constant dense<0.000000e+00> : vector<72x16xf32>
    %4 = tpu.matmul %1, %3, %cst {dimension_numbers = #tpu.dot_dimension_numbers<[1], [0], [0], [1], [0, 0, 1, 1], [], []>} : vector<72x12xbf16>, vector<12x16xbf16>, vector<72x16xf32> -> vector<72x16xf32>
    %c0_5 = arith.constant 0 : index
    %c1 = arith.constant 1 : index
    %c0_6 = arith.constant 0 : index
    %5 = vector.load %arg1[%c0_5, %c1, %c0_6] : memref<1x88x12xbf16, #tpu.memory_space<vmem>>, vector<1x72x12xbf16>
    %6 = vector.shape_cast %5 : vector<1x72x12xbf16> to vector<72x12xbf16>
    %c1_7 = arith.constant 1 : index
    %c0_8 = arith.constant 0 : index
    %c0_9 = arith.constant 0 : index
    %7 = vector.load %arg2[%c1_7, %c0_8, %c0_9] : memref<4x12x16xbf16, #tpu.memory_space<vmem>>, vector<1x12x16xbf16>
    %8 = vector.shape_cast %7 : vector<1x12x16xbf16> to vector<12x16xbf16>
    %cst_10 = arith.constant dense<0.000000e+00> : vector<72x16xf32>
    %9 = tpu.matmul %6, %8, %cst_10 {dimension_numbers = #tpu.dot_dimension_numbers<[1], [0], [0], [1], [0, 0, 1, 1], [], []>} : vector<72x12xbf16>, vector<12x16xbf16>, vector<72x16xf32> -> vector<72x16xf32>
    %10 = arith.addf %4, %9 : vector<72x16xf32>
    %c0_11 = arith.constant 0 : index
    %c9 = arith.constant 9 : index
    %c0_12 = arith.constant 0 : index
    %11 = vector.load %arg1[%c0_11, %c9, %c0_12] : memref<1x88x12xbf16, #tpu.memory_space<vmem>>, vector<1x72x12xbf16>
    %12 = vector.shape_cast %11 : vector<1x72x12xbf16> to vector<72x12xbf16>
    %c2 = arith.constant 2 : index
    %c0_13 = arith.constant 0 : index
    %c0_14 = arith.constant 0 : index
    %13 = vector.load %arg2[%c2, %c0_13, %c0_14] : memref<4x12x16xbf16, #tpu.memory_space<vmem>>, vector<1x12x16xbf16>
    %14 = vector.shape_cast %13 : vector<1x12x16xbf16> to vector<12x16xbf16>
    %cst_15 = arith.constant dense<0.000000e+00> : vector<72x16xf32>
    %15 = tpu.matmul %12, %14, %cst_15 {dimension_numbers = #tpu.dot_dimension_numbers<[1], [0], [0], [1], [0, 0, 1, 1], [], []>} : vector<72x12xbf16>, vector<12x16xbf16>, vector<72x16xf32> -> vector<72x16xf32>
    %c0_16 = arith.constant 0 : index
    %c10 = arith.constant 10 : index
    %c0_17 = arith.constant 0 : index
    %16 = vector.load %arg1[%c0_16, %c10, %c0_17] : memref<1x88x12xbf16, #tpu.memory_space<vmem>>, vector<1x72x12xbf16>
    %17 = vector.shape_cast %16 : vector<1x72x12xbf16> to vector<72x12xbf16>
    %c3 = arith.constant 3 : index
    %c0_18 = arith.constant 0 : index
    %c0_19 = arith.constant 0 : index
    %18 = vector.load %arg2[%c3, %c0_18, %c0_19] : memref<4x12x16xbf16, #tpu.memory_space<vmem>>, vector<1x12x16xbf16>
    %19 = vector.shape_cast %18 : vector<1x12x16xbf16> to vector<12x16xbf16>
    %cst_20 = arith.constant dense<0.000000e+00> : vector<72x16xf32>
    %20 = tpu.matmul %17, %19, %cst_20 {dimension_numbers = #tpu.dot_dimension_numbers<[1], [0], [0], [1], [0, 0, 1, 1], [], []>} : vector<72x12xbf16>, vector<12x16xbf16>, vector<72x16xf32> -> vector<72x16xf32>
    %21 = arith.addf %15, %20 : vector<72x16xf32>
    %22 = arith.addf %10, %21 : vector<72x16xf32>
    %c0_21 = arith.constant 0 : index
    %c0_22 = arith.constant 0 : index
    %23 = vector.load %arg3[%c0_21, %c0_22] : memref<1x16xf32, #tpu.memory_space<vmem>>, vector<1x16xf32>
    %24 = vector.broadcast %23 : vector<1x16xf32> to vector<72x16xf32>
    %25 = arith.addf %22, %24 : vector<72x16xf32>
    %cst_23 = arith.constant 0.000000e+00 : f32
    %26 = vector.broadcast %cst_23 : f32 to vector<72x16xf32>
    %27 = arith.maximumf %25, %26 : vector<72x16xf32>
    %28 = arith.truncf %27 : vector<72x16xf32> to vector<72x16xbf16>
    %c0_24 = arith.constant 0 : index
    %c0_25 = arith.constant 0 : index
    %c0_26 = arith.constant 0 : index
    %29 = vector.load %arg4[%c0_24, %c0_25, %c0_26] : memref<1x72x16xbf16, #tpu.memory_space<vmem>>, vector<1x72x16xbf16>
    %30 = vector.shape_cast %29 : vector<1x72x16xbf16> to vector<72x16xbf16>
    %31 = vector.shape_cast %28 : vector<72x16xbf16> to vector<1x72x16xbf16>
    tpu.vector_store %arg4[%c0_24, %c0_25, %c0_26], %31 {strides = array<i32>} : memref<1x72x16xbf16, #tpu.memory_space<vmem>>, vector<1x72x16xbf16>,
    return
  }
  func.func @transform_0(%arg0: i32) -> (i32, i32, i32) {
    %c0_i32 = arith.constant 0 : i32
    %c0_i32_0 = arith.constant 0 : i32
    %c0_i32_1 = arith.constant 0 : i32
    return %arg0, %c0_i32, %c0_i32_0 : i32, i32, i32
  }
  func.func @transform_1(%arg0: i32) -> (i32, i32, i32) {
    %c0_i32 = arith.constant 0 : i32
    %c0_i32_0 = arith.constant 0 : i32
    %c0_i32_1 = arith.constant 0 : i32
    %c0_i32_2 = arith.constant 0 : i32
    return %c0_i32, %c0_i32_0, %c0_i32_1 : i32, i32, i32
  }
  func.func @transform_2(%arg0: i32) -> (i32, i32) {
    %c0_i32 = arith.constant 0 : i32
    %c0_i32_0 = arith.constant 0 : i32
    %c0_i32_1 = arith.constant 0 : i32
    return %c0_i32, %c0_i32_0 : i32, i32
  }
  func.func @transform_3(%arg0: i32) -> (i32, i32, i32) {
    %c0_i32 = arith.constant 0 : i32
    %c0_i32_0 = arith.constant 0 : i32
    %c0_i32_1 = arith.constant 0 : i32
    return %arg0, %c0_i32, %c0_i32_0 : i32, i32, i32
  }
}

module attributes {stable_mosaic.version = 11 : i64} {
  func.func @_conv_k2_kernel(%arg0: i32, %arg1: memref<1x32x64xbf16, #tpu.memory_space<vmem>>, %arg2: memref<4x64x32xbf16, #tpu.memory_space<vmem>>, %arg3: memref<1x32xf32, #tpu.memory_space<vmem>>, %arg4: memref<1x20x32xbf16, #tpu.memory_space<vmem>>) attributes {dimension_semantics = [#tpu.dimension_semantics<parallel>], iteration_bounds = array<i64: 2>, scalar_prefetch = 0 : i64, scratch_operands = 0 : i64, tpu.core_type = #tpu.core_type<tc>, window_params = [{transform_indices = @transform_0, window_bounds = array<i64: 1, 32, 64>}, {pipeline_mode = #tpu.pipeline_mode<synchronous>, transform_indices = @transform_1, window_bounds = array<i64: 4, 64, 32>}, {pipeline_mode = #tpu.pipeline_mode<synchronous>, transform_indices = @transform_2, window_bounds = array<i64: 1, 32>}, {transform_indices = @transform_3, window_bounds = array<i64: 1, 20, 32>}]} {
    %c0 = arith.constant 0 : index
    %c0_0 = arith.constant 0 : index
    %c0_1 = arith.constant 0 : index
    %0 = vector.load %arg1[%c0, %c0_0, %c0_1] : memref<1x32x64xbf16, #tpu.memory_space<vmem>>, vector<1x20x64xbf16>
    %1 = vector.shape_cast %0 : vector<1x20x64xbf16> to vector<20x64xbf16>
    %c0_2 = arith.constant 0 : index
    %c0_3 = arith.constant 0 : index
    %c0_4 = arith.constant 0 : index
    %2 = vector.load %arg2[%c0_2, %c0_3, %c0_4] : memref<4x64x32xbf16, #tpu.memory_space<vmem>>, vector<1x64x32xbf16>
    %3 = vector.shape_cast %2 : vector<1x64x32xbf16> to vector<64x32xbf16>
    %cst = arith.constant dense<0.000000e+00> : vector<20x32xf32>
    %4 = tpu.matmul %1, %3, %cst {dimension_numbers = #tpu.dot_dimension_numbers<[1], [0], [0], [1], [0, 0, 1, 1], [], []>} : vector<20x64xbf16>, vector<64x32xbf16>, vector<20x32xf32> -> vector<20x32xf32>
    %c0_5 = arith.constant 0 : index
    %c1 = arith.constant 1 : index
    %c0_6 = arith.constant 0 : index
    %5 = vector.load %arg1[%c0_5, %c1, %c0_6] : memref<1x32x64xbf16, #tpu.memory_space<vmem>>, vector<1x20x64xbf16>
    %6 = vector.shape_cast %5 : vector<1x20x64xbf16> to vector<20x64xbf16>
    %c1_7 = arith.constant 1 : index
    %c0_8 = arith.constant 0 : index
    %c0_9 = arith.constant 0 : index
    %7 = vector.load %arg2[%c1_7, %c0_8, %c0_9] : memref<4x64x32xbf16, #tpu.memory_space<vmem>>, vector<1x64x32xbf16>
    %8 = vector.shape_cast %7 : vector<1x64x32xbf16> to vector<64x32xbf16>
    %cst_10 = arith.constant dense<0.000000e+00> : vector<20x32xf32>
    %9 = tpu.matmul %6, %8, %cst_10 {dimension_numbers = #tpu.dot_dimension_numbers<[1], [0], [0], [1], [0, 0, 1, 1], [], []>} : vector<20x64xbf16>, vector<64x32xbf16>, vector<20x32xf32> -> vector<20x32xf32>
    %10 = arith.addf %4, %9 : vector<20x32xf32>
    %c0_11 = arith.constant 0 : index
    %c5 = arith.constant 5 : index
    %c0_12 = arith.constant 0 : index
    %11 = vector.load %arg1[%c0_11, %c5, %c0_12] : memref<1x32x64xbf16, #tpu.memory_space<vmem>>, vector<1x20x64xbf16>
    %12 = vector.shape_cast %11 : vector<1x20x64xbf16> to vector<20x64xbf16>
    %c2 = arith.constant 2 : index
    %c0_13 = arith.constant 0 : index
    %c0_14 = arith.constant 0 : index
    %13 = vector.load %arg2[%c2, %c0_13, %c0_14] : memref<4x64x32xbf16, #tpu.memory_space<vmem>>, vector<1x64x32xbf16>
    %14 = vector.shape_cast %13 : vector<1x64x32xbf16> to vector<64x32xbf16>
    %cst_15 = arith.constant dense<0.000000e+00> : vector<20x32xf32>
    %15 = tpu.matmul %12, %14, %cst_15 {dimension_numbers = #tpu.dot_dimension_numbers<[1], [0], [0], [1], [0, 0, 1, 1], [], []>} : vector<20x64xbf16>, vector<64x32xbf16>, vector<20x32xf32> -> vector<20x32xf32>
    %c0_16 = arith.constant 0 : index
    %c6 = arith.constant 6 : index
    %c0_17 = arith.constant 0 : index
    %16 = vector.load %arg1[%c0_16, %c6, %c0_17] : memref<1x32x64xbf16, #tpu.memory_space<vmem>>, vector<1x20x64xbf16>
    %17 = vector.shape_cast %16 : vector<1x20x64xbf16> to vector<20x64xbf16>
    %c3 = arith.constant 3 : index
    %c0_18 = arith.constant 0 : index
    %c0_19 = arith.constant 0 : index
    %18 = vector.load %arg2[%c3, %c0_18, %c0_19] : memref<4x64x32xbf16, #tpu.memory_space<vmem>>, vector<1x64x32xbf16>
    %19 = vector.shape_cast %18 : vector<1x64x32xbf16> to vector<64x32xbf16>
    %cst_20 = arith.constant dense<0.000000e+00> : vector<20x32xf32>
    %20 = tpu.matmul %17, %19, %cst_20 {dimension_numbers = #tpu.dot_dimension_numbers<[1], [0], [0], [1], [0, 0, 1, 1], [], []>} : vector<20x64xbf16>, vector<64x32xbf16>, vector<20x32xf32> -> vector<20x32xf32>
    %21 = arith.addf %15, %20 : vector<20x32xf32>
    %22 = arith.addf %10, %21 : vector<20x32xf32>
    %c0_21 = arith.constant 0 : index
    %c0_22 = arith.constant 0 : index
    %23 = vector.load %arg3[%c0_21, %c0_22] : memref<1x32xf32, #tpu.memory_space<vmem>>, vector<1x32xf32>
    %24 = vector.broadcast %23 : vector<1x32xf32> to vector<20x32xf32>
    %25 = arith.addf %22, %24 : vector<20x32xf32>
    %cst_23 = arith.constant 0.000000e+00 : f32
    %26 = vector.broadcast %cst_23 : f32 to vector<20x32xf32>
    %27 = arith.maximumf %25, %26 : vector<20x32xf32>
    %28 = arith.truncf %27 : vector<20x32xf32> to vector<20x32xbf16>
    %c0_24 = arith.constant 0 : index
    %c0_25 = arith.constant 0 : index
    %c0_26 = arith.constant 0 : index
    %29 = vector.load %arg4[%c0_24, %c0_25, %c0_26] : memref<1x20x32xbf16, #tpu.memory_space<vmem>>, vector<1x20x32xbf16>
    %30 = vector.shape_cast %29 : vector<1x20x32xbf16> to vector<20x32xbf16>
    %31 = vector.shape_cast %28 : vector<20x32xbf16> to vector<1x20x32xbf16>
    tpu.vector_store %arg4[%c0_24, %c0_25, %c0_26], %31 {strides = array<i32>} : memref<1x20x32xbf16, #tpu.memory_space<vmem>>, vector<1x20x32xbf16>,
    return
  }
  func.func @transform_0(%arg0: i32) -> (i32, i32, i32) {
    %c0_i32 = arith.constant 0 : i32
    %c0_i32_0 = arith.constant 0 : i32
    %c0_i32_1 = arith.constant 0 : i32
    return %arg0, %c0_i32, %c0_i32_0 : i32, i32, i32
  }
  func.func @transform_1(%arg0: i32) -> (i32, i32, i32) {
    %c0_i32 = arith.constant 0 : i32
    %c0_i32_0 = arith.constant 0 : i32
    %c0_i32_1 = arith.constant 0 : i32
    %c0_i32_2 = arith.constant 0 : i32
    return %c0_i32, %c0_i32_0, %c0_i32_1 : i32, i32, i32
  }
  func.func @transform_2(%arg0: i32) -> (i32, i32) {
    %c0_i32 = arith.constant 0 : i32
    %c0_i32_0 = arith.constant 0 : i32
    %c0_i32_1 = arith.constant 0 : i32
    return %c0_i32, %c0_i32_0 : i32, i32
  }
  func.func @transform_3(%arg0: i32) -> (i32, i32, i32) {
    %c0_i32 = arith.constant 0 : i32
    %c0_i32_0 = arith.constant 0 : i32
    %c0_i32_1 = arith.constant 0 : i32
    return %arg0, %c0_i32, %c0_i32_0 : i32, i32, i32
  }
}

module attributes {stable_mosaic.version = 11 : i64} {
  func.func @_conv_k2_kernel(%arg0: i32, %arg1: memref<1x16x128xbf16, #tpu.memory_space<vmem>>, %arg2: memref<4x128x64xbf16, #tpu.memory_space<vmem>>, %arg3: memref<1x64xf32, #tpu.memory_space<vmem>>, %arg4: memref<1x6x64xbf16, #tpu.memory_space<vmem>>) attributes {dimension_semantics = [#tpu.dimension_semantics<parallel>], iteration_bounds = array<i64: 2>, scalar_prefetch = 0 : i64, scratch_operands = 0 : i64, tpu.core_type = #tpu.core_type<tc>, window_params = [{transform_indices = @transform_0, window_bounds = array<i64: 1, 16, 128>}, {pipeline_mode = #tpu.pipeline_mode<synchronous>, transform_indices = @transform_1, window_bounds = array<i64: 4, 128, 64>}, {pipeline_mode = #tpu.pipeline_mode<synchronous>, transform_indices = @transform_2, window_bounds = array<i64: 1, 64>}, {transform_indices = @transform_3, window_bounds = array<i64: 1, 6, 64>}]} {
    %c0 = arith.constant 0 : index
    %c0_0 = arith.constant 0 : index
    %c0_1 = arith.constant 0 : index
    %0 = vector.load %arg1[%c0, %c0_0, %c0_1] : memref<1x16x128xbf16, #tpu.memory_space<vmem>>, vector<1x6x128xbf16>
    %1 = vector.shape_cast %0 : vector<1x6x128xbf16> to vector<6x128xbf16>
    %c0_2 = arith.constant 0 : index
    %c0_3 = arith.constant 0 : index
    %c0_4 = arith.constant 0 : index
    %2 = vector.load %arg2[%c0_2, %c0_3, %c0_4] : memref<4x128x64xbf16, #tpu.memory_space<vmem>>, vector<1x128x64xbf16>
    %3 = vector.shape_cast %2 : vector<1x128x64xbf16> to vector<128x64xbf16>
    %cst = arith.constant dense<0.000000e+00> : vector<6x64xf32>
    %4 = tpu.matmul %1, %3, %cst {dimension_numbers = #tpu.dot_dimension_numbers<[1], [0], [0], [1], [0, 0, 1, 1], [], []>} : vector<6x128xbf16>, vector<128x64xbf16>, vector<6x64xf32> -> vector<6x64xf32>
    %c0_5 = arith.constant 0 : index
    %c1 = arith.constant 1 : index
    %c0_6 = arith.constant 0 : index
    %5 = vector.load %arg1[%c0_5, %c1, %c0_6] : memref<1x16x128xbf16, #tpu.memory_space<vmem>>, vector<1x6x128xbf16>
    %6 = vector.shape_cast %5 : vector<1x6x128xbf16> to vector<6x128xbf16>
    %c1_7 = arith.constant 1 : index
    %c0_8 = arith.constant 0 : index
    %c0_9 = arith.constant 0 : index
    %7 = vector.load %arg2[%c1_7, %c0_8, %c0_9] : memref<4x128x64xbf16, #tpu.memory_space<vmem>>, vector<1x128x64xbf16>
    %8 = vector.shape_cast %7 : vector<1x128x64xbf16> to vector<128x64xbf16>
    %cst_10 = arith.constant dense<0.000000e+00> : vector<6x64xf32>
    %9 = tpu.matmul %6, %8, %cst_10 {dimension_numbers = #tpu.dot_dimension_numbers<[1], [0], [0], [1], [0, 0, 1, 1], [], []>} : vector<6x128xbf16>, vector<128x64xbf16>, vector<6x64xf32> -> vector<6x64xf32>
    %10 = arith.addf %4, %9 : vector<6x64xf32>
    %c0_11 = arith.constant 0 : index
    %c3 = arith.constant 3 : index
    %c0_12 = arith.constant 0 : index
    %11 = vector.load %arg1[%c0_11, %c3, %c0_12] : memref<1x16x128xbf16, #tpu.memory_space<vmem>>, vector<1x6x128xbf16>
    %12 = vector.shape_cast %11 : vector<1x6x128xbf16> to vector<6x128xbf16>
    %c2 = arith.constant 2 : index
    %c0_13 = arith.constant 0 : index
    %c0_14 = arith.constant 0 : index
    %13 = vector.load %arg2[%c2, %c0_13, %c0_14] : memref<4x128x64xbf16, #tpu.memory_space<vmem>>, vector<1x128x64xbf16>
    %14 = vector.shape_cast %13 : vector<1x128x64xbf16> to vector<128x64xbf16>
    %cst_15 = arith.constant dense<0.000000e+00> : vector<6x64xf32>
    %15 = tpu.matmul %12, %14, %cst_15 {dimension_numbers = #tpu.dot_dimension_numbers<[1], [0], [0], [1], [0, 0, 1, 1], [], []>} : vector<6x128xbf16>, vector<128x64xbf16>, vector<6x64xf32> -> vector<6x64xf32>
    %c0_16 = arith.constant 0 : index
    %c4 = arith.constant 4 : index
    %c0_17 = arith.constant 0 : index
    %16 = vector.load %arg1[%c0_16, %c4, %c0_17] : memref<1x16x128xbf16, #tpu.memory_space<vmem>>, vector<1x6x128xbf16>
    %17 = vector.shape_cast %16 : vector<1x6x128xbf16> to vector<6x128xbf16>
    %c3_18 = arith.constant 3 : index
    %c0_19 = arith.constant 0 : index
    %c0_20 = arith.constant 0 : index
    %18 = vector.load %arg2[%c3_18, %c0_19, %c0_20] : memref<4x128x64xbf16, #tpu.memory_space<vmem>>, vector<1x128x64xbf16>
    %19 = vector.shape_cast %18 : vector<1x128x64xbf16> to vector<128x64xbf16>
    %cst_21 = arith.constant dense<0.000000e+00> : vector<6x64xf32>
    %20 = tpu.matmul %17, %19, %cst_21 {dimension_numbers = #tpu.dot_dimension_numbers<[1], [0], [0], [1], [0, 0, 1, 1], [], []>} : vector<6x128xbf16>, vector<128x64xbf16>, vector<6x64xf32> -> vector<6x64xf32>
    %21 = arith.addf %15, %20 : vector<6x64xf32>
    %22 = arith.addf %10, %21 : vector<6x64xf32>
    %c0_22 = arith.constant 0 : index
    %c0_23 = arith.constant 0 : index
    %23 = vector.load %arg3[%c0_22, %c0_23] : memref<1x64xf32, #tpu.memory_space<vmem>>, vector<1x64xf32>
    %24 = vector.broadcast %23 : vector<1x64xf32> to vector<6x64xf32>
    %25 = arith.addf %22, %24 : vector<6x64xf32>
    %cst_24 = arith.constant 0.000000e+00 : f32
    %26 = vector.broadcast %cst_24 : f32 to vector<6x64xf32>
    %27 = arith.maximumf %25, %26 : vector<6x64xf32>
    %28 = arith.truncf %27 : vector<6x64xf32> to vector<6x64xbf16>
    %c0_25 = arith.constant 0 : index
    %c0_26 = arith.constant 0 : index
    %c0_27 = arith.constant 0 : index
    %29 = vector.load %arg4[%c0_25, %c0_26, %c0_27] : memref<1x6x64xbf16, #tpu.memory_space<vmem>>, vector<1x6x64xbf16>
    %30 = vector.shape_cast %29 : vector<1x6x64xbf16> to vector<6x64xbf16>
    %31 = vector.shape_cast %28 : vector<6x64xbf16> to vector<1x6x64xbf16>
    tpu.vector_store %arg4[%c0_25, %c0_26, %c0_27], %31 {strides = array<i32>} : memref<1x6x64xbf16, #tpu.memory_space<vmem>>, vector<1x6x64xbf16>,
    return
  }
  func.func @transform_0(%arg0: i32) -> (i32, i32, i32) {
    %c0_i32 = arith.constant 0 : i32
    %c0_i32_0 = arith.constant 0 : i32
    %c0_i32_1 = arith.constant 0 : i32
    return %arg0, %c0_i32, %c0_i32_0 : i32, i32, i32
  }
  func.func @transform_1(%arg0: i32) -> (i32, i32, i32) {
    %c0_i32 = arith.constant 0 : i32
    %c0_i32_0 = arith.constant 0 : i32
    %c0_i32_1 = arith.constant 0 : i32
    %c0_i32_2 = arith.constant 0 : i32
    return %c0_i32, %c0_i32_0, %c0_i32_1 : i32, i32, i32
  }
  func.func @transform_2(%arg0: i32) -> (i32, i32) {
    %c0_i32 = arith.constant 0 : i32
    %c0_i32_0 = arith.constant 0 : i32
    %c0_i32_1 = arith.constant 0 : i32
    return %c0_i32, %c0_i32_0 : i32, i32
  }
  func.func @transform_3(%arg0: i32) -> (i32, i32, i32) {
    %c0_i32 = arith.constant 0 : i32
    %c0_i32_0 = arith.constant 0 : i32
    %c0_i32_1 = arith.constant 0 : i32
    return %arg0, %c0_i32, %c0_i32_0 : i32, i32, i32
  }
}

module attributes {stable_mosaic.version = 11 : i64} {
  func.func @_conv_k2_kernel(%arg0: i32, %arg1: memref<1x24x64xbf16, #tpu.memory_space<vmem>>, %arg2: memref<4x64x128xbf16, #tpu.memory_space<vmem>>, %arg3: memref<1x128xf32, #tpu.memory_space<vmem>>, %arg4: memref<1x12x128xbf16, #tpu.memory_space<vmem>>) attributes {dimension_semantics = [#tpu.dimension_semantics<parallel>], iteration_bounds = array<i64: 2>, scalar_prefetch = 0 : i64, scratch_operands = 0 : i64, tpu.core_type = #tpu.core_type<tc>, window_params = [{transform_indices = @transform_0, window_bounds = array<i64: 1, 24, 64>}, {pipeline_mode = #tpu.pipeline_mode<synchronous>, transform_indices = @transform_1, window_bounds = array<i64: 4, 64, 128>}, {pipeline_mode = #tpu.pipeline_mode<synchronous>, transform_indices = @transform_2, window_bounds = array<i64: 1, 128>}, {transform_indices = @transform_3, window_bounds = array<i64: 1, 12, 128>}]} {
    %c0 = arith.constant 0 : index
    %c0_0 = arith.constant 0 : index
    %c0_1 = arith.constant 0 : index
    %0 = vector.load %arg1[%c0, %c0_0, %c0_1] : memref<1x24x64xbf16, #tpu.memory_space<vmem>>, vector<1x12x64xbf16>
    %1 = vector.shape_cast %0 : vector<1x12x64xbf16> to vector<12x64xbf16>
    %c0_2 = arith.constant 0 : index
    %c0_3 = arith.constant 0 : index
    %c0_4 = arith.constant 0 : index
    %2 = vector.load %arg2[%c0_2, %c0_3, %c0_4] : memref<4x64x128xbf16, #tpu.memory_space<vmem>>, vector<1x64x128xbf16>
    %3 = vector.shape_cast %2 : vector<1x64x128xbf16> to vector<64x128xbf16>
    %cst = arith.constant dense<0.000000e+00> : vector<12x128xf32>
    %4 = tpu.matmul %1, %3, %cst {dimension_numbers = #tpu.dot_dimension_numbers<[1], [0], [0], [1], [0, 0, 1, 1], [], []>} : vector<12x64xbf16>, vector<64x128xbf16>, vector<12x128xf32> -> vector<12x128xf32>
    %c0_5 = arith.constant 0 : index
    %c1 = arith.constant 1 : index
    %c0_6 = arith.constant 0 : index
    %5 = vector.load %arg1[%c0_5, %c1, %c0_6] : memref<1x24x64xbf16, #tpu.memory_space<vmem>>, vector<1x12x64xbf16>
    %6 = vector.shape_cast %5 : vector<1x12x64xbf16> to vector<12x64xbf16>
    %c1_7 = arith.constant 1 : index
    %c0_8 = arith.constant 0 : index
    %c0_9 = arith.constant 0 : index
    %7 = vector.load %arg2[%c1_7, %c0_8, %c0_9] : memref<4x64x128xbf16, #tpu.memory_space<vmem>>, vector<1x64x128xbf16>
    %8 = vector.shape_cast %7 : vector<1x64x128xbf16> to vector<64x128xbf16>
    %cst_10 = arith.constant dense<0.000000e+00> : vector<12x128xf32>
    %9 = tpu.matmul %6, %8, %cst_10 {dimension_numbers = #tpu.dot_dimension_numbers<[1], [0], [0], [1], [0, 0, 1, 1], [], []>} : vector<12x64xbf16>, vector<64x128xbf16>, vector<12x128xf32> -> vector<12x128xf32>
    %10 = arith.addf %4, %9 : vector<12x128xf32>
    %c0_11 = arith.constant 0 : index
    %c4 = arith.constant 4 : index
    %c0_12 = arith.constant 0 : index
    %11 = vector.load %arg1[%c0_11, %c4, %c0_12] : memref<1x24x64xbf16, #tpu.memory_space<vmem>>, vector<1x12x64xbf16>
    %12 = vector.shape_cast %11 : vector<1x12x64xbf16> to vector<12x64xbf16>
    %c2 = arith.constant 2 : index
    %c0_13 = arith.constant 0 : index
    %c0_14 = arith.constant 0 : index
    %13 = vector.load %arg2[%c2, %c0_13, %c0_14] : memref<4x64x128xbf16, #tpu.memory_space<vmem>>, vector<1x64x128xbf16>
    %14 = vector.shape_cast %13 : vector<1x64x128xbf16> to vector<64x128xbf16>
    %cst_15 = arith.constant dense<0.000000e+00> : vector<12x128xf32>
    %15 = tpu.matmul %12, %14, %cst_15 {dimension_numbers = #tpu.dot_dimension_numbers<[1], [0], [0], [1], [0, 0, 1, 1], [], []>} : vector<12x64xbf16>, vector<64x128xbf16>, vector<12x128xf32> -> vector<12x128xf32>
    %c0_16 = arith.constant 0 : index
    %c5 = arith.constant 5 : index
    %c0_17 = arith.constant 0 : index
    %16 = vector.load %arg1[%c0_16, %c5, %c0_17] : memref<1x24x64xbf16, #tpu.memory_space<vmem>>, vector<1x12x64xbf16>
    %17 = vector.shape_cast %16 : vector<1x12x64xbf16> to vector<12x64xbf16>
    %c3 = arith.constant 3 : index
    %c0_18 = arith.constant 0 : index
    %c0_19 = arith.constant 0 : index
    %18 = vector.load %arg2[%c3, %c0_18, %c0_19] : memref<4x64x128xbf16, #tpu.memory_space<vmem>>, vector<1x64x128xbf16>
    %19 = vector.shape_cast %18 : vector<1x64x128xbf16> to vector<64x128xbf16>
    %cst_20 = arith.constant dense<0.000000e+00> : vector<12x128xf32>
    %20 = tpu.matmul %17, %19, %cst_20 {dimension_numbers = #tpu.dot_dimension_numbers<[1], [0], [0], [1], [0, 0, 1, 1], [], []>} : vector<12x64xbf16>, vector<64x128xbf16>, vector<12x128xf32> -> vector<12x128xf32>
    %21 = arith.addf %15, %20 : vector<12x128xf32>
    %22 = arith.addf %10, %21 : vector<12x128xf32>
    %c0_21 = arith.constant 0 : index
    %c0_22 = arith.constant 0 : index
    %23 = vector.load %arg3[%c0_21, %c0_22] : memref<1x128xf32, #tpu.memory_space<vmem>>, vector<1x128xf32>
    %24 = vector.broadcast %23 : vector<1x128xf32> to vector<12x128xf32>
    %25 = arith.addf %22, %24 : vector<12x128xf32>
    %cst_23 = arith.constant 0.000000e+00 : f32
    %26 = vector.broadcast %cst_23 : f32 to vector<12x128xf32>
    %27 = arith.maximumf %25, %26 : vector<12x128xf32>
    %28 = arith.truncf %27 : vector<12x128xf32> to vector<12x128xbf16>
    %c0_24 = arith.constant 0 : index
    %c0_25 = arith.constant 0 : index
    %c0_26 = arith.constant 0 : index
    %29 = vector.load %arg4[%c0_24, %c0_25, %c0_26] : memref<1x12x128xbf16, #tpu.memory_space<vmem>>, vector<1x12x128xbf16>
    %30 = vector.shape_cast %29 : vector<1x12x128xbf16> to vector<12x128xbf16>
    %31 = vector.shape_cast %28 : vector<12x128xbf16> to vector<1x12x128xbf16>
    tpu.vector_store %arg4[%c0_24, %c0_25, %c0_26], %31 {strides = array<i32>} : memref<1x12x128xbf16, #tpu.memory_space<vmem>>, vector<1x12x128xbf16>,
    return
  }
  func.func @transform_0(%arg0: i32) -> (i32, i32, i32) {
    %c0_i32 = arith.constant 0 : i32
    %c0_i32_0 = arith.constant 0 : i32
    %c0_i32_1 = arith.constant 0 : i32
    return %arg0, %c0_i32, %c0_i32_0 : i32, i32, i32
  }
  func.func @transform_1(%arg0: i32) -> (i32, i32, i32) {
    %c0_i32 = arith.constant 0 : i32
    %c0_i32_0 = arith.constant 0 : i32
    %c0_i32_1 = arith.constant 0 : i32
    %c0_i32_2 = arith.constant 0 : i32
    return %c0_i32, %c0_i32_0, %c0_i32_1 : i32, i32, i32
  }
  func.func @transform_2(%arg0: i32) -> (i32, i32) {
    %c0_i32 = arith.constant 0 : i32
    %c0_i32_0 = arith.constant 0 : i32
    %c0_i32_1 = arith.constant 0 : i32
    return %c0_i32, %c0_i32_0 : i32, i32
  }
  func.func @transform_3(%arg0: i32) -> (i32, i32, i32) {
    %c0_i32 = arith.constant 0 : i32
    %c0_i32_0 = arith.constant 0 : i32
    %c0_i32_1 = arith.constant 0 : i32
    return %arg0, %c0_i32, %c0_i32_0 : i32, i32, i32
  }
}

module attributes {stable_mosaic.version = 11 : i64} {
  func.func @_conv_k2_kernel(%arg0: i32, %arg1: memref<1x40x32xbf16, #tpu.memory_space<vmem>>, %arg2: memref<4x32x64xbf16, #tpu.memory_space<vmem>>, %arg3: memref<1x64xf32, #tpu.memory_space<vmem>>, %arg4: memref<1x30x64xbf16, #tpu.memory_space<vmem>>) attributes {dimension_semantics = [#tpu.dimension_semantics<parallel>], iteration_bounds = array<i64: 2>, scalar_prefetch = 0 : i64, scratch_operands = 0 : i64, tpu.core_type = #tpu.core_type<tc>, window_params = [{transform_indices = @transform_0, window_bounds = array<i64: 1, 40, 32>}, {pipeline_mode = #tpu.pipeline_mode<synchronous>, transform_indices = @transform_1, window_bounds = array<i64: 4, 32, 64>}, {pipeline_mode = #tpu.pipeline_mode<synchronous>, transform_indices = @transform_2, window_bounds = array<i64: 1, 64>}, {transform_indices = @transform_3, window_bounds = array<i64: 1, 30, 64>}]} {
    %c0 = arith.constant 0 : index
    %c0_0 = arith.constant 0 : index
    %c0_1 = arith.constant 0 : index
    %0 = vector.load %arg1[%c0, %c0_0, %c0_1] : memref<1x40x32xbf16, #tpu.memory_space<vmem>>, vector<1x30x32xbf16>
    %1 = vector.shape_cast %0 : vector<1x30x32xbf16> to vector<30x32xbf16>
    %c0_2 = arith.constant 0 : index
    %c0_3 = arith.constant 0 : index
    %c0_4 = arith.constant 0 : index
    %2 = vector.load %arg2[%c0_2, %c0_3, %c0_4] : memref<4x32x64xbf16, #tpu.memory_space<vmem>>, vector<1x32x64xbf16>
    %3 = vector.shape_cast %2 : vector<1x32x64xbf16> to vector<32x64xbf16>
    %cst = arith.constant dense<0.000000e+00> : vector<30x64xf32>
    %4 = tpu.matmul %1, %3, %cst {dimension_numbers = #tpu.dot_dimension_numbers<[1], [0], [0], [1], [0, 0, 1, 1], [], []>} : vector<30x32xbf16>, vector<32x64xbf16>, vector<30x64xf32> -> vector<30x64xf32>
    %c0_5 = arith.constant 0 : index
    %c1 = arith.constant 1 : index
    %c0_6 = arith.constant 0 : index
    %5 = vector.load %arg1[%c0_5, %c1, %c0_6] : memref<1x40x32xbf16, #tpu.memory_space<vmem>>, vector<1x30x32xbf16>
    %6 = vector.shape_cast %5 : vector<1x30x32xbf16> to vector<30x32xbf16>
    %c1_7 = arith.constant 1 : index
    %c0_8 = arith.constant 0 : index
    %c0_9 = arith.constant 0 : index
    %7 = vector.load %arg2[%c1_7, %c0_8, %c0_9] : memref<4x32x64xbf16, #tpu.memory_space<vmem>>, vector<1x32x64xbf16>
    %8 = vector.shape_cast %7 : vector<1x32x64xbf16> to vector<32x64xbf16>
    %cst_10 = arith.constant dense<0.000000e+00> : vector<30x64xf32>
    %9 = tpu.matmul %6, %8, %cst_10 {dimension_numbers = #tpu.dot_dimension_numbers<[1], [0], [0], [1], [0, 0, 1, 1], [], []>} : vector<30x32xbf16>, vector<32x64xbf16>, vector<30x64xf32> -> vector<30x64xf32>
    %10 = arith.addf %4, %9 : vector<30x64xf32>
    %c0_11 = arith.constant 0 : index
    %c6 = arith.constant 6 : index
    %c0_12 = arith.constant 0 : index
    %11 = vector.load %arg1[%c0_11, %c6, %c0_12] : memref<1x40x32xbf16, #tpu.memory_space<vmem>>, vector<1x30x32xbf16>
    %12 = vector.shape_cast %11 : vector<1x30x32xbf16> to vector<30x32xbf16>
    %c2 = arith.constant 2 : index
    %c0_13 = arith.constant 0 : index
    %c0_14 = arith.constant 0 : index
    %13 = vector.load %arg2[%c2, %c0_13, %c0_14] : memref<4x32x64xbf16, #tpu.memory_space<vmem>>, vector<1x32x64xbf16>
    %14 = vector.shape_cast %13 : vector<1x32x64xbf16> to vector<32x64xbf16>
    %cst_15 = arith.constant dense<0.000000e+00> : vector<30x64xf32>
    %15 = tpu.matmul %12, %14, %cst_15 {dimension_numbers = #tpu.dot_dimension_numbers<[1], [0], [0], [1], [0, 0, 1, 1], [], []>} : vector<30x32xbf16>, vector<32x64xbf16>, vector<30x64xf32> -> vector<30x64xf32>
    %c0_16 = arith.constant 0 : index
    %c7 = arith.constant 7 : index
    %c0_17 = arith.constant 0 : index
    %16 = vector.load %arg1[%c0_16, %c7, %c0_17] : memref<1x40x32xbf16, #tpu.memory_space<vmem>>, vector<1x30x32xbf16>
    %17 = vector.shape_cast %16 : vector<1x30x32xbf16> to vector<30x32xbf16>
    %c3 = arith.constant 3 : index
    %c0_18 = arith.constant 0 : index
    %c0_19 = arith.constant 0 : index
    %18 = vector.load %arg2[%c3, %c0_18, %c0_19] : memref<4x32x64xbf16, #tpu.memory_space<vmem>>, vector<1x32x64xbf16>
    %19 = vector.shape_cast %18 : vector<1x32x64xbf16> to vector<32x64xbf16>
    %cst_20 = arith.constant dense<0.000000e+00> : vector<30x64xf32>
    %20 = tpu.matmul %17, %19, %cst_20 {dimension_numbers = #tpu.dot_dimension_numbers<[1], [0], [0], [1], [0, 0, 1, 1], [], []>} : vector<30x32xbf16>, vector<32x64xbf16>, vector<30x64xf32> -> vector<30x64xf32>
    %21 = arith.addf %15, %20 : vector<30x64xf32>
    %22 = arith.addf %10, %21 : vector<30x64xf32>
    %c0_21 = arith.constant 0 : index
    %c0_22 = arith.constant 0 : index
    %23 = vector.load %arg3[%c0_21, %c0_22] : memref<1x64xf32, #tpu.memory_space<vmem>>, vector<1x64xf32>
    %24 = vector.broadcast %23 : vector<1x64xf32> to vector<30x64xf32>
    %25 = arith.addf %22, %24 : vector<30x64xf32>
    %cst_23 = arith.constant 0.000000e+00 : f32
    %26 = vector.broadcast %cst_23 : f32 to vector<30x64xf32>
    %27 = arith.maximumf %25, %26 : vector<30x64xf32>
    %28 = arith.truncf %27 : vector<30x64xf32> to vector<30x64xbf16>
    %c0_24 = arith.constant 0 : index
    %c0_25 = arith.constant 0 : index
    %c0_26 = arith.constant 0 : index
    %29 = vector.load %arg4[%c0_24, %c0_25, %c0_26] : memref<1x30x64xbf16, #tpu.memory_space<vmem>>, vector<1x30x64xbf16>
    %30 = vector.shape_cast %29 : vector<1x30x64xbf16> to vector<30x64xbf16>
    %31 = vector.shape_cast %28 : vector<30x64xbf16> to vector<1x30x64xbf16>
    tpu.vector_store %arg4[%c0_24, %c0_25, %c0_26], %31 {strides = array<i32>} : memref<1x30x64xbf16, #tpu.memory_space<vmem>>, vector<1x30x64xbf16>,
    return
  }
  func.func @transform_0(%arg0: i32) -> (i32, i32, i32) {
    %c0_i32 = arith.constant 0 : i32
    %c0_i32_0 = arith.constant 0 : i32
    %c0_i32_1 = arith.constant 0 : i32
    return %arg0, %c0_i32, %c0_i32_0 : i32, i32, i32
  }
  func.func @transform_1(%arg0: i32) -> (i32, i32, i32) {
    %c0_i32 = arith.constant 0 : i32
    %c0_i32_0 = arith.constant 0 : i32
    %c0_i32_1 = arith.constant 0 : i32
    %c0_i32_2 = arith.constant 0 : i32
    return %c0_i32, %c0_i32_0, %c0_i32_1 : i32, i32, i32
  }
  func.func @transform_2(%arg0: i32) -> (i32, i32) {
    %c0_i32 = arith.constant 0 : i32
    %c0_i32_0 = arith.constant 0 : i32
    %c0_i32_1 = arith.constant 0 : i32
    return %c0_i32, %c0_i32_0 : i32, i32
  }
  func.func @transform_3(%arg0: i32) -> (i32, i32, i32) {
    %c0_i32 = arith.constant 0 : i32
    %c0_i32_0 = arith.constant 0 : i32
    %c0_i32_1 = arith.constant 0 : i32
    return %arg0, %c0_i32, %c0_i32_0 : i32, i32, i32
  }
}

module attributes {stable_mosaic.version = 11 : i64} {
  func.func @_conv_k2_kernel(%arg0: i32, %arg1: memref<1x104x17xf32, #tpu.memory_space<vmem>>, %arg2: memref<4x17x12xf32, #tpu.memory_space<vmem>>, %arg3: memref<1x12xf32, #tpu.memory_space<vmem>>, %arg4: memref<1x90x12xf32, #tpu.memory_space<vmem>>) attributes {dimension_semantics = [#tpu.dimension_semantics<parallel>], iteration_bounds = array<i64: 2>, scalar_prefetch = 0 : i64, scratch_operands = 0 : i64, tpu.core_type = #tpu.core_type<tc>, window_params = [{transform_indices = @transform_0, window_bounds = array<i64: 1, 104, 17>}, {pipeline_mode = #tpu.pipeline_mode<synchronous>, transform_indices = @transform_1, window_bounds = array<i64: 4, 17, 12>}, {pipeline_mode = #tpu.pipeline_mode<synchronous>, transform_indices = @transform_2, window_bounds = array<i64: 1, 12>}, {transform_indices = @transform_3, window_bounds = array<i64: 1, 90, 12>}]} {
    %c0 = arith.constant 0 : index
    %c0_0 = arith.constant 0 : index
    %c0_1 = arith.constant 0 : index
    %0 = vector.load %arg1[%c0, %c0_0, %c0_1] : memref<1x104x17xf32, #tpu.memory_space<vmem>>, vector<1x90x17xf32>
    %1 = vector.shape_cast %0 : vector<1x90x17xf32> to vector<90x17xf32>
    %c0_2 = arith.constant 0 : index
    %c0_3 = arith.constant 0 : index
    %c0_4 = arith.constant 0 : index
    %2 = vector.load %arg2[%c0_2, %c0_3, %c0_4] : memref<4x17x12xf32, #tpu.memory_space<vmem>>, vector<1x17x12xf32>
    %3 = vector.shape_cast %2 : vector<1x17x12xf32> to vector<17x12xf32>
    %cst = arith.constant dense<0.000000e+00> : vector<90x12xf32>
    %4 = tpu.matmul %1, %3, %cst {dimension_numbers = #tpu.dot_dimension_numbers<[1], [0], [0], [1], [0, 0, 1, 1], [], []>} : vector<90x17xf32>, vector<17x12xf32>, vector<90x12xf32> -> vector<90x12xf32>
    %c0_5 = arith.constant 0 : index
    %c1 = arith.constant 1 : index
    %c0_6 = arith.constant 0 : index
    %5 = vector.load %arg1[%c0_5, %c1, %c0_6] : memref<1x104x17xf32, #tpu.memory_space<vmem>>, vector<1x90x17xf32>
    %6 = vector.shape_cast %5 : vector<1x90x17xf32> to vector<90x17xf32>
    %c1_7 = arith.constant 1 : index
    %c0_8 = arith.constant 0 : index
    %c0_9 = arith.constant 0 : index
    %7 = vector.load %arg2[%c1_7, %c0_8, %c0_9] : memref<4x17x12xf32, #tpu.memory_space<vmem>>, vector<1x17x12xf32>
    %8 = vector.shape_cast %7 : vector<1x17x12xf32> to vector<17x12xf32>
    %cst_10 = arith.constant dense<0.000000e+00> : vector<90x12xf32>
    %9 = tpu.matmul %6, %8, %cst_10 {dimension_numbers = #tpu.dot_dimension_numbers<[1], [0], [0], [1], [0, 0, 1, 1], [], []>} : vector<90x17xf32>, vector<17x12xf32>, vector<90x12xf32> -> vector<90x12xf32>
    %10 = arith.addf %4, %9 : vector<90x12xf32>
    %c0_11 = arith.constant 0 : index
    %c10 = arith.constant 10 : index
    %c0_12 = arith.constant 0 : index
    %11 = vector.load %arg1[%c0_11, %c10, %c0_12] : memref<1x104x17xf32, #tpu.memory_space<vmem>>, vector<1x90x17xf32>
    %12 = vector.shape_cast %11 : vector<1x90x17xf32> to vector<90x17xf32>
    %c2 = arith.constant 2 : index
    %c0_13 = arith.constant 0 : index
    %c0_14 = arith.constant 0 : index
    %13 = vector.load %arg2[%c2, %c0_13, %c0_14] : memref<4x17x12xf32, #tpu.memory_space<vmem>>, vector<1x17x12xf32>
    %14 = vector.shape_cast %13 : vector<1x17x12xf32> to vector<17x12xf32>
    %cst_15 = arith.constant dense<0.000000e+00> : vector<90x12xf32>
    %15 = tpu.matmul %12, %14, %cst_15 {dimension_numbers = #tpu.dot_dimension_numbers<[1], [0], [0], [1], [0, 0, 1, 1], [], []>} : vector<90x17xf32>, vector<17x12xf32>, vector<90x12xf32> -> vector<90x12xf32>
    %c0_16 = arith.constant 0 : index
    %c11 = arith.constant 11 : index
    %c0_17 = arith.constant 0 : index
    %16 = vector.load %arg1[%c0_16, %c11, %c0_17] : memref<1x104x17xf32, #tpu.memory_space<vmem>>, vector<1x90x17xf32>
    %17 = vector.shape_cast %16 : vector<1x90x17xf32> to vector<90x17xf32>
    %c3 = arith.constant 3 : index
    %c0_18 = arith.constant 0 : index
    %c0_19 = arith.constant 0 : index
    %18 = vector.load %arg2[%c3, %c0_18, %c0_19] : memref<4x17x12xf32, #tpu.memory_space<vmem>>, vector<1x17x12xf32>
    %19 = vector.shape_cast %18 : vector<1x17x12xf32> to vector<17x12xf32>
    %cst_20 = arith.constant dense<0.000000e+00> : vector<90x12xf32>
    %20 = tpu.matmul %17, %19, %cst_20 {dimension_numbers = #tpu.dot_dimension_numbers<[1], [0], [0], [1], [0, 0, 1, 1], [], []>} : vector<90x17xf32>, vector<17x12xf32>, vector<90x12xf32> -> vector<90x12xf32>
    %21 = arith.addf %15, %20 : vector<90x12xf32>
    %22 = arith.addf %10, %21 : vector<90x12xf32>
    %c0_21 = arith.constant 0 : index
    %c0_22 = arith.constant 0 : index
    %23 = vector.load %arg3[%c0_21, %c0_22] : memref<1x12xf32, #tpu.memory_space<vmem>>, vector<1x12xf32>
    %24 = vector.broadcast %23 : vector<1x12xf32> to vector<90x12xf32>
    %25 = arith.addf %22, %24 : vector<90x12xf32>
    %c0_23 = arith.constant 0 : index
    %c0_24 = arith.constant 0 : index
    %c0_25 = arith.constant 0 : index
    %26 = vector.load %arg4[%c0_23, %c0_24, %c0_25] : memref<1x90x12xf32, #tpu.memory_space<vmem>>, vector<1x90x12xf32>
    %27 = vector.shape_cast %26 : vector<1x90x12xf32> to vector<90x12xf32>
    %28 = vector.shape_cast %25 : vector<90x12xf32> to vector<1x90x12xf32>
    tpu.vector_store %arg4[%c0_23, %c0_24, %c0_25], %28 {strides = array<i32>} : memref<1x90x12xf32, #tpu.memory_space<vmem>>, vector<1x90x12xf32>,
    return
  }
  func.func @transform_0(%arg0: i32) -> (i32, i32, i32) {
    %c0_i32 = arith.constant 0 : i32
    %c0_i32_0 = arith.constant 0 : i32
    %c0_i32_1 = arith.constant 0 : i32
    return %arg0, %c0_i32, %c0_i32_0 : i32, i32, i32
  }
  func.func @transform_1(%arg0: i32) -> (i32, i32, i32) {
    %c0_i32 = arith.constant 0 : i32
    %c0_i32_0 = arith.constant 0 : i32
    %c0_i32_1 = arith.constant 0 : i32
    %c0_i32_2 = arith.constant 0 : i32
    return %c0_i32, %c0_i32_0, %c0_i32_1 : i32, i32, i32
  }
  func.func @transform_2(%arg0: i32) -> (i32, i32) {
    %c0_i32 = arith.constant 0 : i32
    %c0_i32_0 = arith.constant 0 : i32
    %c0_i32_1 = arith.constant 0 : i32
    return %c0_i32, %c0_i32_0 : i32, i32
  }
  func.func @transform_3(%arg0: i32) -> (i32, i32, i32) {
    %c0_i32 = arith.constant 0 : i32
    %c0_i32_0 = arith.constant 0 : i32
    %c0_i32_1 = arith.constant 0 : i32
    return %arg0, %c0_i32, %c0_i32_0 : i32, i32, i32
  }
}

</mosaic_0001>

<llo_original>
// kernel: baseline_forward.16
$region0: #{baseline_forward.16}
  #allocation0 [shape = 'u32[]', space=smem, size = 0x4, offset = 0x4, fixed_abs, tag = 'smem constant byte address 0x4 - core index']
  #allocation1 [shape = 'u32[72,128]{1,0:T(1,128)}', space=vmem, size = 0x9000, scoped, tag = 'internal scratch']
  #allocation2 [shape = 'u32[2048]{0}', space=vmem, size = 0x2000, scoped, tag = 'scoped memory for baseline_forward.16']
  #allocation3 [shape = 'u32[2048]{0}', space=vmem, size = 0x2000, scoped, tag = 'scoped memory for baseline_forward.16']
  #allocation4 [shape = 'u32[2048]{0}', space=vmem, size = 0x2000, scoped, tag = 'scoped memory for baseline_forward.16']
  #allocation5 [shape = 'u32[2048]{0}', space=vmem, size = 0x2000, scoped, tag = 'scoped memory for baseline_forward.16']
  #allocation6 [shape = 'u32[2048]{0}', space=vmem, size = 0x2000, scoped, tag = 'scoped memory for baseline_forward.16']
  #allocation7 [shape = 'u32[2048]{0}', space=vmem, size = 0x2000, scoped, tag = 'scoped memory for baseline_forward.16']
  #allocation8 [shape = 'u32[2048]{0}', space=vmem, size = 0x2000, scoped, tag = 'scoped memory for baseline_forward.16']
  #allocation9 [shape = 'u32[2048]{0}', space=vmem, size = 0x2000, scoped, tag = 'scoped memory for baseline_forward.16']
  #allocation10 [shape = 'u32[2048]{0}', space=vmem, size = 0x2000, scoped, tag = 'scoped memory for baseline_forward.16']
  #allocation11 [shape = 'u32[2048]{0}', space=vmem, size = 0x2000, scoped, tag = 'scoped memory for baseline_forward.16']
  #allocation12 [shape = 'u32[2048]{0}', space=vmem, size = 0x2000, scoped, tag = 'scoped memory for baseline_forward.16']
  #allocation13 [shape = 'u32[2048]{0}', space=vmem, size = 0x2000, scoped, tag = 'scoped memory for baseline_forward.16']
  #allocation14 [shape = 'u32[2048]{0}', space=vmem, size = 0x2000, scoped, tag = 'scoped memory for baseline_forward.16']
  #allocation15 [shape = 'u32[2048]{0}', space=vmem, size = 0x2000, scoped, tag = 'scoped memory for baseline_forward.16']
  #allocation16 [shape = 'u32[2048]{0}', space=vmem, size = 0x2000, scoped, tag = 'scoped memory for baseline_forward.16']
  #allocation17 [shape = 'u32[2048]{0}', space=vmem, size = 0x2000, scoped, tag = 'scoped memory for baseline_forward.16']
  #allocation18 [shape = 'u32[2048]{0}', space=vmem, size = 0x2000, scoped, tag = 'scoped memory for baseline_forward.16']
  #allocation19 [shape = 'u32[2048]{0}', space=vmem, size = 0x2000, scoped, tag = 'scoped memory for baseline_forward.16']
  #allocation20 [shape = 'u32[2048]{0}', space=vmem, size = 0x2000, scoped, tag = 'scoped memory for baseline_forward.16']
  #allocation21 [shape = 'u32[2048]{0}', space=vmem, size = 0x2000, scoped, tag = 'scoped memory for baseline_forward.16']
  #allocation22 [shape = 'u32[2048]{0}', space=vmem, size = 0x2000, scoped, tag = 'scoped memory for baseline_forward.16']
  #allocation23 [shape = 'u32[2048]{0}', space=vmem, size = 0x2000, scoped, tag = 'scoped memory for baseline_forward.16']
  #allocation24 [shape = 'u32[2048]{0}', space=vmem, size = 0x2000, scoped, tag = 'scoped memory for baseline_forward.16']
  #allocation25 [shape = 'u32[2048]{0}', space=vmem, size = 0x2000, scoped, tag = 'scoped memory for baseline_forward.16']
  #allocation26 [shape = 'u32[2048]{0}', space=vmem, size = 0x2000, scoped, tag = 'scoped memory for baseline_forward.16']
  %s0 = inlined_call_operand.vmem [shape: bf16[2,81,12], index: 0, kind: input, shape index: {}]
  %s1 = inlined_call_operand.<no memory space> [shape: bf16[], index: 1, kind: input, shape index: {}]
  %s2 = inlined_call_operand.vmem [shape: bf16[1,12,16], index: 2, kind: input, shape index: {}]
  %s3 = inlined_call_operand.<no memory space> [shape: bf16[], index: 3, kind: input, shape index: {}]
  %s4 = inlined_call_operand.vmem [shape: bf16[1,12,16], index: 4, kind: input, shape index: {}]
  %s5 = inlined_call_operand.vmem [shape: bf16[1,12,16], index: 5, kind: input, shape index: {}]
  %s6 = inlined_call_operand.vmem [shape: bf16[1,12,16], index: 6, kind: input, shape index: {}]
  %s7 = inlined_call_operand.vmem [shape: f32[16], index: 7, kind: input, shape index: {}]
  %s8 = inlined_call_operand.vmem [shape: bf16[2,72,16], index: 8, kind: output, shape index: {}]
  %s9 = sld [smem:[#allocation0]]
  $region57: #{baseline_forward.16} parent=0
    _
  %s11 = ssub.s32 1, %s9
  %s12 = scalar_select 0, %s11, %s9
  %v13 = vstv %s1
  %v14 = vunpack.i.l.bf16 %v13
  %v16 = vunpack.i.h.bf16 %v13
  %v18 = vstv %s3
  %v19 = vunpack.i.l.bf16 %v18
  %v21 = vunpack.i.h.bf16 %v18
  %v23 = vstv %s3
  %v24 = vunpack.i.l.bf16 %v23
  %v26 = vunpack.i.h.bf16 %v23
  %v28 = vstv %s3
  %v29 = vunpack.i.l.bf16 %v28
  %v31 = vunpack.i.h.bf16 %v28
  %v33 = vstv %s3
  %v34 = vunpack.i.l.bf16 %v33
  %v36 = vunpack.i.h.bf16 %v33
  loop: start=0, step=1, limit=4
  $region2: #{baseline_forward.16} parent=0 // loop_pre_header
    _
  $region3: #{baseline_forward.16} parent=0 // loop_header
    %s39 = sphi 0, %s43
    %p40 = scmp.ge.s32.totalorder %s39, 4
    %s49 = sphi 0, %s51
    %s52 = sphi 0, %s49
    %s53 = sphi 0, %s52
    %s69 = sphi 0, %s53
    %s77 = sphi 0, %s79
    %s80 = sphi 0, %s77
    %s81 = sphi 0, %s80
    %s97 = sphi 0, %s81
    %s105 = sphi 0, %s107
    %s108 = sphi 0, %s105
    %s109 = sphi 0, %s108
    %s125 = sphi 0, %s109
    %s133 = sphi 0, %s135
    %s136 = sphi 0, %s133
    %s137 = sphi 0, %s136
    %s153 = sphi 0, %s137
    %s157 = sphi 0, %s157
    %s159 = sphi 0, %s157
    %s160 = sphi 0, %s159
    %s174 = sphi 0, %s160
    %s178 = sphi 0, %s178
    %s180 = sphi 0, %s178
    %s181 = sphi 0, %s180
    %s195 = sphi 0, %s181
    %s201 = sphi 0, %s203
    %s204 = sphi 0, %s201
    %s205 = sphi 0, %s204
    %s221 = sphi 0, %s205
  $region4: #{baseline_forward.16} parent=0 // loop_header_branch
    %42 = sbr.rel (%p40) target = $region8
  $region5: #{baseline_forward.16} parent=0 // loop_body
    %s44 = ssub.s32 %s39, 1
    %s45 = ssub.s32 %s39, 2
    %s46 = sadd.s32 %s39, 1
    %s47 = ssub.s32 %s39, %s46
    %p48 = scmp.eq.s32.totalorder %s47, 0
    %s50 = sadd.s32 %s49, 1
    %s51 = scalar_select %p48, %s49, %s50
    %p54 = pneg %p48
    %p55 = scmp.eq.s32.totalorder %s39, 1
    %p56 = por %p54, %p55
    %p57 = scmp.ne.s32.totalorder %s49, %s52
    %p58 = scmp.eq.s32.totalorder %s39, 0
    %p59 = por %p57, %p58
    %p60 = scmp.ne.s32.totalorder %s49, %s52
    %p61 = scmp.eq.s32.totalorder %s44, 1
    %p62 = por %p60, %p61
    %p63 = scmp.ne.s32.totalorder %s52, %s53
    %p64 = scmp.eq.s32.totalorder %s44, 0
    %p65 = por %p63, %p64
    %p66 = scmp.ne.s32.totalorder %s52, %s53
    %p67 = scmp.eq.s32.totalorder %s45, 1
    %p68 = por %p66, %p67
    %p70 = scmp.ne.s32.totalorder %s53, %s69
    %p71 = scmp.eq.s32.totalorder %s45, 0
    %p72 = por %p70, %p71
    %s75 = ssub.s32 0, 0
    %p76 = scmp.eq.s32.totalorder %s75, 0
    %s78 = sadd.s32 %s77, 1
    %s79 = scalar_select %p76, %s77, %s78
    %p82 = pneg %p76
    %p83 = scmp.eq.s32.totalorder %s39, 1
    %p84 = por %p82, %p83
    %p85 = scmp.ne.s32.totalorder %s77, %s80
    %p86 = scmp.eq.s32.totalorder %s39, 0
    %p87 = por %p85, %p86
    %p88 = scmp.ne.s32.totalorder %s77, %s80
    %p89 = scmp.eq.s32.totalorder %s44, 1
    %p90 = por %p88, %p89
    %p91 = scmp.ne.s32.totalorder %s80, %s81
    %p92 = scmp.eq.s32.totalorder %s44, 0
    %p93 = por %p91, %p92
    %p94 = scmp.ne.s32.totalorder %s80, %s81
    %p95 = scmp.eq.s32.totalorder %s45, 1
    %p96 = por %p94, %p95
    %p98 = scmp.ne.s32.totalorder %s81, %s97
    %p99 = scmp.eq.s32.totalorder %s45, 0
    %p100 = por %p98, %p99
    %s103 = ssub.s32 0, 0
    %p104 = scmp.eq.s32.totalorder %s103, 0
    %s106 = sadd.s32 %s105, 1
    %s107 = scalar_select %p104, %s105, %s106
    %p110 = pneg %p104
    %p111 = scmp.eq.s32.totalorder %s39, 1
    %p112 = por %p110, %p111
    %p113 = scmp.ne.s32.totalorder %s105, %s108
    %p114 = scmp.eq.s32.totalorder %s39, 0
    %p115 = por %p113, %p114
    %p116 = scmp.ne.s32.totalorder %s105, %s108
    %p117 = scmp.eq.s32.totalorder %s44, 1
    %p118 = por %p116, %p117
    %p119 = scmp.ne.s32.totalorder %s108, %s109
    %p120 = scmp.eq.s32.totalorder %s44, 0
    %p121 = por %p119, %p120
    %p122 = scmp.ne.s32.totalorder %s108, %s109
    %p123 = scmp.eq.s32.totalorder %s45, 1
    %p124 = por %p122, %p123
    %p126 = scmp.ne.s32.totalorder %s109, %s125
    %p127 = scmp.eq.s32.totalorder %s45, 0
    %p128 = por %p126, %p127
    %s131 = ssub.s32 0, 0
    %p132 = scmp.eq.s32.totalorder %s131, 0
    %s134 = sadd.s32 %s133, 1
    %s135 = scalar_select %p132, %s133, %s134
    %p138 = pneg %p132
    %p139 = scmp.eq.s32.totalorder %s39, 1
    %p140 = por %p138, %p139
    %p141 = scmp.ne.s32.totalorder %s133, %s136
    %p142 = scmp.eq.s32.totalorder %s39, 0
    %p143 = por %p141, %p142
    %p144 = scmp.ne.s32.totalorder %s133, %s136
    %p145 = scmp.eq.s32.totalorder %s44, 1
    %p146 = por %p144, %p145
    %p147 = scmp.ne.s32.totalorder %s136, %s137
    %p148 = scmp.eq.s32.totalorder %s44, 0
    %p149 = por %p147, %p148
    %p150 = scmp.ne.s32.totalorder %s136, %s137
    %p151 = scmp.eq.s32.totalorder %s45, 1
    %p152 = por %p150, %p151
    %p154 = scmp.ne.s32.totalorder %s137, %s153
    %p155 = scmp.eq.s32.totalorder %s45, 0
    %p156 = por %p154, %p155
    %s158 = sadd.s32 %s157, 1
    %p161 = scmp.eq.s32.totalorder %s39, 1
    %p162 = scmp.ne.s32.totalorder %s157, %s159
    %p163 = scmp.eq.s32.totalorder %s39, 0
    %p164 = por %p162, %p163
    %p165 = scmp.ne.s32.totalorder %s157, %s159
    %p166 = scmp.eq.s32.totalorder %s44, 1
    %p167 = por %p165, %p166
    %p168 = scmp.ne.s32.totalorder %s159, %s160
    %p169 = scmp.eq.s32.totalorder %s44, 0
    %p170 = por %p168, %p169
    %p171 = scmp.ne.s32.totalorder %s159, %s160
    %p172 = scmp.eq.s32.totalorder %s45, 1
    %p173 = por %p171, %p172
    %p175 = scmp.ne.s32.totalorder %s160, %s174
    %p176 = scmp.eq.s32.totalorder %s45, 0
    %p177 = por %p175, %p176
    %s179 = sadd.s32 %s178, 1
    %p182 = scmp.eq.s32.totalorder %s39, 1
    %p183 = scmp.ne.s32.totalorder %s178, %s180
    %p184 = scmp.eq.s32.totalorder %s39, 0
    %p185 = por %p183, %p184
    %p186 = scmp.ne.s32.totalorder %s178, %s180
    %p187 = scmp.eq.s32.totalorder %s44, 1
    %p188 = por %p186, %p187
    %p189 = scmp.ne.s32.totalorder %s180, %s181
    %p190 = scmp.eq.s32.totalorder %s44, 0
    %p191 = por %p189, %p190
    %p192 = scmp.ne.s32.totalorder %s180, %s181
    %p193 = scmp.eq.s32.totalorder %s45, 1
    %p194 = por %p192, %p193
    %p196 = scmp.ne.s32.totalorder %s181, %s195
    %p197 = scmp.eq.s32.totalorder %s45, 0
    %p198 = por %p196, %p197
    %s199 = ssub.s32 %s39, %s46
    %p200 = scmp.eq.s32.totalorder %s199, 0
    %s202 = sadd.s32 %s201, 1
    %s203 = scalar_select %p200, %s201, %s202
    %p206 = pneg %p200
    %p207 = scmp.eq.s32.totalorder %s39, 1
    %p208 = por %p206, %p207
    %p209 = scmp.ne.s32.totalorder %s201, %s204
    %p210 = scmp.eq.s32.totalorder %s39, 0
    %p211 = por %p209, %p210
    %p212 = scmp.ne.s32.totalorder %s201, %s204
    %p213 = scmp.eq.s32.totalorder %s44, 1
    %p214 = por %p212, %p213
    %p215 = scmp.ne.s32.totalorder %s204, %s205
    %p216 = scmp.eq.s32.totalorder %s44, 0
    %p217 = por %p215, %p216
    %p218 = scmp.ne.s32.totalorder %s204, %s205
    %p219 = scmp.eq.s32.totalorder %s45, 1
    %p220 = por %p218, %p219
    %p222 = scmp.ne.s32.totalorder %s205, %s221
    %p223 = scmp.eq.s32.totalorder %s45, 0
    %p224 = por %p222, %p223
    %p225 = scmp.le.s32.totalorder 1, %s39
    %p226 = scmp.lt.s32.totalorder %s39, 3
    %p227 = pnand %p225, %p226
    %p228 = pneg %p227
    // Predicated region
    $region9: #{baseline_forward.16} parent=5 // pred_check
      _
    $region10: #{baseline_forward.16} parent=5 // pred_check_branch
      %230 = sbr.rel (%p227) target = $region12
    $region11: #{baseline_forward.16} parent=5 // pred_region
      %s231 = ssub.s32 %s39, 1
      // Predicated region
      $region13: #{baseline_forward.16} parent=11 // pred_check
        %p232 = pneg %p93
      $region14: #{baseline_forward.16} parent=11 // pred_check_branch
        %234 = sbr.rel (%p232) target = $region16
      $region15: #{baseline_forward.16} parent=11 // pred_region
        %s236 = ssub.s32 1, 0
        %s237 = smul.u32 4, %s236
        %s238 = smul.u32 %s237, 2
        %p239 = scmp.lt.s32.totalorder 0, 0
        %s240 = scalar_select %p239, 0, 0
        %s241 = smul.addr %s240, 2
        %s242 = smul.addr %s241, 4
        %s243 = scalar_lea.vmem %s2, %s242
        %s245 = ssub.s32 1, 0
        %s246 = smul.u32 4, %s245
        %s247 = smul.u32 %s246, 2
      $region16: #{baseline_forward.16} parent=11 // pred_fallthru
        _
      // Predicated region
      $region17: #{baseline_forward.16} parent=11 // pred_check
        %p248 = pneg %p121
      $region18: #{baseline_forward.16} parent=11 // pred_check_branch
        %250 = sbr.rel (%p248) target = $region20
      $region19: #{baseline_forward.16} parent=11 // pred_region
        %s252 = ssub.s32 1, 0
        %s253 = smul.u32 4, %s252
        %s254 = smul.u32 %s253, 2
        %p255 = scmp.lt.s32.totalorder 0, 0
        %s256 = scalar_select %p255, 0, 0
        %s257 = smul.addr %s256, 2
        %s258 = smul.addr %s257, 4
        %s259 = scalar_lea.vmem %s4, %s258
        %s261 = ssub.s32 1, 0
        %s262 = smul.u32 4, %s261
        %s263 = smul.u32 %s262, 2
      $region20: #{baseline_forward.16} parent=11 // pred_fallthru
        _
      // Predicated region
      $region21: #{baseline_forward.16} parent=11 // pred_check
        %p264 = pneg %p149
      $region22: #{baseline_forward.16} parent=11 // pred_check_branch
        %266 = sbr.rel (%p264) target = $region24
      $region23: #{baseline_forward.16} parent=11 // pred_region
        %s268 = ssub.s32 1, 0
        %s269 = smul.u32 4, %s268
        %s270 = smul.u32 %s269, 2
        %p271 = scmp.lt.s32.totalorder 0, 0
        %s272 = scalar_select %p271, 0, 0
        %s273 = smul.addr %s272, 2
        %s274 = smul.addr %s273, 4
        %s275 = scalar_lea.vmem %s5, %s274
        %s277 = ssub.s32 1, 0
        %s278 = smul.u32 4, %s277
        %s279 = smul.u32 %s278, 2
      $region24: #{baseline_forward.16} parent=11 // pred_fallthru
        _
      // Predicated region
      $region25: #{baseline_forward.16} parent=11 // pred_check
        %p280 = pneg %p170
      $region26: #{baseline_forward.16} parent=11 // pred_check_branch
        %282 = sbr.rel (%p280) target = $region28
      $region27: #{baseline_forward.16} parent=11 // pred_region
        _
      $region28: #{baseline_forward.16} parent=11 // pred_fallthru
        _
      // Predicated region
      $region29: #{baseline_forward.16} parent=11 // pred_check
        %p283 = pneg %p191
      $region30: #{baseline_forward.16} parent=11 // pred_check_branch
        %285 = sbr.rel (%p283) target = $region32
      $region31: #{baseline_forward.16} parent=11 // pred_region
        _
      $region32: #{baseline_forward.16} parent=11 // pred_fallthru
        _
    $region12: #{baseline_forward.16} parent=5 // pred_fallthru
      _
    %p286 = scmp.lt.s32.totalorder %s39, 2
    // Predicated region
    $region33: #{baseline_forward.16} parent=5 // pred_check
      %p287 = pneg %p286
    $region34: #{baseline_forward.16} parent=5 // pred_check_branch
      %289 = sbr.rel (%p287) target = $region36
    $region35: #{baseline_forward.16} parent=5 // pred_region
      // Predicated region
      $region37: #{baseline_forward.16} parent=35 // pred_check
        %p290 = pneg %p59
      $region38: #{baseline_forward.16} parent=35 // pred_check_branch
        %292 = sbr.rel (%p290) target = $region40
      $region39: #{baseline_forward.16} parent=35 // pred_region
        %p293 = scmp.lt.s32.totalorder %s39, 1
        %s294 = scalar_select %p293, %s39, 1
        %s295 = smul.addr %s294, 11
        %s296 = smul.addr %s295, 4
        %s297 = scalar_lea.vmem %s0, %s296
      $region40: #{baseline_forward.16} parent=35 // pred_fallthru
        _
    $region36: #{baseline_forward.16} parent=5 // pred_fallthru
      _
    %p298 = scmp.le.s32.totalorder 1, %s39
    %p299 = scmp.lt.s32.totalorder %s39, 3
    %p300 = pnand %p298, %p299
    %p301 = pneg %p300
    // Predicated region
    $region41: #{baseline_forward.16} parent=5 // pred_check
      _
    $region42: #{baseline_forward.16} parent=5 // pred_check_branch
      %303 = sbr.rel (%p300) target = $region44
    $region43: #{baseline_forward.16} parent=5 // pred_region
      #allocation27 [shape = 'u8[22528]{0}', space=vmem, size = 0x5800, dematerialized = true, scoped, tag = 'FusionAdapter Buffer %fusion.34 = bf16[2,88,12]{2,1,0:T(8,128)(2,1)} fusion(%param_0.410, %param_1.287), kind=kLoop, calls=%fused_computation.42.clone, metadata={op_name="jit(baseline_forward)/jit(_pad)/pad" stack_frame_id=21}']
      #allocation28 [shape = 'u8[16384]{0}', space=vmem, size = 0x4000, dematerialized = true, scoped, tag = 'FusionAdapter Buffer %fusion.54 = bf16[4,12,16]{2,1,0:T(8,128)(2,1)} fusion(%param_2.185, %param_3.162, %param_4.96, %param_5.28, %param_6.26), kind=kLoop, calls=%fused_computation.87.clone, metadata={op_name="jit(baseline_forward)/concatenate" stack_frame_id=19}']
      #allocation29 [shape = 'u8[512]{0}', space=vmem, size = 0x400, dematerialized = true, scoped, tag = 'FusionAdapter Buffer %fusion.71 = f32[1,16]{1,0:T(1,128)} fusion(%param_7.12), kind=kLoop, calls=%fused_computation.180.clone, metadata={op_name="jit(baseline_forward)/reshape" stack_frame_id=25}']
      %s304 = ssub.s32 %s39, 1
      %p305 = scmp.lt.s32.totalorder %s44, 1
      %s306 = scalar_select %p305, %s44, 1
      %s307 = smul.addr %s306, 11
      %s308 = smul.addr %s307, 4
      %s309 = scalar_lea.vmem %s0, %s308
      %p310 = pneg %p65
      %p311 = pneg %p62
      %s313 = ssub.s32 1, 0
      %s314 = smul.u32 4, %s313
      %s315 = smul.u32 %s314, 2
      %p316 = scmp.lt.s32.totalorder 0, 0
      %s317 = scalar_select %p316, 0, 0
      %s318 = smul.addr %s317, 2
      %s319 = smul.addr %s318, 4
      %s320 = scalar_lea.vmem %s2, %s319
      %p321 = pneg %p93
      %p322 = pneg %p90
      %s324 = ssub.s32 1, 0
      %s325 = smul.u32 4, %s324
      %s326 = smul.u32 %s325, 2
      %p327 = scmp.lt.s32.totalorder 0, 0
      %s328 = scalar_select %p327, 0, 0
      %s329 = smul.addr %s328, 2
      %s330 = smul.addr %s329, 4
      %s331 = scalar_lea.vmem %s4, %s330
      %p332 = pneg %p121
      %p333 = pneg %p118
      %s335 = ssub.s32 1, 0
      %s336 = smul.u32 4, %s335
      %s337 = smul.u32 %s336, 2
      %p338 = scmp.lt.s32.totalorder 0, 0
      %s339 = scalar_select %p338, 0, 0
      %s340 = smul.addr %s339, 2
      %s341 = smul.addr %s340, 4
      %s342 = scalar_lea.vmem %s5, %s341
      %p343 = pneg %p149
      %p344 = pneg %p146
      %p345 = pneg %p170
      %p346 = pneg %p167
      %p347 = pneg %p191
      %p348 = pneg %p188
      %p349 = pneg %p217
      %p350 = pneg %p214
      %p351 = scmp.lt.s32.totalorder %s44, 1
      %s352 = scalar_select %p351, %s44, 1
      %s353 = smul.addr %s352, 9
      %s354 = smul.addr %s353, 4
      %s355 = scalar_lea.vmem %s8, %s354
      %p356 = scmp.lt.s32.totalorder %s44, 1
      %s357 = scalar_select %p356, %s44, 1
      %s358 = smul.addr %s357, 11
      %s359 = smul.addr %s358, 4
      %s360 = scalar_lea.vmem %s0, %s359
      %s362 = ssub.s32 1, 0
      %s363 = smul.u32 4, %s362
      %s364 = smul.u32 %s363, 2
      %p365 = scmp.lt.s32.totalorder 0, 0
      %s366 = scalar_select %p365, 0, 0
      %s367 = smul.addr %s366, 2
      %s368 = smul.addr %s367, 4
      %s369 = scalar_lea.vmem %s2, %s368
      %s371 = ssub.s32 1, 0
      %s372 = smul.u32 4, %s371
      %s373 = smul.u32 %s372, 2
      %s375 = ssub.s32 1, 0
      %s376 = smul.u32 4, %s375
      %s377 = smul.u32 %s376, 2
      %p378 = scmp.lt.s32.totalorder 0, 0
      %s379 = scalar_select %p378, 0, 0
      %s380 = smul.addr %s379, 2
      %s381 = smul.addr %s380, 4
      %s382 = scalar_lea.vmem %s4, %s381
      %s384 = ssub.s32 1, 0
      %s385 = smul.u32 4, %s384
      %s386 = smul.u32 %s385, 2
      %s388 = ssub.s32 1, 0
      %s389 = smul.u32 4, %s388
      %s390 = smul.u32 %s389, 2
      %p391 = scmp.lt.s32.totalorder 0, 0
      %s392 = scalar_select %p391, 0, 0
      %s393 = smul.addr %s392, 2
      %s394 = smul.addr %s393, 4
      %s395 = scalar_lea.vmem %s5, %s394
      %s397 = ssub.s32 1, 0
      %s398 = smul.u32 4, %s397
      %s399 = smul.u32 %s398, 2
      %p400 = scmp.lt.s32.totalorder %s44, 1
      %s401 = scalar_select %p400, %s44, 1
      %s402 = smul.addr %s401, 9
      %s403 = smul.addr %s402, 4
      %s404 = scalar_lea.vmem %s8, %s403
      %v405 = vld [vmem:[%s360] sm:$0xf]
      %v406 = vunpack.c.l.bf16 %v405
      %v407 = vunpack.c.h.bf16 %v405
      %v408 = vlaneseq
      %v409 = vshrl.u32 %v408, 7
      %vm411 = vcmp.lt.s32.totalorder %v409, 81
      %v412 = vsel %vm411, %v406, %v14
      %v413 = vlaneseq
      %v414 = vand.u32 %v413, 127
      %vm416 = vcmp.lt.s32.totalorder %v414, 12
      %v417 = vsel %vm416, %v412, %v14
      %v418 = vpack.c.bf16 0.0, %v417
      %s420 = ssub.s32 16, 1
      %421 = vst [vmem:[#allocation27] sm:%s420] %v418
      %s422 = scalar_lea.vmem %s360, 4
      %v423 = vld [vmem:[%s422] sm:$0xf]
      %v424 = vunpack.c.l.bf16 %v423
      %v425 = vunpack.c.h.bf16 %v423
      %v426 = vlaneseq
      %v427 = vshrl.u32 %v426, 7
      %v428 = vadd.s32 %v427, 8
      %vm429 = vcmp.lt.s32.totalorder %v428, 81
      %v430 = vsel %vm429, %v424, %v14
      %v431 = vlaneseq
      %v432 = vand.u32 %v431, 127
      %vm434 = vcmp.lt.s32.totalorder %v432, 12
      %v435 = vsel %vm434, %v430, %v14
      %s436 = scalar_lea.vmem [#allocation27], 4
      %v437 = vpack.c.bf16 0.0, %v435
      %s439 = ssub.s32 16, 1
      %440 = vst [vmem:[%s436] sm:%s439] %v437
      %s441 = scalar_lea.vmem %s360, 8
      %v442 = vld [vmem:[%s441] sm:$0xf]
      %v443 = vunpack.c.l.bf16 %v442
      %v444 = vunpack.c.h.bf16 %v442
      %v445 = vlaneseq
      %v446 = vshrl.u32 %v445, 7
      %v447 = vadd.s32 %v446, 16
      %vm448 = vcmp.lt.s32.totalorder %v447, 81
      %v449 = vsel %vm448, %v443, %v14
      %v450 = vlaneseq
      %v451 = vand.u32 %v450, 127
      %vm453 = vcmp.lt.s32.totalorder %v451, 12
      %v454 = vsel %vm453, %v449, %v14
      %s455 = scalar_lea.vmem [#allocation27], 8
      %v456 = vpack.c.bf16 0.0, %v454
      %s458 = ssub.s32 16, 1
      %459 = vst [vmem:[%s455] sm:%s458] %v456
      %s460 = scalar_lea.vmem %s360, 12
      %v461 = vld [vmem:[%s460] sm:$0xf]
      %v462 = vunpack.c.l.bf16 %v461
      %v463 = vunpack.c.h.bf16 %v461
      %v464 = vlaneseq
      %v465 = vshrl.u32 %v464, 7
      %v466 = vadd.s32 %v465, 24
      %vm467 = vcmp.lt.s32.totalorder %v466, 81
      %v468 = vsel %vm467, %v462, %v14
      %v469 = vlaneseq
      %v470 = vand.u32 %v469, 127
      %vm472 = vcmp.lt.s32.totalorder %v470, 12
      %v473 = vsel %vm472, %v468, %v14
      %s474 = scalar_lea.vmem [#allocation27], 12
      %v475 = vpack.c.bf16 0.0, %v473
      %s477 = ssub.s32 16, 1
      %478 = vst [vmem:[%s474] sm:%s477] %v475
      %s479 = scalar_lea.vmem %s360, 16
      %v480 = vld [vmem:[%s479] sm:$0xf]
      %v481 = vunpack.c.l.bf16 %v480
      %v482 = vunpack.c.h.bf16 %v480
      %v483 = vlaneseq
      %v484 = vshrl.u32 %v483, 7
      %v485 = vadd.s32 %v484, 32
      %vm486 = vcmp.lt.s32.totalorder %v485, 81
      %v487 = vsel %vm486, %v481, %v14
      %v488 = vlaneseq
      %v489 = vand.u32 %v488, 127
      %vm491 = vcmp.lt.s32.totalorder %v489, 12
      %v492 = vsel %vm491, %v487, %v14
      %s493 = scalar_lea.vmem [#allocation27], 16
      %v494 = vpack.c.bf16 0.0, %v492
      %s496 = ssub.s32 16, 1
      %497 = vst [vmem:[%s493] sm:%s496] %v494
      %s498 = scalar_lea.vmem %s360, 20
      %v499 = vld [vmem:[%s498] sm:$0xf]
      %v500 = vunpack.c.l.bf16 %v499
      %v501 = vunpack.c.h.bf16 %v499
      %v502 = vlaneseq
      %v503 = vshrl.u32 %v502, 7
      %v504 = vadd.s32 %v503, 40
      %vm505 = vcmp.lt.s32.totalorder %v504, 81
      %v506 = vsel %vm505, %v500, %v14
      %v507 = vlaneseq
      %v508 = vand.u32 %v507, 127
      %vm510 = vcmp.lt.s32.totalorder %v508, 12
      %v511 = vsel %vm510, %v506, %v14
      %s512 = scalar_lea.vmem [#allocation27], 20
      %v513 = vpack.c.bf16 0.0, %v511
      %s515 = ssub.s32 16, 1
      %516 = vst [vmem:[%s512] sm:%s515] %v513
      %s517 = scalar_lea.vmem %s360, 24
      %v518 = vld [vmem:[%s517] sm:$0xf]
      %v519 = vunpack.c.l.bf16 %v518
      %v520 = vunpack.c.h.bf16 %v518
      %v521 = vlaneseq
      %v522 = vshrl.u32 %v521, 7
      %v523 = vadd.s32 %v522, 48
      %vm524 = vcmp.lt.s32.totalorder %v523, 81
      %v525 = vsel %vm524, %v519, %v14
      %v526 = vlaneseq
      %v527 = vand.u32 %v526, 127
      %vm529 = vcmp.lt.s32.totalorder %v527, 12
      %v530 = vsel %vm529, %v525, %v14
      %s531 = scalar_lea.vmem [#allocation27], 24
      %v532 = vpack.c.bf16 0.0, %v530
      %s534 = ssub.s32 16, 1
      %535 = vst [vmem:[%s531] sm:%s534] %v532
      %s536 = scalar_lea.vmem %s360, 28
      %v537 = vld [vmem:[%s536] sm:$0xf]
      %v538 = vunpack.c.l.bf16 %v537
      %v539 = vunpack.c.h.bf16 %v537
      %v540 = vlaneseq
      %v541 = vshrl.u32 %v540, 7
      %v542 = vadd.s32 %v541, 56
      %vm543 = vcmp.lt.s32.totalorder %v542, 81
      %v544 = vsel %vm543, %v538, %v14
      %v545 = vlaneseq
      %v546 = vand.u32 %v545, 127
      %vm548 = vcmp.lt.s32.totalorder %v546, 12
      %v549 = vsel %vm548, %v544, %v14
      %s550 = scalar_lea.vmem [#allocation27], 28
      %v551 = vpack.c.bf16 0.0, %v549
      %s553 = ssub.s32 16, 1
      %554 = vst [vmem:[%s550] sm:%s553] %v551
      %s555 = scalar_lea.vmem %s360, 32
      %v556 = vld [vmem:[%s555] sm:$0xf]
      %v557 = vunpack.c.l.bf16 %v556
      %v558 = vunpack.c.h.bf16 %v556
      %v559 = vlaneseq
      %v560 = vshrl.u32 %v559, 7
      %v561 = vadd.s32 %v560, 64
      %vm562 = vcmp.lt.s32.totalorder %v561, 81
      %v563 = vsel %vm562, %v557, %v14
      %v564 = vlaneseq
      %v565 = vand.u32 %v564, 127
      %vm567 = vcmp.lt.s32.totalorder %v565, 12
      %v568 = vsel %vm567, %v563, %v14
      %s569 = scalar_lea.vmem [#allocation27], 32
      %v570 = vpack.c.bf16 0.0, %v568
      %s572 = ssub.s32 16, 1
      %573 = vst [vmem:[%s569] sm:%s572] %v570
      %s574 = scalar_lea.vmem %s360, 36
      %v575 = vld [vmem:[%s574] sm:$0xf]
      %v576 = vunpack.c.l.bf16 %v575
      %v577 = vunpack.c.h.bf16 %v575
      %v578 = vlaneseq
      %v579 = vshrl.u32 %v578, 7
      %v580 = vadd.s32 %v579, 72
      %vm581 = vcmp.lt.s32.totalorder %v580, 81
      %v582 = vsel %vm581, %v576, %v14
      %v583 = vlaneseq
      %v584 = vand.u32 %v583, 127
      %vm586 = vcmp.lt.s32.totalorder %v584, 12
      %v587 = vsel %vm586, %v582, %v14
      %s588 = scalar_lea.vmem [#allocation27], 36
      %v589 = vpack.c.bf16 0.0, %v587
      %s591 = ssub.s32 16, 1
      %592 = vst [vmem:[%s588] sm:%s591] %v589
      %s593 = scalar_lea.vmem %s360, 40
      %s595 = sor.u32 255, 127
      %s596 = sand.u32 %s595, 85
      %s597 = sshrl.u32 %s596, 1
      %s598 = sor.u32 %s596, %s597
      %s599 = sand.u32 51, %s598
      %s600 = sshrl.u32 %s599, 2
      %s601 = sor.u32 %s599, %s600
      %s602 = sand.u32 15, %s601
      %v603 = vld [vmem:[%s593] sm:%s602]
      %v604 = vunpack.c.l.bf16 %v603
      %v605 = vunpack.c.h.bf16 %v603
      %v606 = vlaneseq
      %v607 = vshrl.u32 %v606, 7
      %v608 = vadd.s32 %v607, 80
      %vm609 = vcmp.lt.s32.totalorder %v608, 81
      %v610 = vsel %vm609, %v604, %v14
      %v611 = vlaneseq
      %v612 = vand.u32 %v611, 127
      %vm614 = vcmp.lt.s32.totalorder %v612, 12
      %v615 = vsel %vm614, %v610, %v14
      %s616 = scalar_lea.vmem [#allocation27], 40
      %v617 = vpack.c.bf16 0.0, %v615
      %s619 = ssub.s32 16, 1
      %620 = vst [vmem:[%s616] sm:%s619] %v617
      %s621 = ssub.s32 0, 0
      %p622 = scmp.lt.s32.totalorder %s621, 0
      %s623 = scalar_select %p622, 0, 255
      %s624 = sshrl.u32 %s623, 1
      %s625 = sor.u32 %s623, %s624
      %s626 = sand.u32 %s625, 85
      %s627 = sshrl.u32 %s626, 1
      %s628 = sor.u32 %s626, %s627
      %s629 = sand.u32 51, %s628
      %s630 = sshrl.u32 %s629, 2
      %s631 = sor.u32 %s629, %s630
      %s632 = sand.u32 15, %s631
      %v633 = vld [vmem:[%s369] sm:%s632]
      %v634 = vunpack.c.l.bf16 %v633
      %v635 = vunpack.c.h.bf16 %v633
      %s636 = ssub.s32 0, 0
      %p637 = scmp.lt.s32.totalorder %s636, 0
      %s638 = scalar_select %p637, 0, 255
      %s639 = sshrl.u32 %s638, 1
      %s640 = sor.u32 %s638, %s639
      %s641 = sand.u32 %s640, 85
      %s642 = sshrl.u32 %s641, 1
      %s643 = sor.u32 %s641, %s642
      %s644 = sand.u32 51, %s643
      %s645 = sshrl.u32 %s644, 2
      %s646 = sor.u32 %s644, %s645
      %s647 = sand.u32 15, %s646
      %v648 = vld [vmem:[%s382] sm:%s647]
      %v649 = vunpack.c.l.bf16 %v648
      %v650 = vunpack.c.h.bf16 %v648
      %s651 = ssub.s32 0, 0
      %p652 = scmp.lt.s32.totalorder %s651, 0
      %s653 = scalar_select %p652, 0, 255
      %s654 = sshrl.u32 %s653, 1
      %s655 = sor.u32 %s653, %s654
      %s656 = sand.u32 %s655, 85
      %s657 = sshrl.u32 %s656, 1
      %s658 = sor.u32 %s656, %s657
      %s659 = sand.u32 51, %s658
      %s660 = sshrl.u32 %s659, 2
      %s661 = sor.u32 %s659, %s660
      %s662 = sand.u32 15, %s661
      %v663 = vld [vmem:[%s395] sm:%s662]
      %v664 = vunpack.c.l.bf16 %v663
      %v665 = vunpack.c.h.bf16 %v663
      %s667 = sor.u32 255, 127
      %s668 = sand.u32 %s667, 85
      %s669 = sshrl.u32 %s668, 1
      %s670 = sor.u32 %s668, %s669
      %s671 = sand.u32 51, %s670
      %s672 = sshrl.u32 %s671, 2
      %s673 = sor.u32 %s671, %s672
      %s674 = sand.u32 15, %s673
      %v675 = vld [vmem:[%s6] sm:%s674]
      %v676 = vunpack.c.l.bf16 %v675
      %v677 = vunpack.c.h.bf16 %v675
      %v678 = vlaneseq
      %v679 = vshrl.u32 %v678, 7
      %vm681 = vcmp.lt.s32.totalorder %v679, 12
      %v682 = vsel %vm681, %v676, %v34
      %v683 = vlaneseq
      %v684 = vand.u32 %v683, 127
      %vm686 = vcmp.lt.s32.totalorder %v684, 16
      %v687 = vsel %vm686, %v682, %v34
      %688 = xla_tuple %v687, %v29
      %689 = xla_tuple %688
      %v690 = vmax.f32 %v687, %v29
      %691 = xla_tuple %v690
      %692 = xla_tuple %v690, %v24
      %693 = xla_tuple %692
      %v694 = vmax.f32 %v690, %v24
      %695 = xla_tuple %v694
      %696 = xla_tuple %v694, %v19
      %697 = xla_tuple %696
      %v698 = vmax.f32 %v694, %v19
      %699 = xla_tuple %v698
      %v700 = vpack.c.bf16 0.0, %v698
      %s702 = ssub.s32 16, 1
      %703 = vst [vmem:[#allocation28] sm:%s702] %v700
      %s704 = scalar_lea.vmem %s369, 4
      %s705 = ssub.s32 0, 0
      %p706 = scmp.lt.s32.totalorder %s705, 0
      %s707 = scalar_select %p706, 0, 255
      %s708 = sshrl.u32 %s707, 1
      %s709 = sor.u32 %s707, %s708
      %s710 = sand.u32 %s709, 85
      %s711 = sshrl.u32 %s710, 1
      %s712 = sor.u32 %s710, %s711
      %s713 = sand.u32 51, %s712
      %s714 = sshrl.u32 %s713, 2
      %s715 = sor.u32 %s713, %s714
      %s716 = sand.u32 15, %s715
      %v717 = vld [vmem:[%s704] sm:%s716]
      %v718 = vunpack.c.l.bf16 %v717
      %v719 = vunpack.c.h.bf16 %v717
      %s720 = scalar_lea.vmem %s382, 4
      %s721 = ssub.s32 0, 0
      %p722 = scmp.lt.s32.totalorder %s721, 0
      %s723 = scalar_select %p722, 0, 255
      %s724 = sshrl.u32 %s723, 1
      %s725 = sor.u32 %s723, %s724
      %s726 = sand.u32 %s725, 85
      %s727 = sshrl.u32 %s726, 1
      %s728 = sor.u32 %s726, %s727
      %s729 = sand.u32 51, %s728
      %s730 = sshrl.u32 %s729, 2
      %s731 = sor.u32 %s729, %s730
      %s732 = sand.u32 15, %s731
      %v733 = vld [vmem:[%s720] sm:%s732]
      %v734 = vunpack.c.l.bf16 %v733
      %v735 = vunpack.c.h.bf16 %v733
      %s736 = scalar_lea.vmem %s395, 4
      %s737 = ssub.s32 0, 0
      %p738 = scmp.lt.s32.totalorder %s737, 0
      %s739 = scalar_select %p738, 0, 255
      %s740 = sshrl.u32 %s739, 1
      %s741 = sor.u32 %s739, %s740
      %s742 = sand.u32 %s741, 85
      %s743 = sshrl.u32 %s742, 1
      %s744 = sor.u32 %s742, %s743
      %s745 = sand.u32 51, %s744
      %s746 = sshrl.u32 %s745, 2
      %s747 = sor.u32 %s745, %s746
      %s748 = sand.u32 15, %s747
      %v749 = vld [vmem:[%s736] sm:%s748]
      %v750 = vunpack.c.l.bf16 %v749
      %v751 = vunpack.c.h.bf16 %v749
      %s752 = scalar_lea.vmem %s6, 4
      %s754 = sor.u32 255, 127
      %s755 = sand.u32 %s754, 85
      %s756 = sshrl.u32 %s755, 1
      %s757 = sor.u32 %s755, %s756
      %s758 = sand.u32 51, %s757
      %s759 = sshrl.u32 %s758, 2
      %s760 = sor.u32 %s758, %s759
      %s761 = sand.u32 15, %s760
      %v762 = vld [vmem:[%s752] sm:%s761]
      %v763 = vunpack.c.l.bf16 %v762
      %v764 = vunpack.c.h.bf16 %v762
      %v765 = vlaneseq
      %v766 = vshrl.u32 %v765, 7
      %v767 = vadd.s32 %v766, 8
      %vm768 = vcmp.lt.s32.totalorder %v767, 12
      %v769 = vsel %vm768, %v763, %v34
      %v770 = vlaneseq
      %v771 = vand.u32 %v770, 127
      %vm773 = vcmp.lt.s32.totalorder %v771, 16
      %v774 = vsel %vm773, %v769, %v34
      %775 = xla_tuple %v774, %v29
      %776 = xla_tuple %775
      %v777 = vmax.f32 %v774, %v29
      %778 = xla_tuple %v777
      %779 = xla_tuple %v777, %v24
      %780 = xla_tuple %779
      %v781 = vmax.f32 %v777, %v24
      %782 = xla_tuple %v781
      %783 = xla_tuple %v781, %v19
      %784 = xla_tuple %783
      %v785 = vmax.f32 %v781, %v19
      %786 = xla_tuple %v785
      %s787 = scalar_lea.vmem [#allocation28], 4
      %v788 = vpack.c.bf16 0.0, %v785
      %s790 = ssub.s32 16, 1
      %791 = vst [vmem:[%s787] sm:%s790] %v788
      %v792 = vlaneseq
      %v793 = vshrl.u32 %v792, 7
      %vm795 = vcmp.lt.s32.totalorder %v793, 12
      %v796 = vsel %vm795, %v664, %v29
      %v797 = vlaneseq
      %v798 = vand.u32 %v797, 127
      %vm800 = vcmp.lt.s32.totalorder %v798, 16
      %v801 = vsel %vm800, %v796, %v29
      %802 = xla_tuple %v34, %v801
      %803 = xla_tuple %802
      %v804 = vmax.f32 %v34, %v801
      %805 = xla_tuple %v804
      %806 = xla_tuple %v804, %v24
      %807 = xla_tuple %806
      %v808 = vmax.f32 %v804, %v24
      %809 = xla_tuple %v808
      %810 = xla_tuple %v808, %v19
      %811 = xla_tuple %810
      %v812 = vmax.f32 %v808, %v19
      %813 = xla_tuple %v812
      %s814 = scalar_lea.vmem [#allocation28], 8
      %v815 = vpack.c.bf16 0.0, %v812
      %s817 = ssub.s32 16, 1
      %818 = vst [vmem:[%s814] sm:%s817] %v815
      %s819 = scalar_lea.vmem %s369, 4
      %s820 = scalar_lea.vmem %s382, 4
      %s821 = scalar_lea.vmem %s395, 4
      %v822 = vlaneseq
      %v823 = vshrl.u32 %v822, 7
      %v824 = vadd.s32 %v823, 8
      %vm825 = vcmp.lt.s32.totalorder %v824, 12
      %v826 = vsel %vm825, %v750, %v29
      %v827 = vlaneseq
      %v828 = vand.u32 %v827, 127
      %vm830 = vcmp.lt.s32.totalorder %v828, 16
      %v831 = vsel %vm830, %v826, %v29
      %832 = xla_tuple %v34, %v831
      %833 = xla_tuple %832
      %v834 = vmax.f32 %v34, %v831
      %835 = xla_tuple %v834
      %836 = xla_tuple %v834, %v24
      %837 = xla_tuple %836
      %v838 = vmax.f32 %v834, %v24
      %839 = xla_tuple %v838
      %840 = xla_tuple %v838, %v19
      %841 = xla_tuple %840
      %v842 = vmax.f32 %v838, %v19
      %843 = xla_tuple %v842
      %s844 = scalar_lea.vmem [#allocation28], 12
      %v845 = vpack.c.bf16 0.0, %v842
      %s847 = ssub.s32 16, 1
      %848 = vst [vmem:[%s844] sm:%s847] %v845
      %v849 = vlaneseq
      %v850 = vshrl.u32 %v849, 7
      %vm852 = vcmp.lt.s32.totalorder %v850, 12
      %v853 = vsel %vm852, %v649, %v24
      %v854 = vlaneseq
      %v855 = vand.u32 %v854, 127
      %vm857 = vcmp.lt.s32.totalorder %v855, 16
      %v858 = vsel %vm857, %v853, %v24
      %859 = xla_tuple %v34, %v29
      %860 = xla_tuple %859
      %v861 = vmax.f32 %v34, %v29
      %862 = xla_tuple %v861
      %863 = xla_tuple %v861, %v858
      %864 = xla_tuple %863
      %v865 = vmax.f32 %v861, %v858
      %866 = xla_tuple %v865
      %867 = xla_tuple %v865, %v19
      %868 = xla_tuple %867
      %v869 = vmax.f32 %v865, %v19
      %870 = xla_tuple %v869
      %s871 = scalar_lea.vmem [#allocation28], 16
      %v872 = vpack.c.bf16 0.0, %v869
      %s874 = ssub.s32 16, 1
      %875 = vst [vmem:[%s871] sm:%s874] %v872
      %s876 = scalar_lea.vmem %s369, 4
      %s877 = scalar_lea.vmem %s382, 4
      %v878 = vlaneseq
      %v879 = vshrl.u32 %v878, 7
      %v880 = vadd.s32 %v879, 8
      %vm881 = vcmp.lt.s32.totalorder %v880, 12
      %v882 = vsel %vm881, %v734, %v24
      %v883 = vlaneseq
      %v884 = vand.u32 %v883, 127
      %vm886 = vcmp.lt.s32.totalorder %v884, 16
      %v887 = vsel %vm886, %v882, %v24
      %s888 = scalar_lea.vmem %s395, 4
      %889 = xla_tuple %v34, %v29
      %890 = xla_tuple %889
      %v891 = vmax.f32 %v34, %v29
      %892 = xla_tuple %v891
      %893 = xla_tuple %v891, %v887
      %894 = xla_tuple %893
      %v895 = vmax.f32 %v891, %v887
      %896 = xla_tuple %v895
      %897 = xla_tuple %v895, %v19
      %898 = xla_tuple %897
      %v899 = vmax.f32 %v895, %v19
      %900 = xla_tuple %v899
      %s901 = scalar_lea.vmem [#allocation28], 20
      %v902 = vpack.c.bf16 0.0, %v899
      %s904 = ssub.s32 16, 1
      %905 = vst [vmem:[%s901] sm:%s904] %v902
      %v906 = vlaneseq
      %v907 = vshrl.u32 %v906, 7
      %vm909 = vcmp.lt.s32.totalorder %v907, 12
      %v910 = vsel %vm909, %v634, %v19
      %v911 = vlaneseq
      %v912 = vand.u32 %v911, 127
      %vm914 = vcmp.lt.s32.totalorder %v912, 16
      %v915 = vsel %vm914, %v910, %v19
      %916 = xla_tuple %v34, %v29
      %917 = xla_tuple %916
      %v918 = vmax.f32 %v34, %v29
      %919 = xla_tuple %v918
      %920 = xla_tuple %v918, %v24
      %921 = xla_tuple %920
      %v922 = vmax.f32 %v918, %v24
      %923 = xla_tuple %v922
      %924 = xla_tuple %v922, %v915
      %925 = xla_tuple %924
      %v926 = vmax.f32 %v922, %v915
      %927 = xla_tuple %v926
      %s928 = scalar_lea.vmem [#allocation28], 24
      %v929 = vpack.c.bf16 0.0, %v926
      %s931 = ssub.s32 16, 1
      %932 = vst [vmem:[%s928] sm:%s931] %v929
      %s933 = scalar_lea.vmem %s369, 4
      %v934 = vlaneseq
      %v935 = vshrl.u32 %v934, 7
      %v936 = vadd.s32 %v935, 8
      %vm937 = vcmp.lt.s32.totalorder %v936, 12
      %v938 = vsel %vm937, %v718, %v19
      %v939 = vlaneseq
      %v940 = vand.u32 %v939, 127
      %vm942 = vcmp.lt.s32.totalorder %v940, 16
      %v943 = vsel %vm942, %v938, %v19
      %s944 = scalar_lea.vmem %s382, 4
      %s945 = scalar_lea.vmem %s395, 4
      %946 = xla_tuple %v34, %v29
      %947 = xla_tuple %946
      %v948 = vmax.f32 %v34, %v29
      %949 = xla_tuple %v948
      %950 = xla_tuple %v948, %v24
      %951 = xla_tuple %950
      %v952 = vmax.f32 %v948, %v24
      %953 = xla_tuple %v952
      %954 = xla_tuple %v952, %v943
      %955 = xla_tuple %954
      %v956 = vmax.f32 %v952, %v943
      %957 = xla_tuple %v956
      %s958 = scalar_lea.vmem [#allocation28], 28
      %v959 = vpack.c.bf16 0.0, %v956
      %s961 = ssub.s32 16, 1
      %962 = vst [vmem:[%s958] sm:%s961] %v959
      %v963 = vld [vmem:[%s7] sm:$0x1]
      %s965 = ssub.s32 2, 1
      %966 = vst [vmem:[#allocation29] sm:%s965] %v963
      %v968 = vld [vmem:[#allocation27] sm:$0xf]
      %v969 = vld [vmem:[#allocation27 + $0x4] sm:$0xf]
      %v970 = vld [vmem:[#allocation27 + $0x8] sm:$0xf]
      %v971 = vld [vmem:[#allocation27 + $0xc] sm:$0xf]
      %v972 = vld [vmem:[#allocation27 + $0x10] sm:$0xf]
      %v973 = vld [vmem:[#allocation27 + $0x14] sm:$0xf]
      %v974 = vld [vmem:[#allocation27 + $0x18] sm:$0xf]
      %v975 = vld [vmem:[#allocation27 + $0x1c] sm:$0xf]
      %v976 = vld [vmem:[#allocation27 + $0x20] sm:$0xf]
      %v977 = vld [vmem:[#allocation28] sm:$0xf]
      %v978 = vld [vmem:[#allocation28 + $0x4] sm:$0x3]
      %v979 = vld [vmem:[#allocation27 + $0x24] sm:$0x1]
      %s980 = scalar_lea.vmem [#allocation28], 8
      %v981 = vld [vmem:[%s980] sm:$0xf]
      %v982 = vld [vmem:[%s980 + $0x4] sm:$0x3]
      %v993 = vunpack.c.l.b16 %v968
      %v994 = vunpack.c.l.b16 %v969
      %v995 = vunpack.c.l.b16 %v970
      %v996 = vunpack.c.l.b16 %v971
      %v997 = vunpack.c.l.b16 %v972
      %v998 = vunpack.c.l.b16 %v973
      %v999 = vunpack.c.l.b16 %v974
      %v1000 = vunpack.c.l.b16 %v975
      %v1001 = vunpack.c.l.b16 %v976
      %v1002 = vunpack.c.l.b16 %v979
      %v1003 = vpack.c.b16 %v994, %v993
      %v1004 = vpack.c.b16 %v996, %v995
      %v1005 = vpack.c.b16 %v998, %v997
      %v1006 = vpack.c.b16 %v1000, %v999
      %v1007 = vpack.c.b16 %v1002, %v1001
      %vm1008 = vsmask.f32 7424
      %v1010 = vshrl.u32 %v1003, 16
      %v1012 = vshll.u32 %v1003, 16
      %v1014 = vrot.slane %v1012, 1
      %v1015 = vor.u32 %v1010, %v1014
      %v1017 = vshll.u32 %v1004, 16
      %v1019 = vrot.slane %v1017, 1
      %v1020 = vsel %vm1008, %v1015, %v1019
      %v1021 = vshrl.u32 %v1004, 16
      %v1023 = vor.u32 %v1021, %v1019
      %v1025 = vshll.u32 %v1005, 16
      %v1027 = vrot.slane %v1025, 1
      %v1028 = vsel %vm1008, %v1023, %v1027
      %v1029 = vshrl.u32 %v1005, 16
      %v1031 = vor.u32 %v1029, %v1027
      %v1033 = vshll.u32 %v1006, 16
      %v1035 = vrot.slane %v1033, 1
      %v1036 = vsel %vm1008, %v1031, %v1035
      %v1037 = vshrl.u32 %v1006, 16
      %v1039 = vor.u32 %v1037, %v1035
      %v1041 = vshll.u32 %v1007, 16
      %v1043 = vrot.slane %v1041, 1
      %v1044 = vsel %vm1008, %v1039, %v1043
      %v1045 = vshrl.u32 %v1007, 16
      %v1047 = vor.u32 %v1045, %v1043
      %v1050 = vunpack.c.l.b16 %v981
      %v1051 = vunpack.c.l.b16 %v982
      %v1052 = vpack.c.b16 %v1051, %v1050
      %vm1053 = vcmask 97280
      %v1055 = vsel %vm1053, %v1020, 0
      %v1058 = vsel %vm1053, %v1028, 0
      %v1061 = vsel %vm1053, %v1036, 0
      %v1064 = vsel %vm1053, %v1044, 0
      %v1067 = vsel %vm1053, %v1047, 0
      %vm1069 = vcmask 1045504
      %v1071 = vsel %vm1069, %v1052, 0
      %1073 = vmatpush.bf16.msra.mxu0 0
      %1074 = vmatpush.bf16.msra.mxu0 0
      %1075 = vmatpush.bf16.msra.mxu0 0
      %1076 = vmatpush.bf16.msra.mxu0 0
      %1077 = vmatpush.bf16.msra.mxu0 0
      %1078 = vmatpush.bf16.msra.mxu0 0
      %1079 = vmatpush.bf16.msra.mxu0 0
      %1080 = vmatpush.bf16.msra.mxu0 %v1071
      %1081 = vmatmul.bf16.gmra.mxu0 %v1055
      %v1082 = vpop.f32.mrf.mxu0
      %v1083 = vadd.f32 0.0, %v1082
      %v1084 = vpop.f32.mrf.mxu0
      %v1085 = vadd.f32 0.0, %v1084
      %1086 = vmatmul.bf16.gmra.mxu0 %v1058
      %v1087 = vpop.f32.mrf.mxu0
      %v1088 = vadd.f32 0.0, %v1087
      %v1089 = vpop.f32.mrf.mxu0
      %v1090 = vadd.f32 0.0, %v1089
      %1091 = vmatmul.bf16.gmra.mxu0 %v1061
      %v1092 = vpop.f32.mrf.mxu0
      %v1093 = vadd.f32 0.0, %v1092
      %v1094 = vpop.f32.mrf.mxu0
      %v1095 = vadd.f32 0.0, %v1094
      %1096 = vmatmul.bf16.gmra.mxu0 %v1064
      %v1097 = vpop.f32.mrf.mxu0
      %v1098 = vadd.f32 0.0, %v1097
      %v1099 = vpop.f32.mrf.mxu0
      %v1100 = vadd.f32 0.0, %v1099
      %1101 = vmatmul.bf16.gmra.mxu0 %v1067
      %v1102 = vpop.f32.mrf.mxu0
      %v1103 = vadd.f32 0.0, %v1102
      %v1104 = vpop.f32.mrf.mxu0
      %1105 = vdwg.mxu0
      %v1106 = vpack.c.b16 %v1001, %v1001
      %v1109 = vunpack.c.l.b16 %v977
      %v1110 = vunpack.c.l.b16 %v978
      %v1111 = vpack.c.b16 %v1110, %v1109
      %v1112 = vsel %vm1053, %v1003, 0
      %v1114 = vsel %vm1053, %v1004, 0
      %v1116 = vsel %vm1053, %v1005, 0
      %v1118 = vsel %vm1053, %v1006, 0
      %v1121 = vsel %vm1053, %v1106, 0
      %v1124 = vsel %vm1069, %v1111, 0
      %1126 = vmatpush.bf16.msra.mxu0 0
      %1127 = vmatpush.bf16.msra.mxu0 0
      %1128 = vmatpush.bf16.msra.mxu0 0
      %1129 = vmatpush.bf16.msra.mxu0 0
      %1130 = vmatpush.bf16.msra.mxu0 0
      %1131 = vmatpush.bf16.msra.mxu0 0
      %1132 = vmatpush.bf16.msra.mxu0 0
      %1133 = vmatpush.bf16.msra.mxu0 %v1124
      %1134 = vmatmul.bf16.gmra.mxu0 %v1112
      %v1135 = vpop.f32.mrf.mxu0
      %v1136 = vadd.f32 %v1083, %v1135
      %v1137 = vpop.f32.mrf.mxu0
      %v1138 = vadd.f32 %v1085, %v1137
      %1139 = vmatmul.bf16.gmra.mxu0 %v1114
      %v1140 = vpop.f32.mrf.mxu0
      %v1141 = vadd.f32 %v1088, %v1140
      %v1142 = vpop.f32.mrf.mxu0
      %v1143 = vadd.f32 %v1090, %v1142
      %1144 = vmatmul.bf16.gmra.mxu0 %v1116
      %v1145 = vpop.f32.mrf.mxu0
      %v1146 = vadd.f32 %v1093, %v1145
      %v1147 = vpop.f32.mrf.mxu0
      %v1148 = vadd.f32 %v1095, %v1147
      %1149 = vmatmul.bf16.gmra.mxu0 %v1118
      %v1150 = vpop.f32.mrf.mxu0
      %v1151 = vadd.f32 %v1098, %v1150
      %v1152 = vpop.f32.mrf.mxu0
      %v1153 = vadd.f32 %v1100, %v1152
      %1154 = vmatmul.bf16.gmra.mxu0 %v1121
      %v1155 = vpop.f32.mrf.mxu0
      %v1156 = vadd.f32 %v1103, %v1155
      %v1157 = vpop.f32.mrf.mxu0
      %1158 = vdwg.mxu0
      %v1159 = vld [vmem:[#allocation27 + $0x4] sm:$0xf]
      %v1160 = vld [vmem:[#allocation27 + $0x8] sm:$0xf]
      %v1161 = vld [vmem:[#allocation27 + $0xc] sm:$0xf]
      %v1162 = vld [vmem:[#allocation27 + $0x10] sm:$0xf]
      %v1163 = vld [vmem:[#allocation27 + $0x14] sm:$0xf]
      %v1164 = vld [vmem:[#allocation27 + $0x18] sm:$0xf]
      %v1165 = vld [vmem:[#allocation27 + $0x1c] sm:$0xf]
      %v1166 = vld [vmem:[#allocation27 + $0x20] sm:$0xf]
      %v1167 = vld [vmem:[#allocation27 + $0x24] sm:$0xf]
      %v1168 = vld [vmem:[#allocation27 + $0x28] sm:$0x1]
      %s1169 = scalar_lea.vmem [#allocation28], 16
      %v1170 = vld [vmem:[%s1169] sm:$0xf]
      %v1171 = vld [vmem:[%s1169 + $0x4] sm:$0x3]
      %v1172 = vld [vmem:[#allocation27 + $0x4] sm:$0xe]
      %s1173 = scalar_lea.vmem [#allocation28], 24
      %v1174 = vld [vmem:[%s1173] sm:$0xf]
      %v1175 = vld [vmem:[%s1173 + $0x4] sm:$0x3]
      %v1186 = vunpack.c.l.b16 %v1172
      %v1187 = vunpack.c.l.b16 %v1160
      %v1188 = vunpack.c.l.b16 %v1161
      %v1189 = vunpack.c.l.b16 %v1162
      %v1190 = vunpack.c.l.b16 %v1163
      %v1191 = vunpack.c.l.b16 %v1164
      %v1192 = vunpack.c.l.b16 %v1165
      %v1193 = vunpack.c.l.b16 %v1166
      %v1194 = vunpack.c.l.b16 %v1167
      %v1195 = vunpack.c.l.b16 %v1168
      %v1196 = vpack.c.b16 %v1187, %v1186
      %v1197 = vpack.c.b16 %v1189, %v1188
      %v1198 = vpack.c.b16 %v1191, %v1190
      %v1199 = vpack.c.b16 %v1193, %v1192
      %v1200 = vpack.c.b16 %v1195, %v1194
      %vm1201 = vcmask 1046528
      %v1202 = vrot.slane %v1196, 1
      %v1203 = vrot.slane %v1197, 1
      %v1204 = vsel %vm1201, %v1202, %v1203
      %v1205 = vrot.slane %v1198, 1
      %v1206 = vsel %vm1201, %v1203, %v1205
      %v1207 = vrot.slane %v1199, 1
      %v1208 = vsel %vm1201, %v1205, %v1207
      %v1209 = vrot.slane %v1200, 1
      %v1210 = vsel %vm1201, %v1207, %v1209
      %v1213 = vunpack.c.l.b16 %v1174
      %v1214 = vunpack.c.l.b16 %v1175
      %v1215 = vpack.c.b16 %v1214, %v1213
      %v1217 = vsel %vm1053, %v1204, 0
      %v1220 = vsel %vm1053, %v1206, 0
      %v1223 = vsel %vm1053, %v1208, 0
      %v1226 = vsel %vm1053, %v1210, 0
      %v1229 = vsel %vm1053, %v1209, 0
      %v1232 = vsel %vm1069, %v1215, 0
      %1234 = vmatpush.bf16.msra.mxu0 0
      %1235 = vmatpush.bf16.msra.mxu0 0
      %1236 = vmatpush.bf16.msra.mxu0 0
      %1237 = vmatpush.bf16.msra.mxu0 0
      %1238 = vmatpush.bf16.msra.mxu0 0
      %1239 = vmatpush.bf16.msra.mxu0 0
      %1240 = vmatpush.bf16.msra.mxu0 0
      %1241 = vmatpush.bf16.msra.mxu0 %v1232
      %1242 = vmatmul.bf16.gmra.mxu0 %v1217
      %v1243 = vpop.f32.mrf.mxu0
      %v1244 = vadd.f32 0.0, %v1243
      %v1245 = vpop.f32.mrf.mxu0
      %v1246 = vadd.f32 0.0, %v1245
      %1247 = vmatmul.bf16.gmra.mxu0 %v1220
      %v1248 = vpop.f32.mrf.mxu0
      %v1249 = vadd.f32 0.0, %v1248
      %v1250 = vpop.f32.mrf.mxu0
      %v1251 = vadd.f32 0.0, %v1250
      %1252 = vmatmul.bf16.gmra.mxu0 %v1223
      %v1253 = vpop.f32.mrf.mxu0
      %v1254 = vadd.f32 0.0, %v1253
      %v1255 = vpop.f32.mrf.mxu0
      %v1256 = vadd.f32 0.0, %v1255
      %1257 = vmatmul.bf16.gmra.mxu0 %v1226
      %v1258 = vpop.f32.mrf.mxu0
      %v1259 = vadd.f32 0.0, %v1258
      %v1260 = vpop.f32.mrf.mxu0
      %v1261 = vadd.f32 0.0, %v1260
      %1262 = vmatmul.bf16.gmra.mxu0 %v1229
      %v1263 = vpop.f32.mrf.mxu0
      %v1264 = vadd.f32 0.0, %v1263
      %v1265 = vpop.f32.mrf.mxu0
      %1266 = vdwg.mxu0
      %v1268 = vunpack.c.l.b16 %v1159
      %v1269 = vpack.c.b16 %v1187, %v1268
      %v1271 = vshrl.u32 %v1269, 16
      %v1273 = vshll.u32 %v1269, 16
      %v1275 = vrot.slane %v1273, 1
      %v1276 = vor.u32 %v1271, %v1275
      %v1278 = vshll.u32 %v1197, 16
      %v1280 = vrot.slane %v1278, 1
      %v1281 = vsel %vm1008, %v1276, %v1280
      %v1282 = vshrl.u32 %v1197, 16
      %v1284 = vor.u32 %v1282, %v1280
      %v1286 = vshll.u32 %v1198, 16
      %v1288 = vrot.slane %v1286, 1
      %v1289 = vsel %vm1008, %v1284, %v1288
      %v1290 = vshrl.u32 %v1198, 16
      %v1292 = vor.u32 %v1290, %v1288
      %v1294 = vshll.u32 %v1199, 16
      %v1296 = vrot.slane %v1294, 1
      %v1297 = vsel %vm1008, %v1292, %v1296
      %v1298 = vshrl.u32 %v1199, 16
      %v1300 = vor.u32 %v1298, %v1296
      %v1302 = vshll.u32 %v1200, 16
      %v1304 = vrot.slane %v1302, 1
      %v1305 = vsel %vm1008, %v1300, %v1304
      %v1306 = vshrl.u32 %v1200, 16
      %v1308 = vor.u32 %v1306, %v1304
      %v1311 = vunpack.c.l.b16 %v1170
      %v1312 = vunpack.c.l.b16 %v1171
      %v1313 = vpack.c.b16 %v1312, %v1311
      %v1315 = vsel %vm1053, %v1281, 0
      %v1318 = vsel %vm1053, %v1289, 0
      %v1321 = vsel %vm1053, %v1297, 0
      %v1324 = vsel %vm1053, %v1305, 0
      %v1327 = vsel %vm1053, %v1308, 0
      %v1330 = vsel %vm1069, %v1313, 0
      %1332 = vmatpush.bf16.msra.mxu0 0
      %1333 = vmatpush.bf16.msra.mxu0 0
      %1334 = vmatpush.bf16.msra.mxu0 0
      %1335 = vmatpush.bf16.msra.mxu0 0
      %1336 = vmatpush.bf16.msra.mxu0 0
      %1337 = vmatpush.bf16.msra.mxu0 0
      %1338 = vmatpush.bf16.msra.mxu0 0
      %1339 = vmatpush.bf16.msra.mxu0 %v1330
      %1340 = vmatmul.bf16.gmra.mxu0 %v1315
      %v1341 = vpop.f32.mrf.mxu0
      %v1342 = vadd.f32 %v1244, %v1341
      %v1343 = vpop.f32.mrf.mxu0
      %v1344 = vadd.f32 %v1246, %v1343
      %1345 = vmatmul.bf16.gmra.mxu0 %v1318
      %v1346 = vpop.f32.mrf.mxu0
      %v1347 = vadd.f32 %v1249, %v1346
      %v1348 = vpop.f32.mrf.mxu0
      %v1349 = vadd.f32 %v1251, %v1348
      %1350 = vmatmul.bf16.gmra.mxu0 %v1321
      %v1351 = vpop.f32.mrf.mxu0
      %v1352 = vadd.f32 %v1254, %v1351
      %v1353 = vpop.f32.mrf.mxu0
      %v1354 = vadd.f32 %v1256, %v1353
      %1355 = vmatmul.bf16.gmra.mxu0 %v1324
      %v1356 = vpop.f32.mrf.mxu0
      %v1357 = vadd.f32 %v1259, %v1356
      %v1358 = vpop.f32.mrf.mxu0
      %v1359 = vadd.f32 %v1261, %v1358
      %1360 = vmatmul.bf16.gmra.mxu0 %v1327
      %v1361 = vpop.f32.mrf.mxu0
      %v1362 = vadd.f32 %v1264, %v1361
      %v1363 = vpop.f32.mrf.mxu0
      %1364 = vdwg.mxu0
      %v1365 = vadd.f32 %v1136, %v1342
      %v1366 = vadd.f32 %v1138, %v1344
      %v1367 = vadd.f32 %v1141, %v1347
      %v1368 = vadd.f32 %v1143, %v1349
      %v1369 = vadd.f32 %v1146, %v1352
      %v1370 = vadd.f32 %v1148, %v1354
      %v1371 = vadd.f32 %v1151, %v1357
      %v1372 = vadd.f32 %v1153, %v1359
      %v1373 = vadd.f32 %v1156, %v1362
      %v1374 = vld [vmem:[#allocation29] sm:$0x1]
      %v1376 = vperm.slane %v1374, 0
      %v1378 = vadd.f32 %v1365, %v1376
      %v1379 = vadd.f32 %v1366, %v1376
      %v1380 = vadd.f32 %v1367, %v1376
      %v1381 = vadd.f32 %v1368, %v1376
      %v1382 = vadd.f32 %v1369, %v1376
      %v1383 = vadd.f32 %v1370, %v1376
      %v1384 = vadd.f32 %v1371, %v1376
      %v1385 = vadd.f32 %v1372, %v1376
      %v1386 = vadd.f32 %v1373, %v1376
      %v1387 = vmax.f32 %v1378, 0.0
      %v1388 = vmax.f32 %v1379, 0.0
      %v1389 = vmax.f32 %v1380, 0.0
      %v1390 = vmax.f32 %v1381, 0.0
      %v1391 = vmax.f32 %v1382, 0.0
      %v1392 = vmax.f32 %v1383, 0.0
      %v1393 = vmax.f32 %v1384, 0.0
      %v1394 = vmax.f32 %v1385, 0.0
      %v1395 = vmax.f32 %v1386, 0.0
      %v1396 = vpack.c.bf16 %v1387, %v1387
      %v1397 = vpack.c.bf16 %v1388, %v1388
      %v1398 = vpack.c.bf16 %v1389, %v1389
      %v1399 = vpack.c.bf16 %v1390, %v1390
      %v1400 = vpack.c.bf16 %v1391, %v1391
      %v1401 = vpack.c.bf16 %v1392, %v1392
      %v1402 = vpack.c.bf16 %v1393, %v1393
      %v1403 = vpack.c.bf16 %v1394, %v1394
      %v1404 = vpack.c.bf16 %v1395, %v1395
      %vm1405 = vcmask 125952
      %1406 = vst.msk [vmem:[%s404] sm:$0xf] %vm1405, %v1396
      %1407 = vst.msk [vmem:[%s404 + $0x4] sm:$0xf] %vm1405, %v1397
      %1408 = vst.msk [vmem:[%s404 + $0x8] sm:$0xf] %vm1405, %v1398
      %1409 = vst.msk [vmem:[%s404 + $0xc] sm:$0xf] %vm1405, %v1399
      %1410 = vst.msk [vmem:[%s404 + $0x10] sm:$0xf] %vm1405, %v1400
      %1411 = vst.msk [vmem:[%s404 + $0x14] sm:$0xf] %vm1405, %v1401
      %1412 = vst.msk [vmem:[%s404 + $0x18] sm:$0xf] %vm1405, %v1402
      %1413 = vst.msk [vmem:[%s404 + $0x1c] sm:$0xf] %vm1405, %v1403
      %1414 = vst.msk [vmem:[%s404 + $0x20] sm:$0xf] %vm1405, %v1404
      %p1415 = scmp.lt.s32.totalorder %s44, 1
      %s1416 = scalar_select %p1415, %s44, 1
      %s1417 = smul.addr %s1416, 9
      %s1418 = smul.addr %s1417, 4
      %s1419 = scalar_lea.vmem %s8, %s1418
      // Predicated region
      $region45: #{baseline_forward.16} parent=43 // pred_check
        %p1420 = pneg %p214
      $region46: #{baseline_forward.16} parent=43 // pred_check_branch
        %1422 = sbr.rel (%p1420) target = $region48
      $region47: #{baseline_forward.16} parent=43 // pred_region
        _
      $region48: #{baseline_forward.16} parent=43 // pred_fallthru
        _
    $region44: #{baseline_forward.16} parent=5 // pred_fallthru
      _
    %p1423 = scmp.le.s32.totalorder 2, %s39
    // Predicated region
    $region49: #{baseline_forward.16} parent=5 // pred_check
      %p1424 = pneg %p1423
    $region50: #{baseline_forward.16} parent=5 // pred_check_branch
      %1426 = sbr.rel (%p1424) target = $region52
    $region51: #{baseline_forward.16} parent=5 // pred_region
      %s1427 = ssub.s32 %s39, 2
      // Predicated region
      $region53: #{baseline_forward.16} parent=51 // pred_check
        %p1428 = pneg %p220
      $region54: #{baseline_forward.16} parent=51 // pred_check_branch
        %1430 = sbr.rel (%p1428) target = $region56
      $region55: #{baseline_forward.16} parent=51 // pred_region
        %p1431 = scmp.lt.s32.totalorder %s45, 1
        %s1432 = scalar_select %p1431, %s45, 1
        %s1433 = smul.addr %s1432, 9
        %s1434 = smul.addr %s1433, 4
        %s1435 = scalar_lea.vmem %s8, %s1434
      $region56: #{baseline_forward.16} parent=51 // pred_fallthru
        _
    $region52: #{baseline_forward.16} parent=5 // pred_fallthru
      _
  $region6: #{baseline_forward.16} parent=0 // loop_footer
    %s43 = sadd.s32 1, %s39
  $region7: #{baseline_forward.16} parent=0 // loop_footer_branch
    %38 = sbr.rel target = $region3
  $region8: #{baseline_forward.16} parent=0 // loop_exit
    _

// kernel: baseline_forward.14
$region0: #{baseline_forward.14}
  #allocation0 [shape = 'u32[]', space=smem, size = 0x4, offset = 0x4, fixed_abs, tag = 'smem constant byte address 0x4 - core index']
  #allocation1 [shape = 'u32[72,128]{1,0:T(1,128)}', space=vmem, size = 0x9000, scoped, tag = 'internal scratch']
  #allocation2 [shape = 'u32[2048]{0}', space=vmem, size = 0x2000, scoped, tag = 'scoped memory for baseline_forward.14']
  #allocation3 [shape = 'u32[2048]{0}', space=vmem, size = 0x2000, scoped, tag = 'scoped memory for baseline_forward.14']
  #allocation4 [shape = 'u32[2048]{0}', space=vmem, size = 0x2000, scoped, tag = 'scoped memory for baseline_forward.14']
  #allocation5 [shape = 'u32[2048]{0}', space=vmem, size = 0x2000, scoped, tag = 'scoped memory for baseline_forward.14']
  #allocation6 [shape = 'u32[2048]{0}', space=vmem, size = 0x2000, scoped, tag = 'scoped memory for baseline_forward.14']
  #allocation7 [shape = 'u32[2048]{0}', space=vmem, size = 0x2000, scoped, tag = 'scoped memory for baseline_forward.14']
  #allocation8 [shape = 'u32[2048]{0}', space=vmem, size = 0x2000, scoped, tag = 'scoped memory for baseline_forward.14']
  #allocation9 [shape = 'u32[2048]{0}', space=vmem, size = 0x2000, scoped, tag = 'scoped memory for baseline_forward.14']
  #allocation10 [shape = 'u32[2048]{0}', space=vmem, size = 0x2000, scoped, tag = 'scoped memory for baseline_forward.14']
  #allocation11 [shape = 'u32[2048]{0}', space=vmem, size = 0x2000, scoped, tag = 'scoped memory for baseline_forward.14']
  #allocation12 [shape = 'u32[2048]{0}', space=vmem, size = 0x2000, scoped, tag = 'scoped memory for baseline_forward.14']
  #allocation13 [shape = 'u32[2048]{0}', space=vmem, size = 0x2000, scoped, tag = 'scoped memory for baseline_forward.14']
  #allocation14 [shape = 'u32[2048]{0}', space=vmem, size = 0x2000, scoped, tag = 'scoped memory for baseline_forward.14']
  #allocation15 [shape = 'u32[2048]{0}', space=vmem, size = 0x2000, scoped, tag = 'scoped memory for baseline_forward.14']
  #allocation16 [shape = 'u32[2048]{0}', space=vmem, size = 0x2000, scoped, tag = 'scoped memory for baseline_forward.14']
  #allocation17 [shape = 'u32[2048]{0}', space=vmem, size = 0x2000, scoped, tag = 'scoped memory for baseline_forward.14']
  #allocation18 [shape = 'u32[2048]{0}', space=vmem, size = 0x2000, scoped, tag = 'scoped memory for baseline_forward.14']
  #allocation19 [shape = 'u32[2048]{0}', space=vmem, size = 0x2000, scoped, tag = 'scoped memory for baseline_forward.14']
  #allocation20 [shape = 'u32[2048]{0}', space=vmem, size = 0x2000, scoped, tag = 'scoped memory for baseline_forward.14']
  #allocation21 [shape = 'u32[2048]{0}', space=vmem, size = 0x2000, scoped, tag = 'scoped memory for baseline_forward.14']
  #allocation22 [shape = 'u32[2048]{0}', space=vmem, size = 0x2000, scoped, tag = 'scoped memory for baseline_forward.14']
  #allocation23 [shape = 'u32[2048]{0}', space=vmem, size = 0x2000, scoped, tag = 'scoped memory for baseline_forward.14']
  #allocation24 [shape = 'u32[2048]{0}', space=vmem, size = 0x2000, scoped, tag = 'scoped memory for baseline_forward.14']
  #allocation25 [shape = 'u32[2048]{0}', space=vmem, size = 0x2000, scoped, tag = 'scoped memory for baseline_forward.14']
  #allocation26 [shape = 'u32[2048]{0}', space=vmem, size = 0x2000, scoped, tag = 'scoped memory for baseline_forward.14']
  %s0 = inlined_call_operand.vmem [shape: bf16[1,64,32], index: 0, kind: input, shape index: {}]
  %s1 = inlined_call_operand.<no memory space> [shape: bf16[], index: 1, kind: input, shape index: {}]
  %s2 = inlined_call_operand.vmem [shape: bf16[1,64,32], index: 2, kind: input, shape index: {}]
  %s3 = inlined_call_operand.vmem [shape: bf16[1,64,32], index: 3, kind: input, shape index: {}]
  %s4 = inlined_call_operand.vmem [shape: bf16[1,64,32], index: 4, kind: input, shape index: {}]
  %s5 = inlined_call_operand.vmem [shape: bf16[2,25,64], index: 5, kind: input, shape index: {}]
  %s6 = inlined_call_operand.<no memory space> [shape: bf16[], index: 6, kind: input, shape index: {}]
  %s7 = inlined_call_operand.vmem [shape: f32[32], index: 7, kind: input, shape index: {}]
  %s8 = inlined_call_operand.vmem [shape: bf16[2,20,32], index: 8, kind: output, shape index: {}]
  %s9 = sld [smem:[#allocation0]]
  $region57: #{baseline_forward.14} parent=0
    _
  %s11 = ssub.s32 1, %s9
  %s12 = scalar_select 0, %s11, %s9
  %v13 = vstv %s6
  %v14 = vunpack.i.l.bf16 %v13
  %v16 = vunpack.i.h.bf16 %v13
  %v18 = vstv %s1
  %v19 = vunpack.i.l.bf16 %v18
  %v21 = vunpack.i.h.bf16 %v18
  %v23 = vstv %s1
  %v24 = vunpack.i.l.bf16 %v23
  %v26 = vunpack.i.h.bf16 %v23
  %v28 = vstv %s1
  %v29 = vunpack.i.l.bf16 %v28
  %v31 = vunpack.i.h.bf16 %v28
  %v33 = vstv %s1
  %v34 = vunpack.i.l.bf16 %v33
  %v36 = vunpack.i.h.bf16 %v33
  loop: start=0, step=1, limit=4
  $region2: #{baseline_forward.14} parent=0 // loop_pre_header
    _
  $region3: #{baseline_forward.14} parent=0 // loop_header
    %s39 = sphi 0, %s43
    %p40 = scmp.ge.s32.totalorder %s39, 4
    %s49 = sphi 0, %s51
    %s52 = sphi 0, %s49
    %s53 = sphi 0, %s52
    %s69 = sphi 0, %s53
    %s77 = sphi 0, %s79
    %s80 = sphi 0, %s77
    %s81 = sphi 0, %s80
    %s97 = sphi 0, %s81
    %s105 = sphi 0, %s107
    %s108 = sphi 0, %s105
    %s109 = sphi 0, %s108
    %s125 = sphi 0, %s109
    %s133 = sphi 0, %s135
    %s136 = sphi 0, %s133
    %s137 = sphi 0, %s136
    %s153 = sphi 0, %s137
    %s157 = sphi 0, %s157
    %s159 = sphi 0, %s157
    %s160 = sphi 0, %s159
    %s174 = sphi 0, %s160
    %s178 = sphi 0, %s178
    %s180 = sphi 0, %s178
    %s181 = sphi 0, %s180
    %s195 = sphi 0, %s181
    %s201 = sphi 0, %s203
    %s204 = sphi 0, %s201
    %s205 = sphi 0, %s204
    %s221 = sphi 0, %s205
  $region4: #{baseline_forward.14} parent=0 // loop_header_branch
    %42 = sbr.rel (%p40) target = $region8
  $region5: #{baseline_forward.14} parent=0 // loop_body
    %s44 = ssub.s32 %s39, 1
    %s45 = ssub.s32 %s39, 2
    %s46 = sadd.s32 %s39, 1
    %s47 = ssub.s32 %s39, %s46
    %p48 = scmp.eq.s32.totalorder %s47, 0
    %s50 = sadd.s32 %s49, 1
    %s51 = scalar_select %p48, %s49, %s50
    %p54 = pneg %p48
    %p55 = scmp.eq.s32.totalorder %s39, 1
    %p56 = por %p54, %p55
    %p57 = scmp.ne.s32.totalorder %s49, %s52
    %p58 = scmp.eq.s32.totalorder %s39, 0
    %p59 = por %p57, %p58
    %p60 = scmp.ne.s32.totalorder %s49, %s52
    %p61 = scmp.eq.s32.totalorder %s44, 1
    %p62 = por %p60, %p61
    %p63 = scmp.ne.s32.totalorder %s52, %s53
    %p64 = scmp.eq.s32.totalorder %s44, 0
    %p65 = por %p63, %p64
    %p66 = scmp.ne.s32.totalorder %s52, %s53
    %p67 = scmp.eq.s32.totalorder %s45, 1
    %p68 = por %p66, %p67
    %p70 = scmp.ne.s32.totalorder %s53, %s69
    %p71 = scmp.eq.s32.totalorder %s45, 0
    %p72 = por %p70, %p71
    %s75 = ssub.s32 0, 0
    %p76 = scmp.eq.s32.totalorder %s75, 0
    %s78 = sadd.s32 %s77, 1
    %s79 = scalar_select %p76, %s77, %s78
    %p82 = pneg %p76
    %p83 = scmp.eq.s32.totalorder %s39, 1
    %p84 = por %p82, %p83
    %p85 = scmp.ne.s32.totalorder %s77, %s80
    %p86 = scmp.eq.s32.totalorder %s39, 0
    %p87 = por %p85, %p86
    %p88 = scmp.ne.s32.totalorder %s77, %s80
    %p89 = scmp.eq.s32.totalorder %s44, 1
    %p90 = por %p88, %p89
    %p91 = scmp.ne.s32.totalorder %s80, %s81
    %p92 = scmp.eq.s32.totalorder %s44, 0
    %p93 = por %p91, %p92
    %p94 = scmp.ne.s32.totalorder %s80, %s81
    %p95 = scmp.eq.s32.totalorder %s45, 1
    %p96 = por %p94, %p95
    %p98 = scmp.ne.s32.totalorder %s81, %s97
    %p99 = scmp.eq.s32.totalorder %s45, 0
    %p100 = por %p98, %p99
    %s103 = ssub.s32 0, 0
    %p104 = scmp.eq.s32.totalorder %s103, 0
    %s106 = sadd.s32 %s105, 1
    %s107 = scalar_select %p104, %s105, %s106
    %p110 = pneg %p104
    %p111 = scmp.eq.s32.totalorder %s39, 1
    %p112 = por %p110, %p111
    %p113 = scmp.ne.s32.totalorder %s105, %s108
    %p114 = scmp.eq.s32.totalorder %s39, 0
    %p115 = por %p113, %p114
    %p116 = scmp.ne.s32.totalorder %s105, %s108
    %p117 = scmp.eq.s32.totalorder %s44, 1
    %p118 = por %p116, %p117
    %p119 = scmp.ne.s32.totalorder %s108, %s109
    %p120 = scmp.eq.s32.totalorder %s44, 0
    %p121 = por %p119, %p120
    %p122 = scmp.ne.s32.totalorder %s108, %s109
    %p123 = scmp.eq.s32.totalorder %s45, 1
    %p124 = por %p122, %p123
    %p126 = scmp.ne.s32.totalorder %s109, %s125
    %p127 = scmp.eq.s32.totalorder %s45, 0
    %p128 = por %p126, %p127
    %s131 = ssub.s32 0, 0
    %p132 = scmp.eq.s32.totalorder %s131, 0
    %s134 = sadd.s32 %s133, 1
    %s135 = scalar_select %p132, %s133, %s134
    %p138 = pneg %p132
    %p139 = scmp.eq.s32.totalorder %s39, 1
    %p140 = por %p138, %p139
    %p141 = scmp.ne.s32.totalorder %s133, %s136
    %p142 = scmp.eq.s32.totalorder %s39, 0
    %p143 = por %p141, %p142
    %p144 = scmp.ne.s32.totalorder %s133, %s136
    %p145 = scmp.eq.s32.totalorder %s44, 1
    %p146 = por %p144, %p145
    %p147 = scmp.ne.s32.totalorder %s136, %s137
    %p148 = scmp.eq.s32.totalorder %s44, 0
    %p149 = por %p147, %p148
    %p150 = scmp.ne.s32.totalorder %s136, %s137
    %p151 = scmp.eq.s32.totalorder %s45, 1
    %p152 = por %p150, %p151
    %p154 = scmp.ne.s32.totalorder %s137, %s153
    %p155 = scmp.eq.s32.totalorder %s45, 0
    %p156 = por %p154, %p155
    %s158 = sadd.s32 %s157, 1
    %p161 = scmp.eq.s32.totalorder %s39, 1
    %p162 = scmp.ne.s32.totalorder %s157, %s159
    %p163 = scmp.eq.s32.totalorder %s39, 0
    %p164 = por %p162, %p163
    %p165 = scmp.ne.s32.totalorder %s157, %s159
    %p166 = scmp.eq.s32.totalorder %s44, 1
    %p167 = por %p165, %p166
    %p168 = scmp.ne.s32.totalorder %s159, %s160
    %p169 = scmp.eq.s32.totalorder %s44, 0
    %p170 = por %p168, %p169
    %p171 = scmp.ne.s32.totalorder %s159, %s160
    %p172 = scmp.eq.s32.totalorder %s45, 1
    %p173 = por %p171, %p172
    %p175 = scmp.ne.s32.totalorder %s160, %s174
    %p176 = scmp.eq.s32.totalorder %s45, 0
    %p177 = por %p175, %p176
    %s179 = sadd.s32 %s178, 1
    %p182 = scmp.eq.s32.totalorder %s39, 1
    %p183 = scmp.ne.s32.totalorder %s178, %s180
    %p184 = scmp.eq.s32.totalorder %s39, 0
    %p185 = por %p183, %p184
    %p186 = scmp.ne.s32.totalorder %s178, %s180
    %p187 = scmp.eq.s32.totalorder %s44, 1
    %p188 = por %p186, %p187
    %p189 = scmp.ne.s32.totalorder %s180, %s181
    %p190 = scmp.eq.s32.totalorder %s44, 0
    %p191 = por %p189, %p190
    %p192 = scmp.ne.s32.totalorder %s180, %s181
    %p193 = scmp.eq.s32.totalorder %s45, 1
    %p194 = por %p192, %p193
    %p196 = scmp.ne.s32.totalorder %s181, %s195
    %p197 = scmp.eq.s32.totalorder %s45, 0
    %p198 = por %p196, %p197
    %s199 = ssub.s32 %s39, %s46
    %p200 = scmp.eq.s32.totalorder %s199, 0
    %s202 = sadd.s32 %s201, 1
    %s203 = scalar_select %p200, %s201, %s202
    %p206 = pneg %p200
    %p207 = scmp.eq.s32.totalorder %s39, 1
    %p208 = por %p206, %p207
    %p209 = scmp.ne.s32.totalorder %s201, %s204
    %p210 = scmp.eq.s32.totalorder %s39, 0
    %p211 = por %p209, %p210
    %p212 = scmp.ne.s32.totalorder %s201, %s204
    %p213 = scmp.eq.s32.totalorder %s44, 1
    %p214 = por %p212, %p213
    %p215 = scmp.ne.s32.totalorder %s204, %s205
    %p216 = scmp.eq.s32.totalorder %s44, 0
    %p217 = por %p215, %p216
    %p218 = scmp.ne.s32.totalorder %s204, %s205
    %p219 = scmp.eq.s32.totalorder %s45, 1
    %p220 = por %p218, %p219
    %p222 = scmp.ne.s32.totalorder %s205, %s221
    %p223 = scmp.eq.s32.totalorder %s45, 0
    %p224 = por %p222, %p223
    %p225 = scmp.le.s32.totalorder 1, %s39
    %p226 = scmp.lt.s32.totalorder %s39, 3
    %p227 = pnand %p225, %p226
    %p228 = pneg %p227
    // Predicated region
    $region9: #{baseline_forward.14} parent=5 // pred_check
      _
    $region10: #{baseline_forward.14} parent=5 // pred_check_branch
      %230 = sbr.rel (%p227) target = $region12
    $region11: #{baseline_forward.14} parent=5 // pred_region
      %s231 = ssub.s32 %s39, 1
      // Predicated region
      $region13: #{baseline_forward.14} parent=11 // pred_check
        %p232 = pneg %p93
      $region14: #{baseline_forward.14} parent=11 // pred_check_branch
        %234 = sbr.rel (%p232) target = $region16
      $region15: #{baseline_forward.14} parent=11 // pred_region
        %s236 = ssub.s32 1, 0
        %s237 = smul.u32 4, %s236
        %s238 = smul.u32 %s237, 8
        %p239 = scmp.lt.s32.totalorder 0, 0
        %s240 = scalar_select %p239, 0, 0
        %s241 = smul.addr %s240, 8
        %s242 = smul.addr %s241, 4
        %s243 = scalar_lea.vmem %s0, %s242
        %s245 = ssub.s32 1, 0
        %s246 = smul.u32 4, %s245
        %s247 = smul.u32 %s246, 8
      $region16: #{baseline_forward.14} parent=11 // pred_fallthru
        _
      // Predicated region
      $region17: #{baseline_forward.14} parent=11 // pred_check
        %p248 = pneg %p121
      $region18: #{baseline_forward.14} parent=11 // pred_check_branch
        %250 = sbr.rel (%p248) target = $region20
      $region19: #{baseline_forward.14} parent=11 // pred_region
        %s252 = ssub.s32 1, 0
        %s253 = smul.u32 4, %s252
        %s254 = smul.u32 %s253, 8
        %p255 = scmp.lt.s32.totalorder 0, 0
        %s256 = scalar_select %p255, 0, 0
        %s257 = smul.addr %s256, 8
        %s258 = smul.addr %s257, 4
        %s259 = scalar_lea.vmem %s2, %s258
        %s261 = ssub.s32 1, 0
        %s262 = smul.u32 4, %s261
        %s263 = smul.u32 %s262, 8
      $region20: #{baseline_forward.14} parent=11 // pred_fallthru
        _
      // Predicated region
      $region21: #{baseline_forward.14} parent=11 // pred_check
        %p264 = pneg %p149
      $region22: #{baseline_forward.14} parent=11 // pred_check_branch
        %266 = sbr.rel (%p264) target = $region24
      $region23: #{baseline_forward.14} parent=11 // pred_region
        %s268 = ssub.s32 1, 0
        %s269 = smul.u32 4, %s268
        %s270 = smul.u32 %s269, 8
        %p271 = scmp.lt.s32.totalorder 0, 0
        %s272 = scalar_select %p271, 0, 0
        %s273 = smul.addr %s272, 8
        %s274 = smul.addr %s273, 4
        %s275 = scalar_lea.vmem %s3, %s274
        %s277 = ssub.s32 1, 0
        %s278 = smul.u32 4, %s277
        %s279 = smul.u32 %s278, 8
      $region24: #{baseline_forward.14} parent=11 // pred_fallthru
        _
      // Predicated region
      $region25: #{baseline_forward.14} parent=11 // pred_check
        %p280 = pneg %p170
      $region26: #{baseline_forward.14} parent=11 // pred_check_branch
        %282 = sbr.rel (%p280) target = $region28
      $region27: #{baseline_forward.14} parent=11 // pred_region
        _
      $region28: #{baseline_forward.14} parent=11 // pred_fallthru
        _
      // Predicated region
      $region29: #{baseline_forward.14} parent=11 // pred_check
        %p283 = pneg %p191
      $region30: #{baseline_forward.14} parent=11 // pred_check_branch
        %285 = sbr.rel (%p283) target = $region32
      $region31: #{baseline_forward.14} parent=11 // pred_region
        _
      $region32: #{baseline_forward.14} parent=11 // pred_fallthru
        _
    $region12: #{baseline_forward.14} parent=5 // pred_fallthru
      _
    %p286 = scmp.lt.s32.totalorder %s39, 2
    // Predicated region
    $region33: #{baseline_forward.14} parent=5 // pred_check
      %p287 = pneg %p286
    $region34: #{baseline_forward.14} parent=5 // pred_check_branch
      %289 = sbr.rel (%p287) target = $region36
    $region35: #{baseline_forward.14} parent=5 // pred_region
      // Predicated region
      $region37: #{baseline_forward.14} parent=35 // pred_check
        %p290 = pneg %p59
      $region38: #{baseline_forward.14} parent=35 // pred_check_branch
        %292 = sbr.rel (%p290) target = $region40
      $region39: #{baseline_forward.14} parent=35 // pred_region
        %p293 = scmp.lt.s32.totalorder %s39, 1
        %s294 = scalar_select %p293, %s39, 1
        %s295 = smul.addr %s294, 4
        %s296 = smul.addr %s295, 4
        %s297 = scalar_lea.vmem %s5, %s296
      $region40: #{baseline_forward.14} parent=35 // pred_fallthru
        _
    $region36: #{baseline_forward.14} parent=5 // pred_fallthru
      _
    %p298 = scmp.le.s32.totalorder 1, %s39
    %p299 = scmp.lt.s32.totalorder %s39, 3
    %p300 = pnand %p298, %p299
    %p301 = pneg %p300
    // Predicated region
    $region41: #{baseline_forward.14} parent=5 // pred_check
      _
    $region42: #{baseline_forward.14} parent=5 // pred_check_branch
      %303 = sbr.rel (%p300) target = $region44
    $region43: #{baseline_forward.14} parent=5 // pred_region
      #allocation27 [shape = 'u8[8192]{0}', space=vmem, size = 0x2000, dematerialized = true, scoped, tag = 'FusionAdapter Buffer %fusion.61 = bf16[2,32,64]{2,1,0:T(8,128)(2,1)} fusion(%param_5.27, %param_6.25), kind=kLoop, calls=%fused_computation.102.clone, metadata={op_name="jit(baseline_forward)/jit(_pad)/pad" stack_frame_id=40}']
      #allocation28 [shape = 'u8[65536]{0}', space=vmem, size = 0x10000, dematerialized = true, scoped, tag = 'FusionAdapter Buffer %fusion.11 = bf16[4,64,32]{2,1,0:T(8,128)(2,1)} fusion(%param_0.408, %param_1.286, %param_2.184, %param_3.161, %param_4.95), kind=kLoop, calls=%fused_computation.12.clone, metadata={op_name="jit(baseline_forward)/concatenate" stack_frame_id=38}']
      #allocation29 [shape = 'u8[512]{0}', space=vmem, size = 0x400, dematerialized = true, scoped, tag = 'FusionAdapter Buffer %fusion.70 = f32[1,32]{1,0:T(1,128)} fusion(%param_7.11), kind=kLoop, calls=%fused_computation.179.clone, metadata={op_name="jit(baseline_forward)/reshape" stack_frame_id=43}']
      %s304 = ssub.s32 %s39, 1
      %p305 = scmp.lt.s32.totalorder %s44, 1
      %s306 = scalar_select %p305, %s44, 1
      %s307 = smul.addr %s306, 4
      %s308 = smul.addr %s307, 4
      %s309 = scalar_lea.vmem %s5, %s308
      %p310 = pneg %p65
      %p311 = pneg %p62
      %s313 = ssub.s32 1, 0
      %s314 = smul.u32 4, %s313
      %s315 = smul.u32 %s314, 8
      %p316 = scmp.lt.s32.totalorder 0, 0
      %s317 = scalar_select %p316, 0, 0
      %s318 = smul.addr %s317, 8
      %s319 = smul.addr %s318, 4
      %s320 = scalar_lea.vmem %s0, %s319
      %p321 = pneg %p93
      %p322 = pneg %p90
      %s324 = ssub.s32 1, 0
      %s325 = smul.u32 4, %s324
      %s326 = smul.u32 %s325, 8
      %p327 = scmp.lt.s32.totalorder 0, 0
      %s328 = scalar_select %p327, 0, 0
      %s329 = smul.addr %s328, 8
      %s330 = smul.addr %s329, 4
      %s331 = scalar_lea.vmem %s2, %s330
      %p332 = pneg %p121
      %p333 = pneg %p118
      %s335 = ssub.s32 1, 0
      %s336 = smul.u32 4, %s335
      %s337 = smul.u32 %s336, 8
      %p338 = scmp.lt.s32.totalorder 0, 0
      %s339 = scalar_select %p338, 0, 0
      %s340 = smul.addr %s339, 8
      %s341 = smul.addr %s340, 4
      %s342 = scalar_lea.vmem %s3, %s341
      %p343 = pneg %p149
      %p344 = pneg %p146
      %p345 = pneg %p170
      %p346 = pneg %p167
      %p347 = pneg %p191
      %p348 = pneg %p188
      %p349 = pneg %p217
      %p350 = pneg %p214
      %p351 = scmp.lt.s32.totalorder %s44, 1
      %s352 = scalar_select %p351, %s44, 1
      %s353 = smul.addr %s352, 3
      %s354 = smul.addr %s353, 4
      %s355 = scalar_lea.vmem %s8, %s354
      %p356 = scmp.lt.s32.totalorder %s44, 1
      %s357 = scalar_select %p356, %s44, 1
      %s358 = smul.addr %s357, 4
      %s359 = smul.addr %s358, 4
      %s360 = scalar_lea.vmem %s5, %s359
      %s362 = ssub.s32 1, 0
      %s363 = smul.u32 4, %s362
      %s364 = smul.u32 %s363, 8
      %p365 = scmp.lt.s32.totalorder 0, 0
      %s366 = scalar_select %p365, 0, 0
      %s367 = smul.addr %s366, 8
      %s368 = smul.addr %s367, 4
      %s369 = scalar_lea.vmem %s0, %s368
      %s371 = ssub.s32 1, 0
      %s372 = smul.u32 4, %s371
      %s373 = smul.u32 %s372, 8
      %s375 = ssub.s32 1, 0
      %s376 = smul.u32 4, %s375
      %s377 = smul.u32 %s376, 8
      %p378 = scmp.lt.s32.totalorder 0, 0
      %s379 = scalar_select %p378, 0, 0
      %s380 = smul.addr %s379, 8
      %s381 = smul.addr %s380, 4
      %s382 = scalar_lea.vmem %s2, %s381
      %s384 = ssub.s32 1, 0
      %s385 = smul.u32 4, %s384
      %s386 = smul.u32 %s385, 8
      %s388 = ssub.s32 1, 0
      %s389 = smul.u32 4, %s388
      %s390 = smul.u32 %s389, 8
      %p391 = scmp.lt.s32.totalorder 0, 0
      %s392 = scalar_select %p391, 0, 0
      %s393 = smul.addr %s392, 8
      %s394 = smul.addr %s393, 4
      %s395 = scalar_lea.vmem %s3, %s394
      %s397 = ssub.s32 1, 0
      %s398 = smul.u32 4, %s397
      %s399 = smul.u32 %s398, 8
      %p400 = scmp.lt.s32.totalorder %s44, 1
      %s401 = scalar_select %p400, %s44, 1
      %s402 = smul.addr %s401, 3
      %s403 = smul.addr %s402, 4
      %s404 = scalar_lea.vmem %s8, %s403
      %v405 = vld [vmem:[%s360] sm:$0xf]
      %v406 = vunpack.c.l.bf16 %v405
      %v407 = vunpack.c.h.bf16 %v405
      %v408 = vlaneseq
      %v409 = vshrl.u32 %v408, 7
      %vm411 = vcmp.lt.s32.totalorder %v409, 25
      %v412 = vsel %vm411, %v406, %v14
      %v413 = vlaneseq
      %v414 = vand.u32 %v413, 127
      %vm416 = vcmp.lt.s32.totalorder %v414, 64
      %v417 = vsel %vm416, %v412, %v14
      %v418 = vpack.c.bf16 0.0, %v417
      %s420 = ssub.s32 16, 1
      %421 = vst [vmem:[#allocation27] sm:%s420] %v418
      %s422 = scalar_lea.vmem %s360, 4
      %v423 = vld [vmem:[%s422] sm:$0xf]
      %v424 = vunpack.c.l.bf16 %v423
      %v425 = vunpack.c.h.bf16 %v423
      %v426 = vlaneseq
      %v427 = vshrl.u32 %v426, 7
      %v428 = vadd.s32 %v427, 8
      %vm429 = vcmp.lt.s32.totalorder %v428, 25
      %v430 = vsel %vm429, %v424, %v14
      %v431 = vlaneseq
      %v432 = vand.u32 %v431, 127
      %vm434 = vcmp.lt.s32.totalorder %v432, 64
      %v435 = vsel %vm434, %v430, %v14
      %s436 = scalar_lea.vmem [#allocation27], 4
      %v437 = vpack.c.bf16 0.0, %v435
      %s439 = ssub.s32 16, 1
      %440 = vst [vmem:[%s436] sm:%s439] %v437
      %s441 = scalar_lea.vmem %s360, 8
      %v442 = vld [vmem:[%s441] sm:$0xf]
      %v443 = vunpack.c.l.bf16 %v442
      %v444 = vunpack.c.h.bf16 %v442
      %v445 = vlaneseq
      %v446 = vshrl.u32 %v445, 7
      %v447 = vadd.s32 %v446, 16
      %vm448 = vcmp.lt.s32.totalorder %v447, 25
      %v449 = vsel %vm448, %v443, %v14
      %v450 = vlaneseq
      %v451 = vand.u32 %v450, 127
      %vm453 = vcmp.lt.s32.totalorder %v451, 64
      %v454 = vsel %vm453, %v449, %v14
      %s455 = scalar_lea.vmem [#allocation27], 8
      %v456 = vpack.c.bf16 0.0, %v454
      %s458 = ssub.s32 16, 1
      %459 = vst [vmem:[%s455] sm:%s458] %v456
      %s460 = scalar_lea.vmem %s360, 12
      %s462 = sor.u32 255, 127
      %s463 = sand.u32 %s462, 85
      %s464 = sshrl.u32 %s463, 1
      %s465 = sor.u32 %s463, %s464
      %s466 = sand.u32 51, %s465
      %s467 = sshrl.u32 %s466, 2
      %s468 = sor.u32 %s466, %s467
      %s469 = sand.u32 15, %s468
      %v470 = vld [vmem:[%s460] sm:%s469]
      %v471 = vunpack.c.l.bf16 %v470
      %v472 = vunpack.c.h.bf16 %v470
      %v473 = vlaneseq
      %v474 = vshrl.u32 %v473, 7
      %v475 = vadd.s32 %v474, 24
      %vm476 = vcmp.lt.s32.totalorder %v475, 25
      %v477 = vsel %vm476, %v471, %v14
      %v478 = vlaneseq
      %v479 = vand.u32 %v478, 127
      %vm481 = vcmp.lt.s32.totalorder %v479, 64
      %v482 = vsel %vm481, %v477, %v14
      %s483 = scalar_lea.vmem [#allocation27], 12
      %v484 = vpack.c.bf16 0.0, %v482
      %s486 = ssub.s32 16, 1
      %487 = vst [vmem:[%s483] sm:%s486] %v484
      %s488 = ssub.s32 0, 0
      %p489 = scmp.lt.s32.totalorder %s488, 0
      %s490 = scalar_select %p489, 0, 255
      %s491 = sshrl.u32 %s490, 1
      %s492 = sor.u32 %s490, %s491
      %s493 = sand.u32 %s492, 85
      %s494 = sshrl.u32 %s493, 1
      %s495 = sor.u32 %s493, %s494
      %s496 = sand.u32 51, %s495
      %s497 = sshrl.u32 %s496, 2
      %s498 = sor.u32 %s496, %s497
      %s499 = sand.u32 15, %s498
      %v500 = vld [vmem:[%s369] sm:%s499]
      %v501 = vunpack.c.l.bf16 %v500
      %v502 = vunpack.c.h.bf16 %v500
      %s503 = ssub.s32 0, 0
      %p504 = scmp.lt.s32.totalorder %s503, 0
      %s505 = scalar_select %p504, 0, 255
      %s506 = sshrl.u32 %s505, 1
      %s507 = sor.u32 %s505, %s506
      %s508 = sand.u32 %s507, 85
      %s509 = sshrl.u32 %s508, 1
      %s510 = sor.u32 %s508, %s509
      %s511 = sand.u32 51, %s510
      %s512 = sshrl.u32 %s511, 2
      %s513 = sor.u32 %s511, %s512
      %s514 = sand.u32 15, %s513
      %v515 = vld [vmem:[%s382] sm:%s514]
      %v516 = vunpack.c.l.bf16 %v515
      %v517 = vunpack.c.h.bf16 %v515
      %s518 = ssub.s32 0, 0
      %p519 = scmp.lt.s32.totalorder %s518, 0
      %s520 = scalar_select %p519, 0, 255
      %s521 = sshrl.u32 %s520, 1
      %s522 = sor.u32 %s520, %s521
      %s523 = sand.u32 %s522, 85
      %s524 = sshrl.u32 %s523, 1
      %s525 = sor.u32 %s523, %s524
      %s526 = sand.u32 51, %s525
      %s527 = sshrl.u32 %s526, 2
      %s528 = sor.u32 %s526, %s527
      %s529 = sand.u32 15, %s528
      %v530 = vld [vmem:[%s395] sm:%s529]
      %v531 = vunpack.c.l.bf16 %v530
      %v532 = vunpack.c.h.bf16 %v530
      %s534 = sor.u32 255, 127
      %s535 = sand.u32 %s534, 85
      %s536 = sshrl.u32 %s535, 1
      %s537 = sor.u32 %s535, %s536
      %s538 = sand.u32 51, %s537
      %s539 = sshrl.u32 %s538, 2
      %s540 = sor.u32 %s538, %s539
      %s541 = sand.u32 15, %s540
      %v542 = vld [vmem:[%s4] sm:%s541]
      %v543 = vunpack.c.l.bf16 %v542
      %v544 = vunpack.c.h.bf16 %v542
      %v545 = vlaneseq
      %v546 = vand.u32 %v545, 127
      %vm548 = vcmp.lt.s32.totalorder %v546, 32
      %v549 = vsel %vm548, %v543, %v34
      %550 = xla_tuple %v549, %v29
      %551 = xla_tuple %550
      %v552 = vmax.f32 %v549, %v29
      %553 = xla_tuple %v552
      %554 = xla_tuple %v552, %v24
      %555 = xla_tuple %554
      %v556 = vmax.f32 %v552, %v24
      %557 = xla_tuple %v556
      %558 = xla_tuple %v556, %v19
      %559 = xla_tuple %558
      %v560 = vmax.f32 %v556, %v19
      %561 = xla_tuple %v560
      %v562 = vpack.c.bf16 0.0, %v560
      %s564 = ssub.s32 16, 1
      %565 = vst [vmem:[#allocation28] sm:%s564] %v562
      %s566 = scalar_lea.vmem %s369, 4
      %s567 = ssub.s32 0, 0
      %p568 = scmp.lt.s32.totalorder %s567, 0
      %s569 = scalar_select %p568, 0, 255
      %s570 = sshrl.u32 %s569, 1
      %s571 = sor.u32 %s569, %s570
      %s572 = sand.u32 %s571, 85
      %s573 = sshrl.u32 %s572, 1
      %s574 = sor.u32 %s572, %s573
      %s575 = sand.u32 51, %s574
      %s576 = sshrl.u32 %s575, 2
      %s577 = sor.u32 %s575, %s576
      %s578 = sand.u32 15, %s577
      %v579 = vld [vmem:[%s566] sm:%s578]
      %v580 = vunpack.c.l.bf16 %v579
      %v581 = vunpack.c.h.bf16 %v579
      %s582 = scalar_lea.vmem %s382, 4
      %s583 = ssub.s32 0, 0
      %p584 = scmp.lt.s32.totalorder %s583, 0
      %s585 = scalar_select %p584, 0, 255
      %s586 = sshrl.u32 %s585, 1
      %s587 = sor.u32 %s585, %s586
      %s588 = sand.u32 %s587, 85
      %s589 = sshrl.u32 %s588, 1
      %s590 = sor.u32 %s588, %s589
      %s591 = sand.u32 51, %s590
      %s592 = sshrl.u32 %s591, 2
      %s593 = sor.u32 %s591, %s592
      %s594 = sand.u32 15, %s593
      %v595 = vld [vmem:[%s582] sm:%s594]
      %v596 = vunpack.c.l.bf16 %v595
      %v597 = vunpack.c.h.bf16 %v595
      %s598 = scalar_lea.vmem %s395, 4
      %s599 = ssub.s32 0, 0
      %p600 = scmp.lt.s32.totalorder %s599, 0
      %s601 = scalar_select %p600, 0, 255
      %s602 = sshrl.u32 %s601, 1
      %s603 = sor.u32 %s601, %s602
      %s604 = sand.u32 %s603, 85
      %s605 = sshrl.u32 %s604, 1
      %s606 = sor.u32 %s604, %s605
      %s607 = sand.u32 51, %s606
      %s608 = sshrl.u32 %s607, 2
      %s609 = sor.u32 %s607, %s608
      %s610 = sand.u32 15, %s609
      %v611 = vld [vmem:[%s598] sm:%s610]
      %v612 = vunpack.c.l.bf16 %v611
      %v613 = vunpack.c.h.bf16 %v611
      %s614 = scalar_lea.vmem %s4, 4
      %s616 = sor.u32 255, 127
      %s617 = sand.u32 %s616, 85
      %s618 = sshrl.u32 %s617, 1
      %s619 = sor.u32 %s617, %s618
      %s620 = sand.u32 51, %s619
      %s621 = sshrl.u32 %s620, 2
      %s622 = sor.u32 %s620, %s621
      %s623 = sand.u32 15, %s622
      %v624 = vld [vmem:[%s614] sm:%s623]
      %v625 = vunpack.c.l.bf16 %v624
      %v626 = vunpack.c.h.bf16 %v624
      %v627 = vlaneseq
      %v628 = vand.u32 %v627, 127
      %vm630 = vcmp.lt.s32.totalorder %v628, 32
      %v631 = vsel %vm630, %v625, %v34
      %632 = xla_tuple %v631, %v29
      %633 = xla_tuple %632
      %v634 = vmax.f32 %v631, %v29
      %635 = xla_tuple %v634
      %636 = xla_tuple %v634, %v24
      %637 = xla_tuple %636
      %v638 = vmax.f32 %v634, %v24
      %639 = xla_tuple %v638
      %640 = xla_tuple %v638, %v19
      %641 = xla_tuple %640
      %v642 = vmax.f32 %v638, %v19
      %643 = xla_tuple %v642
      %s644 = scalar_lea.vmem [#allocation28], 4
      %v645 = vpack.c.bf16 0.0, %v642
      %s647 = ssub.s32 16, 1
      %648 = vst [vmem:[%s644] sm:%s647] %v645
      %s649 = scalar_lea.vmem %s369, 8
      %s650 = ssub.s32 0, 0
      %p651 = scmp.lt.s32.totalorder %s650, 0
      %s652 = scalar_select %p651, 0, 255
      %s653 = sshrl.u32 %s652, 1
      %s654 = sor.u32 %s652, %s653
      %s655 = sand.u32 %s654, 85
      %s656 = sshrl.u32 %s655, 1
      %s657 = sor.u32 %s655, %s656
      %s658 = sand.u32 51, %s657
      %s659 = sshrl.u32 %s658, 2
      %s660 = sor.u32 %s658, %s659
      %s661 = sand.u32 15, %s660
      %v662 = vld [vmem:[%s649] sm:%s661]
      %v663 = vunpack.c.l.bf16 %v662
      %v664 = vunpack.c.h.bf16 %v662
      %s665 = scalar_lea.vmem %s382, 8
      %s666 = ssub.s32 0, 0
      %p667 = scmp.lt.s32.totalorder %s666, 0
      %s668 = scalar_select %p667, 0, 255
      %s669 = sshrl.u32 %s668, 1
      %s670 = sor.u32 %s668, %s669
      %s671 = sand.u32 %s670, 85
      %s672 = sshrl.u32 %s671, 1
      %s673 = sor.u32 %s671, %s672
      %s674 = sand.u32 51, %s673
      %s675 = sshrl.u32 %s674, 2
      %s676 = sor.u32 %s674, %s675
      %s677 = sand.u32 15, %s676
      %v678 = vld [vmem:[%s665] sm:%s677]
      %v679 = vunpack.c.l.bf16 %v678
      %v680 = vunpack.c.h.bf16 %v678
      %s681 = scalar_lea.vmem %s395, 8
      %s682 = ssub.s32 0, 0
      %p683 = scmp.lt.s32.totalorder %s682, 0
      %s684 = scalar_select %p683, 0, 255
      %s685 = sshrl.u32 %s684, 1
      %s686 = sor.u32 %s684, %s685
      %s687 = sand.u32 %s686, 85
      %s688 = sshrl.u32 %s687, 1
      %s689 = sor.u32 %s687, %s688
      %s690 = sand.u32 51, %s689
      %s691 = sshrl.u32 %s690, 2
      %s692 = sor.u32 %s690, %s691
      %s693 = sand.u32 15, %s692
      %v694 = vld [vmem:[%s681] sm:%s693]
      %v695 = vunpack.c.l.bf16 %v694
      %v696 = vunpack.c.h.bf16 %v694
      %s697 = scalar_lea.vmem %s4, 8
      %s699 = sor.u32 255, 127
      %s700 = sand.u32 %s699, 85
      %s701 = sshrl.u32 %s700, 1
      %s702 = sor.u32 %s700, %s701
      %s703 = sand.u32 51, %s702
      %s704 = sshrl.u32 %s703, 2
      %s705 = sor.u32 %s703, %s704
      %s706 = sand.u32 15, %s705
      %v707 = vld [vmem:[%s697] sm:%s706]
      %v708 = vunpack.c.l.bf16 %v707
      %v709 = vunpack.c.h.bf16 %v707
      %v710 = vlaneseq
      %v711 = vand.u32 %v710, 127
      %vm713 = vcmp.lt.s32.totalorder %v711, 32
      %v714 = vsel %vm713, %v708, %v34
      %715 = xla_tuple %v714, %v29
      %716 = xla_tuple %715
      %v717 = vmax.f32 %v714, %v29
      %718 = xla_tuple %v717
      %719 = xla_tuple %v717, %v24
      %720 = xla_tuple %719
      %v721 = vmax.f32 %v717, %v24
      %722 = xla_tuple %v721
      %723 = xla_tuple %v721, %v19
      %724 = xla_tuple %723
      %v725 = vmax.f32 %v721, %v19
      %726 = xla_tuple %v725
      %s727 = scalar_lea.vmem [#allocation28], 8
      %v728 = vpack.c.bf16 0.0, %v725
      %s730 = ssub.s32 16, 1
      %731 = vst [vmem:[%s727] sm:%s730] %v728
      %s732 = scalar_lea.vmem %s369, 12
      %s733 = ssub.s32 0, 0
      %p734 = scmp.lt.s32.totalorder %s733, 0
      %s735 = scalar_select %p734, 0, 255
      %s736 = sshrl.u32 %s735, 1
      %s737 = sor.u32 %s735, %s736
      %s738 = sand.u32 %s737, 85
      %s739 = sshrl.u32 %s738, 1
      %s740 = sor.u32 %s738, %s739
      %s741 = sand.u32 51, %s740
      %s742 = sshrl.u32 %s741, 2
      %s743 = sor.u32 %s741, %s742
      %s744 = sand.u32 15, %s743
      %v745 = vld [vmem:[%s732] sm:%s744]
      %v746 = vunpack.c.l.bf16 %v745
      %v747 = vunpack.c.h.bf16 %v745
      %s748 = scalar_lea.vmem %s382, 12
      %s749 = ssub.s32 0, 0
      %p750 = scmp.lt.s32.totalorder %s749, 0
      %s751 = scalar_select %p750, 0, 255
      %s752 = sshrl.u32 %s751, 1
      %s753 = sor.u32 %s751, %s752
      %s754 = sand.u32 %s753, 85
      %s755 = sshrl.u32 %s754, 1
      %s756 = sor.u32 %s754, %s755
      %s757 = sand.u32 51, %s756
      %s758 = sshrl.u32 %s757, 2
      %s759 = sor.u32 %s757, %s758
      %s760 = sand.u32 15, %s759
      %v761 = vld [vmem:[%s748] sm:%s760]
      %v762 = vunpack.c.l.bf16 %v761
      %v763 = vunpack.c.h.bf16 %v761
      %s764 = scalar_lea.vmem %s395, 12
      %s765 = ssub.s32 0, 0
      %p766 = scmp.lt.s32.totalorder %s765, 0
      %s767 = scalar_select %p766, 0, 255
      %s768 = sshrl.u32 %s767, 1
      %s769 = sor.u32 %s767, %s768
      %s770 = sand.u32 %s769, 85
      %s771 = sshrl.u32 %s770, 1
      %s772 = sor.u32 %s770, %s771
      %s773 = sand.u32 51, %s772
      %s774 = sshrl.u32 %s773, 2
      %s775 = sor.u32 %s773, %s774
      %s776 = sand.u32 15, %s775
      %v777 = vld [vmem:[%s764] sm:%s776]
      %v778 = vunpack.c.l.bf16 %v777
      %v779 = vunpack.c.h.bf16 %v777
      %s780 = scalar_lea.vmem %s4, 12
      %s782 = sor.u32 255, 127
      %s783 = sand.u32 %s782, 85
      %s784 = sshrl.u32 %s783, 1
      %s785 = sor.u32 %s783, %s784
      %s786 = sand.u32 51, %s785
      %s787 = sshrl.u32 %s786, 2
      %s788 = sor.u32 %s786, %s787
      %s789 = sand.u32 15, %s788
      %v790 = vld [vmem:[%s780] sm:%s789]
      %v791 = vunpack.c.l.bf16 %v790
      %v792 = vunpack.c.h.bf16 %v790
      %v793 = vlaneseq
      %v794 = vand.u32 %v793, 127
      %vm796 = vcmp.lt.s32.totalorder %v794, 32
      %v797 = vsel %vm796, %v791, %v34
      %798 = xla_tuple %v797, %v29
      %799 = xla_tuple %798
      %v800 = vmax.f32 %v797, %v29
      %801 = xla_tuple %v800
      %802 = xla_tuple %v800, %v24
      %803 = xla_tuple %802
      %v804 = vmax.f32 %v800, %v24
      %805 = xla_tuple %v804
      %806 = xla_tuple %v804, %v19
      %807 = xla_tuple %806
      %v808 = vmax.f32 %v804, %v19
      %809 = xla_tuple %v808
      %s810 = scalar_lea.vmem [#allocation28], 12
      %v811 = vpack.c.bf16 0.0, %v808
      %s813 = ssub.s32 16, 1
      %814 = vst [vmem:[%s810] sm:%s813] %v811
      %s815 = scalar_lea.vmem %s369, 16
      %s816 = ssub.s32 0, 0
      %p817 = scmp.lt.s32.totalorder %s816, 0
      %s818 = scalar_select %p817, 0, 255
      %s819 = sshrl.u32 %s818, 1
      %s820 = sor.u32 %s818, %s819
      %s821 = sand.u32 %s820, 85
      %s822 = sshrl.u32 %s821, 1
      %s823 = sor.u32 %s821, %s822
      %s824 = sand.u32 51, %s823
      %s825 = sshrl.u32 %s824, 2
      %s826 = sor.u32 %s824, %s825
      %s827 = sand.u32 15, %s826
      %v828 = vld [vmem:[%s815] sm:%s827]
      %v829 = vunpack.c.l.bf16 %v828
      %v830 = vunpack.c.h.bf16 %v828
      %s831 = scalar_lea.vmem %s382, 16
      %s832 = ssub.s32 0, 0
      %p833 = scmp.lt.s32.totalorder %s832, 0
      %s834 = scalar_select %p833, 0, 255
      %s835 = sshrl.u32 %s834, 1
      %s836 = sor.u32 %s834, %s835
      %s837 = sand.u32 %s836, 85
      %s838 = sshrl.u32 %s837, 1
      %s839 = sor.u32 %s837, %s838
      %s840 = sand.u32 51, %s839
      %s841 = sshrl.u32 %s840, 2
      %s842 = sor.u32 %s840, %s841
      %s843 = sand.u32 15, %s842
      %v844 = vld [vmem:[%s831] sm:%s843]
      %v845 = vunpack.c.l.bf16 %v844
      %v846 = vunpack.c.h.bf16 %v844
      %s847 = scalar_lea.vmem %s395, 16
      %s848 = ssub.s32 0, 0
      %p849 = scmp.lt.s32.totalorder %s848, 0
      %s850 = scalar_select %p849, 0, 255
      %s851 = sshrl.u32 %s850, 1
      %s852 = sor.u32 %s850, %s851
      %s853 = sand.u32 %s852, 85
      %s854 = sshrl.u32 %s853, 1
      %s855 = sor.u32 %s853, %s854
      %s856 = sand.u32 51, %s855
      %s857 = sshrl.u32 %s856, 2
      %s858 = sor.u32 %s856, %s857
      %s859 = sand.u32 15, %s858
      %v860 = vld [vmem:[%s847] sm:%s859]
      %v861 = vunpack.c.l.bf16 %v860
      %v862 = vunpack.c.h.bf16 %v860
      %s863 = scalar_lea.vmem %s4, 16
      %s865 = sor.u32 255, 127
      %s866 = sand.u32 %s865, 85
      %s867 = sshrl.u32 %s866, 1
      %s868 = sor.u32 %s866, %s867
      %s869 = sand.u32 51, %s868
      %s870 = sshrl.u32 %s869, 2
      %s871 = sor.u32 %s869, %s870
      %s872 = sand.u32 15, %s871
      %v873 = vld [vmem:[%s863] sm:%s872]
      %v874 = vunpack.c.l.bf16 %v873
      %v875 = vunpack.c.h.bf16 %v873
      %v876 = vlaneseq
      %v877 = vand.u32 %v876, 127
      %vm879 = vcmp.lt.s32.totalorder %v877, 32
      %v880 = vsel %vm879, %v874, %v34
      %881 = xla_tuple %v880, %v29
      %882 = xla_tuple %881
      %v883 = vmax.f32 %v880, %v29
      %884 = xla_tuple %v883
      %885 = xla_tuple %v883, %v24
      %886 = xla_tuple %885
      %v887 = vmax.f32 %v883, %v24
      %888 = xla_tuple %v887
      %889 = xla_tuple %v887, %v19
      %890 = xla_tuple %889
      %v891 = vmax.f32 %v887, %v19
      %892 = xla_tuple %v891
      %s893 = scalar_lea.vmem [#allocation28], 16
      %v894 = vpack.c.bf16 0.0, %v891
      %s896 = ssub.s32 16, 1
      %897 = vst [vmem:[%s893] sm:%s896] %v894
      %s898 = scalar_lea.vmem %s369, 20
      %s899 = ssub.s32 0, 0
      %p900 = scmp.lt.s32.totalorder %s899, 0
      %s901 = scalar_select %p900, 0, 255
      %s902 = sshrl.u32 %s901, 1
      %s903 = sor.u32 %s901, %s902
      %s904 = sand.u32 %s903, 85
      %s905 = sshrl.u32 %s904, 1
      %s906 = sor.u32 %s904, %s905
      %s907 = sand.u32 51, %s906
      %s908 = sshrl.u32 %s907, 2
      %s909 = sor.u32 %s907, %s908
      %s910 = sand.u32 15, %s909
      %v911 = vld [vmem:[%s898] sm:%s910]
      %v912 = vunpack.c.l.bf16 %v911
      %v913 = vunpack.c.h.bf16 %v911
      %s914 = scalar_lea.vmem %s382, 20
      %s915 = ssub.s32 0, 0
      %p916 = scmp.lt.s32.totalorder %s915, 0
      %s917 = scalar_select %p916, 0, 255
      %s918 = sshrl.u32 %s917, 1
      %s919 = sor.u32 %s917, %s918
      %s920 = sand.u32 %s919, 85
      %s921 = sshrl.u32 %s920, 1
      %s922 = sor.u32 %s920, %s921
      %s923 = sand.u32 51, %s922
      %s924 = sshrl.u32 %s923, 2
      %s925 = sor.u32 %s923, %s924
      %s926 = sand.u32 15, %s925
      %v927 = vld [vmem:[%s914] sm:%s926]
      %v928 = vunpack.c.l.bf16 %v927
      %v929 = vunpack.c.h.bf16 %v927
      %s930 = scalar_lea.vmem %s395, 20
      %s931 = ssub.s32 0, 0
      %p932 = scmp.lt.s32.totalorder %s931, 0
      %s933 = scalar_select %p932, 0, 255
      %s934 = sshrl.u32 %s933, 1
      %s935 = sor.u32 %s933, %s934
      %s936 = sand.u32 %s935, 85
      %s937 = sshrl.u32 %s936, 1
      %s938 = sor.u32 %s936, %s937
      %s939 = sand.u32 51, %s938
      %s940 = sshrl.u32 %s939, 2
      %s941 = sor.u32 %s939, %s940
      %s942 = sand.u32 15, %s941
      %v943 = vld [vmem:[%s930] sm:%s942]
      %v944 = vunpack.c.l.bf16 %v943
      %v945 = vunpack.c.h.bf16 %v943
      %s946 = scalar_lea.vmem %s4, 20
      %s948 = sor.u32 255, 127
      %s949 = sand.u32 %s948, 85
      %s950 = sshrl.u32 %s949, 1
      %s951 = sor.u32 %s949, %s950
      %s952 = sand.u32 51, %s951
      %s953 = sshrl.u32 %s952, 2
      %s954 = sor.u32 %s952, %s953
      %s955 = sand.u32 15, %s954
      %v956 = vld [vmem:[%s946] sm:%s955]
      %v957 = vunpack.c.l.bf16 %v956
      %v958 = vunpack.c.h.bf16 %v956
      %v959 = vlaneseq
      %v960 = vand.u32 %v959, 127
      %vm962 = vcmp.lt.s32.totalorder %v960, 32
      %v963 = vsel %vm962, %v957, %v34
      %964 = xla_tuple %v963, %v29
      %965 = xla_tuple %964
      %v966 = vmax.f32 %v963, %v29
      %967 = xla_tuple %v966
      %968 = xla_tuple %v966, %v24
      %969 = xla_tuple %968
      %v970 = vmax.f32 %v966, %v24
      %971 = xla_tuple %v970
      %972 = xla_tuple %v970, %v19
      %973 = xla_tuple %972
      %v974 = vmax.f32 %v970, %v19
      %975 = xla_tuple %v974
      %s976 = scalar_lea.vmem [#allocation28], 20
      %v977 = vpack.c.bf16 0.0, %v974
      %s979 = ssub.s32 16, 1
      %980 = vst [vmem:[%s976] sm:%s979] %v977
      %s981 = scalar_lea.vmem %s369, 24
      %s982 = ssub.s32 0, 0
      %p983 = scmp.lt.s32.totalorder %s982, 0
      %s984 = scalar_select %p983, 0, 255
      %s985 = sshrl.u32 %s984, 1
      %s986 = sor.u32 %s984, %s985
      %s987 = sand.u32 %s986, 85
      %s988 = sshrl.u32 %s987, 1
      %s989 = sor.u32 %s987, %s988
      %s990 = sand.u32 51, %s989
      %s991 = sshrl.u32 %s990, 2
      %s992 = sor.u32 %s990, %s991
      %s993 = sand.u32 15, %s992
      %v994 = vld [vmem:[%s981] sm:%s993]
      %v995 = vunpack.c.l.bf16 %v994
      %v996 = vunpack.c.h.bf16 %v994
      %s997 = scalar_lea.vmem %s382, 24
      %s998 = ssub.s32 0, 0
      %p999 = scmp.lt.s32.totalorder %s998, 0
      %s1000 = scalar_select %p999, 0, 255
      %s1001 = sshrl.u32 %s1000, 1
      %s1002 = sor.u32 %s1000, %s1001
      %s1003 = sand.u32 %s1002, 85
      %s1004 = sshrl.u32 %s1003, 1
      %s1005 = sor.u32 %s1003, %s1004
      %s1006 = sand.u32 51, %s1005
      %s1007 = sshrl.u32 %s1006, 2
      %s1008 = sor.u32 %s1006, %s1007
      %s1009 = sand.u32 15, %s1008
      %v1010 = vld [vmem:[%s997] sm:%s1009]
      %v1011 = vunpack.c.l.bf16 %v1010
      %v1012 = vunpack.c.h.bf16 %v1010
      %s1013 = scalar_lea.vmem %s395, 24
      %s1014 = ssub.s32 0, 0
      %p1015 = scmp.lt.s32.totalorder %s1014, 0
      %s1016 = scalar_select %p1015, 0, 255
      %s1017 = sshrl.u32 %s1016, 1
      %s1018 = sor.u32 %s1016, %s1017
      %s1019 = sand.u32 %s1018, 85
      %s1020 = sshrl.u32 %s1019, 1
      %s1021 = sor.u32 %s1019, %s1020
      %s1022 = sand.u32 51, %s1021
      %s1023 = sshrl.u32 %s1022, 2
      %s1024 = sor.u32 %s1022, %s1023
      %s1025 = sand.u32 15, %s1024
      %v1026 = vld [vmem:[%s1013] sm:%s1025]
      %v1027 = vunpack.c.l.bf16 %v1026
      %v1028 = vunpack.c.h.bf16 %v1026
      %s1029 = scalar_lea.vmem %s4, 24
      %s1031 = sor.u32 255, 127
      %s1032 = sand.u32 %s1031, 85
      %s1033 = sshrl.u32 %s1032, 1
      %s1034 = sor.u32 %s1032, %s1033
      %s1035 = sand.u32 51, %s1034
      %s1036 = sshrl.u32 %s1035, 2
      %s1037 = sor.u32 %s1035, %s1036
      %s1038 = sand.u32 15, %s1037
      %v1039 = vld [vmem:[%s1029] sm:%s1038]
      %v1040 = vunpack.c.l.bf16 %v1039
      %v1041 = vunpack.c.h.bf16 %v1039
      %v1042 = vlaneseq
      %v1043 = vand.u32 %v1042, 127
      %vm1045 = vcmp.lt.s32.totalorder %v1043, 32
      %v1046 = vsel %vm1045, %v1040, %v34
      %1047 = xla_tuple %v1046, %v29
      %1048 = xla_tuple %1047
      %v1049 = vmax.f32 %v1046, %v29
      %1050 = xla_tuple %v1049
      %1051 = xla_tuple %v1049, %v24
      %1052 = xla_tuple %1051
      %v1053 = vmax.f32 %v1049, %v24
      %1054 = xla_tuple %v1053
      %1055 = xla_tuple %v1053, %v19
      %1056 = xla_tuple %1055
      %v1057 = vmax.f32 %v1053, %v19
      %1058 = xla_tuple %v1057
      %s1059 = scalar_lea.vmem [#allocation28], 24
      %v1060 = vpack.c.bf16 0.0, %v1057
      %s1062 = ssub.s32 16, 1
      %1063 = vst [vmem:[%s1059] sm:%s1062] %v1060
      %s1064 = scalar_lea.vmem %s369, 28
      %s1065 = ssub.s32 0, 0
      %p1066 = scmp.lt.s32.totalorder %s1065, 0
      %s1067 = scalar_select %p1066, 0, 255
      %s1068 = sshrl.u32 %s1067, 1
      %s1069 = sor.u32 %s1067, %s1068
      %s1070 = sand.u32 %s1069, 85
      %s1071 = sshrl.u32 %s1070, 1
      %s1072 = sor.u32 %s1070, %s1071
      %s1073 = sand.u32 51, %s1072
      %s1074 = sshrl.u32 %s1073, 2
      %s1075 = sor.u32 %s1073, %s1074
      %s1076 = sand.u32 15, %s1075
      %v1077 = vld [vmem:[%s1064] sm:%s1076]
      %v1078 = vunpack.c.l.bf16 %v1077
      %v1079 = vunpack.c.h.bf16 %v1077
      %s1080 = scalar_lea.vmem %s382, 28
      %s1081 = ssub.s32 0, 0
      %p1082 = scmp.lt.s32.totalorder %s1081, 0
      %s1083 = scalar_select %p1082, 0, 255
      %s1084 = sshrl.u32 %s1083, 1
      %s1085 = sor.u32 %s1083, %s1084
      %s1086 = sand.u32 %s1085, 85
      %s1087 = sshrl.u32 %s1086, 1
      %s1088 = sor.u32 %s1086, %s1087
      %s1089 = sand.u32 51, %s1088
      %s1090 = sshrl.u32 %s1089, 2
      %s1091 = sor.u32 %s1089, %s1090
      %s1092 = sand.u32 15, %s1091
      %v1093 = vld [vmem:[%s1080] sm:%s1092]
      %v1094 = vunpack.c.l.bf16 %v1093
      %v1095 = vunpack.c.h.bf16 %v1093
      %s1096 = scalar_lea.vmem %s395, 28
      %s1097 = ssub.s32 0, 0
      %p1098 = scmp.lt.s32.totalorder %s1097, 0
      %s1099 = scalar_select %p1098, 0, 255
      %s1100 = sshrl.u32 %s1099, 1
      %s1101 = sor.u32 %s1099, %s1100
      %s1102 = sand.u32 %s1101, 85
      %s1103 = sshrl.u32 %s1102, 1
      %s1104 = sor.u32 %s1102, %s1103
      %s1105 = sand.u32 51, %s1104
      %s1106 = sshrl.u32 %s1105, 2
      %s1107 = sor.u32 %s1105, %s1106
      %s1108 = sand.u32 15, %s1107
      %v1109 = vld [vmem:[%s1096] sm:%s1108]
      %v1110 = vunpack.c.l.bf16 %v1109
      %v1111 = vunpack.c.h.bf16 %v1109
      %s1112 = scalar_lea.vmem %s4, 28
      %s1114 = sor.u32 255, 127
      %s1115 = sand.u32 %s1114, 85
      %s1116 = sshrl.u32 %s1115, 1
      %s1117 = sor.u32 %s1115, %s1116
      %s1118 = sand.u32 51, %s1117
      %s1119 = sshrl.u32 %s1118, 2
      %s1120 = sor.u32 %s1118, %s1119
      %s1121 = sand.u32 15, %s1120
      %v1122 = vld [vmem:[%s1112] sm:%s1121]
      %v1123 = vunpack.c.l.bf16 %v1122
      %v1124 = vunpack.c.h.bf16 %v1122
      %v1125 = vlaneseq
      %v1126 = vand.u32 %v1125, 127
      %vm1128 = vcmp.lt.s32.totalorder %v1126, 32
      %v1129 = vsel %vm1128, %v1123, %v34
      %1130 = xla_tuple %v1129, %v29
      %1131 = xla_tuple %1130
      %v1132 = vmax.f32 %v1129, %v29
      %1133 = xla_tuple %v1132
      %1134 = xla_tuple %v1132, %v24
      %1135 = xla_tuple %1134
      %v1136 = vmax.f32 %v1132, %v24
      %1137 = xla_tuple %v1136
      %1138 = xla_tuple %v1136, %v19
      %1139 = xla_tuple %1138
      %v1140 = vmax.f32 %v1136, %v19
      %1141 = xla_tuple %v1140
      %s1142 = scalar_lea.vmem [#allocation28], 28
      %v1143 = vpack.c.bf16 0.0, %v1140
      %s1145 = ssub.s32 16, 1
      %1146 = vst [vmem:[%s1142] sm:%s1145] %v1143
      %v1147 = vlaneseq
      %v1148 = vand.u32 %v1147, 127
      %vm1150 = vcmp.lt.s32.totalorder %v1148, 32
      %v1151 = vsel %vm1150, %v531, %v29
      %1152 = xla_tuple %v34, %v1151
      %1153 = xla_tuple %1152
      %v1154 = vmax.f32 %v34, %v1151
      %1155 = xla_tuple %v1154
      %1156 = xla_tuple %v1154, %v24
      %1157 = xla_tuple %1156
      %v1158 = vmax.f32 %v1154, %v24
      %1159 = xla_tuple %v1158
      %1160 = xla_tuple %v1158, %v19
      %1161 = xla_tuple %1160
      %v1162 = vmax.f32 %v1158, %v19
      %1163 = xla_tuple %v1162
      %s1164 = scalar_lea.vmem [#allocation28], 32
      %v1165 = vpack.c.bf16 0.0, %v1162
      %s1167 = ssub.s32 16, 1
      %1168 = vst [vmem:[%s1164] sm:%s1167] %v1165
      %s1169 = scalar_lea.vmem %s369, 4
      %s1170 = scalar_lea.vmem %s382, 4
      %s1171 = scalar_lea.vmem %s395, 4
      %v1172 = vlaneseq
      %v1173 = vand.u32 %v1172, 127
      %vm1175 = vcmp.lt.s32.totalorder %v1173, 32
      %v1176 = vsel %vm1175, %v612, %v29
      %1177 = xla_tuple %v34, %v1176
      %1178 = xla_tuple %1177
      %v1179 = vmax.f32 %v34, %v1176
      %1180 = xla_tuple %v1179
      %1181 = xla_tuple %v1179, %v24
      %1182 = xla_tuple %1181
      %v1183 = vmax.f32 %v1179, %v24
      %1184 = xla_tuple %v1183
      %1185 = xla_tuple %v1183, %v19
      %1186 = xla_tuple %1185
      %v1187 = vmax.f32 %v1183, %v19
      %1188 = xla_tuple %v1187
      %s1189 = scalar_lea.vmem [#allocation28], 36
      %v1190 = vpack.c.bf16 0.0, %v1187
      %s1192 = ssub.s32 16, 1
      %1193 = vst [vmem:[%s1189] sm:%s1192] %v1190
      %s1194 = scalar_lea.vmem %s369, 8
      %s1195 = scalar_lea.vmem %s382, 8
      %s1196 = scalar_lea.vmem %s395, 8
      %v1197 = vlaneseq
      %v1198 = vand.u32 %v1197, 127
      %vm1200 = vcmp.lt.s32.totalorder %v1198, 32
      %v1201 = vsel %vm1200, %v695, %v29
      %1202 = xla_tuple %v34, %v1201
      %1203 = xla_tuple %1202
      %v1204 = vmax.f32 %v34, %v1201
      %1205 = xla_tuple %v1204
      %1206 = xla_tuple %v1204, %v24
      %1207 = xla_tuple %1206
      %v1208 = vmax.f32 %v1204, %v24
      %1209 = xla_tuple %v1208
      %1210 = xla_tuple %v1208, %v19
      %1211 = xla_tuple %1210
      %v1212 = vmax.f32 %v1208, %v19
      %1213 = xla_tuple %v1212
      %s1214 = scalar_lea.vmem [#allocation28], 40
      %v1215 = vpack.c.bf16 0.0, %v1212
      %s1217 = ssub.s32 16, 1
      %1218 = vst [vmem:[%s1214] sm:%s1217] %v1215
      %s1219 = scalar_lea.vmem %s369, 12
      %s1220 = scalar_lea.vmem %s382, 12
      %s1221 = scalar_lea.vmem %s395, 12
      %v1222 = vlaneseq
      %v1223 = vand.u32 %v1222, 127
      %vm1225 = vcmp.lt.s32.totalorder %v1223, 32
      %v1226 = vsel %vm1225, %v778, %v29
      %1227 = xla_tuple %v34, %v1226
      %1228 = xla_tuple %1227
      %v1229 = vmax.f32 %v34, %v1226
      %1230 = xla_tuple %v1229
      %1231 = xla_tuple %v1229, %v24
      %1232 = xla_tuple %1231
      %v1233 = vmax.f32 %v1229, %v24
      %1234 = xla_tuple %v1233
      %1235 = xla_tuple %v1233, %v19
      %1236 = xla_tuple %1235
      %v1237 = vmax.f32 %v1233, %v19
      %1238 = xla_tuple %v1237
      %s1239 = scalar_lea.vmem [#allocation28], 44
      %v1240 = vpack.c.bf16 0.0, %v1237
      %s1242 = ssub.s32 16, 1
      %1243 = vst [vmem:[%s1239] sm:%s1242] %v1240
      %s1244 = scalar_lea.vmem %s369, 16
      %s1245 = scalar_lea.vmem %s382, 16
      %s1246 = scalar_lea.vmem %s395, 16
      %v1247 = vlaneseq
      %v1248 = vand.u32 %v1247, 127
      %vm1250 = vcmp.lt.s32.totalorder %v1248, 32
      %v1251 = vsel %vm1250, %v861, %v29
      %1252 = xla_tuple %v34, %v1251
      %1253 = xla_tuple %1252
      %v1254 = vmax.f32 %v34, %v1251
      %1255 = xla_tuple %v1254
      %1256 = xla_tuple %v1254, %v24
      %1257 = xla_tuple %1256
      %v1258 = vmax.f32 %v1254, %v24
      %1259 = xla_tuple %v1258
      %1260 = xla_tuple %v1258, %v19
      %1261 = xla_tuple %1260
      %v1262 = vmax.f32 %v1258, %v19
      %1263 = xla_tuple %v1262
      %s1264 = scalar_lea.vmem [#allocation28], 48
      %v1265 = vpack.c.bf16 0.0, %v1262
      %s1267 = ssub.s32 16, 1
      %1268 = vst [vmem:[%s1264] sm:%s1267] %v1265
      %s1269 = scalar_lea.vmem %s369, 20
      %s1270 = scalar_lea.vmem %s382, 20
      %s1271 = scalar_lea.vmem %s395, 20
      %v1272 = vlaneseq
      %v1273 = vand.u32 %v1272, 127
      %vm1275 = vcmp.lt.s32.totalorder %v1273, 32
      %v1276 = vsel %vm1275, %v944, %v29
      %1277 = xla_tuple %v34, %v1276
      %1278 = xla_tuple %1277
      %v1279 = vmax.f32 %v34, %v1276
      %1280 = xla_tuple %v1279
      %1281 = xla_tuple %v1279, %v24
      %1282 = xla_tuple %1281
      %v1283 = vmax.f32 %v1279, %v24
      %1284 = xla_tuple %v1283
      %1285 = xla_tuple %v1283, %v19
      %1286 = xla_tuple %1285
      %v1287 = vmax.f32 %v1283, %v19
      %1288 = xla_tuple %v1287
      %s1289 = scalar_lea.vmem [#allocation28], 52
      %v1290 = vpack.c.bf16 0.0, %v1287
      %s1292 = ssub.s32 16, 1
      %1293 = vst [vmem:[%s1289] sm:%s1292] %v1290
      %s1294 = scalar_lea.vmem %s369, 24
      %s1295 = scalar_lea.vmem %s382, 24
      %s1296 = scalar_lea.vmem %s395, 24
      %v1297 = vlaneseq
      %v1298 = vand.u32 %v1297, 127
      %vm1300 = vcmp.lt.s32.totalorder %v1298, 32
      %v1301 = vsel %vm1300, %v1027, %v29
      %1302 = xla_tuple %v34, %v1301
      %1303 = xla_tuple %1302
      %v1304 = vmax.f32 %v34, %v1301
      %1305 = xla_tuple %v1304
      %1306 = xla_tuple %v1304, %v24
      %1307 = xla_tuple %1306
      %v1308 = vmax.f32 %v1304, %v24
      %1309 = xla_tuple %v1308
      %1310 = xla_tuple %v1308, %v19
      %1311 = xla_tuple %1310
      %v1312 = vmax.f32 %v1308, %v19
      %1313 = xla_tuple %v1312
      %s1314 = scalar_lea.vmem [#allocation28], 56
      %v1315 = vpack.c.bf16 0.0, %v1312
      %s1317 = ssub.s32 16, 1
      %1318 = vst [vmem:[%s1314] sm:%s1317] %v1315
      %s1319 = scalar_lea.vmem %s369, 28
      %s1320 = scalar_lea.vmem %s382, 28
      %s1321 = scalar_lea.vmem %s395, 28
      %v1322 = vlaneseq
      %v1323 = vand.u32 %v1322, 127
      %vm1325 = vcmp.lt.s32.totalorder %v1323, 32
      %v1326 = vsel %vm1325, %v1110, %v29
      %1327 = xla_tuple %v34, %v1326
      %1328 = xla_tuple %1327
      %v1329 = vmax.f32 %v34, %v1326
      %1330 = xla_tuple %v1329
      %1331 = xla_tuple %v1329, %v24
      %1332 = xla_tuple %1331
      %v1333 = vmax.f32 %v1329, %v24
      %1334 = xla_tuple %v1333
      %1335 = xla_tuple %v1333, %v19
      %1336 = xla_tuple %1335
      %v1337 = vmax.f32 %v1333, %v19
      %1338 = xla_tuple %v1337
      %s1339 = scalar_lea.vmem [#allocation28], 60
      %v1340 = vpack.c.bf16 0.0, %v1337
      %s1342 = ssub.s32 16, 1
      %1343 = vst [vmem:[%s1339] sm:%s1342] %v1340
      %v1344 = vlaneseq
      %v1345 = vand.u32 %v1344, 127
      %vm1347 = vcmp.lt.s32.totalorder %v1345, 32
      %v1348 = vsel %vm1347, %v516, %v24
      %1349 = xla_tuple %v34, %v29
      %1350 = xla_tuple %1349
      %v1351 = vmax.f32 %v34, %v29
      %1352 = xla_tuple %v1351
      %1353 = xla_tuple %v1351, %v1348
      %1354 = xla_tuple %1353
      %v1355 = vmax.f32 %v1351, %v1348
      %1356 = xla_tuple %v1355
      %1357 = xla_tuple %v1355, %v19
      %1358 = xla_tuple %1357
      %v1359 = vmax.f32 %v1355, %v19
      %1360 = xla_tuple %v1359
      %s1361 = scalar_lea.vmem [#allocation28], 64
      %v1362 = vpack.c.bf16 0.0, %v1359
      %s1364 = ssub.s32 16, 1
      %1365 = vst [vmem:[%s1361] sm:%s1364] %v1362
      %s1366 = scalar_lea.vmem %s369, 4
      %s1367 = scalar_lea.vmem %s382, 4
      %v1368 = vlaneseq
      %v1369 = vand.u32 %v1368, 127
      %vm1371 = vcmp.lt.s32.totalorder %v1369, 32
      %v1372 = vsel %vm1371, %v596, %v24
      %s1373 = scalar_lea.vmem %s395, 4
      %1374 = xla_tuple %v34, %v29
      %1375 = xla_tuple %1374
      %v1376 = vmax.f32 %v34, %v29
      %1377 = xla_tuple %v1376
      %1378 = xla_tuple %v1376, %v1372
      %1379 = xla_tuple %1378
      %v1380 = vmax.f32 %v1376, %v1372
      %1381 = xla_tuple %v1380
      %1382 = xla_tuple %v1380, %v19
      %1383 = xla_tuple %1382
      %v1384 = vmax.f32 %v1380, %v19
      %1385 = xla_tuple %v1384
      %s1386 = scalar_lea.vmem [#allocation28], 68
      %v1387 = vpack.c.bf16 0.0, %v1384
      %s1389 = ssub.s32 16, 1
      %1390 = vst [vmem:[%s1386] sm:%s1389] %v1387
      %s1391 = scalar_lea.vmem %s369, 8
      %s1392 = scalar_lea.vmem %s382, 8
      %v1393 = vlaneseq
      %v1394 = vand.u32 %v1393, 127
      %vm1396 = vcmp.lt.s32.totalorder %v1394, 32
      %v1397 = vsel %vm1396, %v679, %v24
      %s1398 = scalar_lea.vmem %s395, 8
      %1399 = xla_tuple %v34, %v29
      %1400 = xla_tuple %1399
      %v1401 = vmax.f32 %v34, %v29
      %1402 = xla_tuple %v1401
      %1403 = xla_tuple %v1401, %v1397
      %1404 = xla_tuple %1403
      %v1405 = vmax.f32 %v1401, %v1397
      %1406 = xla_tuple %v1405
      %1407 = xla_tuple %v1405, %v19
      %1408 = xla_tuple %1407
      %v1409 = vmax.f32 %v1405, %v19
      %1410 = xla_tuple %v1409
      %s1411 = scalar_lea.vmem [#allocation28], 72
      %v1412 = vpack.c.bf16 0.0, %v1409
      %s1414 = ssub.s32 16, 1
      %1415 = vst [vmem:[%s1411] sm:%s1414] %v1412
      %s1416 = scalar_lea.vmem %s369, 12
      %s1417 = scalar_lea.vmem %s382, 12
      %v1418 = vlaneseq
      %v1419 = vand.u32 %v1418, 127
      %vm1421 = vcmp.lt.s32.totalorder %v1419, 32
      %v1422 = vsel %vm1421, %v762, %v24
      %s1423 = scalar_lea.vmem %s395, 12
      %1424 = xla_tuple %v34, %v29
      %1425 = xla_tuple %1424
      %v1426 = vmax.f32 %v34, %v29
      %1427 = xla_tuple %v1426
      %1428 = xla_tuple %v1426, %v1422
      %1429 = xla_tuple %1428
      %v1430 = vmax.f32 %v1426, %v1422
      %1431 = xla_tuple %v1430
      %1432 = xla_tuple %v1430, %v19
      %1433 = xla_tuple %1432
      %v1434 = vmax.f32 %v1430, %v19
      %1435 = xla_tuple %v1434
      %s1436 = scalar_lea.vmem [#allocation28], 76
      %v1437 = vpack.c.bf16 0.0, %v1434
      %s1439 = ssub.s32 16, 1
      %1440 = vst [vmem:[%s1436] sm:%s1439] %v1437
      %s1441 = scalar_lea.vmem %s369, 16
      %s1442 = scalar_lea.vmem %s382, 16
      %v1443 = vlaneseq
      %v1444 = vand.u32 %v1443, 127
      %vm1446 = vcmp.lt.s32.totalorder %v1444, 32
      %v1447 = vsel %vm1446, %v845, %v24
      %s1448 = scalar_lea.vmem %s395, 16
      %1449 = xla_tuple %v34, %v29
      %1450 = xla_tuple %1449
      %v1451 = vmax.f32 %v34, %v29
      %1452 = xla_tuple %v1451
      %1453 = xla_tuple %v1451, %v1447
      %1454 = xla_tuple %1453
      %v1455 = vmax.f32 %v1451, %v1447
      %1456 = xla_tuple %v1455
      %1457 = xla_tuple %v1455, %v19
      %1458 = xla_tuple %1457
      %v1459 = vmax.f32 %v1455, %v19
      %1460 = xla_tuple %v1459
      %s1461 = scalar_lea.vmem [#allocation28], 80
      %v1462 = vpack.c.bf16 0.0, %v1459
      %s1464 = ssub.s32 16, 1
      %1465 = vst [vmem:[%s1461] sm:%s1464] %v1462
      %s1466 = scalar_lea.vmem %s369, 20
      %s1467 = scalar_lea.vmem %s382, 20
      %v1468 = vlaneseq
      %v1469 = vand.u32 %v1468, 127
      %vm1471 = vcmp.lt.s32.totalorder %v1469, 32
      %v1472 = vsel %vm1471, %v928, %v24
      %s1473 = scalar_lea.vmem %s395, 20
      %1474 = xla_tuple %v34, %v29
      %1475 = xla_tuple %1474
      %v1476 = vmax.f32 %v34, %v29
      %1477 = xla_tuple %v1476
      %1478 = xla_tuple %v1476, %v1472
      %1479 = xla_tuple %1478
      %v1480 = vmax.f32 %v1476, %v1472
      %1481 = xla_tuple %v1480
      %1482 = xla_tuple %v1480, %v19
      %1483 = xla_tuple %1482
      %v1484 = vmax.f32 %v1480, %v19
      %1485 = xla_tuple %v1484
      %s1486 = scalar_lea.vmem [#allocation28], 84
      %v1487 = vpack.c.bf16 0.0, %v1484
      %s1489 = ssub.s32 16, 1
      %1490 = vst [vmem:[%s1486] sm:%s1489] %v1487
      %s1491 = scalar_lea.vmem %s369, 24
      %s1492 = scalar_lea.vmem %s382, 24
      %v1493 = vlaneseq
      %v1494 = vand.u32 %v1493, 127
      %vm1496 = vcmp.lt.s32.totalorder %v1494, 32
      %v1497 = vsel %vm1496, %v1011, %v24
      %s1498 = scalar_lea.vmem %s395, 24
      %1499 = xla_tuple %v34, %v29
      %1500 = xla_tuple %1499
      %v1501 = vmax.f32 %v34, %v29
      %1502 = xla_tuple %v1501
      %1503 = xla_tuple %v1501, %v1497
      %1504 = xla_tuple %1503
      %v1505 = vmax.f32 %v1501, %v1497
      %1506 = xla_tuple %v1505
      %1507 = xla_tuple %v1505, %v19
      %1508 = xla_tuple %1507
      %v1509 = vmax.f32 %v1505, %v19
      %1510 = xla_tuple %v1509
      %s1511 = scalar_lea.vmem [#allocation28], 88
      %v1512 = vpack.c.bf16 0.0, %v1509
      %s1514 = ssub.s32 16, 1
      %1515 = vst [vmem:[%s1511] sm:%s1514] %v1512
      %s1516 = scalar_lea.vmem %s369, 28
      %s1517 = scalar_lea.vmem %s382, 28
      %v1518 = vlaneseq
      %v1519 = vand.u32 %v1518, 127
      %vm1521 = vcmp.lt.s32.totalorder %v1519, 32
      %v1522 = vsel %vm1521, %v1094, %v24
      %s1523 = scalar_lea.vmem %s395, 28
      %1524 = xla_tuple %v34, %v29
      %1525 = xla_tuple %1524
      %v1526 = vmax.f32 %v34, %v29
      %1527 = xla_tuple %v1526
      %1528 = xla_tuple %v1526, %v1522
      %1529 = xla_tuple %1528
      %v1530 = vmax.f32 %v1526, %v1522
      %1531 = xla_tuple %v1530
      %1532 = xla_tuple %v1530, %v19
      %1533 = xla_tuple %1532
      %v1534 = vmax.f32 %v1530, %v19
      %1535 = xla_tuple %v1534
      %s1536 = scalar_lea.vmem [#allocation28], 92
      %v1537 = vpack.c.bf16 0.0, %v1534
      %s1539 = ssub.s32 16, 1
      %1540 = vst [vmem:[%s1536] sm:%s1539] %v1537
      %v1541 = vlaneseq
      %v1542 = vand.u32 %v1541, 127
      %vm1544 = vcmp.lt.s32.totalorder %v1542, 32
      %v1545 = vsel %vm1544, %v501, %v19
      %1546 = xla_tuple %v34, %v29
      %1547 = xla_tuple %1546
      %v1548 = vmax.f32 %v34, %v29
      %1549 = xla_tuple %v1548
      %1550 = xla_tuple %v1548, %v24
      %1551 = xla_tuple %1550
      %v1552 = vmax.f32 %v1548, %v24
      %1553 = xla_tuple %v1552
      %1554 = xla_tuple %v1552, %v1545
      %1555 = xla_tuple %1554
      %v1556 = vmax.f32 %v1552, %v1545
      %1557 = xla_tuple %v1556
      %s1558 = scalar_lea.vmem [#allocation28], 96
      %v1559 = vpack.c.bf16 0.0, %v1556
      %s1561 = ssub.s32 16, 1
      %1562 = vst [vmem:[%s1558] sm:%s1561] %v1559
      %s1563 = scalar_lea.vmem %s369, 4
      %v1564 = vlaneseq
      %v1565 = vand.u32 %v1564, 127
      %vm1567 = vcmp.lt.s32.totalorder %v1565, 32
      %v1568 = vsel %vm1567, %v580, %v19
      %s1569 = scalar_lea.vmem %s382, 4
      %s1570 = scalar_lea.vmem %s395, 4
      %1571 = xla_tuple %v34, %v29
      %1572 = xla_tuple %1571
      %v1573 = vmax.f32 %v34, %v29
      %1574 = xla_tuple %v1573
      %1575 = xla_tuple %v1573, %v24
      %1576 = xla_tuple %1575
      %v1577 = vmax.f32 %v1573, %v24
      %1578 = xla_tuple %v1577
      %1579 = xla_tuple %v1577, %v1568
      %1580 = xla_tuple %1579
      %v1581 = vmax.f32 %v1577, %v1568
      %1582 = xla_tuple %v1581
      %s1583 = scalar_lea.vmem [#allocation28], 100
      %v1584 = vpack.c.bf16 0.0, %v1581
      %s1586 = ssub.s32 16, 1
      %1587 = vst [vmem:[%s1583] sm:%s1586] %v1584
      %s1588 = scalar_lea.vmem %s369, 8
      %v1589 = vlaneseq
      %v1590 = vand.u32 %v1589, 127
      %vm1592 = vcmp.lt.s32.totalorder %v1590, 32
      %v1593 = vsel %vm1592, %v663, %v19
      %s1594 = scalar_lea.vmem %s382, 8
      %s1595 = scalar_lea.vmem %s395, 8
      %1596 = xla_tuple %v34, %v29
      %1597 = xla_tuple %1596
      %v1598 = vmax.f32 %v34, %v29
      %1599 = xla_tuple %v1598
      %1600 = xla_tuple %v1598, %v24
      %1601 = xla_tuple %1600
      %v1602 = vmax.f32 %v1598, %v24
      %1603 = xla_tuple %v1602
      %1604 = xla_tuple %v1602, %v1593
      %1605 = xla_tuple %1604
      %v1606 = vmax.f32 %v1602, %v1593
      %1607 = xla_tuple %v1606
      %s1608 = scalar_lea.vmem [#allocation28], 104
      %v1609 = vpack.c.bf16 0.0, %v1606
      %s1611 = ssub.s32 16, 1
      %1612 = vst [vmem:[%s1608] sm:%s1611] %v1609
      %s1613 = scalar_lea.vmem %s369, 12
      %v1614 = vlaneseq
      %v1615 = vand.u32 %v1614, 127
      %vm1617 = vcmp.lt.s32.totalorder %v1615, 32
      %v1618 = vsel %vm1617, %v746, %v19
      %s1619 = scalar_lea.vmem %s382, 12
      %s1620 = scalar_lea.vmem %s395, 12
      %1621 = xla_tuple %v34, %v29
      %1622 = xla_tuple %1621
      %v1623 = vmax.f32 %v34, %v29
      %1624 = xla_tuple %v1623
      %1625 = xla_tuple %v1623, %v24
      %1626 = xla_tuple %1625
      %v1627 = vmax.f32 %v1623, %v24
      %1628 = xla_tuple %v1627
      %1629 = xla_tuple %v1627, %v1618
      %1630 = xla_tuple %1629
      %v1631 = vmax.f32 %v1627, %v1618
      %1632 = xla_tuple %v1631
      %s1633 = scalar_lea.vmem [#allocation28], 108
      %v1634 = vpack.c.bf16 0.0, %v1631
      %s1636 = ssub.s32 16, 1
      %1637 = vst [vmem:[%s1633] sm:%s1636] %v1634
      %s1638 = scalar_lea.vmem %s369, 16
      %v1639 = vlaneseq
      %v1640 = vand.u32 %v1639, 127
      %vm1642 = vcmp.lt.s32.totalorder %v1640, 32
      %v1643 = vsel %vm1642, %v829, %v19
      %s1644 = scalar_lea.vmem %s382, 16
      %s1645 = scalar_lea.vmem %s395, 16
      %1646 = xla_tuple %v34, %v29
      %1647 = xla_tuple %1646
      %v1648 = vmax.f32 %v34, %v29
      %1649 = xla_tuple %v1648
      %1650 = xla_tuple %v1648, %v24
      %1651 = xla_tuple %1650
      %v1652 = vmax.f32 %v1648, %v24
      %1653 = xla_tuple %v1652
      %1654 = xla_tuple %v1652, %v1643
      %1655 = xla_tuple %1654
      %v1656 = vmax.f32 %v1652, %v1643
      %1657 = xla_tuple %v1656
      %s1658 = scalar_lea.vmem [#allocation28], 112
      %v1659 = vpack.c.bf16 0.0, %v1656
      %s1661 = ssub.s32 16, 1
      %1662 = vst [vmem:[%s1658] sm:%s1661] %v1659
      %s1663 = scalar_lea.vmem %s369, 20
      %v1664 = vlaneseq
      %v1665 = vand.u32 %v1664, 127
      %vm1667 = vcmp.lt.s32.totalorder %v1665, 32
      %v1668 = vsel %vm1667, %v912, %v19
      %s1669 = scalar_lea.vmem %s382, 20
      %s1670 = scalar_lea.vmem %s395, 20
      %1671 = xla_tuple %v34, %v29
      %1672 = xla_tuple %1671
      %v1673 = vmax.f32 %v34, %v29
      %1674 = xla_tuple %v1673
      %1675 = xla_tuple %v1673, %v24
      %1676 = xla_tuple %1675
      %v1677 = vmax.f32 %v1673, %v24
      %1678 = xla_tuple %v1677
      %1679 = xla_tuple %v1677, %v1668
      %1680 = xla_tuple %1679
      %v1681 = vmax.f32 %v1677, %v1668
      %1682 = xla_tuple %v1681
      %s1683 = scalar_lea.vmem [#allocation28], 116
      %v1684 = vpack.c.bf16 0.0, %v1681
      %s1686 = ssub.s32 16, 1
      %1687 = vst [vmem:[%s1683] sm:%s1686] %v1684
      %s1688 = scalar_lea.vmem %s369, 24
      %v1689 = vlaneseq
      %v1690 = vand.u32 %v1689, 127
      %vm1692 = vcmp.lt.s32.totalorder %v1690, 32
      %v1693 = vsel %vm1692, %v995, %v19
      %s1694 = scalar_lea.vmem %s382, 24
      %s1695 = scalar_lea.vmem %s395, 24
      %1696 = xla_tuple %v34, %v29
      %1697 = xla_tuple %1696
      %v1698 = vmax.f32 %v34, %v29
      %1699 = xla_tuple %v1698
      %1700 = xla_tuple %v1698, %v24
      %1701 = xla_tuple %1700
      %v1702 = vmax.f32 %v1698, %v24
      %1703 = xla_tuple %v1702
      %1704 = xla_tuple %v1702, %v1693
      %1705 = xla_tuple %1704
      %v1706 = vmax.f32 %v1702, %v1693
      %1707 = xla_tuple %v1706
      %s1708 = scalar_lea.vmem [#allocation28], 120
      %v1709 = vpack.c.bf16 0.0, %v1706
      %s1711 = ssub.s32 16, 1
      %1712 = vst [vmem:[%s1708] sm:%s1711] %v1709
      %s1713 = scalar_lea.vmem %s369, 28
      %v1714 = vlaneseq
      %v1715 = vand.u32 %v1714, 127
      %vm1717 = vcmp.lt.s32.totalorder %v1715, 32
      %v1718 = vsel %vm1717, %v1078, %v19
      %s1719 = scalar_lea.vmem %s382, 28
      %s1720 = scalar_lea.vmem %s395, 28
      %1721 = xla_tuple %v34, %v29
      %1722 = xla_tuple %1721
      %v1723 = vmax.f32 %v34, %v29
      %1724 = xla_tuple %v1723
      %1725 = xla_tuple %v1723, %v24
      %1726 = xla_tuple %1725
      %v1727 = vmax.f32 %v1723, %v24
      %1728 = xla_tuple %v1727
      %1729 = xla_tuple %v1727, %v1718
      %1730 = xla_tuple %1729
      %v1731 = vmax.f32 %v1727, %v1718
      %1732 = xla_tuple %v1731
      %s1733 = scalar_lea.vmem [#allocation28], 124
      %v1734 = vpack.c.bf16 0.0, %v1731
      %s1736 = ssub.s32 16, 1
      %1737 = vst [vmem:[%s1733] sm:%s1736] %v1734
      %v1738 = vld [vmem:[%s7] sm:$0x1]
      %s1740 = ssub.s32 2, 1
      %1741 = vst [vmem:[#allocation29] sm:%s1740] %v1738
      %v1743 = vld [vmem:[#allocation27] sm:$0xf]
      %v1744 = vld [vmem:[#allocation27 + $0x4] sm:$0xf]
      %v1745 = vld [vmem:[#allocation27 + $0x8] sm:$0x3]
      %v1746 = vld [vmem:[#allocation28] sm:$0xf]
      %v1747 = vld [vmem:[#allocation28 + $0x4] sm:$0xf]
      %v1748 = vld [vmem:[#allocation28 + $0x8] sm:$0xf]
      %v1749 = vld [vmem:[#allocation28 + $0xc] sm:$0xf]
      %v1750 = vld [vmem:[#allocation28 + $0x10] sm:$0xf]
      %v1751 = vld [vmem:[#allocation28 + $0x14] sm:$0xf]
      %v1752 = vld [vmem:[#allocation28 + $0x18] sm:$0xf]
      %v1753 = vld [vmem:[#allocation28 + $0x1c] sm:$0xf]
      %v1754 = vld [vmem:[#allocation27 + $0x8] sm:$0x7]
      %s1755 = scalar_lea.vmem [#allocation28], 32
      %v1756 = vld [vmem:[%s1755] sm:$0xf]
      %v1757 = vld [vmem:[%s1755 + $0x4] sm:$0xf]
      %v1758 = vld [vmem:[%s1755 + $0x8] sm:$0xf]
      %v1759 = vld [vmem:[%s1755 + $0xc] sm:$0xf]
      %v1760 = vld [vmem:[%s1755 + $0x10] sm:$0xf]
      %v1761 = vld [vmem:[%s1755 + $0x14] sm:$0xf]
      %v1762 = vld [vmem:[%s1755 + $0x18] sm:$0xf]
      %v1763 = vld [vmem:[%s1755 + $0x1c] sm:$0xf]
      %v1767 = vunpack.c.l.b16 %v1743
      %v1768 = vunpack.c.l.b16 %v1744
      %v1769 = vunpack.c.l.b16 %v1754
      %v1770 = vpack.c.b16 %v1768, %v1767
      %v1771 = vpack.c.b16 %v1769, %v1769
      %vm1772 = vsmask.f32 7424
      %v1774 = vshrl.u32 %v1770, 16
      %v1776 = vshll.u32 %v1770, 16
      %v1778 = vrot.slane %v1776, 1
      %v1779 = vor.u32 %v1774, %v1778
      %v1781 = vshll.u32 %v1771, 16
      %v1783 = vrot.slane %v1781, 1
      %v1784 = vsel %vm1772, %v1779, %v1783
      %v1785 = vshrl.u32 %v1771, 16
      %v1787 = vor.u32 %v1785, %v1783
      %v1796 = vunpack.c.l.b16 %v1756
      %v1797 = vunpack.c.l.b16 %v1757
      %v1798 = vunpack.c.l.b16 %v1758
      %v1799 = vunpack.c.l.b16 %v1759
      %v1800 = vunpack.c.l.b16 %v1760
      %v1801 = vunpack.c.l.b16 %v1761
      %v1802 = vunpack.c.l.b16 %v1762
      %v1803 = vunpack.c.l.b16 %v1763
      %v1804 = vpack.c.b16 %v1797, %v1796
      %v1805 = vpack.c.b16 %v1799, %v1798
      %v1806 = vpack.c.b16 %v1801, %v1800
      %v1807 = vpack.c.b16 %v1803, %v1802
      %vm1812 = vcmask 523264
      %v1814 = vsel %vm1812, %v1784, 0
      %v1817 = vsel %vm1812, %v1787, 0
      %1819 = vmatpush.bf16.msra.mxu0 0
      %1820 = vmatpush.bf16.msra.mxu0 0
      %1821 = vmatpush.bf16.msra.mxu0 0
      %1822 = vmatpush.bf16.msra.mxu0 0
      %1823 = vmatpush.bf16.msra.mxu0 %v1807
      %1824 = vmatpush.bf16.msra.mxu0 %v1806
      %1825 = vmatpush.bf16.msra.mxu0 %v1805
      %1826 = vmatpush.bf16.msra.mxu0 %v1804
      %1827 = vmatmul.bf16.gmra.mxu0 %v1814
      %v1828 = vpop.f32.mrf.mxu0
      %v1829 = vadd.f32 0.0, %v1828
      %v1830 = vpop.f32.mrf.mxu0
      %v1831 = vadd.f32 0.0, %v1830
      %1832 = vmatmul.bf16.gmra.mxu0 %v1817
      %v1833 = vpop.f32.mrf.mxu0
      %v1834 = vadd.f32 0.0, %v1833
      %v1835 = vpop.f32.mrf.mxu0
      %1836 = vdwg.mxu0
      %v1838 = vunpack.c.l.b16 %v1745
      %v1839 = vpack.c.b16 %v1838, %v1838
      %v1848 = vunpack.c.l.b16 %v1746
      %v1849 = vunpack.c.l.b16 %v1747
      %v1850 = vunpack.c.l.b16 %v1748
      %v1851 = vunpack.c.l.b16 %v1749
      %v1852 = vunpack.c.l.b16 %v1750
      %v1853 = vunpack.c.l.b16 %v1751
      %v1854 = vunpack.c.l.b16 %v1752
      %v1855 = vunpack.c.l.b16 %v1753
      %v1856 = vpack.c.b16 %v1849, %v1848
      %v1857 = vpack.c.b16 %v1851, %v1850
      %v1858 = vpack.c.b16 %v1853, %v1852
      %v1859 = vpack.c.b16 %v1855, %v1854
      %v1864 = vsel %vm1812, %v1770, 0
      %v1867 = vsel %vm1812, %v1839, 0
      %1869 = vmatpush.bf16.msra.mxu0 0
      %1870 = vmatpush.bf16.msra.mxu0 0
      %1871 = vmatpush.bf16.msra.mxu0 0
      %1872 = vmatpush.bf16.msra.mxu0 0
      %1873 = vmatpush.bf16.msra.mxu0 %v1859
      %1874 = vmatpush.bf16.msra.mxu0 %v1858
      %1875 = vmatpush.bf16.msra.mxu0 %v1857
      %1876 = vmatpush.bf16.msra.mxu0 %v1856
      %1877 = vmatmul.bf16.gmra.mxu0 %v1864
      %v1878 = vpop.f32.mrf.mxu0
      %v1879 = vadd.f32 %v1829, %v1878
      %v1880 = vpop.f32.mrf.mxu0
      %v1881 = vadd.f32 %v1831, %v1880
      %1882 = vmatmul.bf16.gmra.mxu0 %v1867
      %v1883 = vpop.f32.mrf.mxu0
      %v1884 = vadd.f32 %v1834, %v1883
      %v1885 = vpop.f32.mrf.mxu0
      %1886 = vdwg.mxu0
      %v1887 = vld [vmem:[#allocation27] sm:$0xc]
      %v1888 = vld [vmem:[#allocation27 + $0x4] sm:$0xf]
      %v1889 = vld [vmem:[#allocation27 + $0x8] sm:$0xf]
      %v1890 = vld [vmem:[#allocation27 + $0xc] sm:$0x1]
      %s1891 = scalar_lea.vmem [#allocation28], 64
      %v1892 = vld [vmem:[%s1891] sm:$0xf]
      %v1893 = vld [vmem:[%s1891 + $0x4] sm:$0xf]
      %v1894 = vld [vmem:[%s1891 + $0x8] sm:$0xf]
      %v1895 = vld [vmem:[%s1891 + $0xc] sm:$0xf]
      %v1896 = vld [vmem:[%s1891 + $0x10] sm:$0xf]
      %v1897 = vld [vmem:[%s1891 + $0x14] sm:$0xf]
      %v1898 = vld [vmem:[%s1891 + $0x18] sm:$0xf]
      %v1899 = vld [vmem:[%s1891 + $0x1c] sm:$0xf]
      %v1900 = vld [vmem:[#allocation27] sm:$0x8]
      %s1901 = scalar_lea.vmem [#allocation28], 96
      %v1902 = vld [vmem:[%s1901] sm:$0xf]
      %v1903 = vld [vmem:[%s1901 + $0x4] sm:$0xf]
      %v1904 = vld [vmem:[%s1901 + $0x8] sm:$0xf]
      %v1905 = vld [vmem:[%s1901 + $0xc] sm:$0xf]
      %v1906 = vld [vmem:[%s1901 + $0x10] sm:$0xf]
      %v1907 = vld [vmem:[%s1901 + $0x14] sm:$0xf]
      %v1908 = vld [vmem:[%s1901 + $0x18] sm:$0xf]
      %v1909 = vld [vmem:[%s1901 + $0x1c] sm:$0xf]
      %v1914 = vunpack.c.l.b16 %v1900
      %v1915 = vunpack.c.l.b16 %v1888
      %v1916 = vunpack.c.l.b16 %v1889
      %v1917 = vunpack.c.l.b16 %v1890
      %v1918 = vpack.c.b16 %v1915, %v1914
      %v1919 = vpack.c.b16 %v1917, %v1916
      %vm1920 = vcmask 1044480
      %v1921 = vrot.slane %v1918, 3
      %v1922 = vrot.slane %v1919, 3
      %v1923 = vsel %vm1920, %v1921, %v1922
      %v1932 = vunpack.c.l.b16 %v1902
      %v1933 = vunpack.c.l.b16 %v1903
      %v1934 = vunpack.c.l.b16 %v1904
      %v1935 = vunpack.c.l.b16 %v1905
      %v1936 = vunpack.c.l.b16 %v1906
      %v1937 = vunpack.c.l.b16 %v1907
      %v1938 = vunpack.c.l.b16 %v1908
      %v1939 = vunpack.c.l.b16 %v1909
      %v1940 = vpack.c.b16 %v1933, %v1932
      %v1941 = vpack.c.b16 %v1935, %v1934
      %v1942 = vpack.c.b16 %v1937, %v1936
      %v1943 = vpack.c.b16 %v1939, %v1938
      %v1949 = vsel %vm1812, %v1923, 0
      %v1952 = vsel %vm1812, %v1922, 0
      %1954 = vmatpush.bf16.msra.mxu0 0
      %1955 = vmatpush.bf16.msra.mxu0 0
      %1956 = vmatpush.bf16.msra.mxu0 0
      %1957 = vmatpush.bf16.msra.mxu0 0
      %1958 = vmatpush.bf16.msra.mxu0 %v1943
      %1959 = vmatpush.bf16.msra.mxu0 %v1942
      %1960 = vmatpush.bf16.msra.mxu0 %v1941
      %1961 = vmatpush.bf16.msra.mxu0 %v1940
      %1962 = vmatmul.bf16.gmra.mxu0 %v1949
      %v1963 = vpop.f32.mrf.mxu0
      %v1964 = vadd.f32 0.0, %v1963
      %v1965 = vpop.f32.mrf.mxu0
      %v1966 = vadd.f32 0.0, %v1965
      %1967 = vmatmul.bf16.gmra.mxu0 %v1952
      %v1968 = vpop.f32.mrf.mxu0
      %v1969 = vadd.f32 0.0, %v1968
      %v1970 = vpop.f32.mrf.mxu0
      %1971 = vdwg.mxu0
      %v1973 = vunpack.c.l.b16 %v1887
      %v1974 = vpack.c.b16 %v1915, %v1973
      %vm1975 = vsmask.f32 5376
      %v1977 = vshrl.u32 %v1974, 16
      %v1979 = vrot.slane %v1977, 2
      %v1980 = vshll.u32 %v1974, 16
      %v1982 = vrot.slane %v1980, 3
      %v1983 = vor.u32 %v1979, %v1982
      %v1985 = vshrl.u32 %v1919, 16
      %v1987 = vrot.slane %v1985, 2
      %v1988 = vshll.u32 %v1919, 16
      %v1990 = vrot.slane %v1988, 3
      %v1991 = vor.u32 %v1987, %v1990
      %v1992 = vsel %vm1975, %v1983, %v1991
      %v2001 = vunpack.c.l.b16 %v1892
      %v2002 = vunpack.c.l.b16 %v1893
      %v2003 = vunpack.c.l.b16 %v1894
      %v2004 = vunpack.c.l.b16 %v1895
      %v2005 = vunpack.c.l.b16 %v1896
      %v2006 = vunpack.c.l.b16 %v1897
      %v2007 = vunpack.c.l.b16 %v1898
      %v2008 = vunpack.c.l.b16 %v1899
      %v2009 = vpack.c.b16 %v2002, %v2001
      %v2010 = vpack.c.b16 %v2004, %v2003
      %v2011 = vpack.c.b16 %v2006, %v2005
      %v2012 = vpack.c.b16 %v2008, %v2007
      %v2018 = vsel %vm1812, %v1992, 0
      %v2021 = vsel %vm1812, %v1991, 0
      %2023 = vmatpush.bf16.msra.mxu0 0
      %2024 = vmatpush.bf16.msra.mxu0 0
      %2025 = vmatpush.bf16.msra.mxu0 0
      %2026 = vmatpush.bf16.msra.mxu0 0
      %2027 = vmatpush.bf16.msra.mxu0 %v2012
      %2028 = vmatpush.bf16.msra.mxu0 %v2011
      %2029 = vmatpush.bf16.msra.mxu0 %v2010
      %2030 = vmatpush.bf16.msra.mxu0 %v2009
      %2031 = vmatmul.bf16.gmra.mxu0 %v2018
      %v2032 = vpop.f32.mrf.mxu0
      %v2033 = vadd.f32 %v1964, %v2032
      %v2034 = vpop.f32.mrf.mxu0
      %v2035 = vadd.f32 %v1966, %v2034
      %2036 = vmatmul.bf16.gmra.mxu0 %v2021
      %v2037 = vpop.f32.mrf.mxu0
      %v2038 = vadd.f32 %v1969, %v2037
      %v2039 = vpop.f32.mrf.mxu0
      %2040 = vdwg.mxu0
      %v2041 = vadd.f32 %v1879, %v2033
      %v2042 = vadd.f32 %v1881, %v2035
      %v2043 = vadd.f32 %v1884, %v2038
      %v2044 = vld [vmem:[#allocation29] sm:$0x1]
      %v2046 = vperm.slane %v2044, 0
      %v2048 = vadd.f32 %v2041, %v2046
      %v2049 = vadd.f32 %v2042, %v2046
      %v2050 = vadd.f32 %v2043, %v2046
      %v2051 = vmax.f32 %v2048, 0.0
      %v2052 = vmax.f32 %v2049, 0.0
      %v2053 = vmax.f32 %v2050, 0.0
      %v2054 = vpack.c.bf16 %v2051, %v2051
      %v2055 = vpack.c.bf16 %v2052, %v2052
      %v2056 = vpack.c.bf16 %v2053, %v2053
      %vm2057 = vcmask 257024
      %2058 = vst.msk [vmem:[%s404] sm:$0xf] %vm2057, %v2054
      %2059 = vst.msk [vmem:[%s404 + $0x4] sm:$0xf] %vm2057, %v2055
      %vm2060 = vcmask 254976
      %2061 = vst.msk [vmem:[%s404 + $0x8] sm:$0x3] %vm2060, %v2056
      %p2062 = scmp.lt.s32.totalorder %s44, 1
      %s2063 = scalar_select %p2062, %s44, 1
      %s2064 = smul.addr %s2063, 3
      %s2065 = smul.addr %s2064, 4
      %s2066 = scalar_lea.vmem %s8, %s2065
      // Predicated region
      $region45: #{baseline_forward.14} parent=43 // pred_check
        %p2067 = pneg %p214
      $region46: #{baseline_forward.14} parent=43 // pred_check_branch
        %2069 = sbr.rel (%p2067) target = $region48
      $region47: #{baseline_forward.14} parent=43 // pred_region
        _
      $region48: #{baseline_forward.14} parent=43 // pred_fallthru
        _
    $region44: #{baseline_forward.14} parent=5 // pred_fallthru
      _
    %p2070 = scmp.le.s32.totalorder 2, %s39
    // Predicated region
    $region49: #{baseline_forward.14} parent=5 // pred_check
      %p2071 = pneg %p2070
    $region50: #{baseline_forward.14} parent=5 // pred_check_branch
      %2073 = sbr.rel (%p2071) target = $region52
    $region51: #{baseline_forward.14} parent=5 // pred_region
      %s2074 = ssub.s32 %s39, 2
      // Predicated region
      $region53: #{baseline_forward.14} parent=51 // pred_check
        %p2075 = pneg %p220
      $region54: #{baseline_forward.14} parent=51 // pred_check_branch
        %2077 = sbr.rel (%p2075) target = $region56
      $region55: #{baseline_forward.14} parent=51 // pred_region
        %p2078 = scmp.lt.s32.totalorder %s45, 1
        %s2079 = scalar_select %p2078, %s45, 1
        %s2080 = smul.addr %s2079, 3
        %s2081 = smul.addr %s2080, 4
        %s2082 = scalar_lea.vmem %s8, %s2081
      $region56: #{baseline_forward.14} parent=51 // pred_fallthru
        _
    $region52: #{baseline_forward.14} parent=5 // pred_fallthru
      _
  $region6: #{baseline_forward.14} parent=0 // loop_footer
    %s43 = sadd.s32 1, %s39
  $region7: #{baseline_forward.14} parent=0 // loop_footer_branch
    %38 = sbr.rel target = $region3
  $region8: #{baseline_forward.14} parent=0 // loop_exit
    _

// kernel: tile.18
$region0: #{tile.18}
  #allocation0 [shape = 's32[1]{0}', space=sflag, size = 0x4, scoped, tag = 'scoped memory for tile.18']
  %s0 = inlined_call_operand.vmem [shape: f32[32], index: 0, kind: input, shape index: {}]
  %s1 = inlined_call_operand.vmem [shape: f32[4,32], index: 1, kind: output, shape index: {}]
  // Predicated region
  $region2: #{tile.18} parent=0 // pred_check
    _
  $region3: #{tile.18} parent=0 // pred_check_branch
    %3 = sbr.rel (0) target = $region5
  $region4: #{tile.18} parent=0 // pred_region
    _
  $region5: #{tile.18} parent=0 // pred_fallthru
    _
  %v4 = vld [vmem:[%s0] ss:$0 sm:$0xff]
  %5 = vst [vmem:[%s1] sm:$0xf] %v4

// kernel: tile.19
$region0: #{tile.19}
  %s0 = inlined_call_operand.vmem [shape: f32[4,32], index: 0, kind: input, shape index: {}]
  %s1 = inlined_call_operand.vmem [shape: f32[1,128], index: 1, kind: output, shape index: {}]
  $region1: #{tile.19} parent=0
    #allocation0 [shape = 'u8[4096]{0}', space=vmem, size = 0x1000, scoped, tag = 'scoped mem for output reshape']
    #allocation1 [shape = 'u8[4096]{0}', space=vmem, size = 0x1000, scoped, tag = 'scoped mem for input reshape']
    %s3 = ssub.s32 16, 1
    %v4 = vld [vmem:[%s0] sm:%s3]
    %5 = vst [vmem:[#allocation1] sm:%s3] %v4
    %v6 = vld [vmem:[#allocation1] sm:$0x1]
    %vm7 = vcmask 261120
    %8 = vst.msk [vmem:[#allocation0] sm:$0x1] %vm7, %v6
    %s9 = scalar_lea.vmem [#allocation1], 3
    %v10 = vld [vmem:[%s9] sm:$0x1]
    %11 = vrot.lane.b32.xlu0 %v10, 96
    %v12 = vpop.permute.xlu0 %11
    %vm13 = vcmask 1048320
    %14 = vst.msk [vmem:[#allocation0] sm:$0x1] %vm13, %v12
    %s15 = scalar_lea.vmem [#allocation1], 2
    %v16 = vld [vmem:[%s15] sm:$0x1]
    %17 = vrot.lane.b32.xlu0 %v16, 64
    %v18 = vpop.permute.xlu0 %17
    %vm19 = vcmask 785920
    %20 = vst.msk [vmem:[#allocation0] sm:$0x1] %vm19, %v18
    %s21 = scalar_lea.vmem [#allocation1], 1
    %v22 = vld [vmem:[%s21] sm:$0x1]
    %23 = vrot.lane.b32.xlu0 %v22, 32
    %v24 = vpop.permute.xlu0 %23
    %vm25 = vcmask 523520
    %26 = vst.msk [vmem:[#allocation0] sm:$0x1] %vm25, %v24
    %s28 = ssub.s32 2, 1
    %v29 = vld [vmem:[#allocation0] sm:%s28]
    %s31 = ssub.s32 2, 1
    %32 = vst [vmem:[%s1] sm:%s31] %v29

// kernel: tile.23
$region0: #{tile.23}
  #allocation0 [shape = 's32[1]{0}', space=sflag, size = 0x4, scoped, tag = 'scoped memory for tile.23']
  %s0 = inlined_call_operand.vmem [shape: f32[16], index: 0, kind: input, shape index: {}]
  %s1 = inlined_call_operand.vmem [shape: f32[4,16], index: 1, kind: output, shape index: {}]
  // Predicated region
  $region2: #{tile.23} parent=0 // pred_check
    _
  $region3: #{tile.23} parent=0 // pred_check_branch
    %3 = sbr.rel (0) target = $region5
  $region4: #{tile.23} parent=0 // pred_region
    _
  $region5: #{tile.23} parent=0 // pred_fallthru
    _
  %v4 = vld [vmem:[%s0] ss:$0 sm:$0xff]
  %5 = vst [vmem:[%s1] sm:$0xf] %v4

// kernel: baseline_forward.12
$region0: #{baseline_forward.12}
  #allocation0 [shape = 'u32[]', space=smem, size = 0x4, offset = 0x4, fixed_abs, tag = 'smem constant byte address 0x4 - core index']
  #allocation1 [shape = 'u32[72,128]{1,0:T(1,128)}', space=vmem, size = 0x9000, scoped, tag = 'internal scratch']
  #allocation2 [shape = 'u32[2048]{0}', space=vmem, size = 0x2000, scoped, tag = 'scoped memory for baseline_forward.12']
  #allocation3 [shape = 'u32[2048]{0}', space=vmem, size = 0x2000, scoped, tag = 'scoped memory for baseline_forward.12']
  #allocation4 [shape = 'u32[2048]{0}', space=vmem, size = 0x2000, scoped, tag = 'scoped memory for baseline_forward.12']
  #allocation5 [shape = 'u32[2048]{0}', space=vmem, size = 0x2000, scoped, tag = 'scoped memory for baseline_forward.12']
  #allocation6 [shape = 'u32[2048]{0}', space=vmem, size = 0x2000, scoped, tag = 'scoped memory for baseline_forward.12']
  #allocation7 [shape = 'u32[2048]{0}', space=vmem, size = 0x2000, scoped, tag = 'scoped memory for baseline_forward.12']
  #allocation8 [shape = 'u32[2048]{0}', space=vmem, size = 0x2000, scoped, tag = 'scoped memory for baseline_forward.12']
  #allocation9 [shape = 'u32[2048]{0}', space=vmem, size = 0x2000, scoped, tag = 'scoped memory for baseline_forward.12']
  #allocation10 [shape = 'u32[2048]{0}', space=vmem, size = 0x2000, scoped, tag = 'scoped memory for baseline_forward.12']
  #allocation11 [shape = 'u32[2048]{0}', space=vmem, size = 0x2000, scoped, tag = 'scoped memory for baseline_forward.12']
  #allocation12 [shape = 'u32[2048]{0}', space=vmem, size = 0x2000, scoped, tag = 'scoped memory for baseline_forward.12']
  #allocation13 [shape = 'u32[2048]{0}', space=vmem, size = 0x2000, scoped, tag = 'scoped memory for baseline_forward.12']
  #allocation14 [shape = 'u32[2048]{0}', space=vmem, size = 0x2000, scoped, tag = 'scoped memory for baseline_forward.12']
  #allocation15 [shape = 'u32[2048]{0}', space=vmem, size = 0x2000, scoped, tag = 'scoped memory for baseline_forward.12']
  #allocation16 [shape = 'u32[2048]{0}', space=vmem, size = 0x2000, scoped, tag = 'scoped memory for baseline_forward.12']
  #allocation17 [shape = 'u32[2048]{0}', space=vmem, size = 0x2000, scoped, tag = 'scoped memory for baseline_forward.12']
  #allocation18 [shape = 'u32[2048]{0}', space=vmem, size = 0x2000, scoped, tag = 'scoped memory for baseline_forward.12']
  #allocation19 [shape = 'u32[2048]{0}', space=vmem, size = 0x2000, scoped, tag = 'scoped memory for baseline_forward.12']
  #allocation20 [shape = 'u32[2048]{0}', space=vmem, size = 0x2000, scoped, tag = 'scoped memory for baseline_forward.12']
  #allocation21 [shape = 'u32[2048]{0}', space=vmem, size = 0x2000, scoped, tag = 'scoped memory for baseline_forward.12']
  #allocation22 [shape = 'u32[2048]{0}', space=vmem, size = 0x2000, scoped, tag = 'scoped memory for baseline_forward.12']
  #allocation23 [shape = 'u32[2048]{0}', space=vmem, size = 0x2000, scoped, tag = 'scoped memory for baseline_forward.12']
  #allocation24 [shape = 'u32[2048]{0}', space=vmem, size = 0x2000, scoped, tag = 'scoped memory for baseline_forward.12']
  #allocation25 [shape = 'u32[2048]{0}', space=vmem, size = 0x2000, scoped, tag = 'scoped memory for baseline_forward.12']
  #allocation26 [shape = 'u32[2048]{0}', space=vmem, size = 0x2000, scoped, tag = 'scoped memory for baseline_forward.12']
  %s0 = inlined_call_operand.vmem [shape: bf16[1,128,64], index: 0, kind: input, shape index: {}]
  %s1 = inlined_call_operand.<no memory space> [shape: bf16[], index: 1, kind: input, shape index: {}]
  %s2 = inlined_call_operand.vmem [shape: bf16[1,128,64], index: 2, kind: input, shape index: {}]
  %s3 = inlined_call_operand.vmem [shape: bf16[1,128,64], index: 3, kind: input, shape index: {}]
  %s4 = inlined_call_operand.vmem [shape: bf16[1,128,64], index: 4, kind: input, shape index: {}]
  %s5 = inlined_call_operand.vmem [shape: bf16[2,9,128], index: 5, kind: input, shape index: {}]
  %s6 = inlined_call_operand.<no memory space> [shape: bf16[], index: 6, kind: input, shape index: {}]
  %s7 = inlined_call_operand.vmem [shape: f32[64], index: 7, kind: input, shape index: {}]
  %s8 = inlined_call_operand.vmem [shape: bf16[2,6,64], index: 8, kind: output, shape index: {}]
  %s9 = sld [smem:[#allocation0]]
  $region57: #{baseline_forward.12} parent=0
    _
  %s11 = ssub.s32 1, %s9
  %s12 = scalar_select 0, %s11, %s9
  %v13 = vstv %s6
  %v14 = vunpack.i.l.bf16 %v13
  %v16 = vunpack.i.h.bf16 %v13
  %v18 = vstv %s1
  %v19 = vunpack.i.l.bf16 %v18
  %v21 = vunpack.i.h.bf16 %v18
  %v23 = vstv %s1
  %v24 = vunpack.i.l.bf16 %v23
  %v26 = vunpack.i.h.bf16 %v23
  %v28 = vstv %s1
  %v29 = vunpack.i.l.bf16 %v28
  %v31 = vunpack.i.h.bf16 %v28
  %v33 = vstv %s1
  %v34 = vunpack.i.l.bf16 %v33
  %v36 = vunpack.i.h.bf16 %v33
  loop: start=0, step=1, limit=4
  $region2: #{baseline_forward.12} parent=0 // loop_pre_header
    _
  $region3: #{baseline_forward.12} parent=0 // loop_header
    %s39 = sphi 0, %s43
    %p40 = scmp.ge.s32.totalorder %s39, 4
    %s49 = sphi 0, %s51
    %s52 = sphi 0, %s49
    %s53 = sphi 0, %s52
    %s69 = sphi 0, %s53
    %s77 = sphi 0, %s79
    %s80 = sphi 0, %s77
    %s81 = sphi 0, %s80
    %s97 = sphi 0, %s81
    %s105 = sphi 0, %s107
    %s108 = sphi 0, %s105
    %s109 = sphi 0, %s108
    %s125 = sphi 0, %s109
    %s133 = sphi 0, %s135
    %s136 = sphi 0, %s133
    %s137 = sphi 0, %s136
    %s153 = sphi 0, %s137
    %s157 = sphi 0, %s157
    %s159 = sphi 0, %s157
    %s160 = sphi 0, %s159
    %s174 = sphi 0, %s160
    %s178 = sphi 0, %s178
    %s180 = sphi 0, %s178
    %s181 = sphi 0, %s180
    %s195 = sphi 0, %s181
    %s201 = sphi 0, %s203
    %s204 = sphi 0, %s201
    %s205 = sphi 0, %s204
    %s221 = sphi 0, %s205
  $region4: #{baseline_forward.12} parent=0 // loop_header_branch
    %42 = sbr.rel (%p40) target = $region8
  $region5: #{baseline_forward.12} parent=0 // loop_body
    %s44 = ssub.s32 %s39, 1
    %s45 = ssub.s32 %s39, 2
    %s46 = sadd.s32 %s39, 1
    %s47 = ssub.s32 %s39, %s46
    %p48 = scmp.eq.s32.totalorder %s47, 0
    %s50 = sadd.s32 %s49, 1
    %s51 = scalar_select %p48, %s49, %s50
    %p54 = pneg %p48
    %p55 = scmp.eq.s32.totalorder %s39, 1
    %p56 = por %p54, %p55
    %p57 = scmp.ne.s32.totalorder %s49, %s52
    %p58 = scmp.eq.s32.totalorder %s39, 0
    %p59 = por %p57, %p58
    %p60 = scmp.ne.s32.totalorder %s49, %s52
    %p61 = scmp.eq.s32.totalorder %s44, 1
    %p62 = por %p60, %p61
    %p63 = scmp.ne.s32.totalorder %s52, %s53
    %p64 = scmp.eq.s32.totalorder %s44, 0
    %p65 = por %p63, %p64
    %p66 = scmp.ne.s32.totalorder %s52, %s53
    %p67 = scmp.eq.s32.totalorder %s45, 1
    %p68 = por %p66, %p67
    %p70 = scmp.ne.s32.totalorder %s53, %s69
    %p71 = scmp.eq.s32.totalorder %s45, 0
    %p72 = por %p70, %p71
    %s75 = ssub.s32 0, 0
    %p76 = scmp.eq.s32.totalorder %s75, 0
    %s78 = sadd.s32 %s77, 1
    %s79 = scalar_select %p76, %s77, %s78
    %p82 = pneg %p76
    %p83 = scmp.eq.s32.totalorder %s39, 1
    %p84 = por %p82, %p83
    %p85 = scmp.ne.s32.totalorder %s77, %s80
    %p86 = scmp.eq.s32.totalorder %s39, 0
    %p87 = por %p85, %p86
    %p88 = scmp.ne.s32.totalorder %s77, %s80
    %p89 = scmp.eq.s32.totalorder %s44, 1
    %p90 = por %p88, %p89
    %p91 = scmp.ne.s32.totalorder %s80, %s81
    %p92 = scmp.eq.s32.totalorder %s44, 0
    %p93 = por %p91, %p92
    %p94 = scmp.ne.s32.totalorder %s80, %s81
    %p95 = scmp.eq.s32.totalorder %s45, 1
    %p96 = por %p94, %p95
    %p98 = scmp.ne.s32.totalorder %s81, %s97
    %p99 = scmp.eq.s32.totalorder %s45, 0
    %p100 = por %p98, %p99
    %s103 = ssub.s32 0, 0
    %p104 = scmp.eq.s32.totalorder %s103, 0
    %s106 = sadd.s32 %s105, 1
    %s107 = scalar_select %p104, %s105, %s106
    %p110 = pneg %p104
    %p111 = scmp.eq.s32.totalorder %s39, 1
    %p112 = por %p110, %p111
    %p113 = scmp.ne.s32.totalorder %s105, %s108
    %p114 = scmp.eq.s32.totalorder %s39, 0
    %p115 = por %p113, %p114
    %p116 = scmp.ne.s32.totalorder %s105, %s108
    %p117 = scmp.eq.s32.totalorder %s44, 1
    %p118 = por %p116, %p117
    %p119 = scmp.ne.s32.totalorder %s108, %s109
    %p120 = scmp.eq.s32.totalorder %s44, 0
    %p121 = por %p119, %p120
    %p122 = scmp.ne.s32.totalorder %s108, %s109
    %p123 = scmp.eq.s32.totalorder %s45, 1
    %p124 = por %p122, %p123
    %p126 = scmp.ne.s32.totalorder %s109, %s125
    %p127 = scmp.eq.s32.totalorder %s45, 0
    %p128 = por %p126, %p127
    %s131 = ssub.s32 0, 0
    %p132 = scmp.eq.s32.totalorder %s131, 0
    %s134 = sadd.s32 %s133, 1
    %s135 = scalar_select %p132, %s133, %s134
    %p138 = pneg %p132
    %p139 = scmp.eq.s32.totalorder %s39, 1
    %p140 = por %p138, %p139
    %p141 = scmp.ne.s32.totalorder %s133, %s136
    %p142 = scmp.eq.s32.totalorder %s39, 0
    %p143 = por %p141, %p142
    %p144 = scmp.ne.s32.totalorder %s133, %s136
    %p145 = scmp.eq.s32.totalorder %s44, 1
    %p146 = por %p144, %p145
    %p147 = scmp.ne.s32.totalorder %s136, %s137
    %p148 = scmp.eq.s32.totalorder %s44, 0
    %p149 = por %p147, %p148
    %p150 = scmp.ne.s32.totalorder %s136, %s137
    %p151 = scmp.eq.s32.totalorder %s45, 1
    %p152 = por %p150, %p151
    %p154 = scmp.ne.s32.totalorder %s137, %s153
    %p155 = scmp.eq.s32.totalorder %s45, 0
    %p156 = por %p154, %p155
    %s158 = sadd.s32 %s157, 1
    %p161 = scmp.eq.s32.totalorder %s39, 1
    %p162 = scmp.ne.s32.totalorder %s157, %s159
    %p163 = scmp.eq.s32.totalorder %s39, 0
    %p164 = por %p162, %p163
    %p165 = scmp.ne.s32.totalorder %s157, %s159
    %p166 = scmp.eq.s32.totalorder %s44, 1
    %p167 = por %p165, %p166
    %p168 = scmp.ne.s32.totalorder %s159, %s160
    %p169 = scmp.eq.s32.totalorder %s44, 0
    %p170 = por %p168, %p169
    %p171 = scmp.ne.s32.totalorder %s159, %s160
    %p172 = scmp.eq.s32.totalorder %s45, 1
    %p173 = por %p171, %p172
    %p175 = scmp.ne.s32.totalorder %s160, %s174
    %p176 = scmp.eq.s32.totalorder %s45, 0
    %p177 = por %p175, %p176
    %s179 = sadd.s32 %s178, 1
    %p182 = scmp.eq.s32.totalorder %s39, 1
    %p183 = scmp.ne.s32.totalorder %s178, %s180
    %p184 = scmp.eq.s32.totalorder %s39, 0
    %p185 = por %p183, %p184
    %p186 = scmp.ne.s32.totalorder %s178, %s180
    %p187 = scmp.eq.s32.totalorder %s44, 1
    %p188 = por %p186, %p187
    %p189 = scmp.ne.s32.totalorder %s180, %s181
    %p190 = scmp.eq.s32.totalorder %s44, 0
    %p191 = por %p189, %p190
    %p192 = scmp.ne.s32.totalorder %s180, %s181
    %p193 = scmp.eq.s32.totalorder %s45, 1
    %p194 = por %p192, %p193
    %p196 = scmp.ne.s32.totalorder %s181, %s195
    %p197 = scmp.eq.s32.totalorder %s45, 0
    %p198 = por %p196, %p197
    %s199 = ssub.s32 %s39, %s46
    %p200 = scmp.eq.s32.totalorder %s199, 0
    %s202 = sadd.s32 %s201, 1
    %s203 = scalar_select %p200, %s201, %s202
    %p206 = pneg %p200
    %p207 = scmp.eq.s32.totalorder %s39, 1
    %p208 = por %p206, %p207
    %p209 = scmp.ne.s32.totalorder %s201, %s204
    %p210 = scmp.eq.s32.totalorder %s39, 0
    %p211 = por %p209, %p210
    %p212 = scmp.ne.s32.totalorder %s201, %s204
    %p213 = scmp.eq.s32.totalorder %s44, 1
    %p214 = por %p212, %p213
    %p215 = scmp.ne.s32.totalorder %s204, %s205
    %p216 = scmp.eq.s32.totalorder %s44, 0
    %p217 = por %p215, %p216
    %p218 = scmp.ne.s32.totalorder %s204, %s205
    %p219 = scmp.eq.s32.totalorder %s45, 1
    %p220 = por %p218, %p219
    %p222 = scmp.ne.s32.totalorder %s205, %s221
    %p223 = scmp.eq.s32.totalorder %s45, 0
    %p224 = por %p222, %p223
    %p225 = scmp.le.s32.totalorder 1, %s39
    %p226 = scmp.lt.s32.totalorder %s39, 3
    %p227 = pnand %p225, %p226
    %p228 = pneg %p227
    // Predicated region
    $region9: #{baseline_forward.12} parent=5 // pred_check
      _
    $region10: #{baseline_forward.12} parent=5 // pred_check_branch
      %230 = sbr.rel (%p227) target = $region12
    $region11: #{baseline_forward.12} parent=5 // pred_region
      %s231 = ssub.s32 %s39, 1
      // Predicated region
      $region13: #{baseline_forward.12} parent=11 // pred_check
        %p232 = pneg %p93
      $region14: #{baseline_forward.12} parent=11 // pred_check_branch
        %234 = sbr.rel (%p232) target = $region16
      $region15: #{baseline_forward.12} parent=11 // pred_region
        %s236 = ssub.s32 1, 0
        %s237 = smul.u32 4, %s236
        %s238 = smul.u32 %s237, 16
        %p239 = scmp.lt.s32.totalorder 0, 0
        %s240 = scalar_select %p239, 0, 0
        %s241 = smul.addr %s240, 16
        %s242 = smul.addr %s241, 4
        %s243 = scalar_lea.vmem %s0, %s242
        %s245 = ssub.s32 1, 0
        %s246 = smul.u32 4, %s245
        %s247 = smul.u32 %s246, 16
      $region16: #{baseline_forward.12} parent=11 // pred_fallthru
        _
      // Predicated region
      $region17: #{baseline_forward.12} parent=11 // pred_check
        %p248 = pneg %p121
      $region18: #{baseline_forward.12} parent=11 // pred_check_branch
        %250 = sbr.rel (%p248) target = $region20
      $region19: #{baseline_forward.12} parent=11 // pred_region
        %s252 = ssub.s32 1, 0
        %s253 = smul.u32 4, %s252
        %s254 = smul.u32 %s253, 16
        %p255 = scmp.lt.s32.totalorder 0, 0
        %s256 = scalar_select %p255, 0, 0
        %s257 = smul.addr %s256, 16
        %s258 = smul.addr %s257, 4
        %s259 = scalar_lea.vmem %s2, %s258
        %s261 = ssub.s32 1, 0
        %s262 = smul.u32 4, %s261
        %s263 = smul.u32 %s262, 16
      $region20: #{baseline_forward.12} parent=11 // pred_fallthru
        _
      // Predicated region
      $region21: #{baseline_forward.12} parent=11 // pred_check
        %p264 = pneg %p149
      $region22: #{baseline_forward.12} parent=11 // pred_check_branch
        %266 = sbr.rel (%p264) target = $region24
      $region23: #{baseline_forward.12} parent=11 // pred_region
        %s268 = ssub.s32 1, 0
        %s269 = smul.u32 4, %s268
        %s270 = smul.u32 %s269, 16
        %p271 = scmp.lt.s32.totalorder 0, 0
        %s272 = scalar_select %p271, 0, 0
        %s273 = smul.addr %s272, 16
        %s274 = smul.addr %s273, 4
        %s275 = scalar_lea.vmem %s3, %s274
        %s277 = ssub.s32 1, 0
        %s278 = smul.u32 4, %s277
        %s279 = smul.u32 %s278, 16
      $region24: #{baseline_forward.12} parent=11 // pred_fallthru
        _
      // Predicated region
      $region25: #{baseline_forward.12} parent=11 // pred_check
        %p280 = pneg %p170
      $region26: #{baseline_forward.12} parent=11 // pred_check_branch
        %282 = sbr.rel (%p280) target = $region28
      $region27: #{baseline_forward.12} parent=11 // pred_region
        _
      $region28: #{baseline_forward.12} parent=11 // pred_fallthru
        _
      // Predicated region
      $region29: #{baseline_forward.12} parent=11 // pred_check
        %p283 = pneg %p191
      $region30: #{baseline_forward.12} parent=11 // pred_check_branch
        %285 = sbr.rel (%p283) target = $region32
      $region31: #{baseline_forward.12} parent=11 // pred_region
        _
      $region32: #{baseline_forward.12} parent=11 // pred_fallthru
        _
    $region12: #{baseline_forward.12} parent=5 // pred_fallthru
      _
    %p286 = scmp.lt.s32.totalorder %s39, 2
    // Predicated region
    $region33: #{baseline_forward.12} parent=5 // pred_check
      %p287 = pneg %p286
    $region34: #{baseline_forward.12} parent=5 // pred_check_branch
      %289 = sbr.rel (%p287) target = $region36
    $region35: #{baseline_forward.12} parent=5 // pred_region
      // Predicated region
      $region37: #{baseline_forward.12} parent=35 // pred_check
        %p290 = pneg %p59
      $region38: #{baseline_forward.12} parent=35 // pred_check_branch
        %292 = sbr.rel (%p290) target = $region40
      $region39: #{baseline_forward.12} parent=35 // pred_region
        %p293 = scmp.lt.s32.totalorder %s39, 1
        %s294 = scalar_select %p293, %s39, 1
        %s295 = smul.addr %s294, 2
        %s296 = smul.addr %s295, 4
        %s297 = scalar_lea.vmem %s5, %s296
      $region40: #{baseline_forward.12} parent=35 // pred_fallthru
        _
    $region36: #{baseline_forward.12} parent=5 // pred_fallthru
      _
    %p298 = scmp.le.s32.totalorder 1, %s39
    %p299 = scmp.lt.s32.totalorder %s39, 3
    %p300 = pnand %p298, %p299
    %p301 = pneg %p300
    // Predicated region
    $region41: #{baseline_forward.12} parent=5 // pred_check
      _
    $region42: #{baseline_forward.12} parent=5 // pred_check_branch
      %303 = sbr.rel (%p300) target = $region44
    $region43: #{baseline_forward.12} parent=5 // pred_region
      #allocation27 [shape = 'u8[4096]{0}', space=vmem, size = 0x1000, dematerialized = true, scoped, tag = 'FusionAdapter Buffer %fusion.63 = bf16[2,16,128]{2,1,0:T(8,128)(2,1)} fusion(%param_5.26, %param_6.24), kind=kLoop, calls=%fused_computation.144.clone, metadata={op_name="jit(baseline_forward)/jit(_pad)/pad" stack_frame_id=57}']
      #allocation28 [shape = 'u8[131072]{0}', space=vmem, size = 0x20000, dematerialized = true, scoped, tag = 'FusionAdapter Buffer %fusion.1 = bf16[4,128,64]{2,1,0:T(8,128)(2,1)} fusion(%param_0.406, %param_1.285, %param_2.183, %param_3.160, %param_4.94), kind=kLoop, calls=%fused_computation.1.clone, metadata={op_name="jit(baseline_forward)/concatenate" stack_frame_id=55}']
      #allocation29 [shape = 'u8[512]{0}', space=vmem, size = 0x400, dematerialized = true, scoped, tag = 'FusionAdapter Buffer %fusion.69 = f32[1,64]{1,0:T(1,128)} fusion(%param_7.10), kind=kLoop, calls=%fused_computation.178.clone, metadata={op_name="jit(baseline_forward)/reshape" stack_frame_id=60}']
      %s304 = ssub.s32 %s39, 1
      %p305 = scmp.lt.s32.totalorder %s44, 1
      %s306 = scalar_select %p305, %s44, 1
      %s307 = smul.addr %s306, 2
      %s308 = smul.addr %s307, 4
      %s309 = scalar_lea.vmem %s5, %s308
      %p310 = pneg %p65
      %p311 = pneg %p62
      %s313 = ssub.s32 1, 0
      %s314 = smul.u32 4, %s313
      %s315 = smul.u32 %s314, 16
      %p316 = scmp.lt.s32.totalorder 0, 0
      %s317 = scalar_select %p316, 0, 0
      %s318 = smul.addr %s317, 16
      %s319 = smul.addr %s318, 4
      %s320 = scalar_lea.vmem %s0, %s319
      %p321 = pneg %p93
      %p322 = pneg %p90
      %s324 = ssub.s32 1, 0
      %s325 = smul.u32 4, %s324
      %s326 = smul.u32 %s325, 16
      %p327 = scmp.lt.s32.totalorder 0, 0
      %s328 = scalar_select %p327, 0, 0
      %s329 = smul.addr %s328, 16
      %s330 = smul.addr %s329, 4
      %s331 = scalar_lea.vmem %s2, %s330
      %p332 = pneg %p121
      %p333 = pneg %p118
      %s335 = ssub.s32 1, 0
      %s336 = smul.u32 4, %s335
      %s337 = smul.u32 %s336, 16
      %p338 = scmp.lt.s32.totalorder 0, 0
      %s339 = scalar_select %p338, 0, 0
      %s340 = smul.addr %s339, 16
      %s341 = smul.addr %s340, 4
      %s342 = scalar_lea.vmem %s3, %s341
      %p343 = pneg %p149
      %p344 = pneg %p146
      %p345 = pneg %p170
      %p346 = pneg %p167
      %p347 = pneg %p191
      %p348 = pneg %p188
      %p349 = pneg %p217
      %p350 = pneg %p214
      %p351 = scmp.lt.s32.totalorder %s44, 1
      %s352 = scalar_select %p351, %s44, 1
      %s353 = smul.addr %s352, 4
      %s354 = scalar_lea.vmem %s8, %s353
      %p355 = scmp.lt.s32.totalorder %s44, 1
      %s356 = scalar_select %p355, %s44, 1
      %s357 = smul.addr %s356, 2
      %s358 = smul.addr %s357, 4
      %s359 = scalar_lea.vmem %s5, %s358
      %s361 = ssub.s32 1, 0
      %s362 = smul.u32 4, %s361
      %s363 = smul.u32 %s362, 16
      %p364 = scmp.lt.s32.totalorder 0, 0
      %s365 = scalar_select %p364, 0, 0
      %s366 = smul.addr %s365, 16
      %s367 = smul.addr %s366, 4
      %s368 = scalar_lea.vmem %s0, %s367
      %s370 = ssub.s32 1, 0
      %s371 = smul.u32 4, %s370
      %s372 = smul.u32 %s371, 16
      %s374 = ssub.s32 1, 0
      %s375 = smul.u32 4, %s374
      %s376 = smul.u32 %s375, 16
      %p377 = scmp.lt.s32.totalorder 0, 0
      %s378 = scalar_select %p377, 0, 0
      %s379 = smul.addr %s378, 16
      %s380 = smul.addr %s379, 4
      %s381 = scalar_lea.vmem %s2, %s380
      %s383 = ssub.s32 1, 0
      %s384 = smul.u32 4, %s383
      %s385 = smul.u32 %s384, 16
      %s387 = ssub.s32 1, 0
      %s388 = smul.u32 4, %s387
      %s389 = smul.u32 %s388, 16
      %p390 = scmp.lt.s32.totalorder 0, 0
      %s391 = scalar_select %p390, 0, 0
      %s392 = smul.addr %s391, 16
      %s393 = smul.addr %s392, 4
      %s394 = scalar_lea.vmem %s3, %s393
      %s396 = ssub.s32 1, 0
      %s397 = smul.u32 4, %s396
      %s398 = smul.u32 %s397, 16
      %p399 = scmp.lt.s32.totalorder %s44, 1
      %s400 = scalar_select %p399, %s44, 1
      %s401 = smul.addr %s400, 4
      %s402 = scalar_lea.vmem %s8, %s401
      %v403 = vld [vmem:[%s359] sm:$0xf]
      %v404 = vunpack.c.l.bf16 %v403
      %v405 = vunpack.c.h.bf16 %v403
      %v406 = vlaneseq
      %v407 = vshrl.u32 %v406, 7
      %vm409 = vcmp.lt.s32.totalorder %v407, 9
      %v410 = vsel %vm409, %v404, %v14
      %v411 = vpack.c.bf16 0.0, %v410
      %s413 = ssub.s32 16, 1
      %414 = vst [vmem:[#allocation27] sm:%s413] %v411
      %s415 = scalar_lea.vmem %s359, 4
      %s417 = sor.u32 255, 127
      %s418 = sand.u32 %s417, 85
      %s419 = sshrl.u32 %s418, 1
      %s420 = sor.u32 %s418, %s419
      %s421 = sand.u32 51, %s420
      %s422 = sshrl.u32 %s421, 2
      %s423 = sor.u32 %s421, %s422
      %s424 = sand.u32 15, %s423
      %v425 = vld [vmem:[%s415] sm:%s424]
      %v426 = vunpack.c.l.bf16 %v425
      %v427 = vunpack.c.h.bf16 %v425
      %v428 = vlaneseq
      %v429 = vshrl.u32 %v428, 7
      %v430 = vadd.s32 %v429, 8
      %vm431 = vcmp.lt.s32.totalorder %v430, 9
      %v432 = vsel %vm431, %v426, %v14
      %s433 = scalar_lea.vmem [#allocation27], 4
      %v434 = vpack.c.bf16 0.0, %v432
      %s436 = ssub.s32 16, 1
      %437 = vst [vmem:[%s433] sm:%s436] %v434
      %s438 = ssub.s32 0, 0
      %p439 = scmp.lt.s32.totalorder %s438, 0
      %s440 = scalar_select %p439, 0, 255
      %s441 = sshrl.u32 %s440, 1
      %s442 = sor.u32 %s440, %s441
      %s443 = sand.u32 %s442, 85
      %s444 = sshrl.u32 %s443, 1
      %s445 = sor.u32 %s443, %s444
      %s446 = sand.u32 51, %s445
      %s447 = sshrl.u32 %s446, 2
      %s448 = sor.u32 %s446, %s447
      %s449 = sand.u32 15, %s448
      %v450 = vld [vmem:[%s368] sm:%s449]
      %v451 = vunpack.c.l.bf16 %v450
      %v452 = vunpack.c.h.bf16 %v450
      %s453 = ssub.s32 0, 0
      %p454 = scmp.lt.s32.totalorder %s453, 0
      %s455 = scalar_select %p454, 0, 255
      %s456 = sshrl.u32 %s455, 1
      %s457 = sor.u32 %s455, %s456
      %s458 = sand.u32 %s457, 85
      %s459 = sshrl.u32 %s458, 1
      %s460 = sor.u32 %s458, %s459
      %s461 = sand.u32 51, %s460
      %s462 = sshrl.u32 %s461, 2
      %s463 = sor.u32 %s461, %s462
      %s464 = sand.u32 15, %s463
      %v465 = vld [vmem:[%s381] sm:%s464]
      %v466 = vunpack.c.l.bf16 %v465
      %v467 = vunpack.c.h.bf16 %v465
      %s468 = ssub.s32 0, 0
      %p469 = scmp.lt.s32.totalorder %s468, 0
      %s470 = scalar_select %p469, 0, 255
      %s471 = sshrl.u32 %s470, 1
      %s472 = sor.u32 %s470, %s471
      %s473 = sand.u32 %s472, 85
      %s474 = sshrl.u32 %s473, 1
      %s475 = sor.u32 %s473, %s474
      %s476 = sand.u32 51, %s475
      %s477 = sshrl.u32 %s476, 2
      %s478 = sor.u32 %s476, %s477
      %s479 = sand.u32 15, %s478
      %v480 = vld [vmem:[%s394] sm:%s479]
      %v481 = vunpack.c.l.bf16 %v480
      %v482 = vunpack.c.h.bf16 %v480
      %s484 = sor.u32 255, 127
      %s485 = sand.u32 %s484, 85
      %s486 = sshrl.u32 %s485, 1
      %s487 = sor.u32 %s485, %s486
      %s488 = sand.u32 51, %s487
      %s489 = sshrl.u32 %s488, 2
      %s490 = sor.u32 %s488, %s489
      %s491 = sand.u32 15, %s490
      %v492 = vld [vmem:[%s4] sm:%s491]
      %v493 = vunpack.c.l.bf16 %v492
      %v494 = vunpack.c.h.bf16 %v492
      %v495 = vlaneseq
      %v496 = vand.u32 %v495, 127
      %vm498 = vcmp.lt.s32.totalorder %v496, 64
      %v499 = vsel %vm498, %v493, %v34
      %500 = xla_tuple %v499, %v29
      %501 = xla_tuple %500
      %v502 = vmax.f32 %v499, %v29
      %503 = xla_tuple %v502
      %504 = xla_tuple %v502, %v24
      %505 = xla_tuple %504
      %v506 = vmax.f32 %v502, %v24
      %507 = xla_tuple %v506
      %508 = xla_tuple %v506, %v19
      %509 = xla_tuple %508
      %v510 = vmax.f32 %v506, %v19
      %511 = xla_tuple %v510
      %v512 = vpack.c.bf16 0.0, %v510
      %s514 = ssub.s32 16, 1
      %515 = vst [vmem:[#allocation28] sm:%s514] %v512
      %s516 = scalar_lea.vmem %s368, 4
      %s517 = ssub.s32 0, 0
      %p518 = scmp.lt.s32.totalorder %s517, 0
      %s519 = scalar_select %p518, 0, 255
      %s520 = sshrl.u32 %s519, 1
      %s521 = sor.u32 %s519, %s520
      %s522 = sand.u32 %s521, 85
      %s523 = sshrl.u32 %s522, 1
      %s524 = sor.u32 %s522, %s523
      %s525 = sand.u32 51, %s524
      %s526 = sshrl.u32 %s525, 2
      %s527 = sor.u32 %s525, %s526
      %s528 = sand.u32 15, %s527
      %v529 = vld [vmem:[%s516] sm:%s528]
      %v530 = vunpack.c.l.bf16 %v529
      %v531 = vunpack.c.h.bf16 %v529
      %s532 = scalar_lea.vmem %s381, 4
      %s533 = ssub.s32 0, 0
      %p534 = scmp.lt.s32.totalorder %s533, 0
      %s535 = scalar_select %p534, 0, 255
      %s536 = sshrl.u32 %s535, 1
      %s537 = sor.u32 %s535, %s536
      %s538 = sand.u32 %s537, 85
      %s539 = sshrl.u32 %s538, 1
      %s540 = sor.u32 %s538, %s539
      %s541 = sand.u32 51, %s540
      %s542 = sshrl.u32 %s541, 2
      %s543 = sor.u32 %s541, %s542
      %s544 = sand.u32 15, %s543
      %v545 = vld [vmem:[%s532] sm:%s544]
      %v546 = vunpack.c.l.bf16 %v545
      %v547 = vunpack.c.h.bf16 %v545
      %s548 = scalar_lea.vmem %s394, 4
      %s549 = ssub.s32 0, 0
      %p550 = scmp.lt.s32.totalorder %s549, 0
      %s551 = scalar_select %p550, 0, 255
      %s552 = sshrl.u32 %s551, 1
      %s553 = sor.u32 %s551, %s552
      %s554 = sand.u32 %s553, 85
      %s555 = sshrl.u32 %s554, 1
      %s556 = sor.u32 %s554, %s555
      %s557 = sand.u32 51, %s556
      %s558 = sshrl.u32 %s557, 2
      %s559 = sor.u32 %s557, %s558
      %s560 = sand.u32 15, %s559
      %v561 = vld [vmem:[%s548] sm:%s560]
      %v562 = vunpack.c.l.bf16 %v561
      %v563 = vunpack.c.h.bf16 %v561
      %s564 = scalar_lea.vmem %s4, 4
      %s566 = sor.u32 255, 127
      %s567 = sand.u32 %s566, 85
      %s568 = sshrl.u32 %s567, 1
      %s569 = sor.u32 %s567, %s568
      %s570 = sand.u32 51, %s569
      %s571 = sshrl.u32 %s570, 2
      %s572 = sor.u32 %s570, %s571
      %s573 = sand.u32 15, %s572
      %v574 = vld [vmem:[%s564] sm:%s573]
      %v575 = vunpack.c.l.bf16 %v574
      %v576 = vunpack.c.h.bf16 %v574
      %v577 = vlaneseq
      %v578 = vand.u32 %v577, 127
      %vm580 = vcmp.lt.s32.totalorder %v578, 64
      %v581 = vsel %vm580, %v575, %v34
      %582 = xla_tuple %v581, %v29
      %583 = xla_tuple %582
      %v584 = vmax.f32 %v581, %v29
      %585 = xla_tuple %v584
      %586 = xla_tuple %v584, %v24
      %587 = xla_tuple %586
      %v588 = vmax.f32 %v584, %v24
      %589 = xla_tuple %v588
      %590 = xla_tuple %v588, %v19
      %591 = xla_tuple %590
      %v592 = vmax.f32 %v588, %v19
      %593 = xla_tuple %v592
      %s594 = scalar_lea.vmem [#allocation28], 4
      %v595 = vpack.c.bf16 0.0, %v592
      %s597 = ssub.s32 16, 1
      %598 = vst [vmem:[%s594] sm:%s597] %v595
      %s599 = scalar_lea.vmem %s368, 8
      %s600 = ssub.s32 0, 0
      %p601 = scmp.lt.s32.totalorder %s600, 0
      %s602 = scalar_select %p601, 0, 255
      %s603 = sshrl.u32 %s602, 1
      %s604 = sor.u32 %s602, %s603
      %s605 = sand.u32 %s604, 85
      %s606 = sshrl.u32 %s605, 1
      %s607 = sor.u32 %s605, %s606
      %s608 = sand.u32 51, %s607
      %s609 = sshrl.u32 %s608, 2
      %s610 = sor.u32 %s608, %s609
      %s611 = sand.u32 15, %s610
      %v612 = vld [vmem:[%s599] sm:%s611]
      %v613 = vunpack.c.l.bf16 %v612
      %v614 = vunpack.c.h.bf16 %v612
      %s615 = scalar_lea.vmem %s381, 8
      %s616 = ssub.s32 0, 0
      %p617 = scmp.lt.s32.totalorder %s616, 0
      %s618 = scalar_select %p617, 0, 255
      %s619 = sshrl.u32 %s618, 1
      %s620 = sor.u32 %s618, %s619
      %s621 = sand.u32 %s620, 85
      %s622 = sshrl.u32 %s621, 1
      %s623 = sor.u32 %s621, %s622
      %s624 = sand.u32 51, %s623
      %s625 = sshrl.u32 %s624, 2
      %s626 = sor.u32 %s624, %s625
      %s627 = sand.u32 15, %s626
      %v628 = vld [vmem:[%s615] sm:%s627]
      %v629 = vunpack.c.l.bf16 %v628
      %v630 = vunpack.c.h.bf16 %v628
      %s631 = scalar_lea.vmem %s394, 8
      %s632 = ssub.s32 0, 0
      %p633 = scmp.lt.s32.totalorder %s632, 0
      %s634 = scalar_select %p633, 0, 255
      %s635 = sshrl.u32 %s634, 1
      %s636 = sor.u32 %s634, %s635
      %s637 = sand.u32 %s636, 85
      %s638 = sshrl.u32 %s637, 1
      %s639 = sor.u32 %s637, %s638
      %s640 = sand.u32 51, %s639
      %s641 = sshrl.u32 %s640, 2
      %s642 = sor.u32 %s640, %s641
      %s643 = sand.u32 15, %s642
      %v644 = vld [vmem:[%s631] sm:%s643]
      %v645 = vunpack.c.l.bf16 %v644
      %v646 = vunpack.c.h.bf16 %v644
      %s647 = scalar_lea.vmem %s4, 8
      %s649 = sor.u32 255, 127
      %s650 = sand.u32 %s649, 85
      %s651 = sshrl.u32 %s650, 1
      %s652 = sor.u32 %s650, %s651
      %s653 = sand.u32 51, %s652
      %s654 = sshrl.u32 %s653, 2
      %s655 = sor.u32 %s653, %s654
      %s656 = sand.u32 15, %s655
      %v657 = vld [vmem:[%s647] sm:%s656]
      %v658 = vunpack.c.l.bf16 %v657
      %v659 = vunpack.c.h.bf16 %v657
      %v660 = vlaneseq
      %v661 = vand.u32 %v660, 127
      %vm663 = vcmp.lt.s32.totalorder %v661, 64
      %v664 = vsel %vm663, %v658, %v34
      %665 = xla_tuple %v664, %v29
      %666 = xla_tuple %665
      %v667 = vmax.f32 %v664, %v29
      %668 = xla_tuple %v667
      %669 = xla_tuple %v667, %v24
      %670 = xla_tuple %669
      %v671 = vmax.f32 %v667, %v24
      %672 = xla_tuple %v671
      %673 = xla_tuple %v671, %v19
      %674 = xla_tuple %673
      %v675 = vmax.f32 %v671, %v19
      %676 = xla_tuple %v675
      %s677 = scalar_lea.vmem [#allocation28], 8
      %v678 = vpack.c.bf16 0.0, %v675
      %s680 = ssub.s32 16, 1
      %681 = vst [vmem:[%s677] sm:%s680] %v678
      %s682 = scalar_lea.vmem %s368, 12
      %s683 = ssub.s32 0, 0
      %p684 = scmp.lt.s32.totalorder %s683, 0
      %s685 = scalar_select %p684, 0, 255
      %s686 = sshrl.u32 %s685, 1
      %s687 = sor.u32 %s685, %s686
      %s688 = sand.u32 %s687, 85
      %s689 = sshrl.u32 %s688, 1
      %s690 = sor.u32 %s688, %s689
      %s691 = sand.u32 51, %s690
      %s692 = sshrl.u32 %s691, 2
      %s693 = sor.u32 %s691, %s692
      %s694 = sand.u32 15, %s693
      %v695 = vld [vmem:[%s682] sm:%s694]
      %v696 = vunpack.c.l.bf16 %v695
      %v697 = vunpack.c.h.bf16 %v695
      %s698 = scalar_lea.vmem %s381, 12
      %s699 = ssub.s32 0, 0
      %p700 = scmp.lt.s32.totalorder %s699, 0
      %s701 = scalar_select %p700, 0, 255
      %s702 = sshrl.u32 %s701, 1
      %s703 = sor.u32 %s701, %s702
      %s704 = sand.u32 %s703, 85
      %s705 = sshrl.u32 %s704, 1
      %s706 = sor.u32 %s704, %s705
      %s707 = sand.u32 51, %s706
      %s708 = sshrl.u32 %s707, 2
      %s709 = sor.u32 %s707, %s708
      %s710 = sand.u32 15, %s709
      %v711 = vld [vmem:[%s698] sm:%s710]
      %v712 = vunpack.c.l.bf16 %v711
      %v713 = vunpack.c.h.bf16 %v711
      %s714 = scalar_lea.vmem %s394, 12
      %s715 = ssub.s32 0, 0
      %p716 = scmp.lt.s32.totalorder %s715, 0
      %s717 = scalar_select %p716, 0, 255
      %s718 = sshrl.u32 %s717, 1
      %s719 = sor.u32 %s717, %s718
      %s720 = sand.u32 %s719, 85
      %s721 = sshrl.u32 %s720, 1
      %s722 = sor.u32 %s720, %s721
      %s723 = sand.u32 51, %s722
      %s724 = sshrl.u32 %s723, 2
      %s725 = sor.u32 %s723, %s724
      %s726 = sand.u32 15, %s725
      %v727 = vld [vmem:[%s714] sm:%s726]
      %v728 = vunpack.c.l.bf16 %v727
      %v729 = vunpack.c.h.bf16 %v727
      %s730 = scalar_lea.vmem %s4, 12
      %s732 = sor.u32 255, 127
      %s733 = sand.u32 %s732, 85
      %s734 = sshrl.u32 %s733, 1
      %s735 = sor.u32 %s733, %s734
      %s736 = sand.u32 51, %s735
      %s737 = sshrl.u32 %s736, 2
      %s738 = sor.u32 %s736, %s737
      %s739 = sand.u32 15, %s738
      %v740 = vld [vmem:[%s730] sm:%s739]
      %v741 = vunpack.c.l.bf16 %v740
      %v742 = vunpack.c.h.bf16 %v740
      %v743 = vlaneseq
      %v744 = vand.u32 %v743, 127
      %vm746 = vcmp.lt.s32.totalorder %v744, 64
      %v747 = vsel %vm746, %v741, %v34
      %748 = xla_tuple %v747, %v29
      %749 = xla_tuple %748
      %v750 = vmax.f32 %v747, %v29
      %751 = xla_tuple %v750
      %752 = xla_tuple %v750, %v24
      %753 = xla_tuple %752
      %v754 = vmax.f32 %v750, %v24
      %755 = xla_tuple %v754
      %756 = xla_tuple %v754, %v19
      %757 = xla_tuple %756
      %v758 = vmax.f32 %v754, %v19
      %759 = xla_tuple %v758
      %s760 = scalar_lea.vmem [#allocation28], 12
      %v761 = vpack.c.bf16 0.0, %v758
      %s763 = ssub.s32 16, 1
      %764 = vst [vmem:[%s760] sm:%s763] %v761
      %s765 = scalar_lea.vmem %s368, 16
      %s766 = ssub.s32 0, 0
      %p767 = scmp.lt.s32.totalorder %s766, 0
      %s768 = scalar_select %p767, 0, 255
      %s769 = sshrl.u32 %s768, 1
      %s770 = sor.u32 %s768, %s769
      %s771 = sand.u32 %s770, 85
      %s772 = sshrl.u32 %s771, 1
      %s773 = sor.u32 %s771, %s772
      %s774 = sand.u32 51, %s773
      %s775 = sshrl.u32 %s774, 2
      %s776 = sor.u32 %s774, %s775
      %s777 = sand.u32 15, %s776
      %v778 = vld [vmem:[%s765] sm:%s777]
      %v779 = vunpack.c.l.bf16 %v778
      %v780 = vunpack.c.h.bf16 %v778
      %s781 = scalar_lea.vmem %s381, 16
      %s782 = ssub.s32 0, 0
      %p783 = scmp.lt.s32.totalorder %s782, 0
      %s784 = scalar_select %p783, 0, 255
      %s785 = sshrl.u32 %s784, 1
      %s786 = sor.u32 %s784, %s785
      %s787 = sand.u32 %s786, 85
      %s788 = sshrl.u32 %s787, 1
      %s789 = sor.u32 %s787, %s788
      %s790 = sand.u32 51, %s789
      %s791 = sshrl.u32 %s790, 2
      %s792 = sor.u32 %s790, %s791
      %s793 = sand.u32 15, %s792
      %v794 = vld [vmem:[%s781] sm:%s793]
      %v795 = vunpack.c.l.bf16 %v794
      %v796 = vunpack.c.h.bf16 %v794
      %s797 = scalar_lea.vmem %s394, 16
      %s798 = ssub.s32 0, 0
      %p799 = scmp.lt.s32.totalorder %s798, 0
      %s800 = scalar_select %p799, 0, 255
      %s801 = sshrl.u32 %s800, 1
      %s802 = sor.u32 %s800, %s801
      %s803 = sand.u32 %s802, 85
      %s804 = sshrl.u32 %s803, 1
      %s805 = sor.u32 %s803, %s804
      %s806 = sand.u32 51, %s805
      %s807 = sshrl.u32 %s806, 2
      %s808 = sor.u32 %s806, %s807
      %s809 = sand.u32 15, %s808
      %v810 = vld [vmem:[%s797] sm:%s809]
      %v811 = vunpack.c.l.bf16 %v810
      %v812 = vunpack.c.h.bf16 %v810
      %s813 = scalar_lea.vmem %s4, 16
      %s815 = sor.u32 255, 127
      %s816 = sand.u32 %s815, 85
      %s817 = sshrl.u32 %s816, 1
      %s818 = sor.u32 %s816, %s817
      %s819 = sand.u32 51, %s818
      %s820 = sshrl.u32 %s819, 2
      %s821 = sor.u32 %s819, %s820
      %s822 = sand.u32 15, %s821
      %v823 = vld [vmem:[%s813] sm:%s822]
      %v824 = vunpack.c.l.bf16 %v823
      %v825 = vunpack.c.h.bf16 %v823
      %v826 = vlaneseq
      %v827 = vand.u32 %v826, 127
      %vm829 = vcmp.lt.s32.totalorder %v827, 64
      %v830 = vsel %vm829, %v824, %v34
      %831 = xla_tuple %v830, %v29
      %832 = xla_tuple %831
      %v833 = vmax.f32 %v830, %v29
      %834 = xla_tuple %v833
      %835 = xla_tuple %v833, %v24
      %836 = xla_tuple %835
      %v837 = vmax.f32 %v833, %v24
      %838 = xla_tuple %v837
      %839 = xla_tuple %v837, %v19
      %840 = xla_tuple %839
      %v841 = vmax.f32 %v837, %v19
      %842 = xla_tuple %v841
      %s843 = scalar_lea.vmem [#allocation28], 16
      %v844 = vpack.c.bf16 0.0, %v841
      %s846 = ssub.s32 16, 1
      %847 = vst [vmem:[%s843] sm:%s846] %v844
      %s848 = scalar_lea.vmem %s368, 20
      %s849 = ssub.s32 0, 0
      %p850 = scmp.lt.s32.totalorder %s849, 0
      %s851 = scalar_select %p850, 0, 255
      %s852 = sshrl.u32 %s851, 1
      %s853 = sor.u32 %s851, %s852
      %s854 = sand.u32 %s853, 85
      %s855 = sshrl.u32 %s854, 1
      %s856 = sor.u32 %s854, %s855
      %s857 = sand.u32 51, %s856
      %s858 = sshrl.u32 %s857, 2
      %s859 = sor.u32 %s857, %s858
      %s860 = sand.u32 15, %s859
      %v861 = vld [vmem:[%s848] sm:%s860]
      %v862 = vunpack.c.l.bf16 %v861
      %v863 = vunpack.c.h.bf16 %v861
      %s864 = scalar_lea.vmem %s381, 20
      %s865 = ssub.s32 0, 0
      %p866 = scmp.lt.s32.totalorder %s865, 0
      %s867 = scalar_select %p866, 0, 255
      %s868 = sshrl.u32 %s867, 1
      %s869 = sor.u32 %s867, %s868
      %s870 = sand.u32 %s869, 85
      %s871 = sshrl.u32 %s870, 1
      %s872 = sor.u32 %s870, %s871
      %s873 = sand.u32 51, %s872
      %s874 = sshrl.u32 %s873, 2
      %s875 = sor.u32 %s873, %s874
      %s876 = sand.u32 15, %s875
      %v877 = vld [vmem:[%s864] sm:%s876]
      %v878 = vunpack.c.l.bf16 %v877
      %v879 = vunpack.c.h.bf16 %v877
      %s880 = scalar_lea.vmem %s394, 20
      %s881 = ssub.s32 0, 0
      %p882 = scmp.lt.s32.totalorder %s881, 0
      %s883 = scalar_select %p882, 0, 255
      %s884 = sshrl.u32 %s883, 1
      %s885 = sor.u32 %s883, %s884
      %s886 = sand.u32 %s885, 85
      %s887 = sshrl.u32 %s886, 1
      %s888 = sor.u32 %s886, %s887
      %s889 = sand.u32 51, %s888
      %s890 = sshrl.u32 %s889, 2
      %s891 = sor.u32 %s889, %s890
      %s892 = sand.u32 15, %s891
      %v893 = vld [vmem:[%s880] sm:%s892]
      %v894 = vunpack.c.l.bf16 %v893
      %v895 = vunpack.c.h.bf16 %v893
      %s896 = scalar_lea.vmem %s4, 20
      %s898 = sor.u32 255, 127
      %s899 = sand.u32 %s898, 85
      %s900 = sshrl.u32 %s899, 1
      %s901 = sor.u32 %s899, %s900
      %s902 = sand.u32 51, %s901
      %s903 = sshrl.u32 %s902, 2
      %s904 = sor.u32 %s902, %s903
      %s905 = sand.u32 15, %s904
      %v906 = vld [vmem:[%s896] sm:%s905]
      %v907 = vunpack.c.l.bf16 %v906
      %v908 = vunpack.c.h.bf16 %v906
      %v909 = vlaneseq
      %v910 = vand.u32 %v909, 127
      %vm912 = vcmp.lt.s32.totalorder %v910, 64
      %v913 = vsel %vm912, %v907, %v34
      %914 = xla_tuple %v913, %v29
      %915 = xla_tuple %914
      %v916 = vmax.f32 %v913, %v29
      %917 = xla_tuple %v916
      %918 = xla_tuple %v916, %v24
      %919 = xla_tuple %918
      %v920 = vmax.f32 %v916, %v24
      %921 = xla_tuple %v920
      %922 = xla_tuple %v920, %v19
      %923 = xla_tuple %922
      %v924 = vmax.f32 %v920, %v19
      %925 = xla_tuple %v924
      %s926 = scalar_lea.vmem [#allocation28], 20
      %v927 = vpack.c.bf16 0.0, %v924
      %s929 = ssub.s32 16, 1
      %930 = vst [vmem:[%s926] sm:%s929] %v927
      %s931 = scalar_lea.vmem %s368, 24
      %s932 = ssub.s32 0, 0
      %p933 = scmp.lt.s32.totalorder %s932, 0
      %s934 = scalar_select %p933, 0, 255
      %s935 = sshrl.u32 %s934, 1
      %s936 = sor.u32 %s934, %s935
      %s937 = sand.u32 %s936, 85
      %s938 = sshrl.u32 %s937, 1
      %s939 = sor.u32 %s937, %s938
      %s940 = sand.u32 51, %s939
      %s941 = sshrl.u32 %s940, 2
      %s942 = sor.u32 %s940, %s941
      %s943 = sand.u32 15, %s942
      %v944 = vld [vmem:[%s931] sm:%s943]
      %v945 = vunpack.c.l.bf16 %v944
      %v946 = vunpack.c.h.bf16 %v944
      %s947 = scalar_lea.vmem %s381, 24
      %s948 = ssub.s32 0, 0
      %p949 = scmp.lt.s32.totalorder %s948, 0
      %s950 = scalar_select %p949, 0, 255
      %s951 = sshrl.u32 %s950, 1
      %s952 = sor.u32 %s950, %s951
      %s953 = sand.u32 %s952, 85
      %s954 = sshrl.u32 %s953, 1
      %s955 = sor.u32 %s953, %s954
      %s956 = sand.u32 51, %s955
      %s957 = sshrl.u32 %s956, 2
      %s958 = sor.u32 %s956, %s957
      %s959 = sand.u32 15, %s958
      %v960 = vld [vmem:[%s947] sm:%s959]
      %v961 = vunpack.c.l.bf16 %v960
      %v962 = vunpack.c.h.bf16 %v960
      %s963 = scalar_lea.vmem %s394, 24
      %s964 = ssub.s32 0, 0
      %p965 = scmp.lt.s32.totalorder %s964, 0
      %s966 = scalar_select %p965, 0, 255
      %s967 = sshrl.u32 %s966, 1
      %s968 = sor.u32 %s966, %s967
      %s969 = sand.u32 %s968, 85
      %s970 = sshrl.u32 %s969, 1
      %s971 = sor.u32 %s969, %s970
      %s972 = sand.u32 51, %s971
      %s973 = sshrl.u32 %s972, 2
      %s974 = sor.u32 %s972, %s973
      %s975 = sand.u32 15, %s974
      %v976 = vld [vmem:[%s963] sm:%s975]
      %v977 = vunpack.c.l.bf16 %v976
      %v978 = vunpack.c.h.bf16 %v976
      %s979 = scalar_lea.vmem %s4, 24
      %s981 = sor.u32 255, 127
      %s982 = sand.u32 %s981, 85
      %s983 = sshrl.u32 %s982, 1
      %s984 = sor.u32 %s982, %s983
      %s985 = sand.u32 51, %s984
      %s986 = sshrl.u32 %s985, 2
      %s987 = sor.u32 %s985, %s986
      %s988 = sand.u32 15, %s987
      %v989 = vld [vmem:[%s979] sm:%s988]
      %v990 = vunpack.c.l.bf16 %v989
      %v991 = vunpack.c.h.bf16 %v989
      %v992 = vlaneseq
      %v993 = vand.u32 %v992, 127
      %vm995 = vcmp.lt.s32.totalorder %v993, 64
      %v996 = vsel %vm995, %v990, %v34
      %997 = xla_tuple %v996, %v29
      %998 = xla_tuple %997
      %v999 = vmax.f32 %v996, %v29
      %1000 = xla_tuple %v999
      %1001 = xla_tuple %v999, %v24
      %1002 = xla_tuple %1001
      %v1003 = vmax.f32 %v999, %v24
      %1004 = xla_tuple %v1003
      %1005 = xla_tuple %v1003, %v19
      %1006 = xla_tuple %1005
      %v1007 = vmax.f32 %v1003, %v19
      %1008 = xla_tuple %v1007
      %s1009 = scalar_lea.vmem [#allocation28], 24
      %v1010 = vpack.c.bf16 0.0, %v1007
      %s1012 = ssub.s32 16, 1
      %1013 = vst [vmem:[%s1009] sm:%s1012] %v1010
      %s1014 = scalar_lea.vmem %s368, 28
      %s1015 = ssub.s32 0, 0
      %p1016 = scmp.lt.s32.totalorder %s1015, 0
      %s1017 = scalar_select %p1016, 0, 255
      %s1018 = sshrl.u32 %s1017, 1
      %s1019 = sor.u32 %s1017, %s1018
      %s1020 = sand.u32 %s1019, 85
      %s1021 = sshrl.u32 %s1020, 1
      %s1022 = sor.u32 %s1020, %s1021
      %s1023 = sand.u32 51, %s1022
      %s1024 = sshrl.u32 %s1023, 2
      %s1025 = sor.u32 %s1023, %s1024
      %s1026 = sand.u32 15, %s1025
      %v1027 = vld [vmem:[%s1014] sm:%s1026]
      %v1028 = vunpack.c.l.bf16 %v1027
      %v1029 = vunpack.c.h.bf16 %v1027
      %s1030 = scalar_lea.vmem %s381, 28
      %s1031 = ssub.s32 0, 0
      %p1032 = scmp.lt.s32.totalorder %s1031, 0
      %s1033 = scalar_select %p1032, 0, 255
      %s1034 = sshrl.u32 %s1033, 1
      %s1035 = sor.u32 %s1033, %s1034
      %s1036 = sand.u32 %s1035, 85
      %s1037 = sshrl.u32 %s1036, 1
      %s1038 = sor.u32 %s1036, %s1037
      %s1039 = sand.u32 51, %s1038
      %s1040 = sshrl.u32 %s1039, 2
      %s1041 = sor.u32 %s1039, %s1040
      %s1042 = sand.u32 15, %s1041
      %v1043 = vld [vmem:[%s1030] sm:%s1042]
      %v1044 = vunpack.c.l.bf16 %v1043
      %v1045 = vunpack.c.h.bf16 %v1043
      %s1046 = scalar_lea.vmem %s394, 28
      %s1047 = ssub.s32 0, 0
      %p1048 = scmp.lt.s32.totalorder %s1047, 0
      %s1049 = scalar_select %p1048, 0, 255
      %s1050 = sshrl.u32 %s1049, 1
      %s1051 = sor.u32 %s1049, %s1050
      %s1052 = sand.u32 %s1051, 85
      %s1053 = sshrl.u32 %s1052, 1
      %s1054 = sor.u32 %s1052, %s1053
      %s1055 = sand.u32 51, %s1054
      %s1056 = sshrl.u32 %s1055, 2
      %s1057 = sor.u32 %s1055, %s1056
      %s1058 = sand.u32 15, %s1057
      %v1059 = vld [vmem:[%s1046] sm:%s1058]
      %v1060 = vunpack.c.l.bf16 %v1059
      %v1061 = vunpack.c.h.bf16 %v1059
      %s1062 = scalar_lea.vmem %s4, 28
      %s1064 = sor.u32 255, 127
      %s1065 = sand.u32 %s1064, 85
      %s1066 = sshrl.u32 %s1065, 1
      %s1067 = sor.u32 %s1065, %s1066
      %s1068 = sand.u32 51, %s1067
      %s1069 = sshrl.u32 %s1068, 2
      %s1070 = sor.u32 %s1068, %s1069
      %s1071 = sand.u32 15, %s1070
      %v1072 = vld [vmem:[%s1062] sm:%s1071]
      %v1073 = vunpack.c.l.bf16 %v1072
      %v1074 = vunpack.c.h.bf16 %v1072
      %v1075 = vlaneseq
      %v1076 = vand.u32 %v1075, 127
      %vm1078 = vcmp.lt.s32.totalorder %v1076, 64
      %v1079 = vsel %vm1078, %v1073, %v34
      %1080 = xla_tuple %v1079, %v29
      %1081 = xla_tuple %1080
      %v1082 = vmax.f32 %v1079, %v29
      %1083 = xla_tuple %v1082
      %1084 = xla_tuple %v1082, %v24
      %1085 = xla_tuple %1084
      %v1086 = vmax.f32 %v1082, %v24
      %1087 = xla_tuple %v1086
      %1088 = xla_tuple %v1086, %v19
      %1089 = xla_tuple %1088
      %v1090 = vmax.f32 %v1086, %v19
      %1091 = xla_tuple %v1090
      %s1092 = scalar_lea.vmem [#allocation28], 28
      %v1093 = vpack.c.bf16 0.0, %v1090
      %s1095 = ssub.s32 16, 1
      %1096 = vst [vmem:[%s1092] sm:%s1095] %v1093
      %s1097 = scalar_lea.vmem %s368, 32
      %s1098 = ssub.s32 0, 0
      %p1099 = scmp.lt.s32.totalorder %s1098, 0
      %s1100 = scalar_select %p1099, 0, 255
      %s1101 = sshrl.u32 %s1100, 1
      %s1102 = sor.u32 %s1100, %s1101
      %s1103 = sand.u32 %s1102, 85
      %s1104 = sshrl.u32 %s1103, 1
      %s1105 = sor.u32 %s1103, %s1104
      %s1106 = sand.u32 51, %s1105
      %s1107 = sshrl.u32 %s1106, 2
      %s1108 = sor.u32 %s1106, %s1107
      %s1109 = sand.u32 15, %s1108
      %v1110 = vld [vmem:[%s1097] sm:%s1109]
      %v1111 = vunpack.c.l.bf16 %v1110
      %v1112 = vunpack.c.h.bf16 %v1110
      %s1113 = scalar_lea.vmem %s381, 32
      %s1114 = ssub.s32 0, 0
      %p1115 = scmp.lt.s32.totalorder %s1114, 0
      %s1116 = scalar_select %p1115, 0, 255
      %s1117 = sshrl.u32 %s1116, 1
      %s1118 = sor.u32 %s1116, %s1117
      %s1119 = sand.u32 %s1118, 85
      %s1120 = sshrl.u32 %s1119, 1
      %s1121 = sor.u32 %s1119, %s1120
      %s1122 = sand.u32 51, %s1121
      %s1123 = sshrl.u32 %s1122, 2
      %s1124 = sor.u32 %s1122, %s1123
      %s1125 = sand.u32 15, %s1124
      %v1126 = vld [vmem:[%s1113] sm:%s1125]
      %v1127 = vunpack.c.l.bf16 %v1126
      %v1128 = vunpack.c.h.bf16 %v1126
      %s1129 = scalar_lea.vmem %s394, 32
      %s1130 = ssub.s32 0, 0
      %p1131 = scmp.lt.s32.totalorder %s1130, 0
      %s1132 = scalar_select %p1131, 0, 255
      %s1133 = sshrl.u32 %s1132, 1
      %s1134 = sor.u32 %s1132, %s1133
      %s1135 = sand.u32 %s1134, 85
      %s1136 = sshrl.u32 %s1135, 1
      %s1137 = sor.u32 %s1135, %s1136
      %s1138 = sand.u32 51, %s1137
      %s1139 = sshrl.u32 %s1138, 2
      %s1140 = sor.u32 %s1138, %s1139
      %s1141 = sand.u32 15, %s1140
      %v1142 = vld [vmem:[%s1129] sm:%s1141]
      %v1143 = vunpack.c.l.bf16 %v1142
      %v1144 = vunpack.c.h.bf16 %v1142
      %s1145 = scalar_lea.vmem %s4, 32
      %s1147 = sor.u32 255, 127
      %s1148 = sand.u32 %s1147, 85
      %s1149 = sshrl.u32 %s1148, 1
      %s1150 = sor.u32 %s1148, %s1149
      %s1151 = sand.u32 51, %s1150
      %s1152 = sshrl.u32 %s1151, 2
      %s1153 = sor.u32 %s1151, %s1152
      %s1154 = sand.u32 15, %s1153
      %v1155 = vld [vmem:[%s1145] sm:%s1154]
      %v1156 = vunpack.c.l.bf16 %v1155
      %v1157 = vunpack.c.h.bf16 %v1155
      %v1158 = vlaneseq
      %v1159 = vand.u32 %v1158, 127
      %vm1161 = vcmp.lt.s32.totalorder %v1159, 64
      %v1162 = vsel %vm1161, %v1156, %v34
      %1163 = xla_tuple %v1162, %v29
      %1164 = xla_tuple %1163
      %v1165 = vmax.f32 %v1162, %v29
      %1166 = xla_tuple %v1165
      %1167 = xla_tuple %v1165, %v24
      %1168 = xla_tuple %1167
      %v1169 = vmax.f32 %v1165, %v24
      %1170 = xla_tuple %v1169
      %1171 = xla_tuple %v1169, %v19
      %1172 = xla_tuple %1171
      %v1173 = vmax.f32 %v1169, %v19
      %1174 = xla_tuple %v1173
      %s1175 = scalar_lea.vmem [#allocation28], 32
      %v1176 = vpack.c.bf16 0.0, %v1173
      %s1178 = ssub.s32 16, 1
      %1179 = vst [vmem:[%s1175] sm:%s1178] %v1176
      %s1180 = scalar_lea.vmem %s368, 36
      %s1181 = ssub.s32 0, 0
      %p1182 = scmp.lt.s32.totalorder %s1181, 0
      %s1183 = scalar_select %p1182, 0, 255
      %s1184 = sshrl.u32 %s1183, 1
      %s1185 = sor.u32 %s1183, %s1184
      %s1186 = sand.u32 %s1185, 85
      %s1187 = sshrl.u32 %s1186, 1
      %s1188 = sor.u32 %s1186, %s1187
      %s1189 = sand.u32 51, %s1188
      %s1190 = sshrl.u32 %s1189, 2
      %s1191 = sor.u32 %s1189, %s1190
      %s1192 = sand.u32 15, %s1191
      %v1193 = vld [vmem:[%s1180] sm:%s1192]
      %v1194 = vunpack.c.l.bf16 %v1193
      %v1195 = vunpack.c.h.bf16 %v1193
      %s1196 = scalar_lea.vmem %s381, 36
      %s1197 = ssub.s32 0, 0
      %p1198 = scmp.lt.s32.totalorder %s1197, 0
      %s1199 = scalar_select %p1198, 0, 255
      %s1200 = sshrl.u32 %s1199, 1
      %s1201 = sor.u32 %s1199, %s1200
      %s1202 = sand.u32 %s1201, 85
      %s1203 = sshrl.u32 %s1202, 1
      %s1204 = sor.u32 %s1202, %s1203
      %s1205 = sand.u32 51, %s1204
      %s1206 = sshrl.u32 %s1205, 2
      %s1207 = sor.u32 %s1205, %s1206
      %s1208 = sand.u32 15, %s1207
      %v1209 = vld [vmem:[%s1196] sm:%s1208]
      %v1210 = vunpack.c.l.bf16 %v1209
      %v1211 = vunpack.c.h.bf16 %v1209
      %s1212 = scalar_lea.vmem %s394, 36
      %s1213 = ssub.s32 0, 0
      %p1214 = scmp.lt.s32.totalorder %s1213, 0
      %s1215 = scalar_select %p1214, 0, 255
      %s1216 = sshrl.u32 %s1215, 1
      %s1217 = sor.u32 %s1215, %s1216
      %s1218 = sand.u32 %s1217, 85
      %s1219 = sshrl.u32 %s1218, 1
      %s1220 = sor.u32 %s1218, %s1219
      %s1221 = sand.u32 51, %s1220
      %s1222 = sshrl.u32 %s1221, 2
      %s1223 = sor.u32 %s1221, %s1222
      %s1224 = sand.u32 15, %s1223
      %v1225 = vld [vmem:[%s1212] sm:%s1224]
      %v1226 = vunpack.c.l.bf16 %v1225
      %v1227 = vunpack.c.h.bf16 %v1225
      %s1228 = scalar_lea.vmem %s4, 36
      %s1230 = sor.u32 255, 127
      %s1231 = sand.u32 %s1230, 85
      %s1232 = sshrl.u32 %s1231, 1
      %s1233 = sor.u32 %s1231, %s1232
      %s1234 = sand.u32 51, %s1233
      %s1235 = sshrl.u32 %s1234, 2
      %s1236 = sor.u32 %s1234, %s1235
      %s1237 = sand.u32 15, %s1236
      %v1238 = vld [vmem:[%s1228] sm:%s1237]
      %v1239 = vunpack.c.l.bf16 %v1238
      %v1240 = vunpack.c.h.bf16 %v1238
      %v1241 = vlaneseq
      %v1242 = vand.u32 %v1241, 127
      %vm1244 = vcmp.lt.s32.totalorder %v1242, 64
      %v1245 = vsel %vm1244, %v1239, %v34
      %1246 = xla_tuple %v1245, %v29
      %1247 = xla_tuple %1246
      %v1248 = vmax.f32 %v1245, %v29
      %1249 = xla_tuple %v1248
      %1250 = xla_tuple %v1248, %v24
      %1251 = xla_tuple %1250
      %v1252 = vmax.f32 %v1248, %v24
      %1253 = xla_tuple %v1252
      %1254 = xla_tuple %v1252, %v19
      %1255 = xla_tuple %1254
      %v1256 = vmax.f32 %v1252, %v19
      %1257 = xla_tuple %v1256
      %s1258 = scalar_lea.vmem [#allocation28], 36
      %v1259 = vpack.c.bf16 0.0, %v1256
      %s1261 = ssub.s32 16, 1
      %1262 = vst [vmem:[%s1258] sm:%s1261] %v1259
      %s1263 = scalar_lea.vmem %s368, 40
      %s1264 = ssub.s32 0, 0
      %p1265 = scmp.lt.s32.totalorder %s1264, 0
      %s1266 = scalar_select %p1265, 0, 255
      %s1267 = sshrl.u32 %s1266, 1
      %s1268 = sor.u32 %s1266, %s1267
      %s1269 = sand.u32 %s1268, 85
      %s1270 = sshrl.u32 %s1269, 1
      %s1271 = sor.u32 %s1269, %s1270
      %s1272 = sand.u32 51, %s1271
      %s1273 = sshrl.u32 %s1272, 2
      %s1274 = sor.u32 %s1272, %s1273
      %s1275 = sand.u32 15, %s1274
      %v1276 = vld [vmem:[%s1263] sm:%s1275]
      %v1277 = vunpack.c.l.bf16 %v1276
      %v1278 = vunpack.c.h.bf16 %v1276
      %s1279 = scalar_lea.vmem %s381, 40
      %s1280 = ssub.s32 0, 0
      %p1281 = scmp.lt.s32.totalorder %s1280, 0
      %s1282 = scalar_select %p1281, 0, 255
      %s1283 = sshrl.u32 %s1282, 1
      %s1284 = sor.u32 %s1282, %s1283
      %s1285 = sand.u32 %s1284, 85
      %s1286 = sshrl.u32 %s1285, 1
      %s1287 = sor.u32 %s1285, %s1286
      %s1288 = sand.u32 51, %s1287
      %s1289 = sshrl.u32 %s1288, 2
      %s1290 = sor.u32 %s1288, %s1289
      %s1291 = sand.u32 15, %s1290
      %v1292 = vld [vmem:[%s1279] sm:%s1291]
      %v1293 = vunpack.c.l.bf16 %v1292
      %v1294 = vunpack.c.h.bf16 %v1292
      %s1295 = scalar_lea.vmem %s394, 40
      %s1296 = ssub.s32 0, 0
      %p1297 = scmp.lt.s32.totalorder %s1296, 0
      %s1298 = scalar_select %p1297, 0, 255
      %s1299 = sshrl.u32 %s1298, 1
      %s1300 = sor.u32 %s1298, %s1299
      %s1301 = sand.u32 %s1300, 85
      %s1302 = sshrl.u32 %s1301, 1
      %s1303 = sor.u32 %s1301, %s1302
      %s1304 = sand.u32 51, %s1303
      %s1305 = sshrl.u32 %s1304, 2
      %s1306 = sor.u32 %s1304, %s1305
      %s1307 = sand.u32 15, %s1306
      %v1308 = vld [vmem:[%s1295] sm:%s1307]
      %v1309 = vunpack.c.l.bf16 %v1308
      %v1310 = vunpack.c.h.bf16 %v1308
      %s1311 = scalar_lea.vmem %s4, 40
      %s1313 = sor.u32 255, 127
      %s1314 = sand.u32 %s1313, 85
      %s1315 = sshrl.u32 %s1314, 1
      %s1316 = sor.u32 %s1314, %s1315
      %s1317 = sand.u32 51, %s1316
      %s1318 = sshrl.u32 %s1317, 2
      %s1319 = sor.u32 %s1317, %s1318
      %s1320 = sand.u32 15, %s1319
      %v1321 = vld [vmem:[%s1311] sm:%s1320]
      %v1322 = vunpack.c.l.bf16 %v1321
      %v1323 = vunpack.c.h.bf16 %v1321
      %v1324 = vlaneseq
      %v1325 = vand.u32 %v1324, 127
      %vm1327 = vcmp.lt.s32.totalorder %v1325, 64
      %v1328 = vsel %vm1327, %v1322, %v34
      %1329 = xla_tuple %v1328, %v29
      %1330 = xla_tuple %1329
      %v1331 = vmax.f32 %v1328, %v29
      %1332 = xla_tuple %v1331
      %1333 = xla_tuple %v1331, %v24
      %1334 = xla_tuple %1333
      %v1335 = vmax.f32 %v1331, %v24
      %1336 = xla_tuple %v1335
      %1337 = xla_tuple %v1335, %v19
      %1338 = xla_tuple %1337
      %v1339 = vmax.f32 %v1335, %v19
      %1340 = xla_tuple %v1339
      %s1341 = scalar_lea.vmem [#allocation28], 40
      %v1342 = vpack.c.bf16 0.0, %v1339
      %s1344 = ssub.s32 16, 1
      %1345 = vst [vmem:[%s1341] sm:%s1344] %v1342
      %s1346 = scalar_lea.vmem %s368, 44
      %s1347 = ssub.s32 0, 0
      %p1348 = scmp.lt.s32.totalorder %s1347, 0
      %s1349 = scalar_select %p1348, 0, 255
      %s1350 = sshrl.u32 %s1349, 1
      %s1351 = sor.u32 %s1349, %s1350
      %s1352 = sand.u32 %s1351, 85
      %s1353 = sshrl.u32 %s1352, 1
      %s1354 = sor.u32 %s1352, %s1353
      %s1355 = sand.u32 51, %s1354
      %s1356 = sshrl.u32 %s1355, 2
      %s1357 = sor.u32 %s1355, %s1356
      %s1358 = sand.u32 15, %s1357
      %v1359 = vld [vmem:[%s1346] sm:%s1358]
      %v1360 = vunpack.c.l.bf16 %v1359
      %v1361 = vunpack.c.h.bf16 %v1359
      %s1362 = scalar_lea.vmem %s381, 44
      %s1363 = ssub.s32 0, 0
      %p1364 = scmp.lt.s32.totalorder %s1363, 0
      %s1365 = scalar_select %p1364, 0, 255
      %s1366 = sshrl.u32 %s1365, 1
      %s1367 = sor.u32 %s1365, %s1366
      %s1368 = sand.u32 %s1367, 85
      %s1369 = sshrl.u32 %s1368, 1
      %s1370 = sor.u32 %s1368, %s1369
      %s1371 = sand.u32 51, %s1370
      %s1372 = sshrl.u32 %s1371, 2
      %s1373 = sor.u32 %s1371, %s1372
      %s1374 = sand.u32 15, %s1373
      %v1375 = vld [vmem:[%s1362] sm:%s1374]
      %v1376 = vunpack.c.l.bf16 %v1375
      %v1377 = vunpack.c.h.bf16 %v1375
      %s1378 = scalar_lea.vmem %s394, 44
      %s1379 = ssub.s32 0, 0
      %p1380 = scmp.lt.s32.totalorder %s1379, 0
      %s1381 = scalar_select %p1380, 0, 255
      %s1382 = sshrl.u32 %s1381, 1
      %s1383 = sor.u32 %s1381, %s1382
      %s1384 = sand.u32 %s1383, 85
      %s1385 = sshrl.u32 %s1384, 1
      %s1386 = sor.u32 %s1384, %s1385
      %s1387 = sand.u32 51, %s1386
      %s1388 = sshrl.u32 %s1387, 2
      %s1389 = sor.u32 %s1387, %s1388
      %s1390 = sand.u32 15, %s1389
      %v1391 = vld [vmem:[%s1378] sm:%s1390]
      %v1392 = vunpack.c.l.bf16 %v1391
      %v1393 = vunpack.c.h.bf16 %v1391
      %s1394 = scalar_lea.vmem %s4, 44
      %s1396 = sor.u32 255, 127
      %s1397 = sand.u32 %s1396, 85
      %s1398 = sshrl.u32 %s1397, 1
      %s1399 = sor.u32 %s1397, %s1398
      %s1400 = sand.u32 51, %s1399
      %s1401 = sshrl.u32 %s1400, 2
      %s1402 = sor.u32 %s1400, %s1401
      %s1403 = sand.u32 15, %s1402
      %v1404 = vld [vmem:[%s1394] sm:%s1403]
      %v1405 = vunpack.c.l.bf16 %v1404
      %v1406 = vunpack.c.h.bf16 %v1404
      %v1407 = vlaneseq
      %v1408 = vand.u32 %v1407, 127
      %vm1410 = vcmp.lt.s32.totalorder %v1408, 64
      %v1411 = vsel %vm1410, %v1405, %v34
      %1412 = xla_tuple %v1411, %v29
      %1413 = xla_tuple %1412
      %v1414 = vmax.f32 %v1411, %v29
      %1415 = xla_tuple %v1414
      %1416 = xla_tuple %v1414, %v24
      %1417 = xla_tuple %1416
      %v1418 = vmax.f32 %v1414, %v24
      %1419 = xla_tuple %v1418
      %1420 = xla_tuple %v1418, %v19
      %1421 = xla_tuple %1420
      %v1422 = vmax.f32 %v1418, %v19
      %1423 = xla_tuple %v1422
      %s1424 = scalar_lea.vmem [#allocation28], 44
      %v1425 = vpack.c.bf16 0.0, %v1422
      %s1427 = ssub.s32 16, 1
      %1428 = vst [vmem:[%s1424] sm:%s1427] %v1425
      %s1429 = scalar_lea.vmem %s368, 48
      %s1430 = ssub.s32 0, 0
      %p1431 = scmp.lt.s32.totalorder %s1430, 0
      %s1432 = scalar_select %p1431, 0, 255
      %s1433 = sshrl.u32 %s1432, 1
      %s1434 = sor.u32 %s1432, %s1433
      %s1435 = sand.u32 %s1434, 85
      %s1436 = sshrl.u32 %s1435, 1
      %s1437 = sor.u32 %s1435, %s1436
      %s1438 = sand.u32 51, %s1437
      %s1439 = sshrl.u32 %s1438, 2
      %s1440 = sor.u32 %s1438, %s1439
      %s1441 = sand.u32 15, %s1440
      %v1442 = vld [vmem:[%s1429] sm:%s1441]
      %v1443 = vunpack.c.l.bf16 %v1442
      %v1444 = vunpack.c.h.bf16 %v1442
      %s1445 = scalar_lea.vmem %s381, 48
      %s1446 = ssub.s32 0, 0
      %p1447 = scmp.lt.s32.totalorder %s1446, 0
      %s1448 = scalar_select %p1447, 0, 255
      %s1449 = sshrl.u32 %s1448, 1
      %s1450 = sor.u32 %s1448, %s1449
      %s1451 = sand.u32 %s1450, 85
      %s1452 = sshrl.u32 %s1451, 1
      %s1453 = sor.u32 %s1451, %s1452
      %s1454 = sand.u32 51, %s1453
      %s1455 = sshrl.u32 %s1454, 2
      %s1456 = sor.u32 %s1454, %s1455
      %s1457 = sand.u32 15, %s1456
      %v1458 = vld [vmem:[%s1445] sm:%s1457]
      %v1459 = vunpack.c.l.bf16 %v1458
      %v1460 = vunpack.c.h.bf16 %v1458
      %s1461 = scalar_lea.vmem %s394, 48
      %s1462 = ssub.s32 0, 0
      %p1463 = scmp.lt.s32.totalorder %s1462, 0
      %s1464 = scalar_select %p1463, 0, 255
      %s1465 = sshrl.u32 %s1464, 1
      %s1466 = sor.u32 %s1464, %s1465
      %s1467 = sand.u32 %s1466, 85
      %s1468 = sshrl.u32 %s1467, 1
      %s1469 = sor.u32 %s1467, %s1468
      %s1470 = sand.u32 51, %s1469
      %s1471 = sshrl.u32 %s1470, 2
      %s1472 = sor.u32 %s1470, %s1471
      %s1473 = sand.u32 15, %s1472
      %v1474 = vld [vmem:[%s1461] sm:%s1473]
      %v1475 = vunpack.c.l.bf16 %v1474
      %v1476 = vunpack.c.h.bf16 %v1474
      %s1477 = scalar_lea.vmem %s4, 48
      %s1479 = sor.u32 255, 127
      %s1480 = sand.u32 %s1479, 85
      %s1481 = sshrl.u32 %s1480, 1
      %s1482 = sor.u32 %s1480, %s1481
      %s1483 = sand.u32 51, %s1482
      %s1484 = sshrl.u32 %s1483, 2
      %s1485 = sor.u32 %s1483, %s1484
      %s1486 = sand.u32 15, %s1485
      %v1487 = vld [vmem:[%s1477] sm:%s1486]
      %v1488 = vunpack.c.l.bf16 %v1487
      %v1489 = vunpack.c.h.bf16 %v1487
      %v1490 = vlaneseq
      %v1491 = vand.u32 %v1490, 127
      %vm1493 = vcmp.lt.s32.totalorder %v1491, 64
      %v1494 = vsel %vm1493, %v1488, %v34
      %1495 = xla_tuple %v1494, %v29
      %1496 = xla_tuple %1495
      %v1497 = vmax.f32 %v1494, %v29
      %1498 = xla_tuple %v1497
      %1499 = xla_tuple %v1497, %v24
      %1500 = xla_tuple %1499
      %v1501 = vmax.f32 %v1497, %v24
      %1502 = xla_tuple %v1501
      %1503 = xla_tuple %v1501, %v19
      %1504 = xla_tuple %1503
      %v1505 = vmax.f32 %v1501, %v19
      %1506 = xla_tuple %v1505
      %s1507 = scalar_lea.vmem [#allocation28], 48
      %v1508 = vpack.c.bf16 0.0, %v1505
      %s1510 = ssub.s32 16, 1
      %1511 = vst [vmem:[%s1507] sm:%s1510] %v1508
      %s1512 = scalar_lea.vmem %s368, 52
      %s1513 = ssub.s32 0, 0
      %p1514 = scmp.lt.s32.totalorder %s1513, 0
      %s1515 = scalar_select %p1514, 0, 255
      %s1516 = sshrl.u32 %s1515, 1
      %s1517 = sor.u32 %s1515, %s1516
      %s1518 = sand.u32 %s1517, 85
      %s1519 = sshrl.u32 %s1518, 1
      %s1520 = sor.u32 %s1518, %s1519
      %s1521 = sand.u32 51, %s1520
      %s1522 = sshrl.u32 %s1521, 2
      %s1523 = sor.u32 %s1521, %s1522
      %s1524 = sand.u32 15, %s1523
      %v1525 = vld [vmem:[%s1512] sm:%s1524]
      %v1526 = vunpack.c.l.bf16 %v1525
      %v1527 = vunpack.c.h.bf16 %v1525
      %s1528 = scalar_lea.vmem %s381, 52
      %s1529 = ssub.s32 0, 0
      %p1530 = scmp.lt.s32.totalorder %s1529, 0
      %s1531 = scalar_select %p1530, 0, 255
      %s1532 = sshrl.u32 %s1531, 1
      %s1533 = sor.u32 %s1531, %s1532
      %s1534 = sand.u32 %s1533, 85
      %s1535 = sshrl.u32 %s1534, 1
      %s1536 = sor.u32 %s1534, %s1535
      %s1537 = sand.u32 51, %s1536
      %s1538 = sshrl.u32 %s1537, 2
      %s1539 = sor.u32 %s1537, %s1538
      %s1540 = sand.u32 15, %s1539
      %v1541 = vld [vmem:[%s1528] sm:%s1540]
      %v1542 = vunpack.c.l.bf16 %v1541
      %v1543 = vunpack.c.h.bf16 %v1541
      %s1544 = scalar_lea.vmem %s394, 52
      %s1545 = ssub.s32 0, 0
      %p1546 = scmp.lt.s32.totalorder %s1545, 0
      %s1547 = scalar_select %p1546, 0, 255
      %s1548 = sshrl.u32 %s1547, 1
      %s1549 = sor.u32 %s1547, %s1548
      %s1550 = sand.u32 %s1549, 85
      %s1551 = sshrl.u32 %s1550, 1
      %s1552 = sor.u32 %s1550, %s1551
      %s1553 = sand.u32 51, %s1552
      %s1554 = sshrl.u32 %s1553, 2
      %s1555 = sor.u32 %s1553, %s1554
      %s1556 = sand.u32 15, %s1555
      %v1557 = vld [vmem:[%s1544] sm:%s1556]
      %v1558 = vunpack.c.l.bf16 %v1557
      %v1559 = vunpack.c.h.bf16 %v1557
      %s1560 = scalar_lea.vmem %s4, 52
      %s1562 = sor.u32 255, 127
      %s1563 = sand.u32 %s1562, 85
      %s1564 = sshrl.u32 %s1563, 1
      %s1565 = sor.u32 %s1563, %s1564
      %s1566 = sand.u32 51, %s1565
      %s1567 = sshrl.u32 %s1566, 2
      %s1568 = sor.u32 %s1566, %s1567
      %s1569 = sand.u32 15, %s1568
      %v1570 = vld [vmem:[%s1560] sm:%s1569]
      %v1571 = vunpack.c.l.bf16 %v1570
      %v1572 = vunpack.c.h.bf16 %v1570
      %v1573 = vlaneseq
      %v1574 = vand.u32 %v1573, 127
      %vm1576 = vcmp.lt.s32.totalorder %v1574, 64
      %v1577 = vsel %vm1576, %v1571, %v34
      %1578 = xla_tuple %v1577, %v29
      %1579 = xla_tuple %1578
      %v1580 = vmax.f32 %v1577, %v29
      %1581 = xla_tuple %v1580
      %1582 = xla_tuple %v1580, %v24
      %1583 = xla_tuple %1582
      %v1584 = vmax.f32 %v1580, %v24
      %1585 = xla_tuple %v1584
      %1586 = xla_tuple %v1584, %v19
      %1587 = xla_tuple %1586
      %v1588 = vmax.f32 %v1584, %v19
      %1589 = xla_tuple %v1588
      %s1590 = scalar_lea.vmem [#allocation28], 52
      %v1591 = vpack.c.bf16 0.0, %v1588
      %s1593 = ssub.s32 16, 1
      %1594 = vst [vmem:[%s1590] sm:%s1593] %v1591
      %s1595 = scalar_lea.vmem %s368, 56
      %s1596 = ssub.s32 0, 0
      %p1597 = scmp.lt.s32.totalorder %s1596, 0
      %s1598 = scalar_select %p1597, 0, 255
      %s1599 = sshrl.u32 %s1598, 1
      %s1600 = sor.u32 %s1598, %s1599
      %s1601 = sand.u32 %s1600, 85
      %s1602 = sshrl.u32 %s1601, 1
      %s1603 = sor.u32 %s1601, %s1602
      %s1604 = sand.u32 51, %s1603
      %s1605 = sshrl.u32 %s1604, 2
      %s1606 = sor.u32 %s1604, %s1605
      %s1607 = sand.u32 15, %s1606
      %v1608 = vld [vmem:[%s1595] sm:%s1607]
      %v1609 = vunpack.c.l.bf16 %v1608
      %v1610 = vunpack.c.h.bf16 %v1608
      %s1611 = scalar_lea.vmem %s381, 56
      %s1612 = ssub.s32 0, 0
      %p1613 = scmp.lt.s32.totalorder %s1612, 0
      %s1614 = scalar_select %p1613, 0, 255
      %s1615 = sshrl.u32 %s1614, 1
      %s1616 = sor.u32 %s1614, %s1615
      %s1617 = sand.u32 %s1616, 85
      %s1618 = sshrl.u32 %s1617, 1
      %s1619 = sor.u32 %s1617, %s1618
      %s1620 = sand.u32 51, %s1619
      %s1621 = sshrl.u32 %s1620, 2
      %s1622 = sor.u32 %s1620, %s1621
      %s1623 = sand.u32 15, %s1622
      %v1624 = vld [vmem:[%s1611] sm:%s1623]
      %v1625 = vunpack.c.l.bf16 %v1624
      %v1626 = vunpack.c.h.bf16 %v1624
      %s1627 = scalar_lea.vmem %s394, 56
      %s1628 = ssub.s32 0, 0
      %p1629 = scmp.lt.s32.totalorder %s1628, 0
      %s1630 = scalar_select %p1629, 0, 255
      %s1631 = sshrl.u32 %s1630, 1
      %s1632 = sor.u32 %s1630, %s1631
      %s1633 = sand.u32 %s1632, 85
      %s1634 = sshrl.u32 %s1633, 1
      %s1635 = sor.u32 %s1633, %s1634
      %s1636 = sand.u32 51, %s1635
      %s1637 = sshrl.u32 %s1636, 2
      %s1638 = sor.u32 %s1636, %s1637
      %s1639 = sand.u32 15, %s1638
      %v1640 = vld [vmem:[%s1627] sm:%s1639]
      %v1641 = vunpack.c.l.bf16 %v1640
      %v1642 = vunpack.c.h.bf16 %v1640
      %s1643 = scalar_lea.vmem %s4, 56
      %s1645 = sor.u32 255, 127
      %s1646 = sand.u32 %s1645, 85
      %s1647 = sshrl.u32 %s1646, 1
      %s1648 = sor.u32 %s1646, %s1647
      %s1649 = sand.u32 51, %s1648
      %s1650 = sshrl.u32 %s1649, 2
      %s1651 = sor.u32 %s1649, %s1650
      %s1652 = sand.u32 15, %s1651
      %v1653 = vld [vmem:[%s1643] sm:%s1652]
      %v1654 = vunpack.c.l.bf16 %v1653
      %v1655 = vunpack.c.h.bf16 %v1653
      %v1656 = vlaneseq
      %v1657 = vand.u32 %v1656, 127
      %vm1659 = vcmp.lt.s32.totalorder %v1657, 64
      %v1660 = vsel %vm1659, %v1654, %v34
      %1661 = xla_tuple %v1660, %v29
      %1662 = xla_tuple %1661
      %v1663 = vmax.f32 %v1660, %v29
      %1664 = xla_tuple %v1663
      %1665 = xla_tuple %v1663, %v24
      %1666 = xla_tuple %1665
      %v1667 = vmax.f32 %v1663, %v24
      %1668 = xla_tuple %v1667
      %1669 = xla_tuple %v1667, %v19
      %1670 = xla_tuple %1669
      %v1671 = vmax.f32 %v1667, %v19
      %1672 = xla_tuple %v1671
      %s1673 = scalar_lea.vmem [#allocation28], 56
      %v1674 = vpack.c.bf16 0.0, %v1671
      %s1676 = ssub.s32 16, 1
      %1677 = vst [vmem:[%s1673] sm:%s1676] %v1674
      %s1678 = scalar_lea.vmem %s368, 60
      %s1679 = ssub.s32 0, 0
      %p1680 = scmp.lt.s32.totalorder %s1679, 0
      %s1681 = scalar_select %p1680, 0, 255
      %s1682 = sshrl.u32 %s1681, 1
      %s1683 = sor.u32 %s1681, %s1682
      %s1684 = sand.u32 %s1683, 85
      %s1685 = sshrl.u32 %s1684, 1
      %s1686 = sor.u32 %s1684, %s1685
      %s1687 = sand.u32 51, %s1686
      %s1688 = sshrl.u32 %s1687, 2
      %s1689 = sor.u32 %s1687, %s1688
      %s1690 = sand.u32 15, %s1689
      %v1691 = vld [vmem:[%s1678] sm:%s1690]
      %v1692 = vunpack.c.l.bf16 %v1691
      %v1693 = vunpack.c.h.bf16 %v1691
      %s1694 = scalar_lea.vmem %s381, 60
      %s1695 = ssub.s32 0, 0
      %p1696 = scmp.lt.s32.totalorder %s1695, 0
      %s1697 = scalar_select %p1696, 0, 255
      %s1698 = sshrl.u32 %s1697, 1
      %s1699 = sor.u32 %s1697, %s1698
      %s1700 = sand.u32 %s1699, 85
      %s1701 = sshrl.u32 %s1700, 1
      %s1702 = sor.u32 %s1700, %s1701
      %s1703 = sand.u32 51, %s1702
      %s1704 = sshrl.u32 %s1703, 2
      %s1705 = sor.u32 %s1703, %s1704
      %s1706 = sand.u32 15, %s1705
      %v1707 = vld [vmem:[%s1694] sm:%s1706]
      %v1708 = vunpack.c.l.bf16 %v1707
      %v1709 = vunpack.c.h.bf16 %v1707
      %s1710 = scalar_lea.vmem %s394, 60
      %s1711 = ssub.s32 0, 0
      %p1712 = scmp.lt.s32.totalorder %s1711, 0
      %s1713 = scalar_select %p1712, 0, 255
      %s1714 = sshrl.u32 %s1713, 1
      %s1715 = sor.u32 %s1713, %s1714
      %s1716 = sand.u32 %s1715, 85
      %s1717 = sshrl.u32 %s1716, 1
      %s1718 = sor.u32 %s1716, %s1717
      %s1719 = sand.u32 51, %s1718
      %s1720 = sshrl.u32 %s1719, 2
      %s1721 = sor.u32 %s1719, %s1720
      %s1722 = sand.u32 15, %s1721
      %v1723 = vld [vmem:[%s1710] sm:%s1722]
      %v1724 = vunpack.c.l.bf16 %v1723
      %v1725 = vunpack.c.h.bf16 %v1723
      %s1726 = scalar_lea.vmem %s4, 60
      %s1728 = sor.u32 255, 127
      %s1729 = sand.u32 %s1728, 85
      %s1730 = sshrl.u32 %s1729, 1
      %s1731 = sor.u32 %s1729, %s1730
      %s1732 = sand.u32 51, %s1731
      %s1733 = sshrl.u32 %s1732, 2
      %s1734 = sor.u32 %s1732, %s1733
      %s1735 = sand.u32 15, %s1734
      %v1736 = vld [vmem:[%s1726] sm:%s1735]
      %v1737 = vunpack.c.l.bf16 %v1736
      %v1738 = vunpack.c.h.bf16 %v1736
      %v1739 = vlaneseq
      %v1740 = vand.u32 %v1739, 127
      %vm1742 = vcmp.lt.s32.totalorder %v1740, 64
      %v1743 = vsel %vm1742, %v1737, %v34
      %1744 = xla_tuple %v1743, %v29
      %1745 = xla_tuple %1744
      %v1746 = vmax.f32 %v1743, %v29
      %1747 = xla_tuple %v1746
      %1748 = xla_tuple %v1746, %v24
      %1749 = xla_tuple %1748
      %v1750 = vmax.f32 %v1746, %v24
      %1751 = xla_tuple %v1750
      %1752 = xla_tuple %v1750, %v19
      %1753 = xla_tuple %1752
      %v1754 = vmax.f32 %v1750, %v19
      %1755 = xla_tuple %v1754
      %s1756 = scalar_lea.vmem [#allocation28], 60
      %v1757 = vpack.c.bf16 0.0, %v1754
      %s1759 = ssub.s32 16, 1
      %1760 = vst [vmem:[%s1756] sm:%s1759] %v1757
      %v1761 = vlaneseq
      %v1762 = vand.u32 %v1761, 127
      %vm1764 = vcmp.lt.s32.totalorder %v1762, 64
      %v1765 = vsel %vm1764, %v481, %v29
      %1766 = xla_tuple %v34, %v1765
      %1767 = xla_tuple %1766
      %v1768 = vmax.f32 %v34, %v1765
      %1769 = xla_tuple %v1768
      %1770 = xla_tuple %v1768, %v24
      %1771 = xla_tuple %1770
      %v1772 = vmax.f32 %v1768, %v24
      %1773 = xla_tuple %v1772
      %1774 = xla_tuple %v1772, %v19
      %1775 = xla_tuple %1774
      %v1776 = vmax.f32 %v1772, %v19
      %1777 = xla_tuple %v1776
      %s1778 = scalar_lea.vmem [#allocation28], 64
      %v1779 = vpack.c.bf16 0.0, %v1776
      %s1781 = ssub.s32 16, 1
      %1782 = vst [vmem:[%s1778] sm:%s1781] %v1779
      %s1783 = scalar_lea.vmem %s368, 4
      %s1784 = scalar_lea.vmem %s381, 4
      %s1785 = scalar_lea.vmem %s394, 4
      %v1786 = vlaneseq
      %v1787 = vand.u32 %v1786, 127
      %vm1789 = vcmp.lt.s32.totalorder %v1787, 64
      %v1790 = vsel %vm1789, %v562, %v29
      %1791 = xla_tuple %v34, %v1790
      %1792 = xla_tuple %1791
      %v1793 = vmax.f32 %v34, %v1790
      %1794 = xla_tuple %v1793
      %1795 = xla_tuple %v1793, %v24
      %1796 = xla_tuple %1795
      %v1797 = vmax.f32 %v1793, %v24
      %1798 = xla_tuple %v1797
      %1799 = xla_tuple %v1797, %v19
      %1800 = xla_tuple %1799
      %v1801 = vmax.f32 %v1797, %v19
      %1802 = xla_tuple %v1801
      %s1803 = scalar_lea.vmem [#allocation28], 68
      %v1804 = vpack.c.bf16 0.0, %v1801
      %s1806 = ssub.s32 16, 1
      %1807 = vst [vmem:[%s1803] sm:%s1806] %v1804
      %s1808 = scalar_lea.vmem %s368, 8
      %s1809 = scalar_lea.vmem %s381, 8
      %s1810 = scalar_lea.vmem %s394, 8
      %v1811 = vlaneseq
      %v1812 = vand.u32 %v1811, 127
      %vm1814 = vcmp.lt.s32.totalorder %v1812, 64
      %v1815 = vsel %vm1814, %v645, %v29
      %1816 = xla_tuple %v34, %v1815
      %1817 = xla_tuple %1816
      %v1818 = vmax.f32 %v34, %v1815
      %1819 = xla_tuple %v1818
      %1820 = xla_tuple %v1818, %v24
      %1821 = xla_tuple %1820
      %v1822 = vmax.f32 %v1818, %v24
      %1823 = xla_tuple %v1822
      %1824 = xla_tuple %v1822, %v19
      %1825 = xla_tuple %1824
      %v1826 = vmax.f32 %v1822, %v19
      %1827 = xla_tuple %v1826
      %s1828 = scalar_lea.vmem [#allocation28], 72
      %v1829 = vpack.c.bf16 0.0, %v1826
      %s1831 = ssub.s32 16, 1
      %1832 = vst [vmem:[%s1828] sm:%s1831] %v1829
      %s1833 = scalar_lea.vmem %s368, 12
      %s1834 = scalar_lea.vmem %s381, 12
      %s1835 = scalar_lea.vmem %s394, 12
      %v1836 = vlaneseq
      %v1837 = vand.u32 %v1836, 127
      %vm1839 = vcmp.lt.s32.totalorder %v1837, 64
      %v1840 = vsel %vm1839, %v728, %v29
      %1841 = xla_tuple %v34, %v1840
      %1842 = xla_tuple %1841
      %v1843 = vmax.f32 %v34, %v1840
      %1844 = xla_tuple %v1843
      %1845 = xla_tuple %v1843, %v24
      %1846 = xla_tuple %1845
      %v1847 = vmax.f32 %v1843, %v24
      %1848 = xla_tuple %v1847
      %1849 = xla_tuple %v1847, %v19
      %1850 = xla_tuple %1849
      %v1851 = vmax.f32 %v1847, %v19
      %1852 = xla_tuple %v1851
      %s1853 = scalar_lea.vmem [#allocation28], 76
      %v1854 = vpack.c.bf16 0.0, %v1851
      %s1856 = ssub.s32 16, 1
      %1857 = vst [vmem:[%s1853] sm:%s1856] %v1854
      %s1858 = scalar_lea.vmem %s368, 16
      %s1859 = scalar_lea.vmem %s381, 16
      %s1860 = scalar_lea.vmem %s394, 16
      %v1861 = vlaneseq
      %v1862 = vand.u32 %v1861, 127
      %vm1864 = vcmp.lt.s32.totalorder %v1862, 64
      %v1865 = vsel %vm1864, %v811, %v29
      %1866 = xla_tuple %v34, %v1865
      %1867 = xla_tuple %1866
      %v1868 = vmax.f32 %v34, %v1865
      %1869 = xla_tuple %v1868
      %1870 = xla_tuple %v1868, %v24
      %1871 = xla_tuple %1870
      %v1872 = vmax.f32 %v1868, %v24
      %1873 = xla_tuple %v1872
      %1874 = xla_tuple %v1872, %v19
      %1875 = xla_tuple %1874
      %v1876 = vmax.f32 %v1872, %v19
      %1877 = xla_tuple %v1876
      %s1878 = scalar_lea.vmem [#allocation28], 80
      %v1879 = vpack.c.bf16 0.0, %v1876
      %s1881 = ssub.s32 16, 1
      %1882 = vst [vmem:[%s1878] sm:%s1881] %v1879
      %s1883 = scalar_lea.vmem %s368, 20
      %s1884 = scalar_lea.vmem %s381, 20
      %s1885 = scalar_lea.vmem %s394, 20
      %v1886 = vlaneseq
      %v1887 = vand.u32 %v1886, 127
      %vm1889 = vcmp.lt.s32.totalorder %v1887, 64
      %v1890 = vsel %vm1889, %v894, %v29
      %1891 = xla_tuple %v34, %v1890
      %1892 = xla_tuple %1891
      %v1893 = vmax.f32 %v34, %v1890
      %1894 = xla_tuple %v1893
      %1895 = xla_tuple %v1893, %v24
      %1896 = xla_tuple %1895
      %v1897 = vmax.f32 %v1893, %v24
      %1898 = xla_tuple %v1897
      %1899 = xla_tuple %v1897, %v19
      %1900 = xla_tuple %1899
      %v1901 = vmax.f32 %v1897, %v19
      %1902 = xla_tuple %v1901
      %s1903 = scalar_lea.vmem [#allocation28], 84
      %v1904 = vpack.c.bf16 0.0, %v1901
      %s1906 = ssub.s32 16, 1
      %1907 = vst [vmem:[%s1903] sm:%s1906] %v1904
      %s1908 = scalar_lea.vmem %s368, 24
      %s1909 = scalar_lea.vmem %s381, 24
      %s1910 = scalar_lea.vmem %s394, 24
      %v1911 = vlaneseq
      %v1912 = vand.u32 %v1911, 127
      %vm1914 = vcmp.lt.s32.totalorder %v1912, 64
      %v1915 = vsel %vm1914, %v977, %v29
      %1916 = xla_tuple %v34, %v1915
      %1917 = xla_tuple %1916
      %v1918 = vmax.f32 %v34, %v1915
      %1919 = xla_tuple %v1918
      %1920 = xla_tuple %v1918, %v24
      %1921 = xla_tuple %1920
      %v1922 = vmax.f32 %v1918, %v24
      %1923 = xla_tuple %v1922
      %1924 = xla_tuple %v1922, %v19
      %1925 = xla_tuple %1924
      %v1926 = vmax.f32 %v1922, %v19
      %1927 = xla_tuple %v1926
      %s1928 = scalar_lea.vmem [#allocation28], 88
      %v1929 = vpack.c.bf16 0.0, %v1926
      %s1931 = ssub.s32 16, 1
      %1932 = vst [vmem:[%s1928] sm:%s1931] %v1929
      %s1933 = scalar_lea.vmem %s368, 28
      %s1934 = scalar_lea.vmem %s381, 28
      %s1935 = scalar_lea.vmem %s394, 28
      %v1936 = vlaneseq
      %v1937 = vand.u32 %v1936, 127
      %vm1939 = vcmp.lt.s32.totalorder %v1937, 64
      %v1940 = vsel %vm1939, %v1060, %v29
      %1941 = xla_tuple %v34, %v1940
      %1942 = xla_tuple %1941
      %v1943 = vmax.f32 %v34, %v1940
      %1944 = xla_tuple %v1943
      %1945 = xla_tuple %v1943, %v24
      %1946 = xla_tuple %1945
      %v1947 = vmax.f32 %v1943, %v24
      %1948 = xla_tuple %v1947
      %1949 = xla_tuple %v1947, %v19
      %1950 = xla_tuple %1949
      %v1951 = vmax.f32 %v1947, %v19
      %1952 = xla_tuple %v1951
      %s1953 = scalar_lea.vmem [#allocation28], 92
      %v1954 = vpack.c.bf16 0.0, %v1951
      %s1956 = ssub.s32 16, 1
      %1957 = vst [vmem:[%s1953] sm:%s1956] %v1954
      %s1958 = scalar_lea.vmem %s368, 32
      %s1959 = scalar_lea.vmem %s381, 32
      %s1960 = scalar_lea.vmem %s394, 32
      %v1961 = vlaneseq
      %v1962 = vand.u32 %v1961, 127
      %vm1964 = vcmp.lt.s32.totalorder %v1962, 64
      %v1965 = vsel %vm1964, %v1143, %v29
      %1966 = xla_tuple %v34, %v1965
      %1967 = xla_tuple %1966
      %v1968 = vmax.f32 %v34, %v1965
      %1969 = xla_tuple %v1968
      %1970 = xla_tuple %v1968, %v24
      %1971 = xla_tuple %1970
      %v1972 = vmax.f32 %v1968, %v24
      %1973 = xla_tuple %v1972
      %1974 = xla_tuple %v1972, %v19
      %1975 = xla_tuple %1974
      %v1976 = vmax.f32 %v1972, %v19
      %1977 = xla_tuple %v1976
      %s1978 = scalar_lea.vmem [#allocation28], 96
      %v1979 = vpack.c.bf16 0.0, %v1976
      %s1981 = ssub.s32 16, 1
      %1982 = vst [vmem:[%s1978] sm:%s1981] %v1979
      %s1983 = scalar_lea.vmem %s368, 36
      %s1984 = scalar_lea.vmem %s381, 36
      %s1985 = scalar_lea.vmem %s394, 36
      %v1986 = vlaneseq
      %v1987 = vand.u32 %v1986, 127
      %vm1989 = vcmp.lt.s32.totalorder %v1987, 64
      %v1990 = vsel %vm1989, %v1226, %v29
      %1991 = xla_tuple %v34, %v1990
      %1992 = xla_tuple %1991
      %v1993 = vmax.f32 %v34, %v1990
      %1994 = xla_tuple %v1993
      %1995 = xla_tuple %v1993, %v24
      %1996 = xla_tuple %1995
      %v1997 = vmax.f32 %v1993, %v24
      %1998 = xla_tuple %v1997
      %1999 = xla_tuple %v1997, %v19
      %2000 = xla_tuple %1999
      %v2001 = vmax.f32 %v1997, %v19
      %2002 = xla_tuple %v2001
      %s2003 = scalar_lea.vmem [#allocation28], 100
      %v2004 = vpack.c.bf16 0.0, %v2001
      %s2006 = ssub.s32 16, 1
      %2007 = vst [vmem:[%s2003] sm:%s2006] %v2004
      %s2008 = scalar_lea.vmem %s368, 40
      %s2009 = scalar_lea.vmem %s381, 40
      %s2010 = scalar_lea.vmem %s394, 40
      %v2011 = vlaneseq
      %v2012 = vand.u32 %v2011, 127
      %vm2014 = vcmp.lt.s32.totalorder %v2012, 64
      %v2015 = vsel %vm2014, %v1309, %v29
      %2016 = xla_tuple %v34, %v2015
      %2017 = xla_tuple %2016
      %v2018 = vmax.f32 %v34, %v2015
      %2019 = xla_tuple %v2018
      %2020 = xla_tuple %v2018, %v24
      %2021 = xla_tuple %2020
      %v2022 = vmax.f32 %v2018, %v24
      %2023 = xla_tuple %v2022
      %2024 = xla_tuple %v2022, %v19
      %2025 = xla_tuple %2024
      %v2026 = vmax.f32 %v2022, %v19
      %2027 = xla_tuple %v2026
      %s2028 = scalar_lea.vmem [#allocation28], 104
      %v2029 = vpack.c.bf16 0.0, %v2026
      %s2031 = ssub.s32 16, 1
      %2032 = vst [vmem:[%s2028] sm:%s2031] %v2029
      %s2033 = scalar_lea.vmem %s368, 44
      %s2034 = scalar_lea.vmem %s381, 44
      %s2035 = scalar_lea.vmem %s394, 44
      %v2036 = vlaneseq
      %v2037 = vand.u32 %v2036, 127
      %vm2039 = vcmp.lt.s32.totalorder %v2037, 64
      %v2040 = vsel %vm2039, %v1392, %v29
      %2041 = xla_tuple %v34, %v2040
      %2042 = xla_tuple %2041
      %v2043 = vmax.f32 %v34, %v2040
      %2044 = xla_tuple %v2043
      %2045 = xla_tuple %v2043, %v24
      %2046 = xla_tuple %2045
      %v2047 = vmax.f32 %v2043, %v24
      %2048 = xla_tuple %v2047
      %2049 = xla_tuple %v2047, %v19
      %2050 = xla_tuple %2049
      %v2051 = vmax.f32 %v2047, %v19
      %2052 = xla_tuple %v2051
      %s2053 = scalar_lea.vmem [#allocation28], 108
      %v2054 = vpack.c.bf16 0.0, %v2051
      %s2056 = ssub.s32 16, 1
      %2057 = vst [vmem:[%s2053] sm:%s2056] %v2054
      %s2058 = scalar_lea.vmem %s368, 48
      %s2059 = scalar_lea.vmem %s381, 48
      %s2060 = scalar_lea.vmem %s394, 48
      %v2061 = vlaneseq
      %v2062 = vand.u32 %v2061, 127
      %vm2064 = vcmp.lt.s32.totalorder %v2062, 64
      %v2065 = vsel %vm2064, %v1475, %v29
      %2066 = xla_tuple %v34, %v2065
      %2067 = xla_tuple %2066
      %v2068 = vmax.f32 %v34, %v2065
      %2069 = xla_tuple %v2068
      %2070 = xla_tuple %v2068, %v24
      %2071 = xla_tuple %2070
      %v2072 = vmax.f32 %v2068, %v24
      %2073 = xla_tuple %v2072
      %2074 = xla_tuple %v2072, %v19
      %2075 = xla_tuple %2074
      %v2076 = vmax.f32 %v2072, %v19
      %2077 = xla_tuple %v2076
      %s2078 = scalar_lea.vmem [#allocation28], 112
      %v2079 = vpack.c.bf16 0.0, %v2076
      %s2081 = ssub.s32 16, 1
      %2082 = vst [vmem:[%s2078] sm:%s2081] %v2079
      %s2083 = scalar_lea.vmem %s368, 52
      %s2084 = scalar_lea.vmem %s381, 52
      %s2085 = scalar_lea.vmem %s394, 52
      %v2086 = vlaneseq
      %v2087 = vand.u32 %v2086, 127
      %vm2089 = vcmp.lt.s32.totalorder %v2087, 64
      %v2090 = vsel %vm2089, %v1558, %v29
      %2091 = xla_tuple %v34, %v2090
      %2092 = xla_tuple %2091
      %v2093 = vmax.f32 %v34, %v2090
      %2094 = xla_tuple %v2093
      %2095 = xla_tuple %v2093, %v24
      %2096 = xla_tuple %2095
      %v2097 = vmax.f32 %v2093, %v24
      %2098 = xla_tuple %v2097
      %2099 = xla_tuple %v2097, %v19
      %2100 = xla_tuple %2099
      %v2101 = vmax.f32 %v2097, %v19
      %2102 = xla_tuple %v2101
      %s2103 = scalar_lea.vmem [#allocation28], 116
      %v2104 = vpack.c.bf16 0.0, %v2101
      %s2106 = ssub.s32 16, 1
      %2107 = vst [vmem:[%s2103] sm:%s2106] %v2104
      %s2108 = scalar_lea.vmem %s368, 56
      %s2109 = scalar_lea.vmem %s381, 56
      %s2110 = scalar_lea.vmem %s394, 56
      %v2111 = vlaneseq
      %v2112 = vand.u32 %v2111, 127
      %vm2114 = vcmp.lt.s32.totalorder %v2112, 64
      %v2115 = vsel %vm2114, %v1641, %v29
      %2116 = xla_tuple %v34, %v2115
      %2117 = xla_tuple %2116
      %v2118 = vmax.f32 %v34, %v2115
      %2119 = xla_tuple %v2118
      %2120 = xla_tuple %v2118, %v24
      %2121 = xla_tuple %2120
      %v2122 = vmax.f32 %v2118, %v24
      %2123 = xla_tuple %v2122
      %2124 = xla_tuple %v2122, %v19
      %2125 = xla_tuple %2124
      %v2126 = vmax.f32 %v2122, %v19
      %2127 = xla_tuple %v2126
      %s2128 = scalar_lea.vmem [#allocation28], 120
      %v2129 = vpack.c.bf16 0.0, %v2126
      %s2131 = ssub.s32 16, 1
      %2132 = vst [vmem:[%s2128] sm:%s2131] %v2129
      %s2133 = scalar_lea.vmem %s368, 60
      %s2134 = scalar_lea.vmem %s381, 60
      %s2135 = scalar_lea.vmem %s394, 60
      %v2136 = vlaneseq
      %v2137 = vand.u32 %v2136, 127
      %vm2139 = vcmp.lt.s32.totalorder %v2137, 64
      %v2140 = vsel %vm2139, %v1724, %v29
      %2141 = xla_tuple %v34, %v2140
      %2142 = xla_tuple %2141
      %v2143 = vmax.f32 %v34, %v2140
      %2144 = xla_tuple %v2143
      %2145 = xla_tuple %v2143, %v24
      %2146 = xla_tuple %2145
      %v2147 = vmax.f32 %v2143, %v24
      %2148 = xla_tuple %v2147
      %2149 = xla_tuple %v2147, %v19
      %2150 = xla_tuple %2149
      %v2151 = vmax.f32 %v2147, %v19
      %2152 = xla_tuple %v2151
      %s2153 = scalar_lea.vmem [#allocation28], 124
      %v2154 = vpack.c.bf16 0.0, %v2151
      %s2156 = ssub.s32 16, 1
      %2157 = vst [vmem:[%s2153] sm:%s2156] %v2154
      %v2158 = vlaneseq
      %v2159 = vand.u32 %v2158, 127
      %vm2161 = vcmp.lt.s32.totalorder %v2159, 64
      %v2162 = vsel %vm2161, %v466, %v24
      %2163 = xla_tuple %v34, %v29
      %2164 = xla_tuple %2163
      %v2165 = vmax.f32 %v34, %v29
      %2166 = xla_tuple %v2165
      %2167 = xla_tuple %v2165, %v2162
      %2168 = xla_tuple %2167
      %v2169 = vmax.f32 %v2165, %v2162
      %2170 = xla_tuple %v2169
      %2171 = xla_tuple %v2169, %v19
      %2172 = xla_tuple %2171
      %v2173 = vmax.f32 %v2169, %v19
      %2174 = xla_tuple %v2173
      %s2175 = scalar_lea.vmem [#allocation28], 128
      %v2176 = vpack.c.bf16 0.0, %v2173
      %s2178 = ssub.s32 16, 1
      %2179 = vst [vmem:[%s2175] sm:%s2178] %v2176
      %s2180 = scalar_lea.vmem %s368, 4
      %s2181 = scalar_lea.vmem %s381, 4
      %v2182 = vlaneseq
      %v2183 = vand.u32 %v2182, 127
      %vm2185 = vcmp.lt.s32.totalorder %v2183, 64
      %v2186 = vsel %vm2185, %v546, %v24
      %s2187 = scalar_lea.vmem %s394, 4
      %2188 = xla_tuple %v34, %v29
      %2189 = xla_tuple %2188
      %v2190 = vmax.f32 %v34, %v29
      %2191 = xla_tuple %v2190
      %2192 = xla_tuple %v2190, %v2186
      %2193 = xla_tuple %2192
      %v2194 = vmax.f32 %v2190, %v2186
      %2195 = xla_tuple %v2194
      %2196 = xla_tuple %v2194, %v19
      %2197 = xla_tuple %2196
      %v2198 = vmax.f32 %v2194, %v19
      %2199 = xla_tuple %v2198
      %s2200 = scalar_lea.vmem [#allocation28], 132
      %v2201 = vpack.c.bf16 0.0, %v2198
      %s2203 = ssub.s32 16, 1
      %2204 = vst [vmem:[%s2200] sm:%s2203] %v2201
      %s2205 = scalar_lea.vmem %s368, 8
      %s2206 = scalar_lea.vmem %s381, 8
      %v2207 = vlaneseq
      %v2208 = vand.u32 %v2207, 127
      %vm2210 = vcmp.lt.s32.totalorder %v2208, 64
      %v2211 = vsel %vm2210, %v629, %v24
      %s2212 = scalar_lea.vmem %s394, 8
      %2213 = xla_tuple %v34, %v29
      %2214 = xla_tuple %2213
      %v2215 = vmax.f32 %v34, %v29
      %2216 = xla_tuple %v2215
      %2217 = xla_tuple %v2215, %v2211
      %2218 = xla_tuple %2217
      %v2219 = vmax.f32 %v2215, %v2211
      %2220 = xla_tuple %v2219
      %2221 = xla_tuple %v2219, %v19
      %2222 = xla_tuple %2221
      %v2223 = vmax.f32 %v2219, %v19
      %2224 = xla_tuple %v2223
      %s2225 = scalar_lea.vmem [#allocation28], 136
      %v2226 = vpack.c.bf16 0.0, %v2223
      %s2228 = ssub.s32 16, 1
      %2229 = vst [vmem:[%s2225] sm:%s2228] %v2226
      %s2230 = scalar_lea.vmem %s368, 12
      %s2231 = scalar_lea.vmem %s381, 12
      %v2232 = vlaneseq
      %v2233 = vand.u32 %v2232, 127
      %vm2235 = vcmp.lt.s32.totalorder %v2233, 64
      %v2236 = vsel %vm2235, %v712, %v24
      %s2237 = scalar_lea.vmem %s394, 12
      %2238 = xla_tuple %v34, %v29
      %2239 = xla_tuple %2238
      %v2240 = vmax.f32 %v34, %v29
      %2241 = xla_tuple %v2240
      %2242 = xla_tuple %v2240, %v2236
      %2243 = xla_tuple %2242
      %v2244 = vmax.f32 %v2240, %v2236
      %2245 = xla_tuple %v2244
      %2246 = xla_tuple %v2244, %v19
      %2247 = xla_tuple %2246
      %v2248 = vmax.f32 %v2244, %v19
      %2249 = xla_tuple %v2248
      %s2250 = scalar_lea.vmem [#allocation28], 140
      %v2251 = vpack.c.bf16 0.0, %v2248
      %s2253 = ssub.s32 16, 1
      %2254 = vst [vmem:[%s2250] sm:%s2253] %v2251
      %s2255 = scalar_lea.vmem %s368, 16
      %s2256 = scalar_lea.vmem %s381, 16
      %v2257 = vlaneseq
      %v2258 = vand.u32 %v2257, 127
      %vm2260 = vcmp.lt.s32.totalorder %v2258, 64
      %v2261 = vsel %vm2260, %v795, %v24
      %s2262 = scalar_lea.vmem %s394, 16
      %2263 = xla_tuple %v34, %v29
      %2264 = xla_tuple %2263
      %v2265 = vmax.f32 %v34, %v29
      %2266 = xla_tuple %v2265
      %2267 = xla_tuple %v2265, %v2261
      %2268 = xla_tuple %2267
      %v2269 = vmax.f32 %v2265, %v2261
      %2270 = xla_tuple %v2269
      %2271 = xla_tuple %v2269, %v19
      %2272 = xla_tuple %2271
      %v2273 = vmax.f32 %v2269, %v19
      %2274 = xla_tuple %v2273
      %s2275 = scalar_lea.vmem [#allocation28], 144
      %v2276 = vpack.c.bf16 0.0, %v2273
      %s2278 = ssub.s32 16, 1
      %2279 = vst [vmem:[%s2275] sm:%s2278] %v2276
      %s2280 = scalar_lea.vmem %s368, 20
      %s2281 = scalar_lea.vmem %s381, 20
      %v2282 = vlaneseq
      %v2283 = vand.u32 %v2282, 127
      %vm2285 = vcmp.lt.s32.totalorder %v2283, 64
      %v2286 = vsel %vm2285, %v878, %v24
      %s2287 = scalar_lea.vmem %s394, 20
      %2288 = xla_tuple %v34, %v29
      %2289 = xla_tuple %2288
      %v2290 = vmax.f32 %v34, %v29
      %2291 = xla_tuple %v2290
      %2292 = xla_tuple %v2290, %v2286
      %2293 = xla_tuple %2292
      %v2294 = vmax.f32 %v2290, %v2286
      %2295 = xla_tuple %v2294
      %2296 = xla_tuple %v2294, %v19
      %2297 = xla_tuple %2296
      %v2298 = vmax.f32 %v2294, %v19
      %2299 = xla_tuple %v2298
      %s2300 = scalar_lea.vmem [#allocation28], 148
      %v2301 = vpack.c.bf16 0.0, %v2298
      %s2303 = ssub.s32 16, 1
      %2304 = vst [vmem:[%s2300] sm:%s2303] %v2301
      %s2305 = scalar_lea.vmem %s368, 24
      %s2306 = scalar_lea.vmem %s381, 24
      %v2307 = vlaneseq
      %v2308 = vand.u32 %v2307, 127
      %vm2310 = vcmp.lt.s32.totalorder %v2308, 64
      %v2311 = vsel %vm2310, %v961, %v24
      %s2312 = scalar_lea.vmem %s394, 24
      %2313 = xla_tuple %v34, %v29
      %2314 = xla_tuple %2313
      %v2315 = vmax.f32 %v34, %v29
      %2316 = xla_tuple %v2315
      %2317 = xla_tuple %v2315, %v2311
      %2318 = xla_tuple %2317
      %v2319 = vmax.f32 %v2315, %v2311
      %2320 = xla_tuple %v2319
      %2321 = xla_tuple %v2319, %v19
      %2322 = xla_tuple %2321
      %v2323 = vmax.f32 %v2319, %v19
      %2324 = xla_tuple %v2323
      %s2325 = scalar_lea.vmem [#allocation28], 152
      %v2326 = vpack.c.bf16 0.0, %v2323
      %s2328 = ssub.s32 16, 1
      %2329 = vst [vmem:[%s2325] sm:%s2328] %v2326
      %s2330 = scalar_lea.vmem %s368, 28
      %s2331 = scalar_lea.vmem %s381, 28
      %v2332 = vlaneseq
      %v2333 = vand.u32 %v2332, 127
      %vm2335 = vcmp.lt.s32.totalorder %v2333, 64
      %v2336 = vsel %vm2335, %v1044, %v24
      %s2337 = scalar_lea.vmem %s394, 28
      %2338 = xla_tuple %v34, %v29
      %2339 = xla_tuple %2338
      %v2340 = vmax.f32 %v34, %v29
      %2341 = xla_tuple %v2340
      %2342 = xla_tuple %v2340, %v2336
      %2343 = xla_tuple %2342
      %v2344 = vmax.f32 %v2340, %v2336
      %2345 = xla_tuple %v2344
      %2346 = xla_tuple %v2344, %v19
      %2347 = xla_tuple %2346
      %v2348 = vmax.f32 %v2344, %v19
      %2349 = xla_tuple %v2348
      %s2350 = scalar_lea.vmem [#allocation28], 156
      %v2351 = vpack.c.bf16 0.0, %v2348
      %s2353 = ssub.s32 16, 1
      %2354 = vst [vmem:[%s2350] sm:%s2353] %v2351
      %s2355 = scalar_lea.vmem %s368, 32
      %s2356 = scalar_lea.vmem %s381, 32
      %v2357 = vlaneseq
      %v2358 = vand.u32 %v2357, 127
      %vm2360 = vcmp.lt.s32.totalorder %v2358, 64
      %v2361 = vsel %vm2360, %v1127, %v24
      %s2362 = scalar_lea.vmem %s394, 32
      %2363 = xla_tuple %v34, %v29
      %2364 = xla_tuple %2363
      %v2365 = vmax.f32 %v34, %v29
      %2366 = xla_tuple %v2365
      %2367 = xla_tuple %v2365, %v2361
      %2368 = xla_tuple %2367
      %v2369 = vmax.f32 %v2365, %v2361
      %2370 = xla_tuple %v2369
      %2371 = xla_tuple %v2369, %v19
      %2372 = xla_tuple %2371
      %v2373 = vmax.f32 %v2369, %v19
      %2374 = xla_tuple %v2373
      %s2375 = scalar_lea.vmem [#allocation28], 160
      %v2376 = vpack.c.bf16 0.0, %v2373
      %s2378 = ssub.s32 16, 1
      %2379 = vst [vmem:[%s2375] sm:%s2378] %v2376
      %s2380 = scalar_lea.vmem %s368, 36
      %s2381 = scalar_lea.vmem %s381, 36
      %v2382 = vlaneseq
      %v2383 = vand.u32 %v2382, 127
      %vm2385 = vcmp.lt.s32.totalorder %v2383, 64
      %v2386 = vsel %vm2385, %v1210, %v24
      %s2387 = scalar_lea.vmem %s394, 36
      %2388 = xla_tuple %v34, %v29
      %2389 = xla_tuple %2388
      %v2390 = vmax.f32 %v34, %v29
      %2391 = xla_tuple %v2390
      %2392 = xla_tuple %v2390, %v2386
      %2393 = xla_tuple %2392
      %v2394 = vmax.f32 %v2390, %v2386
      %2395 = xla_tuple %v2394
      %2396 = xla_tuple %v2394, %v19
      %2397 = xla_tuple %2396
      %v2398 = vmax.f32 %v2394, %v19
      %2399 = xla_tuple %v2398
      %s2400 = scalar_lea.vmem [#allocation28], 164
      %v2401 = vpack.c.bf16 0.0, %v2398
      %s2403 = ssub.s32 16, 1
      %2404 = vst [vmem:[%s2400] sm:%s2403] %v2401
      %s2405 = scalar_lea.vmem %s368, 40
      %s2406 = scalar_lea.vmem %s381, 40
      %v2407 = vlaneseq
      %v2408 = vand.u32 %v2407, 127
      %vm2410 = vcmp.lt.s32.totalorder %v2408, 64
      %v2411 = vsel %vm2410, %v1293, %v24
      %s2412 = scalar_lea.vmem %s394, 40
      %2413 = xla_tuple %v34, %v29
      %2414 = xla_tuple %2413
      %v2415 = vmax.f32 %v34, %v29
      %2416 = xla_tuple %v2415
      %2417 = xla_tuple %v2415, %v2411
      %2418 = xla_tuple %2417
      %v2419 = vmax.f32 %v2415, %v2411
      %2420 = xla_tuple %v2419
      %2421 = xla_tuple %v2419, %v19
      %2422 = xla_tuple %2421
      %v2423 = vmax.f32 %v2419, %v19
      %2424 = xla_tuple %v2423
      %s2425 = scalar_lea.vmem [#allocation28], 168
      %v2426 = vpack.c.bf16 0.0, %v2423
      %s2428 = ssub.s32 16, 1
      %2429 = vst [vmem:[%s2425] sm:%s2428] %v2426
      %s2430 = scalar_lea.vmem %s368, 44
      %s2431 = scalar_lea.vmem %s381, 44
      %v2432 = vlaneseq
      %v2433 = vand.u32 %v2432, 127
      %vm2435 = vcmp.lt.s32.totalorder %v2433, 64
      %v2436 = vsel %vm2435, %v1376, %v24
      %s2437 = scalar_lea.vmem %s394, 44
      %2438 = xla_tuple %v34, %v29
      %2439 = xla_tuple %2438
      %v2440 = vmax.f32 %v34, %v29
      %2441 = xla_tuple %v2440
      %2442 = xla_tuple %v2440, %v2436
      %2443 = xla_tuple %2442
      %v2444 = vmax.f32 %v2440, %v2436
      %2445 = xla_tuple %v2444
      %2446 = xla_tuple %v2444, %v19
      %2447 = xla_tuple %2446
      %v2448 = vmax.f32 %v2444, %v19
      %2449 = xla_tuple %v2448
      %s2450 = scalar_lea.vmem [#allocation28], 172
      %v2451 = vpack.c.bf16 0.0, %v2448
      %s2453 = ssub.s32 16, 1
      %2454 = vst [vmem:[%s2450] sm:%s2453] %v2451
      %s2455 = scalar_lea.vmem %s368, 48
      %s2456 = scalar_lea.vmem %s381, 48
      %v2457 = vlaneseq
      %v2458 = vand.u32 %v2457, 127
      %vm2460 = vcmp.lt.s32.totalorder %v2458, 64
      %v2461 = vsel %vm2460, %v1459, %v24
      %s2462 = scalar_lea.vmem %s394, 48
      %2463 = xla_tuple %v34, %v29
      %2464 = xla_tuple %2463
      %v2465 = vmax.f32 %v34, %v29
      %2466 = xla_tuple %v2465
      %2467 = xla_tuple %v2465, %v2461
      %2468 = xla_tuple %2467
      %v2469 = vmax.f32 %v2465, %v2461
      %2470 = xla_tuple %v2469
      %2471 = xla_tuple %v2469, %v19
      %2472 = xla_tuple %2471
      %v2473 = vmax.f32 %v2469, %v19
      %2474 = xla_tuple %v2473
      %s2475 = scalar_lea.vmem [#allocation28], 176
      %v2476 = vpack.c.bf16 0.0, %v2473
      %s2478 = ssub.s32 16, 1
      %2479 = vst [vmem:[%s2475] sm:%s2478] %v2476
      %s2480 = scalar_lea.vmem %s368, 52
      %s2481 = scalar_lea.vmem %s381, 52
      %v2482 = vlaneseq
      %v2483 = vand.u32 %v2482, 127
      %vm2485 = vcmp.lt.s32.totalorder %v2483, 64
      %v2486 = vsel %vm2485, %v1542, %v24
      %s2487 = scalar_lea.vmem %s394, 52
      %2488 = xla_tuple %v34, %v29
      %2489 = xla_tuple %2488
      %v2490 = vmax.f32 %v34, %v29
      %2491 = xla_tuple %v2490
      %2492 = xla_tuple %v2490, %v2486
      %2493 = xla_tuple %2492
      %v2494 = vmax.f32 %v2490, %v2486
      %2495 = xla_tuple %v2494
      %2496 = xla_tuple %v2494, %v19
      %2497 = xla_tuple %2496
      %v2498 = vmax.f32 %v2494, %v19
      %2499 = xla_tuple %v2498
      %s2500 = scalar_lea.vmem [#allocation28], 180
      %v2501 = vpack.c.bf16 0.0, %v2498
      %s2503 = ssub.s32 16, 1
      %2504 = vst [vmem:[%s2500] sm:%s2503] %v2501
      %s2505 = scalar_lea.vmem %s368, 56
      %s2506 = scalar_lea.vmem %s381, 56
      %v2507 = vlaneseq
      %v2508 = vand.u32 %v2507, 127
      %vm2510 = vcmp.lt.s32.totalorder %v2508, 64
      %v2511 = vsel %vm2510, %v1625, %v24
      %s2512 = scalar_lea.vmem %s394, 56
      %2513 = xla_tuple %v34, %v29
      %2514 = xla_tuple %2513
      %v2515 = vmax.f32 %v34, %v29
      %2516 = xla_tuple %v2515
      %2517 = xla_tuple %v2515, %v2511
      %2518 = xla_tuple %2517
      %v2519 = vmax.f32 %v2515, %v2511
      %2520 = xla_tuple %v2519
      %2521 = xla_tuple %v2519, %v19
      %2522 = xla_tuple %2521
      %v2523 = vmax.f32 %v2519, %v19
      %2524 = xla_tuple %v2523
      %s2525 = scalar_lea.vmem [#allocation28], 184
      %v2526 = vpack.c.bf16 0.0, %v2523
      %s2528 = ssub.s32 16, 1
      %2529 = vst [vmem:[%s2525] sm:%s2528] %v2526
      %s2530 = scalar_lea.vmem %s368, 60
      %s2531 = scalar_lea.vmem %s381, 60
      %v2532 = vlaneseq
      %v2533 = vand.u32 %v2532, 127
      %vm2535 = vcmp.lt.s32.totalorder %v2533, 64
      %v2536 = vsel %vm2535, %v1708, %v24
      %s2537 = scalar_lea.vmem %s394, 60
      %2538 = xla_tuple %v34, %v29
      %2539 = xla_tuple %2538
      %v2540 = vmax.f32 %v34, %v29
      %2541 = xla_tuple %v2540
      %2542 = xla_tuple %v2540, %v2536
      %2543 = xla_tuple %2542
      %v2544 = vmax.f32 %v2540, %v2536
      %2545 = xla_tuple %v2544
      %2546 = xla_tuple %v2544, %v19
      %2547 = xla_tuple %2546
      %v2548 = vmax.f32 %v2544, %v19
      %2549 = xla_tuple %v2548
      %s2550 = scalar_lea.vmem [#allocation28], 188
      %v2551 = vpack.c.bf16 0.0, %v2548
      %s2553 = ssub.s32 16, 1
      %2554 = vst [vmem:[%s2550] sm:%s2553] %v2551
      %v2555 = vlaneseq
      %v2556 = vand.u32 %v2555, 127
      %vm2558 = vcmp.lt.s32.totalorder %v2556, 64
      %v2559 = vsel %vm2558, %v451, %v19
      %2560 = xla_tuple %v34, %v29
      %2561 = xla_tuple %2560
      %v2562 = vmax.f32 %v34, %v29
      %2563 = xla_tuple %v2562
      %2564 = xla_tuple %v2562, %v24
      %2565 = xla_tuple %2564
      %v2566 = vmax.f32 %v2562, %v24
      %2567 = xla_tuple %v2566
      %2568 = xla_tuple %v2566, %v2559
      %2569 = xla_tuple %2568
      %v2570 = vmax.f32 %v2566, %v2559
      %2571 = xla_tuple %v2570
      %s2572 = scalar_lea.vmem [#allocation28], 192
      %v2573 = vpack.c.bf16 0.0, %v2570
      %s2575 = ssub.s32 16, 1
      %2576 = vst [vmem:[%s2572] sm:%s2575] %v2573
      %s2577 = scalar_lea.vmem %s368, 4
      %v2578 = vlaneseq
      %v2579 = vand.u32 %v2578, 127
      %vm2581 = vcmp.lt.s32.totalorder %v2579, 64
      %v2582 = vsel %vm2581, %v530, %v19
      %s2583 = scalar_lea.vmem %s381, 4
      %s2584 = scalar_lea.vmem %s394, 4
      %2585 = xla_tuple %v34, %v29
      %2586 = xla_tuple %2585
      %v2587 = vmax.f32 %v34, %v29
      %2588 = xla_tuple %v2587
      %2589 = xla_tuple %v2587, %v24
      %2590 = xla_tuple %2589
      %v2591 = vmax.f32 %v2587, %v24
      %2592 = xla_tuple %v2591
      %2593 = xla_tuple %v2591, %v2582
      %2594 = xla_tuple %2593
      %v2595 = vmax.f32 %v2591, %v2582
      %2596 = xla_tuple %v2595
      %s2597 = scalar_lea.vmem [#allocation28], 196
      %v2598 = vpack.c.bf16 0.0, %v2595
      %s2600 = ssub.s32 16, 1
      %2601 = vst [vmem:[%s2597] sm:%s2600] %v2598
      %s2602 = scalar_lea.vmem %s368, 8
      %v2603 = vlaneseq
      %v2604 = vand.u32 %v2603, 127
      %vm2606 = vcmp.lt.s32.totalorder %v2604, 64
      %v2607 = vsel %vm2606, %v613, %v19
      %s2608 = scalar_lea.vmem %s381, 8
      %s2609 = scalar_lea.vmem %s394, 8
      %2610 = xla_tuple %v34, %v29
      %2611 = xla_tuple %2610
      %v2612 = vmax.f32 %v34, %v29
      %2613 = xla_tuple %v2612
      %2614 = xla_tuple %v2612, %v24
      %2615 = xla_tuple %2614
      %v2616 = vmax.f32 %v2612, %v24
      %2617 = xla_tuple %v2616
      %2618 = xla_tuple %v2616, %v2607
      %2619 = xla_tuple %2618
      %v2620 = vmax.f32 %v2616, %v2607
      %2621 = xla_tuple %v2620
      %s2622 = scalar_lea.vmem [#allocation28], 200
      %v2623 = vpack.c.bf16 0.0, %v2620
      %s2625 = ssub.s32 16, 1
      %2626 = vst [vmem:[%s2622] sm:%s2625] %v2623
      %s2627 = scalar_lea.vmem %s368, 12
      %v2628 = vlaneseq
      %v2629 = vand.u32 %v2628, 127
      %vm2631 = vcmp.lt.s32.totalorder %v2629, 64
      %v2632 = vsel %vm2631, %v696, %v19
      %s2633 = scalar_lea.vmem %s381, 12
      %s2634 = scalar_lea.vmem %s394, 12
      %2635 = xla_tuple %v34, %v29
      %2636 = xla_tuple %2635
      %v2637 = vmax.f32 %v34, %v29
      %2638 = xla_tuple %v2637
      %2639 = xla_tuple %v2637, %v24
      %2640 = xla_tuple %2639
      %v2641 = vmax.f32 %v2637, %v24
      %2642 = xla_tuple %v2641
      %2643 = xla_tuple %v2641, %v2632
      %2644 = xla_tuple %2643
      %v2645 = vmax.f32 %v2641, %v2632
      %2646 = xla_tuple %v2645
      %s2647 = scalar_lea.vmem [#allocation28], 204
      %v2648 = vpack.c.bf16 0.0, %v2645
      %s2650 = ssub.s32 16, 1
      %2651 = vst [vmem:[%s2647] sm:%s2650] %v2648
      %s2652 = scalar_lea.vmem %s368, 16
      %v2653 = vlaneseq
      %v2654 = vand.u32 %v2653, 127
      %vm2656 = vcmp.lt.s32.totalorder %v2654, 64
      %v2657 = vsel %vm2656, %v779, %v19
      %s2658 = scalar_lea.vmem %s381, 16
      %s2659 = scalar_lea.vmem %s394, 16
      %2660 = xla_tuple %v34, %v29
      %2661 = xla_tuple %2660
      %v2662 = vmax.f32 %v34, %v29
      %2663 = xla_tuple %v2662
      %2664 = xla_tuple %v2662, %v24
      %2665 = xla_tuple %2664
      %v2666 = vmax.f32 %v2662, %v24
      %2667 = xla_tuple %v2666
      %2668 = xla_tuple %v2666, %v2657
      %2669 = xla_tuple %2668
      %v2670 = vmax.f32 %v2666, %v2657
      %2671 = xla_tuple %v2670
      %s2672 = scalar_lea.vmem [#allocation28], 208
      %v2673 = vpack.c.bf16 0.0, %v2670
      %s2675 = ssub.s32 16, 1
      %2676 = vst [vmem:[%s2672] sm:%s2675] %v2673
      %s2677 = scalar_lea.vmem %s368, 20
      %v2678 = vlaneseq
      %v2679 = vand.u32 %v2678, 127
      %vm2681 = vcmp.lt.s32.totalorder %v2679, 64
      %v2682 = vsel %vm2681, %v862, %v19
      %s2683 = scalar_lea.vmem %s381, 20
      %s2684 = scalar_lea.vmem %s394, 20
      %2685 = xla_tuple %v34, %v29
      %2686 = xla_tuple %2685
      %v2687 = vmax.f32 %v34, %v29
      %2688 = xla_tuple %v2687
      %2689 = xla_tuple %v2687, %v24
      %2690 = xla_tuple %2689
      %v2691 = vmax.f32 %v2687, %v24
      %2692 = xla_tuple %v2691
      %2693 = xla_tuple %v2691, %v2682
      %2694 = xla_tuple %2693
      %v2695 = vmax.f32 %v2691, %v2682
      %2696 = xla_tuple %v2695
      %s2697 = scalar_lea.vmem [#allocation28], 212
      %v2698 = vpack.c.bf16 0.0, %v2695
      %s2700 = ssub.s32 16, 1
      %2701 = vst [vmem:[%s2697] sm:%s2700] %v2698
      %s2702 = scalar_lea.vmem %s368, 24
      %v2703 = vlaneseq
      %v2704 = vand.u32 %v2703, 127
      %vm2706 = vcmp.lt.s32.totalorder %v2704, 64
      %v2707 = vsel %vm2706, %v945, %v19
      %s2708 = scalar_lea.vmem %s381, 24
      %s2709 = scalar_lea.vmem %s394, 24
      %2710 = xla_tuple %v34, %v29
      %2711 = xla_tuple %2710
      %v2712 = vmax.f32 %v34, %v29
      %2713 = xla_tuple %v2712
      %2714 = xla_tuple %v2712, %v24
      %2715 = xla_tuple %2714
      %v2716 = vmax.f32 %v2712, %v24
      %2717 = xla_tuple %v2716
      %2718 = xla_tuple %v2716, %v2707
      %2719 = xla_tuple %2718
      %v2720 = vmax.f32 %v2716, %v2707
      %2721 = xla_tuple %v2720
      %s2722 = scalar_lea.vmem [#allocation28], 216
      %v2723 = vpack.c.bf16 0.0, %v2720
      %s2725 = ssub.s32 16, 1
      %2726 = vst [vmem:[%s2722] sm:%s2725] %v2723
      %s2727 = scalar_lea.vmem %s368, 28
      %v2728 = vlaneseq
      %v2729 = vand.u32 %v2728, 127
      %vm2731 = vcmp.lt.s32.totalorder %v2729, 64
      %v2732 = vsel %vm2731, %v1028, %v19
      %s2733 = scalar_lea.vmem %s381, 28
      %s2734 = scalar_lea.vmem %s394, 28
      %2735 = xla_tuple %v34, %v29
      %2736 = xla_tuple %2735
      %v2737 = vmax.f32 %v34, %v29
      %2738 = xla_tuple %v2737
      %2739 = xla_tuple %v2737, %v24
      %2740 = xla_tuple %2739
      %v2741 = vmax.f32 %v2737, %v24
      %2742 = xla_tuple %v2741
      %2743 = xla_tuple %v2741, %v2732
      %2744 = xla_tuple %2743
      %v2745 = vmax.f32 %v2741, %v2732
      %2746 = xla_tuple %v2745
      %s2747 = scalar_lea.vmem [#allocation28], 220
      %v2748 = vpack.c.bf16 0.0, %v2745
      %s2750 = ssub.s32 16, 1
      %2751 = vst [vmem:[%s2747] sm:%s2750] %v2748
      %s2752 = scalar_lea.vmem %s368, 32
      %v2753 = vlaneseq
      %v2754 = vand.u32 %v2753, 127
      %vm2756 = vcmp.lt.s32.totalorder %v2754, 64
      %v2757 = vsel %vm2756, %v1111, %v19
      %s2758 = scalar_lea.vmem %s381, 32
      %s2759 = scalar_lea.vmem %s394, 32
      %2760 = xla_tuple %v34, %v29
      %2761 = xla_tuple %2760
      %v2762 = vmax.f32 %v34, %v29
      %2763 = xla_tuple %v2762
      %2764 = xla_tuple %v2762, %v24
      %2765 = xla_tuple %2764
      %v2766 = vmax.f32 %v2762, %v24
      %2767 = xla_tuple %v2766
      %2768 = xla_tuple %v2766, %v2757
      %2769 = xla_tuple %2768
      %v2770 = vmax.f32 %v2766, %v2757
      %2771 = xla_tuple %v2770
      %s2772 = scalar_lea.vmem [#allocation28], 224
      %v2773 = vpack.c.bf16 0.0, %v2770
      %s2775 = ssub.s32 16, 1
      %2776 = vst [vmem:[%s2772] sm:%s2775] %v2773
      %s2777 = scalar_lea.vmem %s368, 36
      %v2778 = vlaneseq
      %v2779 = vand.u32 %v2778, 127
      %vm2781 = vcmp.lt.s32.totalorder %v2779, 64
      %v2782 = vsel %vm2781, %v1194, %v19
      %s2783 = scalar_lea.vmem %s381, 36
      %s2784 = scalar_lea.vmem %s394, 36
      %2785 = xla_tuple %v34, %v29
      %2786 = xla_tuple %2785
      %v2787 = vmax.f32 %v34, %v29
      %2788 = xla_tuple %v2787
      %2789 = xla_tuple %v2787, %v24
      %2790 = xla_tuple %2789
      %v2791 = vmax.f32 %v2787, %v24
      %2792 = xla_tuple %v2791
      %2793 = xla_tuple %v2791, %v2782
      %2794 = xla_tuple %2793
      %v2795 = vmax.f32 %v2791, %v2782
      %2796 = xla_tuple %v2795
      %s2797 = scalar_lea.vmem [#allocation28], 228
      %v2798 = vpack.c.bf16 0.0, %v2795
      %s2800 = ssub.s32 16, 1
      %2801 = vst [vmem:[%s2797] sm:%s2800] %v2798
      %s2802 = scalar_lea.vmem %s368, 40
      %v2803 = vlaneseq
      %v2804 = vand.u32 %v2803, 127
      %vm2806 = vcmp.lt.s32.totalorder %v2804, 64
      %v2807 = vsel %vm2806, %v1277, %v19
      %s2808 = scalar_lea.vmem %s381, 40
      %s2809 = scalar_lea.vmem %s394, 40
      %2810 = xla_tuple %v34, %v29
      %2811 = xla_tuple %2810
      %v2812 = vmax.f32 %v34, %v29
      %2813 = xla_tuple %v2812
      %2814 = xla_tuple %v2812, %v24
      %2815 = xla_tuple %2814
      %v2816 = vmax.f32 %v2812, %v24
      %2817 = xla_tuple %v2816
      %2818 = xla_tuple %v2816, %v2807
      %2819 = xla_tuple %2818
      %v2820 = vmax.f32 %v2816, %v2807
      %2821 = xla_tuple %v2820
      %s2822 = scalar_lea.vmem [#allocation28], 232
      %v2823 = vpack.c.bf16 0.0, %v2820
      %s2825 = ssub.s32 16, 1
      %2826 = vst [vmem:[%s2822] sm:%s2825] %v2823
      %s2827 = scalar_lea.vmem %s368, 44
      %v2828 = vlaneseq
      %v2829 = vand.u32 %v2828, 127
      %vm2831 = vcmp.lt.s32.totalorder %v2829, 64
      %v2832 = vsel %vm2831, %v1360, %v19
      %s2833 = scalar_lea.vmem %s381, 44
      %s2834 = scalar_lea.vmem %s394, 44
      %2835 = xla_tuple %v34, %v29
      %2836 = xla_tuple %2835
      %v2837 = vmax.f32 %v34, %v29
      %2838 = xla_tuple %v2837
      %2839 = xla_tuple %v2837, %v24
      %2840 = xla_tuple %2839
      %v2841 = vmax.f32 %v2837, %v24
      %2842 = xla_tuple %v2841
      %2843 = xla_tuple %v2841, %v2832
      %2844 = xla_tuple %2843
      %v2845 = vmax.f32 %v2841, %v2832
      %2846 = xla_tuple %v2845
      %s2847 = scalar_lea.vmem [#allocation28], 236
      %v2848 = vpack.c.bf16 0.0, %v2845
      %s2850 = ssub.s32 16, 1
      %2851 = vst [vmem:[%s2847] sm:%s2850] %v2848
      %s2852 = scalar_lea.vmem %s368, 48
      %v2853 = vlaneseq
      %v2854 = vand.u32 %v2853, 127
      %vm2856 = vcmp.lt.s32.totalorder %v2854, 64
      %v2857 = vsel %vm2856, %v1443, %v19
      %s2858 = scalar_lea.vmem %s381, 48
      %s2859 = scalar_lea.vmem %s394, 48
      %2860 = xla_tuple %v34, %v29
      %2861 = xla_tuple %2860
      %v2862 = vmax.f32 %v34, %v29
      %2863 = xla_tuple %v2862
      %2864 = xla_tuple %v2862, %v24
      %2865 = xla_tuple %2864
      %v2866 = vmax.f32 %v2862, %v24
      %2867 = xla_tuple %v2866
      %2868 = xla_tuple %v2866, %v2857
      %2869 = xla_tuple %2868
      %v2870 = vmax.f32 %v2866, %v2857
      %2871 = xla_tuple %v2870
      %s2872 = scalar_lea.vmem [#allocation28], 240
      %v2873 = vpack.c.bf16 0.0, %v2870
      %s2875 = ssub.s32 16, 1
      %2876 = vst [vmem:[%s2872] sm:%s2875] %v2873
      %s2877 = scalar_lea.vmem %s368, 52
      %v2878 = vlaneseq
      %v2879 = vand.u32 %v2878, 127
      %vm2881 = vcmp.lt.s32.totalorder %v2879, 64
      %v2882 = vsel %vm2881, %v1526, %v19
      %s2883 = scalar_lea.vmem %s381, 52
      %s2884 = scalar_lea.vmem %s394, 52
      %2885 = xla_tuple %v34, %v29
      %2886 = xla_tuple %2885
      %v2887 = vmax.f32 %v34, %v29
      %2888 = xla_tuple %v2887
      %2889 = xla_tuple %v2887, %v24
      %2890 = xla_tuple %2889
      %v2891 = vmax.f32 %v2887, %v24
      %2892 = xla_tuple %v2891
      %2893 = xla_tuple %v2891, %v2882
      %2894 = xla_tuple %2893
      %v2895 = vmax.f32 %v2891, %v2882
      %2896 = xla_tuple %v2895
      %s2897 = scalar_lea.vmem [#allocation28], 244
      %v2898 = vpack.c.bf16 0.0, %v2895
      %s2900 = ssub.s32 16, 1
      %2901 = vst [vmem:[%s2897] sm:%s2900] %v2898
      %s2902 = scalar_lea.vmem %s368, 56
      %v2903 = vlaneseq
      %v2904 = vand.u32 %v2903, 127
      %vm2906 = vcmp.lt.s32.totalorder %v2904, 64
      %v2907 = vsel %vm2906, %v1609, %v19
      %s2908 = scalar_lea.vmem %s381, 56
      %s2909 = scalar_lea.vmem %s394, 56
      %2910 = xla_tuple %v34, %v29
      %2911 = xla_tuple %2910
      %v2912 = vmax.f32 %v34, %v29
      %2913 = xla_tuple %v2912
      %2914 = xla_tuple %v2912, %v24
      %2915 = xla_tuple %2914
      %v2916 = vmax.f32 %v2912, %v24
      %2917 = xla_tuple %v2916
      %2918 = xla_tuple %v2916, %v2907
      %2919 = xla_tuple %2918
      %v2920 = vmax.f32 %v2916, %v2907
      %2921 = xla_tuple %v2920
      %s2922 = scalar_lea.vmem [#allocation28], 248
      %v2923 = vpack.c.bf16 0.0, %v2920
      %s2925 = ssub.s32 16, 1
      %2926 = vst [vmem:[%s2922] sm:%s2925] %v2923
      %s2927 = scalar_lea.vmem %s368, 60
      %v2928 = vlaneseq
      %v2929 = vand.u32 %v2928, 127
      %vm2931 = vcmp.lt.s32.totalorder %v2929, 64
      %v2932 = vsel %vm2931, %v1692, %v19
      %s2933 = scalar_lea.vmem %s381, 60
      %s2934 = scalar_lea.vmem %s394, 60
      %2935 = xla_tuple %v34, %v29
      %2936 = xla_tuple %2935
      %v2937 = vmax.f32 %v34, %v29
      %2938 = xla_tuple %v2937
      %2939 = xla_tuple %v2937, %v24
      %2940 = xla_tuple %2939
      %v2941 = vmax.f32 %v2937, %v24
      %2942 = xla_tuple %v2941
      %2943 = xla_tuple %v2941, %v2932
      %2944 = xla_tuple %2943
      %v2945 = vmax.f32 %v2941, %v2932
      %2946 = xla_tuple %v2945
      %s2947 = scalar_lea.vmem [#allocation28], 252
      %v2948 = vpack.c.bf16 0.0, %v2945
      %s2950 = ssub.s32 16, 1
      %2951 = vst [vmem:[%s2947] sm:%s2950] %v2948
      %v2952 = vld [vmem:[%s7] sm:$0x1]
      %s2954 = ssub.s32 2, 1
      %2955 = vst [vmem:[#allocation29] sm:%s2954] %v2952
      %v2956 = vld [vmem:[#allocation27] sm:$0x7]
      %v2957 = vld [vmem:[#allocation28] sm:$0xf]
      %v2958 = vld [vmem:[#allocation28 + $0x4] sm:$0xf]
      %v2959 = vld [vmem:[#allocation28 + $0x8] sm:$0xf]
      %v2960 = vld [vmem:[#allocation28 + $0xc] sm:$0xf]
      %v2961 = vld [vmem:[#allocation28 + $0x10] sm:$0xf]
      %v2962 = vld [vmem:[#allocation28 + $0x14] sm:$0xf]
      %v2963 = vld [vmem:[#allocation28 + $0x18] sm:$0xf]
      %v2964 = vld [vmem:[#allocation28 + $0x1c] sm:$0xf]
      %v2965 = vld [vmem:[#allocation28 + $0x20] sm:$0xf]
      %v2966 = vld [vmem:[#allocation28 + $0x24] sm:$0xf]
      %v2967 = vld [vmem:[#allocation28 + $0x28] sm:$0xf]
      %v2968 = vld [vmem:[#allocation28 + $0x2c] sm:$0xf]
      %v2969 = vld [vmem:[#allocation28 + $0x30] sm:$0xf]
      %v2970 = vld [vmem:[#allocation28 + $0x34] sm:$0xf]
      %v2971 = vld [vmem:[#allocation28 + $0x38] sm:$0xf]
      %v2972 = vld [vmem:[#allocation28 + $0x3c] sm:$0xf]
      %v2973 = vld [vmem:[#allocation27] sm:$0xf]
      %s2974 = scalar_lea.vmem [#allocation28], 64
      %v2975 = vld [vmem:[%s2974] sm:$0xf]
      %v2976 = vld [vmem:[%s2974 + $0x4] sm:$0xf]
      %v2977 = vld [vmem:[%s2974 + $0x8] sm:$0xf]
      %v2978 = vld [vmem:[%s2974 + $0xc] sm:$0xf]
      %v2979 = vld [vmem:[%s2974 + $0x10] sm:$0xf]
      %v2980 = vld [vmem:[%s2974 + $0x14] sm:$0xf]
      %v2981 = vld [vmem:[%s2974 + $0x18] sm:$0xf]
      %v2982 = vld [vmem:[%s2974 + $0x1c] sm:$0xf]
      %v2983 = vld [vmem:[%s2974 + $0x20] sm:$0xf]
      %v2984 = vld [vmem:[%s2974 + $0x24] sm:$0xf]
      %v2985 = vld [vmem:[%s2974 + $0x28] sm:$0xf]
      %v2986 = vld [vmem:[%s2974 + $0x2c] sm:$0xf]
      %v2987 = vld [vmem:[%s2974 + $0x30] sm:$0xf]
      %v2988 = vld [vmem:[%s2974 + $0x34] sm:$0xf]
      %v2989 = vld [vmem:[%s2974 + $0x38] sm:$0xf]
      %v2990 = vld [vmem:[%s2974 + $0x3c] sm:$0xf]
      %v2992 = vunpack.c.l.b16 %v2973
      %v2993 = vpack.c.b16 %v2992, %v2992
      %v2995 = vshrl.u32 %v2993, 16
      %v2997 = vshll.u32 %v2993, 16
      %v2999 = vrot.slane %v2997, 1
      %v3000 = vor.u32 %v2995, %v2999
      %v3018 = vunpack.c.l.b16 %v2975
      %v3019 = vunpack.c.l.b16 %v2976
      %v3020 = vunpack.c.l.b16 %v2977
      %v3021 = vunpack.c.l.b16 %v2978
      %v3022 = vunpack.c.l.b16 %v2979
      %v3023 = vunpack.c.l.b16 %v2980
      %v3024 = vunpack.c.l.b16 %v2981
      %v3025 = vunpack.c.l.b16 %v2982
      %v3026 = vunpack.c.l.b16 %v2983
      %v3027 = vunpack.c.l.b16 %v2984
      %v3028 = vunpack.c.l.b16 %v2985
      %v3029 = vunpack.c.l.b16 %v2986
      %v3030 = vunpack.c.l.b16 %v2987
      %v3031 = vunpack.c.l.b16 %v2988
      %v3032 = vunpack.c.l.b16 %v2989
      %v3033 = vunpack.c.l.b16 %v2990
      %v3034 = vpack.c.b16 %v3019, %v3018
      %v3035 = vpack.c.b16 %v3021, %v3020
      %v3036 = vpack.c.b16 %v3023, %v3022
      %v3037 = vpack.c.b16 %v3025, %v3024
      %v3038 = vpack.c.b16 %v3027, %v3026
      %v3039 = vpack.c.b16 %v3029, %v3028
      %v3040 = vpack.c.b16 %v3031, %v3030
      %v3041 = vpack.c.b16 %v3033, %v3032
      %3050 = vmatpush.bf16.msra.mxu0 %v3041
      %3051 = vmatpush.bf16.msra.mxu0 %v3040
      %3052 = vmatpush.bf16.msra.mxu0 %v3039
      %3053 = vmatpush.bf16.msra.mxu0 %v3038
      %3054 = vmatpush.bf16.msra.mxu0 %v3037
      %3055 = vmatpush.bf16.msra.mxu0 %v3036
      %3056 = vmatpush.bf16.msra.mxu0 %v3035
      %3057 = vmatpush.bf16.msra.mxu0 %v3034
      %3058 = vmatmul.bf16.gmra.mxu0 %v3000
      %v3059 = vpop.f32.mrf.mxu0
      %v3060 = vadd.f32 0.0, %v3059
      %v3061 = vpop.f32.mrf.mxu0
      %3062 = vdwg.mxu0
      %v3079 = vunpack.c.l.b16 %v2957
      %v3080 = vunpack.c.l.b16 %v2958
      %v3081 = vunpack.c.l.b16 %v2959
      %v3082 = vunpack.c.l.b16 %v2960
      %v3083 = vunpack.c.l.b16 %v2961
      %v3084 = vunpack.c.l.b16 %v2962
      %v3085 = vunpack.c.l.b16 %v2963
      %v3086 = vunpack.c.l.b16 %v2964
      %v3087 = vunpack.c.l.b16 %v2965
      %v3088 = vunpack.c.l.b16 %v2966
      %v3089 = vunpack.c.l.b16 %v2967
      %v3090 = vunpack.c.l.b16 %v2968
      %v3091 = vunpack.c.l.b16 %v2969
      %v3092 = vunpack.c.l.b16 %v2970
      %v3093 = vunpack.c.l.b16 %v2971
      %v3094 = vunpack.c.l.b16 %v2972
      %v3095 = vpack.c.b16 %v3080, %v3079
      %v3096 = vpack.c.b16 %v3082, %v3081
      %v3097 = vpack.c.b16 %v3084, %v3083
      %v3098 = vpack.c.b16 %v3086, %v3085
      %v3099 = vpack.c.b16 %v3088, %v3087
      %v3100 = vpack.c.b16 %v3090, %v3089
      %v3101 = vpack.c.b16 %v3092, %v3091
      %v3102 = vpack.c.b16 %v3094, %v3093
      %3111 = vmatpush.bf16.msra.mxu0 %v3102
      %3112 = vmatpush.bf16.msra.mxu0 %v3101
      %3113 = vmatpush.bf16.msra.mxu0 %v3100
      %3114 = vmatpush.bf16.msra.mxu0 %v3099
      %3115 = vmatpush.bf16.msra.mxu0 %v3098
      %3116 = vmatpush.bf16.msra.mxu0 %v3097
      %3117 = vmatpush.bf16.msra.mxu0 %v3096
      %3118 = vmatpush.bf16.msra.mxu0 %v3095
      %3119 = vmatmul.bf16.gmra.mxu0 %v2956
      %v3120 = vpop.f32.mrf.mxu0
      %v3121 = vadd.f32 %v3060, %v3120
      %v3122 = vpop.f32.mrf.mxu0
      %3123 = vdwg.mxu0
      %v3124 = vld [vmem:[#allocation27] sm:$0xe]
      %v3125 = vld [vmem:[#allocation27 + $0x4] sm:$0x1]
      %s3126 = scalar_lea.vmem [#allocation28], 128
      %v3127 = vld [vmem:[%s3126] sm:$0xf]
      %v3128 = vld [vmem:[%s3126 + $0x4] sm:$0xf]
      %v3129 = vld [vmem:[%s3126 + $0x8] sm:$0xf]
      %v3130 = vld [vmem:[%s3126 + $0xc] sm:$0xf]
      %v3131 = vld [vmem:[%s3126 + $0x10] sm:$0xf]
      %v3132 = vld [vmem:[%s3126 + $0x14] sm:$0xf]
      %v3133 = vld [vmem:[%s3126 + $0x18] sm:$0xf]
      %v3134 = vld [vmem:[%s3126 + $0x1c] sm:$0xf]
      %v3135 = vld [vmem:[%s3126 + $0x20] sm:$0xf]
      %v3136 = vld [vmem:[%s3126 + $0x24] sm:$0xf]
      %v3137 = vld [vmem:[%s3126 + $0x28] sm:$0xf]
      %v3138 = vld [vmem:[%s3126 + $0x2c] sm:$0xf]
      %v3139 = vld [vmem:[%s3126 + $0x30] sm:$0xf]
      %v3140 = vld [vmem:[%s3126 + $0x34] sm:$0xf]
      %v3141 = vld [vmem:[%s3126 + $0x38] sm:$0xf]
      %v3142 = vld [vmem:[%s3126 + $0x3c] sm:$0xf]
      %v3143 = vld [vmem:[#allocation27] sm:$0xc]
      %s3144 = scalar_lea.vmem [#allocation28], 192
      %v3145 = vld [vmem:[%s3144] sm:$0xf]
      %v3146 = vld [vmem:[%s3144 + $0x4] sm:$0xf]
      %v3147 = vld [vmem:[%s3144 + $0x8] sm:$0xf]
      %v3148 = vld [vmem:[%s3144 + $0xc] sm:$0xf]
      %v3149 = vld [vmem:[%s3144 + $0x10] sm:$0xf]
      %v3150 = vld [vmem:[%s3144 + $0x14] sm:$0xf]
      %v3151 = vld [vmem:[%s3144 + $0x18] sm:$0xf]
      %v3152 = vld [vmem:[%s3144 + $0x1c] sm:$0xf]
      %v3153 = vld [vmem:[%s3144 + $0x20] sm:$0xf]
      %v3154 = vld [vmem:[%s3144 + $0x24] sm:$0xf]
      %v3155 = vld [vmem:[%s3144 + $0x28] sm:$0xf]
      %v3156 = vld [vmem:[%s3144 + $0x2c] sm:$0xf]
      %v3157 = vld [vmem:[%s3144 + $0x30] sm:$0xf]
      %v3158 = vld [vmem:[%s3144 + $0x34] sm:$0xf]
      %v3159 = vld [vmem:[%s3144 + $0x38] sm:$0xf]
      %v3160 = vld [vmem:[%s3144 + $0x3c] sm:$0xf]
      %v3163 = vunpack.c.l.b16 %v3143
      %v3164 = vunpack.c.l.b16 %v3125
      %v3165 = vpack.c.b16 %v3164, %v3163
      %v3166 = vrot.slane %v3165, 2
      %v3184 = vunpack.c.l.b16 %v3145
      %v3185 = vunpack.c.l.b16 %v3146
      %v3186 = vunpack.c.l.b16 %v3147
      %v3187 = vunpack.c.l.b16 %v3148
      %v3188 = vunpack.c.l.b16 %v3149
      %v3189 = vunpack.c.l.b16 %v3150
      %v3190 = vunpack.c.l.b16 %v3151
      %v3191 = vunpack.c.l.b16 %v3152
      %v3192 = vunpack.c.l.b16 %v3153
      %v3193 = vunpack.c.l.b16 %v3154
      %v3194 = vunpack.c.l.b16 %v3155
      %v3195 = vunpack.c.l.b16 %v3156
      %v3196 = vunpack.c.l.b16 %v3157
      %v3197 = vunpack.c.l.b16 %v3158
      %v3198 = vunpack.c.l.b16 %v3159
      %v3199 = vunpack.c.l.b16 %v3160
      %v3200 = vpack.c.b16 %v3185, %v3184
      %v3201 = vpack.c.b16 %v3187, %v3186
      %v3202 = vpack.c.b16 %v3189, %v3188
      %v3203 = vpack.c.b16 %v3191, %v3190
      %v3204 = vpack.c.b16 %v3193, %v3192
      %v3205 = vpack.c.b16 %v3195, %v3194
      %v3206 = vpack.c.b16 %v3197, %v3196
      %v3207 = vpack.c.b16 %v3199, %v3198
      %3216 = vmatpush.bf16.msra.mxu0 %v3207
      %3217 = vmatpush.bf16.msra.mxu0 %v3206
      %3218 = vmatpush.bf16.msra.mxu0 %v3205
      %3219 = vmatpush.bf16.msra.mxu0 %v3204
      %3220 = vmatpush.bf16.msra.mxu0 %v3203
      %3221 = vmatpush.bf16.msra.mxu0 %v3202
      %3222 = vmatpush.bf16.msra.mxu0 %v3201
      %3223 = vmatpush.bf16.msra.mxu0 %v3200
      %3224 = vmatmul.bf16.gmra.mxu0 %v3166
      %v3225 = vpop.f32.mrf.mxu0
      %v3226 = vadd.f32 0.0, %v3225
      %v3227 = vpop.f32.mrf.mxu0
      %3228 = vdwg.mxu0
      %v3230 = vunpack.c.l.b16 %v3124
      %v3231 = vpack.c.b16 %v3164, %v3230
      %v3233 = vshrl.u32 %v3231, 16
      %v3235 = vrot.slane %v3233, 1
      %v3236 = vshll.u32 %v3231, 16
      %v3238 = vrot.slane %v3236, 2
      %v3239 = vor.u32 %v3235, %v3238
      %v3257 = vunpack.c.l.b16 %v3127
      %v3258 = vunpack.c.l.b16 %v3128
      %v3259 = vunpack.c.l.b16 %v3129
      %v3260 = vunpack.c.l.b16 %v3130
      %v3261 = vunpack.c.l.b16 %v3131
      %v3262 = vunpack.c.l.b16 %v3132
      %v3263 = vunpack.c.l.b16 %v3133
      %v3264 = vunpack.c.l.b16 %v3134
      %v3265 = vunpack.c.l.b16 %v3135
      %v3266 = vunpack.c.l.b16 %v3136
      %v3267 = vunpack.c.l.b16 %v3137
      %v3268 = vunpack.c.l.b16 %v3138
      %v3269 = vunpack.c.l.b16 %v3139
      %v3270 = vunpack.c.l.b16 %v3140
      %v3271 = vunpack.c.l.b16 %v3141
      %v3272 = vunpack.c.l.b16 %v3142
      %v3273 = vpack.c.b16 %v3258, %v3257
      %v3274 = vpack.c.b16 %v3260, %v3259
      %v3275 = vpack.c.b16 %v3262, %v3261
      %v3276 = vpack.c.b16 %v3264, %v3263
      %v3277 = vpack.c.b16 %v3266, %v3265
      %v3278 = vpack.c.b16 %v3268, %v3267
      %v3279 = vpack.c.b16 %v3270, %v3269
      %v3280 = vpack.c.b16 %v3272, %v3271
      %3289 = vmatpush.bf16.msra.mxu0 %v3280
      %3290 = vmatpush.bf16.msra.mxu0 %v3279
      %3291 = vmatpush.bf16.msra.mxu0 %v3278
      %3292 = vmatpush.bf16.msra.mxu0 %v3277
      %3293 = vmatpush.bf16.msra.mxu0 %v3276
      %3294 = vmatpush.bf16.msra.mxu0 %v3275
      %3295 = vmatpush.bf16.msra.mxu0 %v3274
      %3296 = vmatpush.bf16.msra.mxu0 %v3273
      %3297 = vmatmul.bf16.gmra.mxu0 %v3239
      %v3298 = vpop.f32.mrf.mxu0
      %v3299 = vadd.f32 %v3226, %v3298
      %v3300 = vpop.f32.mrf.mxu0
      %3301 = vdwg.mxu0
      %v3302 = vadd.f32 %v3121, %v3299
      %v3303 = vld [vmem:[#allocation29] sm:$0x1]
      %v3305 = vperm.slane %v3303, 0
      %v3307 = vadd.f32 %v3302, %v3305
      %v3308 = vmax.f32 %v3307, 0.0
      %v3309 = vpack.c.bf16 %v3308, %v3308
      %vm3310 = vcmask 518144
      %3311 = vst.msk [vmem:[%s402] sm:$0x7] %vm3310, %v3309
      %p3312 = scmp.lt.s32.totalorder %s44, 1
      %s3313 = scalar_select %p3312, %s44, 1
      %s3314 = smul.addr %s3313, 4
      %s3315 = scalar_lea.vmem %s8, %s3314
      // Predicated region
      $region45: #{baseline_forward.12} parent=43 // pred_check
        %p3316 = pneg %p214
      $region46: #{baseline_forward.12} parent=43 // pred_check_branch
        %3318 = sbr.rel (%p3316) target = $region48
      $region47: #{baseline_forward.12} parent=43 // pred_region
        _
      $region48: #{baseline_forward.12} parent=43 // pred_fallthru
        _
    $region44: #{baseline_forward.12} parent=5 // pred_fallthru
      _
    %p3319 = scmp.le.s32.totalorder 2, %s39
    // Predicated region
    $region49: #{baseline_forward.12} parent=5 // pred_check
      %p3320 = pneg %p3319
    $region50: #{baseline_forward.12} parent=5 // pred_check_branch
      %3322 = sbr.rel (%p3320) target = $region52
    $region51: #{baseline_forward.12} parent=5 // pred_region
      %s3323 = ssub.s32 %s39, 2
      // Predicated region
      $region53: #{baseline_forward.12} parent=51 // pred_check
        %p3324 = pneg %p220
      $region54: #{baseline_forward.12} parent=51 // pred_check_branch
        %3326 = sbr.rel (%p3324) target = $region56
      $region55: #{baseline_forward.12} parent=51 // pred_region
        %p3327 = scmp.lt.s32.totalorder %s45, 1
        %s3328 = scalar_select %p3327, %s45, 1
        %s3329 = smul.addr %s3328, 4
        %s3330 = scalar_lea.vmem %s8, %s3329
      $region56: #{baseline_forward.12} parent=51 // pred_fallthru
        _
    $region52: #{baseline_forward.12} parent=5 // pred_fallthru
      _
  $region6: #{baseline_forward.12} parent=0 // loop_footer
    %s43 = sadd.s32 1, %s39
  $region7: #{baseline_forward.12} parent=0 // loop_footer_branch
    %38 = sbr.rel target = $region3
  $region8: #{baseline_forward.12} parent=0 // loop_exit
    _

// kernel: tile.24
$region0: #{tile.24}
  %s0 = inlined_call_operand.vmem [shape: f32[4,16], index: 0, kind: input, shape index: {}]
  %s1 = inlined_call_operand.vmem [shape: f32[1,64], index: 1, kind: output, shape index: {}]
  $region1: #{tile.24} parent=0
    #allocation0 [shape = 'u8[4096]{0}', space=vmem, size = 0x1000, scoped, tag = 'scoped mem for output reshape']
    #allocation1 [shape = 'u8[4096]{0}', space=vmem, size = 0x1000, scoped, tag = 'scoped mem for input reshape']
    %s3 = ssub.s32 16, 1
    %v4 = vld [vmem:[%s0] sm:%s3]
    %5 = vst [vmem:[#allocation1] sm:%s3] %v4
    %v6 = vld [vmem:[#allocation1] sm:$0x1]
    %vm7 = vcmask 130048
    %8 = vst.msk [vmem:[#allocation0] sm:$0x1] %vm7, %v6
    %s9 = scalar_lea.vmem [#allocation1], 3
    %v10 = vld [vmem:[%s9] sm:$0x1]
    %11 = vrot.lane.b32.xlu0 %v10, 48
    %v12 = vpop.permute.xlu0 %11
    %vm13 = vcmask 523648
    %14 = vst.msk [vmem:[#allocation0] sm:$0x1] %vm13, %v12
    %s15 = scalar_lea.vmem [#allocation1], 2
    %v16 = vld [vmem:[%s15] sm:$0x1]
    %17 = vrot.lane.b32.xlu0 %v16, 32
    %v18 = vpop.permute.xlu0 %17
    %vm19 = vcmask 392448
    %20 = vst.msk [vmem:[#allocation0] sm:$0x1] %vm19, %v18
    %s21 = scalar_lea.vmem [#allocation1], 1
    %v22 = vld [vmem:[%s21] sm:$0x1]
    %23 = vrot.lane.b32.xlu0 %v22, 16
    %v24 = vpop.permute.xlu0 %23
    %vm25 = vcmask 261248
    %26 = vst.msk [vmem:[#allocation0] sm:$0x1] %vm25, %v24
    %s28 = ssub.s32 2, 1
    %v29 = vld [vmem:[#allocation0] sm:%s28]
    %s31 = ssub.s32 2, 1
    %32 = vst [vmem:[%s1] sm:%s31] %v29

// kernel: baseline_forward.15
$region0: #{baseline_forward.15}
  #allocation0 [shape = 'u32[]', space=smem, size = 0x4, offset = 0x4, fixed_abs, tag = 'smem constant byte address 0x4 - core index']
  #allocation1 [shape = 'u32[72,128]{1,0:T(1,128)}', space=vmem, size = 0x9000, scoped, tag = 'internal scratch']
  #allocation2 [shape = 'u32[2048]{0}', space=vmem, size = 0x2000, scoped, tag = 'scoped memory for baseline_forward.15']
  #allocation3 [shape = 'u32[2048]{0}', space=vmem, size = 0x2000, scoped, tag = 'scoped memory for baseline_forward.15']
  #allocation4 [shape = 'u32[2048]{0}', space=vmem, size = 0x2000, scoped, tag = 'scoped memory for baseline_forward.15']
  #allocation5 [shape = 'u32[2048]{0}', space=vmem, size = 0x2000, scoped, tag = 'scoped memory for baseline_forward.15']
  #allocation6 [shape = 'u32[2048]{0}', space=vmem, size = 0x2000, scoped, tag = 'scoped memory for baseline_forward.15']
  #allocation7 [shape = 'u32[2048]{0}', space=vmem, size = 0x2000, scoped, tag = 'scoped memory for baseline_forward.15']
  #allocation8 [shape = 'u32[2048]{0}', space=vmem, size = 0x2000, scoped, tag = 'scoped memory for baseline_forward.15']
  #allocation9 [shape = 'u32[2048]{0}', space=vmem, size = 0x2000, scoped, tag = 'scoped memory for baseline_forward.15']
  #allocation10 [shape = 'u32[2048]{0}', space=vmem, size = 0x2000, scoped, tag = 'scoped memory for baseline_forward.15']
  #allocation11 [shape = 'u32[2048]{0}', space=vmem, size = 0x2000, scoped, tag = 'scoped memory for baseline_forward.15']
  #allocation12 [shape = 'u32[2048]{0}', space=vmem, size = 0x2000, scoped, tag = 'scoped memory for baseline_forward.15']
  #allocation13 [shape = 'u32[2048]{0}', space=vmem, size = 0x2000, scoped, tag = 'scoped memory for baseline_forward.15']
  #allocation14 [shape = 'u32[2048]{0}', space=vmem, size = 0x2000, scoped, tag = 'scoped memory for baseline_forward.15']
  #allocation15 [shape = 'u32[2048]{0}', space=vmem, size = 0x2000, scoped, tag = 'scoped memory for baseline_forward.15']
  #allocation16 [shape = 'u32[2048]{0}', space=vmem, size = 0x2000, scoped, tag = 'scoped memory for baseline_forward.15']
  #allocation17 [shape = 'u32[2048]{0}', space=vmem, size = 0x2000, scoped, tag = 'scoped memory for baseline_forward.15']
  #allocation18 [shape = 'u32[2048]{0}', space=vmem, size = 0x2000, scoped, tag = 'scoped memory for baseline_forward.15']
  #allocation19 [shape = 'u32[2048]{0}', space=vmem, size = 0x2000, scoped, tag = 'scoped memory for baseline_forward.15']
  #allocation20 [shape = 'u32[2048]{0}', space=vmem, size = 0x2000, scoped, tag = 'scoped memory for baseline_forward.15']
  #allocation21 [shape = 'u32[2048]{0}', space=vmem, size = 0x2000, scoped, tag = 'scoped memory for baseline_forward.15']
  #allocation22 [shape = 'u32[2048]{0}', space=vmem, size = 0x2000, scoped, tag = 'scoped memory for baseline_forward.15']
  #allocation23 [shape = 'u32[2048]{0}', space=vmem, size = 0x2000, scoped, tag = 'scoped memory for baseline_forward.15']
  #allocation24 [shape = 'u32[2048]{0}', space=vmem, size = 0x2000, scoped, tag = 'scoped memory for baseline_forward.15']
  #allocation25 [shape = 'u32[2048]{0}', space=vmem, size = 0x2000, scoped, tag = 'scoped memory for baseline_forward.15']
  #allocation26 [shape = 'u32[2048]{0}', space=vmem, size = 0x2000, scoped, tag = 'scoped memory for baseline_forward.15']
  %s0 = inlined_call_operand.vmem [shape: f32[1,128], index: 0, kind: input, shape index: {}]
  %s1 = inlined_call_operand.vmem [shape: bf16[1,64,128], index: 1, kind: input, shape index: {}]
  %s2 = inlined_call_operand.<no memory space> [shape: bf16[], index: 2, kind: input, shape index: {}]
  %s3 = inlined_call_operand.vmem [shape: bf16[1,64,128], index: 3, kind: input, shape index: {}]
  %s4 = inlined_call_operand.vmem [shape: bf16[1,64,128], index: 4, kind: input, shape index: {}]
  %s5 = inlined_call_operand.vmem [shape: bf16[1,64,128], index: 5, kind: input, shape index: {}]
  %s6 = inlined_call_operand.vmem [shape: bf16[2,16,64], index: 6, kind: input, shape index: {}]
  %s7 = inlined_call_operand.<no memory space> [shape: bf16[], index: 7, kind: input, shape index: {}]
  %s8 = inlined_call_operand.vmem [shape: bf16[2,12,128], index: 8, kind: output, shape index: {}]
  %s9 = sld [smem:[#allocation0]]
  $region57: #{baseline_forward.15} parent=0
    _
  %s11 = ssub.s32 1, %s9
  %s12 = scalar_select 0, %s11, %s9
  %v13 = vstv %s7
  %v14 = vunpack.i.l.bf16 %v13
  %v16 = vunpack.i.h.bf16 %v13
  %v18 = vstv %s2
  %v19 = vunpack.i.l.bf16 %v18
  %v21 = vunpack.i.h.bf16 %v18
  %v23 = vstv %s2
  %v24 = vunpack.i.l.bf16 %v23
  %v26 = vunpack.i.h.bf16 %v23
  %v28 = vstv %s2
  %v29 = vunpack.i.l.bf16 %v28
  %v31 = vunpack.i.h.bf16 %v28
  %v33 = vstv %s2
  %v34 = vunpack.i.l.bf16 %v33
  %v36 = vunpack.i.h.bf16 %v33
  loop: start=0, step=1, limit=4
  $region2: #{baseline_forward.15} parent=0 // loop_pre_header
    _
  $region3: #{baseline_forward.15} parent=0 // loop_header
    %s39 = sphi 0, %s43
    %p40 = scmp.ge.s32.totalorder %s39, 4
    %s49 = sphi 0, %s51
    %s52 = sphi 0, %s49
    %s53 = sphi 0, %s52
    %s69 = sphi 0, %s53
    %s77 = sphi 0, %s79
    %s80 = sphi 0, %s77
    %s81 = sphi 0, %s80
    %s97 = sphi 0, %s81
    %s105 = sphi 0, %s107
    %s108 = sphi 0, %s105
    %s109 = sphi 0, %s108
    %s125 = sphi 0, %s109
    %s133 = sphi 0, %s135
    %s136 = sphi 0, %s133
    %s137 = sphi 0, %s136
    %s153 = sphi 0, %s137
    %s157 = sphi 0, %s157
    %s159 = sphi 0, %s157
    %s160 = sphi 0, %s159
    %s174 = sphi 0, %s160
    %s178 = sphi 0, %s178
    %s180 = sphi 0, %s178
    %s181 = sphi 0, %s180
    %s195 = sphi 0, %s181
    %s201 = sphi 0, %s203
    %s204 = sphi 0, %s201
    %s205 = sphi 0, %s204
    %s221 = sphi 0, %s205
  $region4: #{baseline_forward.15} parent=0 // loop_header_branch
    %42 = sbr.rel (%p40) target = $region8
  $region5: #{baseline_forward.15} parent=0 // loop_body
    %s44 = ssub.s32 %s39, 1
    %s45 = ssub.s32 %s39, 2
    %s46 = sadd.s32 %s39, 1
    %s47 = ssub.s32 %s39, %s46
    %p48 = scmp.eq.s32.totalorder %s47, 0
    %s50 = sadd.s32 %s49, 1
    %s51 = scalar_select %p48, %s49, %s50
    %p54 = pneg %p48
    %p55 = scmp.eq.s32.totalorder %s39, 1
    %p56 = por %p54, %p55
    %p57 = scmp.ne.s32.totalorder %s49, %s52
    %p58 = scmp.eq.s32.totalorder %s39, 0
    %p59 = por %p57, %p58
    %p60 = scmp.ne.s32.totalorder %s49, %s52
    %p61 = scmp.eq.s32.totalorder %s44, 1
    %p62 = por %p60, %p61
    %p63 = scmp.ne.s32.totalorder %s52, %s53
    %p64 = scmp.eq.s32.totalorder %s44, 0
    %p65 = por %p63, %p64
    %p66 = scmp.ne.s32.totalorder %s52, %s53
    %p67 = scmp.eq.s32.totalorder %s45, 1
    %p68 = por %p66, %p67
    %p70 = scmp.ne.s32.totalorder %s53, %s69
    %p71 = scmp.eq.s32.totalorder %s45, 0
    %p72 = por %p70, %p71
    %s75 = ssub.s32 0, 0
    %p76 = scmp.eq.s32.totalorder %s75, 0
    %s78 = sadd.s32 %s77, 1
    %s79 = scalar_select %p76, %s77, %s78
    %p82 = pneg %p76
    %p83 = scmp.eq.s32.totalorder %s39, 1
    %p84 = por %p82, %p83
    %p85 = scmp.ne.s32.totalorder %s77, %s80
    %p86 = scmp.eq.s32.totalorder %s39, 0
    %p87 = por %p85, %p86
    %p88 = scmp.ne.s32.totalorder %s77, %s80
    %p89 = scmp.eq.s32.totalorder %s44, 1
    %p90 = por %p88, %p89
    %p91 = scmp.ne.s32.totalorder %s80, %s81
    %p92 = scmp.eq.s32.totalorder %s44, 0
    %p93 = por %p91, %p92
    %p94 = scmp.ne.s32.totalorder %s80, %s81
    %p95 = scmp.eq.s32.totalorder %s45, 1
    %p96 = por %p94, %p95
    %p98 = scmp.ne.s32.totalorder %s81, %s97
    %p99 = scmp.eq.s32.totalorder %s45, 0
    %p100 = por %p98, %p99
    %s103 = ssub.s32 0, 0
    %p104 = scmp.eq.s32.totalorder %s103, 0
    %s106 = sadd.s32 %s105, 1
    %s107 = scalar_select %p104, %s105, %s106
    %p110 = pneg %p104
    %p111 = scmp.eq.s32.totalorder %s39, 1
    %p112 = por %p110, %p111
    %p113 = scmp.ne.s32.totalorder %s105, %s108
    %p114 = scmp.eq.s32.totalorder %s39, 0
    %p115 = por %p113, %p114
    %p116 = scmp.ne.s32.totalorder %s105, %s108
    %p117 = scmp.eq.s32.totalorder %s44, 1
    %p118 = por %p116, %p117
    %p119 = scmp.ne.s32.totalorder %s108, %s109
    %p120 = scmp.eq.s32.totalorder %s44, 0
    %p121 = por %p119, %p120
    %p122 = scmp.ne.s32.totalorder %s108, %s109
    %p123 = scmp.eq.s32.totalorder %s45, 1
    %p124 = por %p122, %p123
    %p126 = scmp.ne.s32.totalorder %s109, %s125
    %p127 = scmp.eq.s32.totalorder %s45, 0
    %p128 = por %p126, %p127
    %s131 = ssub.s32 0, 0
    %p132 = scmp.eq.s32.totalorder %s131, 0
    %s134 = sadd.s32 %s133, 1
    %s135 = scalar_select %p132, %s133, %s134
    %p138 = pneg %p132
    %p139 = scmp.eq.s32.totalorder %s39, 1
    %p140 = por %p138, %p139
    %p141 = scmp.ne.s32.totalorder %s133, %s136
    %p142 = scmp.eq.s32.totalorder %s39, 0
    %p143 = por %p141, %p142
    %p144 = scmp.ne.s32.totalorder %s133, %s136
    %p145 = scmp.eq.s32.totalorder %s44, 1
    %p146 = por %p144, %p145
    %p147 = scmp.ne.s32.totalorder %s136, %s137
    %p148 = scmp.eq.s32.totalorder %s44, 0
    %p149 = por %p147, %p148
    %p150 = scmp.ne.s32.totalorder %s136, %s137
    %p151 = scmp.eq.s32.totalorder %s45, 1
    %p152 = por %p150, %p151
    %p154 = scmp.ne.s32.totalorder %s137, %s153
    %p155 = scmp.eq.s32.totalorder %s45, 0
    %p156 = por %p154, %p155
    %s158 = sadd.s32 %s157, 1
    %p161 = scmp.eq.s32.totalorder %s39, 1
    %p162 = scmp.ne.s32.totalorder %s157, %s159
    %p163 = scmp.eq.s32.totalorder %s39, 0
    %p164 = por %p162, %p163
    %p165 = scmp.ne.s32.totalorder %s157, %s159
    %p166 = scmp.eq.s32.totalorder %s44, 1
    %p167 = por %p165, %p166
    %p168 = scmp.ne.s32.totalorder %s159, %s160
    %p169 = scmp.eq.s32.totalorder %s44, 0
    %p170 = por %p168, %p169
    %p171 = scmp.ne.s32.totalorder %s159, %s160
    %p172 = scmp.eq.s32.totalorder %s45, 1
    %p173 = por %p171, %p172
    %p175 = scmp.ne.s32.totalorder %s160, %s174
    %p176 = scmp.eq.s32.totalorder %s45, 0
    %p177 = por %p175, %p176
    %s179 = sadd.s32 %s178, 1
    %p182 = scmp.eq.s32.totalorder %s39, 1
    %p183 = scmp.ne.s32.totalorder %s178, %s180
    %p184 = scmp.eq.s32.totalorder %s39, 0
    %p185 = por %p183, %p184
    %p186 = scmp.ne.s32.totalorder %s178, %s180
    %p187 = scmp.eq.s32.totalorder %s44, 1
    %p188 = por %p186, %p187
    %p189 = scmp.ne.s32.totalorder %s180, %s181
    %p190 = scmp.eq.s32.totalorder %s44, 0
    %p191 = por %p189, %p190
    %p192 = scmp.ne.s32.totalorder %s180, %s181
    %p193 = scmp.eq.s32.totalorder %s45, 1
    %p194 = por %p192, %p193
    %p196 = scmp.ne.s32.totalorder %s181, %s195
    %p197 = scmp.eq.s32.totalorder %s45, 0
    %p198 = por %p196, %p197
    %s199 = ssub.s32 %s39, %s46
    %p200 = scmp.eq.s32.totalorder %s199, 0
    %s202 = sadd.s32 %s201, 1
    %s203 = scalar_select %p200, %s201, %s202
    %p206 = pneg %p200
    %p207 = scmp.eq.s32.totalorder %s39, 1
    %p208 = por %p206, %p207
    %p209 = scmp.ne.s32.totalorder %s201, %s204
    %p210 = scmp.eq.s32.totalorder %s39, 0
    %p211 = por %p209, %p210
    %p212 = scmp.ne.s32.totalorder %s201, %s204
    %p213 = scmp.eq.s32.totalorder %s44, 1
    %p214 = por %p212, %p213
    %p215 = scmp.ne.s32.totalorder %s204, %s205
    %p216 = scmp.eq.s32.totalorder %s44, 0
    %p217 = por %p215, %p216
    %p218 = scmp.ne.s32.totalorder %s204, %s205
    %p219 = scmp.eq.s32.totalorder %s45, 1
    %p220 = por %p218, %p219
    %p222 = scmp.ne.s32.totalorder %s205, %s221
    %p223 = scmp.eq.s32.totalorder %s45, 0
    %p224 = por %p222, %p223
    %p225 = scmp.le.s32.totalorder 1, %s39
    %p226 = scmp.lt.s32.totalorder %s39, 3
    %p227 = pnand %p225, %p226
    %p228 = pneg %p227
    // Predicated region
    $region9: #{baseline_forward.15} parent=5 // pred_check
      _
    $region10: #{baseline_forward.15} parent=5 // pred_check_branch
      %230 = sbr.rel (%p227) target = $region12
    $region11: #{baseline_forward.15} parent=5 // pred_region
      %s231 = ssub.s32 %s39, 1
      // Predicated region
      $region13: #{baseline_forward.15} parent=11 // pred_check
        %p232 = pneg %p93
      $region14: #{baseline_forward.15} parent=11 // pred_check_branch
        %234 = sbr.rel (%p232) target = $region16
      $region15: #{baseline_forward.15} parent=11 // pred_region
        %s236 = ssub.s32 1, 0
        %s237 = smul.u32 4, %s236
        %s238 = smul.u32 %s237, 8
        %p239 = scmp.lt.s32.totalorder 0, 0
        %s240 = scalar_select %p239, 0, 0
        %s241 = smul.addr %s240, 8
        %s242 = smul.addr %s241, 4
        %s243 = scalar_lea.vmem %s1, %s242
        %s245 = ssub.s32 1, 0
        %s246 = smul.u32 4, %s245
        %s247 = smul.u32 %s246, 8
      $region16: #{baseline_forward.15} parent=11 // pred_fallthru
        _
      // Predicated region
      $region17: #{baseline_forward.15} parent=11 // pred_check
        %p248 = pneg %p121
      $region18: #{baseline_forward.15} parent=11 // pred_check_branch
        %250 = sbr.rel (%p248) target = $region20
      $region19: #{baseline_forward.15} parent=11 // pred_region
        %s252 = ssub.s32 1, 0
        %s253 = smul.u32 4, %s252
        %s254 = smul.u32 %s253, 8
        %p255 = scmp.lt.s32.totalorder 0, 0
        %s256 = scalar_select %p255, 0, 0
        %s257 = smul.addr %s256, 8
        %s258 = smul.addr %s257, 4
        %s259 = scalar_lea.vmem %s3, %s258
        %s261 = ssub.s32 1, 0
        %s262 = smul.u32 4, %s261
        %s263 = smul.u32 %s262, 8
      $region20: #{baseline_forward.15} parent=11 // pred_fallthru
        _
      // Predicated region
      $region21: #{baseline_forward.15} parent=11 // pred_check
        %p264 = pneg %p149
      $region22: #{baseline_forward.15} parent=11 // pred_check_branch
        %266 = sbr.rel (%p264) target = $region24
      $region23: #{baseline_forward.15} parent=11 // pred_region
        %s268 = ssub.s32 1, 0
        %s269 = smul.u32 4, %s268
        %s270 = smul.u32 %s269, 8
        %p271 = scmp.lt.s32.totalorder 0, 0
        %s272 = scalar_select %p271, 0, 0
        %s273 = smul.addr %s272, 8
        %s274 = smul.addr %s273, 4
        %s275 = scalar_lea.vmem %s4, %s274
        %s277 = ssub.s32 1, 0
        %s278 = smul.u32 4, %s277
        %s279 = smul.u32 %s278, 8
      $region24: #{baseline_forward.15} parent=11 // pred_fallthru
        _
      // Predicated region
      $region25: #{baseline_forward.15} parent=11 // pred_check
        %p280 = pneg %p170
      $region26: #{baseline_forward.15} parent=11 // pred_check_branch
        %282 = sbr.rel (%p280) target = $region28
      $region27: #{baseline_forward.15} parent=11 // pred_region
        _
      $region28: #{baseline_forward.15} parent=11 // pred_fallthru
        _
      // Predicated region
      $region29: #{baseline_forward.15} parent=11 // pred_check
        %p283 = pneg %p191
      $region30: #{baseline_forward.15} parent=11 // pred_check_branch
        %285 = sbr.rel (%p283) target = $region32
      $region31: #{baseline_forward.15} parent=11 // pred_region
        _
      $region32: #{baseline_forward.15} parent=11 // pred_fallthru
        _
    $region12: #{baseline_forward.15} parent=5 // pred_fallthru
      _
    %p286 = scmp.lt.s32.totalorder %s39, 2
    // Predicated region
    $region33: #{baseline_forward.15} parent=5 // pred_check
      %p287 = pneg %p286
    $region34: #{baseline_forward.15} parent=5 // pred_check_branch
      %289 = sbr.rel (%p287) target = $region36
    $region35: #{baseline_forward.15} parent=5 // pred_region
      // Predicated region
      $region37: #{baseline_forward.15} parent=35 // pred_check
        %p290 = pneg %p59
      $region38: #{baseline_forward.15} parent=35 // pred_check_branch
        %292 = sbr.rel (%p290) target = $region40
      $region39: #{baseline_forward.15} parent=35 // pred_region
        %p293 = scmp.lt.s32.totalorder %s39, 1
        %s294 = scalar_select %p293, %s39, 1
        %s295 = smul.addr %s294, 2
        %s296 = smul.addr %s295, 4
        %s297 = scalar_lea.vmem %s6, %s296
      $region40: #{baseline_forward.15} parent=35 // pred_fallthru
        _
    $region36: #{baseline_forward.15} parent=5 // pred_fallthru
      _
    %p298 = scmp.le.s32.totalorder 1, %s39
    %p299 = scmp.lt.s32.totalorder %s39, 3
    %p300 = pnand %p298, %p299
    %p301 = pneg %p300
    // Predicated region
    $region41: #{baseline_forward.15} parent=5 // pred_check
      _
    $region42: #{baseline_forward.15} parent=5 // pred_check_branch
      %303 = sbr.rel (%p300) target = $region44
    $region43: #{baseline_forward.15} parent=5 // pred_region
      #allocation27 [shape = 'u8[6144]{0}', space=vmem, size = 0x1800, dematerialized = true, scoped, tag = 'FusionAdapter Buffer %fusion.62 = bf16[2,24,64]{2,1,0:T(8,128)(2,1)} fusion(%param_6.22, %param_7.8), kind=kLoop, calls=%fused_computation.107.clone, metadata={op_name="jit(baseline_forward)/jit(_pad)/pad" stack_frame_id=75}']
      #allocation28 [shape = 'u8[65536]{0}', space=vmem, size = 0x10000, dematerialized = true, scoped, tag = 'FusionAdapter Buffer %fusion.19 = bf16[4,64,128]{2,1,0:T(8,128)(2,1)} fusion(%param_1.221, %param_2.132, %param_3.118, %param_4.74, %param_5.24), kind=kLoop, calls=%fused_computation.20.clone, metadata={op_name="jit(baseline_forward)/concatenate" stack_frame_id=70}']
      %s304 = ssub.s32 %s39, 1
      %p305 = scmp.lt.s32.totalorder %s44, 1
      %s306 = scalar_select %p305, %s44, 1
      %s307 = smul.addr %s306, 2
      %s308 = smul.addr %s307, 4
      %s309 = scalar_lea.vmem %s6, %s308
      %p310 = pneg %p65
      %p311 = pneg %p62
      %s313 = ssub.s32 1, 0
      %s314 = smul.u32 4, %s313
      %s315 = smul.u32 %s314, 8
      %p316 = scmp.lt.s32.totalorder 0, 0
      %s317 = scalar_select %p316, 0, 0
      %s318 = smul.addr %s317, 8
      %s319 = smul.addr %s318, 4
      %s320 = scalar_lea.vmem %s1, %s319
      %p321 = pneg %p93
      %p322 = pneg %p90
      %s324 = ssub.s32 1, 0
      %s325 = smul.u32 4, %s324
      %s326 = smul.u32 %s325, 8
      %p327 = scmp.lt.s32.totalorder 0, 0
      %s328 = scalar_select %p327, 0, 0
      %s329 = smul.addr %s328, 8
      %s330 = smul.addr %s329, 4
      %s331 = scalar_lea.vmem %s3, %s330
      %p332 = pneg %p121
      %p333 = pneg %p118
      %s335 = ssub.s32 1, 0
      %s336 = smul.u32 4, %s335
      %s337 = smul.u32 %s336, 8
      %p338 = scmp.lt.s32.totalorder 0, 0
      %s339 = scalar_select %p338, 0, 0
      %s340 = smul.addr %s339, 8
      %s341 = smul.addr %s340, 4
      %s342 = scalar_lea.vmem %s4, %s341
      %p343 = pneg %p149
      %p344 = pneg %p146
      %p345 = pneg %p170
      %p346 = pneg %p167
      %p347 = pneg %p191
      %p348 = pneg %p188
      %p349 = pneg %p217
      %p350 = pneg %p214
      %p351 = scmp.lt.s32.totalorder %s44, 1
      %s352 = scalar_select %p351, %s44, 1
      %s353 = smul.addr %s352, 2
      %s354 = smul.addr %s353, 4
      %s355 = scalar_lea.vmem %s8, %s354
      %p356 = scmp.lt.s32.totalorder %s44, 1
      %s357 = scalar_select %p356, %s44, 1
      %s358 = smul.addr %s357, 2
      %s359 = smul.addr %s358, 4
      %s360 = scalar_lea.vmem %s6, %s359
      %s362 = ssub.s32 1, 0
      %s363 = smul.u32 4, %s362
      %s364 = smul.u32 %s363, 8
      %p365 = scmp.lt.s32.totalorder 0, 0
      %s366 = scalar_select %p365, 0, 0
      %s367 = smul.addr %s366, 8
      %s368 = smul.addr %s367, 4
      %s369 = scalar_lea.vmem %s1, %s368
      %s371 = ssub.s32 1, 0
      %s372 = smul.u32 4, %s371
      %s373 = smul.u32 %s372, 8
      %s375 = ssub.s32 1, 0
      %s376 = smul.u32 4, %s375
      %s377 = smul.u32 %s376, 8
      %p378 = scmp.lt.s32.totalorder 0, 0
      %s379 = scalar_select %p378, 0, 0
      %s380 = smul.addr %s379, 8
      %s381 = smul.addr %s380, 4
      %s382 = scalar_lea.vmem %s3, %s381
      %s384 = ssub.s32 1, 0
      %s385 = smul.u32 4, %s384
      %s386 = smul.u32 %s385, 8
      %s388 = ssub.s32 1, 0
      %s389 = smul.u32 4, %s388
      %s390 = smul.u32 %s389, 8
      %p391 = scmp.lt.s32.totalorder 0, 0
      %s392 = scalar_select %p391, 0, 0
      %s393 = smul.addr %s392, 8
      %s394 = smul.addr %s393, 4
      %s395 = scalar_lea.vmem %s4, %s394
      %s397 = ssub.s32 1, 0
      %s398 = smul.u32 4, %s397
      %s399 = smul.u32 %s398, 8
      %p400 = scmp.lt.s32.totalorder %s44, 1
      %s401 = scalar_select %p400, %s44, 1
      %s402 = smul.addr %s401, 2
      %s403 = smul.addr %s402, 4
      %s404 = scalar_lea.vmem %s8, %s403
      %v405 = vld [vmem:[%s360] sm:$0xf]
      %v406 = vunpack.c.l.bf16 %v405
      %v407 = vunpack.c.h.bf16 %v405
      %v408 = vlaneseq
      %v409 = vand.u32 %v408, 127
      %vm411 = vcmp.lt.s32.totalorder %v409, 64
      %v412 = vsel %vm411, %v406, %v14
      %v413 = vpack.c.bf16 0.0, %v412
      %s415 = ssub.s32 16, 1
      %416 = vst [vmem:[#allocation27] sm:%s415] %v413
      %s417 = scalar_lea.vmem %s360, 4
      %s419 = sor.u32 255, 127
      %s420 = sand.u32 %s419, 85
      %s421 = sshrl.u32 %s420, 1
      %s422 = sor.u32 %s420, %s421
      %s423 = sand.u32 51, %s422
      %s424 = sshrl.u32 %s423, 2
      %s425 = sor.u32 %s423, %s424
      %s426 = sand.u32 15, %s425
      %v427 = vld [vmem:[%s417] sm:%s426]
      %v428 = vunpack.c.l.bf16 %v427
      %v429 = vunpack.c.h.bf16 %v427
      %v430 = vlaneseq
      %v431 = vand.u32 %v430, 127
      %vm433 = vcmp.lt.s32.totalorder %v431, 64
      %v434 = vsel %vm433, %v428, %v14
      %s435 = scalar_lea.vmem [#allocation27], 4
      %v436 = vpack.c.bf16 0.0, %v434
      %s438 = ssub.s32 16, 1
      %439 = vst [vmem:[%s435] sm:%s438] %v436
      %s440 = scalar_lea.vmem [#allocation27], 8
      %v441 = vpack.c.bf16 0.0, %v14
      %s443 = ssub.s32 16, 1
      %444 = vst [vmem:[%s440] sm:%s443] %v441
      %s445 = ssub.s32 0, 0
      %p446 = scmp.lt.s32.totalorder %s445, 0
      %s447 = scalar_select %p446, 0, 255
      %s448 = sshrl.u32 %s447, 1
      %s449 = sor.u32 %s447, %s448
      %s450 = sand.u32 %s449, 85
      %s451 = sshrl.u32 %s450, 1
      %s452 = sor.u32 %s450, %s451
      %s453 = sand.u32 51, %s452
      %s454 = sshrl.u32 %s453, 2
      %s455 = sor.u32 %s453, %s454
      %s456 = sand.u32 15, %s455
      %v457 = vld [vmem:[%s369] sm:%s456]
      %v458 = vunpack.c.l.bf16 %v457
      %v459 = vunpack.c.h.bf16 %v457
      %s460 = ssub.s32 0, 0
      %p461 = scmp.lt.s32.totalorder %s460, 0
      %s462 = scalar_select %p461, 0, 255
      %s463 = sshrl.u32 %s462, 1
      %s464 = sor.u32 %s462, %s463
      %s465 = sand.u32 %s464, 85
      %s466 = sshrl.u32 %s465, 1
      %s467 = sor.u32 %s465, %s466
      %s468 = sand.u32 51, %s467
      %s469 = sshrl.u32 %s468, 2
      %s470 = sor.u32 %s468, %s469
      %s471 = sand.u32 15, %s470
      %v472 = vld [vmem:[%s382] sm:%s471]
      %v473 = vunpack.c.l.bf16 %v472
      %v474 = vunpack.c.h.bf16 %v472
      %s475 = ssub.s32 0, 0
      %p476 = scmp.lt.s32.totalorder %s475, 0
      %s477 = scalar_select %p476, 0, 255
      %s478 = sshrl.u32 %s477, 1
      %s479 = sor.u32 %s477, %s478
      %s480 = sand.u32 %s479, 85
      %s481 = sshrl.u32 %s480, 1
      %s482 = sor.u32 %s480, %s481
      %s483 = sand.u32 51, %s482
      %s484 = sshrl.u32 %s483, 2
      %s485 = sor.u32 %s483, %s484
      %s486 = sand.u32 15, %s485
      %v487 = vld [vmem:[%s395] sm:%s486]
      %v488 = vunpack.c.l.bf16 %v487
      %v489 = vunpack.c.h.bf16 %v487
      %s491 = sor.u32 255, 127
      %s492 = sand.u32 %s491, 85
      %s493 = sshrl.u32 %s492, 1
      %s494 = sor.u32 %s492, %s493
      %s495 = sand.u32 51, %s494
      %s496 = sshrl.u32 %s495, 2
      %s497 = sor.u32 %s495, %s496
      %s498 = sand.u32 15, %s497
      %v499 = vld [vmem:[%s5] sm:%s498]
      %v500 = vunpack.c.l.bf16 %v499
      %v501 = vunpack.c.h.bf16 %v499
      %502 = xla_tuple %v500, %v29
      %503 = xla_tuple %502
      %v504 = vmax.f32 %v500, %v29
      %505 = xla_tuple %v504
      %506 = xla_tuple %v504, %v24
      %507 = xla_tuple %506
      %v508 = vmax.f32 %v504, %v24
      %509 = xla_tuple %v508
      %510 = xla_tuple %v508, %v19
      %511 = xla_tuple %510
      %v512 = vmax.f32 %v508, %v19
      %513 = xla_tuple %v512
      %v514 = vpack.c.bf16 0.0, %v512
      %s516 = ssub.s32 16, 1
      %517 = vst [vmem:[#allocation28] sm:%s516] %v514
      %s518 = scalar_lea.vmem %s369, 4
      %s519 = ssub.s32 0, 0
      %p520 = scmp.lt.s32.totalorder %s519, 0
      %s521 = scalar_select %p520, 0, 255
      %s522 = sshrl.u32 %s521, 1
      %s523 = sor.u32 %s521, %s522
      %s524 = sand.u32 %s523, 85
      %s525 = sshrl.u32 %s524, 1
      %s526 = sor.u32 %s524, %s525
      %s527 = sand.u32 51, %s526
      %s528 = sshrl.u32 %s527, 2
      %s529 = sor.u32 %s527, %s528
      %s530 = sand.u32 15, %s529
      %v531 = vld [vmem:[%s518] sm:%s530]
      %v532 = vunpack.c.l.bf16 %v531
      %v533 = vunpack.c.h.bf16 %v531
      %s534 = scalar_lea.vmem %s382, 4
      %s535 = ssub.s32 0, 0
      %p536 = scmp.lt.s32.totalorder %s535, 0
      %s537 = scalar_select %p536, 0, 255
      %s538 = sshrl.u32 %s537, 1
      %s539 = sor.u32 %s537, %s538
      %s540 = sand.u32 %s539, 85
      %s541 = sshrl.u32 %s540, 1
      %s542 = sor.u32 %s540, %s541
      %s543 = sand.u32 51, %s542
      %s544 = sshrl.u32 %s543, 2
      %s545 = sor.u32 %s543, %s544
      %s546 = sand.u32 15, %s545
      %v547 = vld [vmem:[%s534] sm:%s546]
      %v548 = vunpack.c.l.bf16 %v547
      %v549 = vunpack.c.h.bf16 %v547
      %s550 = scalar_lea.vmem %s395, 4
      %s551 = ssub.s32 0, 0
      %p552 = scmp.lt.s32.totalorder %s551, 0
      %s553 = scalar_select %p552, 0, 255
      %s554 = sshrl.u32 %s553, 1
      %s555 = sor.u32 %s553, %s554
      %s556 = sand.u32 %s555, 85
      %s557 = sshrl.u32 %s556, 1
      %s558 = sor.u32 %s556, %s557
      %s559 = sand.u32 51, %s558
      %s560 = sshrl.u32 %s559, 2
      %s561 = sor.u32 %s559, %s560
      %s562 = sand.u32 15, %s561
      %v563 = vld [vmem:[%s550] sm:%s562]
      %v564 = vunpack.c.l.bf16 %v563
      %v565 = vunpack.c.h.bf16 %v563
      %s566 = scalar_lea.vmem %s5, 4
      %s568 = sor.u32 255, 127
      %s569 = sand.u32 %s568, 85
      %s570 = sshrl.u32 %s569, 1
      %s571 = sor.u32 %s569, %s570
      %s572 = sand.u32 51, %s571
      %s573 = sshrl.u32 %s572, 2
      %s574 = sor.u32 %s572, %s573
      %s575 = sand.u32 15, %s574
      %v576 = vld [vmem:[%s566] sm:%s575]
      %v577 = vunpack.c.l.bf16 %v576
      %v578 = vunpack.c.h.bf16 %v576
      %579 = xla_tuple %v577, %v29
      %580 = xla_tuple %579
      %v581 = vmax.f32 %v577, %v29
      %582 = xla_tuple %v581
      %583 = xla_tuple %v581, %v24
      %584 = xla_tuple %583
      %v585 = vmax.f32 %v581, %v24
      %586 = xla_tuple %v585
      %587 = xla_tuple %v585, %v19
      %588 = xla_tuple %587
      %v589 = vmax.f32 %v585, %v19
      %590 = xla_tuple %v589
      %s591 = scalar_lea.vmem [#allocation28], 4
      %v592 = vpack.c.bf16 0.0, %v589
      %s594 = ssub.s32 16, 1
      %595 = vst [vmem:[%s591] sm:%s594] %v592
      %s596 = scalar_lea.vmem %s369, 8
      %s597 = ssub.s32 0, 0
      %p598 = scmp.lt.s32.totalorder %s597, 0
      %s599 = scalar_select %p598, 0, 255
      %s600 = sshrl.u32 %s599, 1
      %s601 = sor.u32 %s599, %s600
      %s602 = sand.u32 %s601, 85
      %s603 = sshrl.u32 %s602, 1
      %s604 = sor.u32 %s602, %s603
      %s605 = sand.u32 51, %s604
      %s606 = sshrl.u32 %s605, 2
      %s607 = sor.u32 %s605, %s606
      %s608 = sand.u32 15, %s607
      %v609 = vld [vmem:[%s596] sm:%s608]
      %v610 = vunpack.c.l.bf16 %v609
      %v611 = vunpack.c.h.bf16 %v609
      %s612 = scalar_lea.vmem %s382, 8
      %s613 = ssub.s32 0, 0
      %p614 = scmp.lt.s32.totalorder %s613, 0
      %s615 = scalar_select %p614, 0, 255
      %s616 = sshrl.u32 %s615, 1
      %s617 = sor.u32 %s615, %s616
      %s618 = sand.u32 %s617, 85
      %s619 = sshrl.u32 %s618, 1
      %s620 = sor.u32 %s618, %s619
      %s621 = sand.u32 51, %s620
      %s622 = sshrl.u32 %s621, 2
      %s623 = sor.u32 %s621, %s622
      %s624 = sand.u32 15, %s623
      %v625 = vld [vmem:[%s612] sm:%s624]
      %v626 = vunpack.c.l.bf16 %v625
      %v627 = vunpack.c.h.bf16 %v625
      %s628 = scalar_lea.vmem %s395, 8
      %s629 = ssub.s32 0, 0
      %p630 = scmp.lt.s32.totalorder %s629, 0
      %s631 = scalar_select %p630, 0, 255
      %s632 = sshrl.u32 %s631, 1
      %s633 = sor.u32 %s631, %s632
      %s634 = sand.u32 %s633, 85
      %s635 = sshrl.u32 %s634, 1
      %s636 = sor.u32 %s634, %s635
      %s637 = sand.u32 51, %s636
      %s638 = sshrl.u32 %s637, 2
      %s639 = sor.u32 %s637, %s638
      %s640 = sand.u32 15, %s639
      %v641 = vld [vmem:[%s628] sm:%s640]
      %v642 = vunpack.c.l.bf16 %v641
      %v643 = vunpack.c.h.bf16 %v641
      %s644 = scalar_lea.vmem %s5, 8
      %s646 = sor.u32 255, 127
      %s647 = sand.u32 %s646, 85
      %s648 = sshrl.u32 %s647, 1
      %s649 = sor.u32 %s647, %s648
      %s650 = sand.u32 51, %s649
      %s651 = sshrl.u32 %s650, 2
      %s652 = sor.u32 %s650, %s651
      %s653 = sand.u32 15, %s652
      %v654 = vld [vmem:[%s644] sm:%s653]
      %v655 = vunpack.c.l.bf16 %v654
      %v656 = vunpack.c.h.bf16 %v654
      %657 = xla_tuple %v655, %v29
      %658 = xla_tuple %657
      %v659 = vmax.f32 %v655, %v29
      %660 = xla_tuple %v659
      %661 = xla_tuple %v659, %v24
      %662 = xla_tuple %661
      %v663 = vmax.f32 %v659, %v24
      %664 = xla_tuple %v663
      %665 = xla_tuple %v663, %v19
      %666 = xla_tuple %665
      %v667 = vmax.f32 %v663, %v19
      %668 = xla_tuple %v667
      %s669 = scalar_lea.vmem [#allocation28], 8
      %v670 = vpack.c.bf16 0.0, %v667
      %s672 = ssub.s32 16, 1
      %673 = vst [vmem:[%s669] sm:%s672] %v670
      %s674 = scalar_lea.vmem %s369, 12
      %s675 = ssub.s32 0, 0
      %p676 = scmp.lt.s32.totalorder %s675, 0
      %s677 = scalar_select %p676, 0, 255
      %s678 = sshrl.u32 %s677, 1
      %s679 = sor.u32 %s677, %s678
      %s680 = sand.u32 %s679, 85
      %s681 = sshrl.u32 %s680, 1
      %s682 = sor.u32 %s680, %s681
      %s683 = sand.u32 51, %s682
      %s684 = sshrl.u32 %s683, 2
      %s685 = sor.u32 %s683, %s684
      %s686 = sand.u32 15, %s685
      %v687 = vld [vmem:[%s674] sm:%s686]
      %v688 = vunpack.c.l.bf16 %v687
      %v689 = vunpack.c.h.bf16 %v687
      %s690 = scalar_lea.vmem %s382, 12
      %s691 = ssub.s32 0, 0
      %p692 = scmp.lt.s32.totalorder %s691, 0
      %s693 = scalar_select %p692, 0, 255
      %s694 = sshrl.u32 %s693, 1
      %s695 = sor.u32 %s693, %s694
      %s696 = sand.u32 %s695, 85
      %s697 = sshrl.u32 %s696, 1
      %s698 = sor.u32 %s696, %s697
      %s699 = sand.u32 51, %s698
      %s700 = sshrl.u32 %s699, 2
      %s701 = sor.u32 %s699, %s700
      %s702 = sand.u32 15, %s701
      %v703 = vld [vmem:[%s690] sm:%s702]
      %v704 = vunpack.c.l.bf16 %v703
      %v705 = vunpack.c.h.bf16 %v703
      %s706 = scalar_lea.vmem %s395, 12
      %s707 = ssub.s32 0, 0
      %p708 = scmp.lt.s32.totalorder %s707, 0
      %s709 = scalar_select %p708, 0, 255
      %s710 = sshrl.u32 %s709, 1
      %s711 = sor.u32 %s709, %s710
      %s712 = sand.u32 %s711, 85
      %s713 = sshrl.u32 %s712, 1
      %s714 = sor.u32 %s712, %s713
      %s715 = sand.u32 51, %s714
      %s716 = sshrl.u32 %s715, 2
      %s717 = sor.u32 %s715, %s716
      %s718 = sand.u32 15, %s717
      %v719 = vld [vmem:[%s706] sm:%s718]
      %v720 = vunpack.c.l.bf16 %v719
      %v721 = vunpack.c.h.bf16 %v719
      %s722 = scalar_lea.vmem %s5, 12
      %s724 = sor.u32 255, 127
      %s725 = sand.u32 %s724, 85
      %s726 = sshrl.u32 %s725, 1
      %s727 = sor.u32 %s725, %s726
      %s728 = sand.u32 51, %s727
      %s729 = sshrl.u32 %s728, 2
      %s730 = sor.u32 %s728, %s729
      %s731 = sand.u32 15, %s730
      %v732 = vld [vmem:[%s722] sm:%s731]
      %v733 = vunpack.c.l.bf16 %v732
      %v734 = vunpack.c.h.bf16 %v732
      %735 = xla_tuple %v733, %v29
      %736 = xla_tuple %735
      %v737 = vmax.f32 %v733, %v29
      %738 = xla_tuple %v737
      %739 = xla_tuple %v737, %v24
      %740 = xla_tuple %739
      %v741 = vmax.f32 %v737, %v24
      %742 = xla_tuple %v741
      %743 = xla_tuple %v741, %v19
      %744 = xla_tuple %743
      %v745 = vmax.f32 %v741, %v19
      %746 = xla_tuple %v745
      %s747 = scalar_lea.vmem [#allocation28], 12
      %v748 = vpack.c.bf16 0.0, %v745
      %s750 = ssub.s32 16, 1
      %751 = vst [vmem:[%s747] sm:%s750] %v748
      %s752 = scalar_lea.vmem %s369, 16
      %s753 = ssub.s32 0, 0
      %p754 = scmp.lt.s32.totalorder %s753, 0
      %s755 = scalar_select %p754, 0, 255
      %s756 = sshrl.u32 %s755, 1
      %s757 = sor.u32 %s755, %s756
      %s758 = sand.u32 %s757, 85
      %s759 = sshrl.u32 %s758, 1
      %s760 = sor.u32 %s758, %s759
      %s761 = sand.u32 51, %s760
      %s762 = sshrl.u32 %s761, 2
      %s763 = sor.u32 %s761, %s762
      %s764 = sand.u32 15, %s763
      %v765 = vld [vmem:[%s752] sm:%s764]
      %v766 = vunpack.c.l.bf16 %v765
      %v767 = vunpack.c.h.bf16 %v765
      %s768 = scalar_lea.vmem %s382, 16
      %s769 = ssub.s32 0, 0
      %p770 = scmp.lt.s32.totalorder %s769, 0
      %s771 = scalar_select %p770, 0, 255
      %s772 = sshrl.u32 %s771, 1
      %s773 = sor.u32 %s771, %s772
      %s774 = sand.u32 %s773, 85
      %s775 = sshrl.u32 %s774, 1
      %s776 = sor.u32 %s774, %s775
      %s777 = sand.u32 51, %s776
      %s778 = sshrl.u32 %s777, 2
      %s779 = sor.u32 %s777, %s778
      %s780 = sand.u32 15, %s779
      %v781 = vld [vmem:[%s768] sm:%s780]
      %v782 = vunpack.c.l.bf16 %v781
      %v783 = vunpack.c.h.bf16 %v781
      %s784 = scalar_lea.vmem %s395, 16
      %s785 = ssub.s32 0, 0
      %p786 = scmp.lt.s32.totalorder %s785, 0
      %s787 = scalar_select %p786, 0, 255
      %s788 = sshrl.u32 %s787, 1
      %s789 = sor.u32 %s787, %s788
      %s790 = sand.u32 %s789, 85
      %s791 = sshrl.u32 %s790, 1
      %s792 = sor.u32 %s790, %s791
      %s793 = sand.u32 51, %s792
      %s794 = sshrl.u32 %s793, 2
      %s795 = sor.u32 %s793, %s794
      %s796 = sand.u32 15, %s795
      %v797 = vld [vmem:[%s784] sm:%s796]
      %v798 = vunpack.c.l.bf16 %v797
      %v799 = vunpack.c.h.bf16 %v797
      %s800 = scalar_lea.vmem %s5, 16
      %s802 = sor.u32 255, 127
      %s803 = sand.u32 %s802, 85
      %s804 = sshrl.u32 %s803, 1
      %s805 = sor.u32 %s803, %s804
      %s806 = sand.u32 51, %s805
      %s807 = sshrl.u32 %s806, 2
      %s808 = sor.u32 %s806, %s807
      %s809 = sand.u32 15, %s808
      %v810 = vld [vmem:[%s800] sm:%s809]
      %v811 = vunpack.c.l.bf16 %v810
      %v812 = vunpack.c.h.bf16 %v810
      %813 = xla_tuple %v811, %v29
      %814 = xla_tuple %813
      %v815 = vmax.f32 %v811, %v29
      %816 = xla_tuple %v815
      %817 = xla_tuple %v815, %v24
      %818 = xla_tuple %817
      %v819 = vmax.f32 %v815, %v24
      %820 = xla_tuple %v819
      %821 = xla_tuple %v819, %v19
      %822 = xla_tuple %821
      %v823 = vmax.f32 %v819, %v19
      %824 = xla_tuple %v823
      %s825 = scalar_lea.vmem [#allocation28], 16
      %v826 = vpack.c.bf16 0.0, %v823
      %s828 = ssub.s32 16, 1
      %829 = vst [vmem:[%s825] sm:%s828] %v826
      %s830 = scalar_lea.vmem %s369, 20
      %s831 = ssub.s32 0, 0
      %p832 = scmp.lt.s32.totalorder %s831, 0
      %s833 = scalar_select %p832, 0, 255
      %s834 = sshrl.u32 %s833, 1
      %s835 = sor.u32 %s833, %s834
      %s836 = sand.u32 %s835, 85
      %s837 = sshrl.u32 %s836, 1
      %s838 = sor.u32 %s836, %s837
      %s839 = sand.u32 51, %s838
      %s840 = sshrl.u32 %s839, 2
      %s841 = sor.u32 %s839, %s840
      %s842 = sand.u32 15, %s841
      %v843 = vld [vmem:[%s830] sm:%s842]
      %v844 = vunpack.c.l.bf16 %v843
      %v845 = vunpack.c.h.bf16 %v843
      %s846 = scalar_lea.vmem %s382, 20
      %s847 = ssub.s32 0, 0
      %p848 = scmp.lt.s32.totalorder %s847, 0
      %s849 = scalar_select %p848, 0, 255
      %s850 = sshrl.u32 %s849, 1
      %s851 = sor.u32 %s849, %s850
      %s852 = sand.u32 %s851, 85
      %s853 = sshrl.u32 %s852, 1
      %s854 = sor.u32 %s852, %s853
      %s855 = sand.u32 51, %s854
      %s856 = sshrl.u32 %s855, 2
      %s857 = sor.u32 %s855, %s856
      %s858 = sand.u32 15, %s857
      %v859 = vld [vmem:[%s846] sm:%s858]
      %v860 = vunpack.c.l.bf16 %v859
      %v861 = vunpack.c.h.bf16 %v859
      %s862 = scalar_lea.vmem %s395, 20
      %s863 = ssub.s32 0, 0
      %p864 = scmp.lt.s32.totalorder %s863, 0
      %s865 = scalar_select %p864, 0, 255
      %s866 = sshrl.u32 %s865, 1
      %s867 = sor.u32 %s865, %s866
      %s868 = sand.u32 %s867, 85
      %s869 = sshrl.u32 %s868, 1
      %s870 = sor.u32 %s868, %s869
      %s871 = sand.u32 51, %s870
      %s872 = sshrl.u32 %s871, 2
      %s873 = sor.u32 %s871, %s872
      %s874 = sand.u32 15, %s873
      %v875 = vld [vmem:[%s862] sm:%s874]
      %v876 = vunpack.c.l.bf16 %v875
      %v877 = vunpack.c.h.bf16 %v875
      %s878 = scalar_lea.vmem %s5, 20
      %s880 = sor.u32 255, 127
      %s881 = sand.u32 %s880, 85
      %s882 = sshrl.u32 %s881, 1
      %s883 = sor.u32 %s881, %s882
      %s884 = sand.u32 51, %s883
      %s885 = sshrl.u32 %s884, 2
      %s886 = sor.u32 %s884, %s885
      %s887 = sand.u32 15, %s886
      %v888 = vld [vmem:[%s878] sm:%s887]
      %v889 = vunpack.c.l.bf16 %v888
      %v890 = vunpack.c.h.bf16 %v888
      %891 = xla_tuple %v889, %v29
      %892 = xla_tuple %891
      %v893 = vmax.f32 %v889, %v29
      %894 = xla_tuple %v893
      %895 = xla_tuple %v893, %v24
      %896 = xla_tuple %895
      %v897 = vmax.f32 %v893, %v24
      %898 = xla_tuple %v897
      %899 = xla_tuple %v897, %v19
      %900 = xla_tuple %899
      %v901 = vmax.f32 %v897, %v19
      %902 = xla_tuple %v901
      %s903 = scalar_lea.vmem [#allocation28], 20
      %v904 = vpack.c.bf16 0.0, %v901
      %s906 = ssub.s32 16, 1
      %907 = vst [vmem:[%s903] sm:%s906] %v904
      %s908 = scalar_lea.vmem %s369, 24
      %s909 = ssub.s32 0, 0
      %p910 = scmp.lt.s32.totalorder %s909, 0
      %s911 = scalar_select %p910, 0, 255
      %s912 = sshrl.u32 %s911, 1
      %s913 = sor.u32 %s911, %s912
      %s914 = sand.u32 %s913, 85
      %s915 = sshrl.u32 %s914, 1
      %s916 = sor.u32 %s914, %s915
      %s917 = sand.u32 51, %s916
      %s918 = sshrl.u32 %s917, 2
      %s919 = sor.u32 %s917, %s918
      %s920 = sand.u32 15, %s919
      %v921 = vld [vmem:[%s908] sm:%s920]
      %v922 = vunpack.c.l.bf16 %v921
      %v923 = vunpack.c.h.bf16 %v921
      %s924 = scalar_lea.vmem %s382, 24
      %s925 = ssub.s32 0, 0
      %p926 = scmp.lt.s32.totalorder %s925, 0
      %s927 = scalar_select %p926, 0, 255
      %s928 = sshrl.u32 %s927, 1
      %s929 = sor.u32 %s927, %s928
      %s930 = sand.u32 %s929, 85
      %s931 = sshrl.u32 %s930, 1
      %s932 = sor.u32 %s930, %s931
      %s933 = sand.u32 51, %s932
      %s934 = sshrl.u32 %s933, 2
      %s935 = sor.u32 %s933, %s934
      %s936 = sand.u32 15, %s935
      %v937 = vld [vmem:[%s924] sm:%s936]
      %v938 = vunpack.c.l.bf16 %v937
      %v939 = vunpack.c.h.bf16 %v937
      %s940 = scalar_lea.vmem %s395, 24
      %s941 = ssub.s32 0, 0
      %p942 = scmp.lt.s32.totalorder %s941, 0
      %s943 = scalar_select %p942, 0, 255
      %s944 = sshrl.u32 %s943, 1
      %s945 = sor.u32 %s943, %s944
      %s946 = sand.u32 %s945, 85
      %s947 = sshrl.u32 %s946, 1
      %s948 = sor.u32 %s946, %s947
      %s949 = sand.u32 51, %s948
      %s950 = sshrl.u32 %s949, 2
      %s951 = sor.u32 %s949, %s950
      %s952 = sand.u32 15, %s951
      %v953 = vld [vmem:[%s940] sm:%s952]
      %v954 = vunpack.c.l.bf16 %v953
      %v955 = vunpack.c.h.bf16 %v953
      %s956 = scalar_lea.vmem %s5, 24
      %s958 = sor.u32 255, 127
      %s959 = sand.u32 %s958, 85
      %s960 = sshrl.u32 %s959, 1
      %s961 = sor.u32 %s959, %s960
      %s962 = sand.u32 51, %s961
      %s963 = sshrl.u32 %s962, 2
      %s964 = sor.u32 %s962, %s963
      %s965 = sand.u32 15, %s964
      %v966 = vld [vmem:[%s956] sm:%s965]
      %v967 = vunpack.c.l.bf16 %v966
      %v968 = vunpack.c.h.bf16 %v966
      %969 = xla_tuple %v967, %v29
      %970 = xla_tuple %969
      %v971 = vmax.f32 %v967, %v29
      %972 = xla_tuple %v971
      %973 = xla_tuple %v971, %v24
      %974 = xla_tuple %973
      %v975 = vmax.f32 %v971, %v24
      %976 = xla_tuple %v975
      %977 = xla_tuple %v975, %v19
      %978 = xla_tuple %977
      %v979 = vmax.f32 %v975, %v19
      %980 = xla_tuple %v979
      %s981 = scalar_lea.vmem [#allocation28], 24
      %v982 = vpack.c.bf16 0.0, %v979
      %s984 = ssub.s32 16, 1
      %985 = vst [vmem:[%s981] sm:%s984] %v982
      %s986 = scalar_lea.vmem %s369, 28
      %s987 = ssub.s32 0, 0
      %p988 = scmp.lt.s32.totalorder %s987, 0
      %s989 = scalar_select %p988, 0, 255
      %s990 = sshrl.u32 %s989, 1
      %s991 = sor.u32 %s989, %s990
      %s992 = sand.u32 %s991, 85
      %s993 = sshrl.u32 %s992, 1
      %s994 = sor.u32 %s992, %s993
      %s995 = sand.u32 51, %s994
      %s996 = sshrl.u32 %s995, 2
      %s997 = sor.u32 %s995, %s996
      %s998 = sand.u32 15, %s997
      %v999 = vld [vmem:[%s986] sm:%s998]
      %v1000 = vunpack.c.l.bf16 %v999
      %v1001 = vunpack.c.h.bf16 %v999
      %s1002 = scalar_lea.vmem %s382, 28
      %s1003 = ssub.s32 0, 0
      %p1004 = scmp.lt.s32.totalorder %s1003, 0
      %s1005 = scalar_select %p1004, 0, 255
      %s1006 = sshrl.u32 %s1005, 1
      %s1007 = sor.u32 %s1005, %s1006
      %s1008 = sand.u32 %s1007, 85
      %s1009 = sshrl.u32 %s1008, 1
      %s1010 = sor.u32 %s1008, %s1009
      %s1011 = sand.u32 51, %s1010
      %s1012 = sshrl.u32 %s1011, 2
      %s1013 = sor.u32 %s1011, %s1012
      %s1014 = sand.u32 15, %s1013
      %v1015 = vld [vmem:[%s1002] sm:%s1014]
      %v1016 = vunpack.c.l.bf16 %v1015
      %v1017 = vunpack.c.h.bf16 %v1015
      %s1018 = scalar_lea.vmem %s395, 28
      %s1019 = ssub.s32 0, 0
      %p1020 = scmp.lt.s32.totalorder %s1019, 0
      %s1021 = scalar_select %p1020, 0, 255
      %s1022 = sshrl.u32 %s1021, 1
      %s1023 = sor.u32 %s1021, %s1022
      %s1024 = sand.u32 %s1023, 85
      %s1025 = sshrl.u32 %s1024, 1
      %s1026 = sor.u32 %s1024, %s1025
      %s1027 = sand.u32 51, %s1026
      %s1028 = sshrl.u32 %s1027, 2
      %s1029 = sor.u32 %s1027, %s1028
      %s1030 = sand.u32 15, %s1029
      %v1031 = vld [vmem:[%s1018] sm:%s1030]
      %v1032 = vunpack.c.l.bf16 %v1031
      %v1033 = vunpack.c.h.bf16 %v1031
      %s1034 = scalar_lea.vmem %s5, 28
      %s1036 = sor.u32 255, 127
      %s1037 = sand.u32 %s1036, 85
      %s1038 = sshrl.u32 %s1037, 1
      %s1039 = sor.u32 %s1037, %s1038
      %s1040 = sand.u32 51, %s1039
      %s1041 = sshrl.u32 %s1040, 2
      %s1042 = sor.u32 %s1040, %s1041
      %s1043 = sand.u32 15, %s1042
      %v1044 = vld [vmem:[%s1034] sm:%s1043]
      %v1045 = vunpack.c.l.bf16 %v1044
      %v1046 = vunpack.c.h.bf16 %v1044
      %1047 = xla_tuple %v1045, %v29
      %1048 = xla_tuple %1047
      %v1049 = vmax.f32 %v1045, %v29
      %1050 = xla_tuple %v1049
      %1051 = xla_tuple %v1049, %v24
      %1052 = xla_tuple %1051
      %v1053 = vmax.f32 %v1049, %v24
      %1054 = xla_tuple %v1053
      %1055 = xla_tuple %v1053, %v19
      %1056 = xla_tuple %1055
      %v1057 = vmax.f32 %v1053, %v19
      %1058 = xla_tuple %v1057
      %s1059 = scalar_lea.vmem [#allocation28], 28
      %v1060 = vpack.c.bf16 0.0, %v1057
      %s1062 = ssub.s32 16, 1
      %1063 = vst [vmem:[%s1059] sm:%s1062] %v1060
      %1064 = xla_tuple %v34, %v488
      %1065 = xla_tuple %1064
      %v1066 = vmax.f32 %v34, %v488
      %1067 = xla_tuple %v1066
      %1068 = xla_tuple %v1066, %v24
      %1069 = xla_tuple %1068
      %v1070 = vmax.f32 %v1066, %v24
      %1071 = xla_tuple %v1070
      %1072 = xla_tuple %v1070, %v19
      %1073 = xla_tuple %1072
      %v1074 = vmax.f32 %v1070, %v19
      %1075 = xla_tuple %v1074
      %s1076 = scalar_lea.vmem [#allocation28], 32
      %v1077 = vpack.c.bf16 0.0, %v1074
      %s1079 = ssub.s32 16, 1
      %1080 = vst [vmem:[%s1076] sm:%s1079] %v1077
      %s1081 = scalar_lea.vmem %s369, 4
      %s1082 = scalar_lea.vmem %s382, 4
      %s1083 = scalar_lea.vmem %s395, 4
      %1084 = xla_tuple %v34, %v564
      %1085 = xla_tuple %1084
      %v1086 = vmax.f32 %v34, %v564
      %1087 = xla_tuple %v1086
      %1088 = xla_tuple %v1086, %v24
      %1089 = xla_tuple %1088
      %v1090 = vmax.f32 %v1086, %v24
      %1091 = xla_tuple %v1090
      %1092 = xla_tuple %v1090, %v19
      %1093 = xla_tuple %1092
      %v1094 = vmax.f32 %v1090, %v19
      %1095 = xla_tuple %v1094
      %s1096 = scalar_lea.vmem [#allocation28], 36
      %v1097 = vpack.c.bf16 0.0, %v1094
      %s1099 = ssub.s32 16, 1
      %1100 = vst [vmem:[%s1096] sm:%s1099] %v1097
      %s1101 = scalar_lea.vmem %s369, 8
      %s1102 = scalar_lea.vmem %s382, 8
      %s1103 = scalar_lea.vmem %s395, 8
      %1104 = xla_tuple %v34, %v642
      %1105 = xla_tuple %1104
      %v1106 = vmax.f32 %v34, %v642
      %1107 = xla_tuple %v1106
      %1108 = xla_tuple %v1106, %v24
      %1109 = xla_tuple %1108
      %v1110 = vmax.f32 %v1106, %v24
      %1111 = xla_tuple %v1110
      %1112 = xla_tuple %v1110, %v19
      %1113 = xla_tuple %1112
      %v1114 = vmax.f32 %v1110, %v19
      %1115 = xla_tuple %v1114
      %s1116 = scalar_lea.vmem [#allocation28], 40
      %v1117 = vpack.c.bf16 0.0, %v1114
      %s1119 = ssub.s32 16, 1
      %1120 = vst [vmem:[%s1116] sm:%s1119] %v1117
      %s1121 = scalar_lea.vmem %s369, 12
      %s1122 = scalar_lea.vmem %s382, 12
      %s1123 = scalar_lea.vmem %s395, 12
      %1124 = xla_tuple %v34, %v720
      %1125 = xla_tuple %1124
      %v1126 = vmax.f32 %v34, %v720
      %1127 = xla_tuple %v1126
      %1128 = xla_tuple %v1126, %v24
      %1129 = xla_tuple %1128
      %v1130 = vmax.f32 %v1126, %v24
      %1131 = xla_tuple %v1130
      %1132 = xla_tuple %v1130, %v19
      %1133 = xla_tuple %1132
      %v1134 = vmax.f32 %v1130, %v19
      %1135 = xla_tuple %v1134
      %s1136 = scalar_lea.vmem [#allocation28], 44
      %v1137 = vpack.c.bf16 0.0, %v1134
      %s1139 = ssub.s32 16, 1
      %1140 = vst [vmem:[%s1136] sm:%s1139] %v1137
      %s1141 = scalar_lea.vmem %s369, 16
      %s1142 = scalar_lea.vmem %s382, 16
      %s1143 = scalar_lea.vmem %s395, 16
      %1144 = xla_tuple %v34, %v798
      %1145 = xla_tuple %1144
      %v1146 = vmax.f32 %v34, %v798
      %1147 = xla_tuple %v1146
      %1148 = xla_tuple %v1146, %v24
      %1149 = xla_tuple %1148
      %v1150 = vmax.f32 %v1146, %v24
      %1151 = xla_tuple %v1150
      %1152 = xla_tuple %v1150, %v19
      %1153 = xla_tuple %1152
      %v1154 = vmax.f32 %v1150, %v19
      %1155 = xla_tuple %v1154
      %s1156 = scalar_lea.vmem [#allocation28], 48
      %v1157 = vpack.c.bf16 0.0, %v1154
      %s1159 = ssub.s32 16, 1
      %1160 = vst [vmem:[%s1156] sm:%s1159] %v1157
      %s1161 = scalar_lea.vmem %s369, 20
      %s1162 = scalar_lea.vmem %s382, 20
      %s1163 = scalar_lea.vmem %s395, 20
      %1164 = xla_tuple %v34, %v876
      %1165 = xla_tuple %1164
      %v1166 = vmax.f32 %v34, %v876
      %1167 = xla_tuple %v1166
      %1168 = xla_tuple %v1166, %v24
      %1169 = xla_tuple %1168
      %v1170 = vmax.f32 %v1166, %v24
      %1171 = xla_tuple %v1170
      %1172 = xla_tuple %v1170, %v19
      %1173 = xla_tuple %1172
      %v1174 = vmax.f32 %v1170, %v19
      %1175 = xla_tuple %v1174
      %s1176 = scalar_lea.vmem [#allocation28], 52
      %v1177 = vpack.c.bf16 0.0, %v1174
      %s1179 = ssub.s32 16, 1
      %1180 = vst [vmem:[%s1176] sm:%s1179] %v1177
      %s1181 = scalar_lea.vmem %s369, 24
      %s1182 = scalar_lea.vmem %s382, 24
      %s1183 = scalar_lea.vmem %s395, 24
      %1184 = xla_tuple %v34, %v954
      %1185 = xla_tuple %1184
      %v1186 = vmax.f32 %v34, %v954
      %1187 = xla_tuple %v1186
      %1188 = xla_tuple %v1186, %v24
      %1189 = xla_tuple %1188
      %v1190 = vmax.f32 %v1186, %v24
      %1191 = xla_tuple %v1190
      %1192 = xla_tuple %v1190, %v19
      %1193 = xla_tuple %1192
      %v1194 = vmax.f32 %v1190, %v19
      %1195 = xla_tuple %v1194
      %s1196 = scalar_lea.vmem [#allocation28], 56
      %v1197 = vpack.c.bf16 0.0, %v1194
      %s1199 = ssub.s32 16, 1
      %1200 = vst [vmem:[%s1196] sm:%s1199] %v1197
      %s1201 = scalar_lea.vmem %s369, 28
      %s1202 = scalar_lea.vmem %s382, 28
      %s1203 = scalar_lea.vmem %s395, 28
      %1204 = xla_tuple %v34, %v1032
      %1205 = xla_tuple %1204
      %v1206 = vmax.f32 %v34, %v1032
      %1207 = xla_tuple %v1206
      %1208 = xla_tuple %v1206, %v24
      %1209 = xla_tuple %1208
      %v1210 = vmax.f32 %v1206, %v24
      %1211 = xla_tuple %v1210
      %1212 = xla_tuple %v1210, %v19
      %1213 = xla_tuple %1212
      %v1214 = vmax.f32 %v1210, %v19
      %1215 = xla_tuple %v1214
      %s1216 = scalar_lea.vmem [#allocation28], 60
      %v1217 = vpack.c.bf16 0.0, %v1214
      %s1219 = ssub.s32 16, 1
      %1220 = vst [vmem:[%s1216] sm:%s1219] %v1217
      %1221 = xla_tuple %v34, %v29
      %1222 = xla_tuple %1221
      %v1223 = vmax.f32 %v34, %v29
      %1224 = xla_tuple %v1223
      %1225 = xla_tuple %v1223, %v473
      %1226 = xla_tuple %1225
      %v1227 = vmax.f32 %v1223, %v473
      %1228 = xla_tuple %v1227
      %1229 = xla_tuple %v1227, %v19
      %1230 = xla_tuple %1229
      %v1231 = vmax.f32 %v1227, %v19
      %1232 = xla_tuple %v1231
      %s1233 = scalar_lea.vmem [#allocation28], 64
      %v1234 = vpack.c.bf16 0.0, %v1231
      %s1236 = ssub.s32 16, 1
      %1237 = vst [vmem:[%s1233] sm:%s1236] %v1234
      %s1238 = scalar_lea.vmem %s369, 4
      %s1239 = scalar_lea.vmem %s382, 4
      %s1240 = scalar_lea.vmem %s395, 4
      %1241 = xla_tuple %v34, %v29
      %1242 = xla_tuple %1241
      %v1243 = vmax.f32 %v34, %v29
      %1244 = xla_tuple %v1243
      %1245 = xla_tuple %v1243, %v548
      %1246 = xla_tuple %1245
      %v1247 = vmax.f32 %v1243, %v548
      %1248 = xla_tuple %v1247
      %1249 = xla_tuple %v1247, %v19
      %1250 = xla_tuple %1249
      %v1251 = vmax.f32 %v1247, %v19
      %1252 = xla_tuple %v1251
      %s1253 = scalar_lea.vmem [#allocation28], 68
      %v1254 = vpack.c.bf16 0.0, %v1251
      %s1256 = ssub.s32 16, 1
      %1257 = vst [vmem:[%s1253] sm:%s1256] %v1254
      %s1258 = scalar_lea.vmem %s369, 8
      %s1259 = scalar_lea.vmem %s382, 8
      %s1260 = scalar_lea.vmem %s395, 8
      %1261 = xla_tuple %v34, %v29
      %1262 = xla_tuple %1261
      %v1263 = vmax.f32 %v34, %v29
      %1264 = xla_tuple %v1263
      %1265 = xla_tuple %v1263, %v626
      %1266 = xla_tuple %1265
      %v1267 = vmax.f32 %v1263, %v626
      %1268 = xla_tuple %v1267
      %1269 = xla_tuple %v1267, %v19
      %1270 = xla_tuple %1269
      %v1271 = vmax.f32 %v1267, %v19
      %1272 = xla_tuple %v1271
      %s1273 = scalar_lea.vmem [#allocation28], 72
      %v1274 = vpack.c.bf16 0.0, %v1271
      %s1276 = ssub.s32 16, 1
      %1277 = vst [vmem:[%s1273] sm:%s1276] %v1274
      %s1278 = scalar_lea.vmem %s369, 12
      %s1279 = scalar_lea.vmem %s382, 12
      %s1280 = scalar_lea.vmem %s395, 12
      %1281 = xla_tuple %v34, %v29
      %1282 = xla_tuple %1281
      %v1283 = vmax.f32 %v34, %v29
      %1284 = xla_tuple %v1283
      %1285 = xla_tuple %v1283, %v704
      %1286 = xla_tuple %1285
      %v1287 = vmax.f32 %v1283, %v704
      %1288 = xla_tuple %v1287
      %1289 = xla_tuple %v1287, %v19
      %1290 = xla_tuple %1289
      %v1291 = vmax.f32 %v1287, %v19
      %1292 = xla_tuple %v1291
      %s1293 = scalar_lea.vmem [#allocation28], 76
      %v1294 = vpack.c.bf16 0.0, %v1291
      %s1296 = ssub.s32 16, 1
      %1297 = vst [vmem:[%s1293] sm:%s1296] %v1294
      %s1298 = scalar_lea.vmem %s369, 16
      %s1299 = scalar_lea.vmem %s382, 16
      %s1300 = scalar_lea.vmem %s395, 16
      %1301 = xla_tuple %v34, %v29
      %1302 = xla_tuple %1301
      %v1303 = vmax.f32 %v34, %v29
      %1304 = xla_tuple %v1303
      %1305 = xla_tuple %v1303, %v782
      %1306 = xla_tuple %1305
      %v1307 = vmax.f32 %v1303, %v782
      %1308 = xla_tuple %v1307
      %1309 = xla_tuple %v1307, %v19
      %1310 = xla_tuple %1309
      %v1311 = vmax.f32 %v1307, %v19
      %1312 = xla_tuple %v1311
      %s1313 = scalar_lea.vmem [#allocation28], 80
      %v1314 = vpack.c.bf16 0.0, %v1311
      %s1316 = ssub.s32 16, 1
      %1317 = vst [vmem:[%s1313] sm:%s1316] %v1314
      %s1318 = scalar_lea.vmem %s369, 20
      %s1319 = scalar_lea.vmem %s382, 20
      %s1320 = scalar_lea.vmem %s395, 20
      %1321 = xla_tuple %v34, %v29
      %1322 = xla_tuple %1321
      %v1323 = vmax.f32 %v34, %v29
      %1324 = xla_tuple %v1323
      %1325 = xla_tuple %v1323, %v860
      %1326 = xla_tuple %1325
      %v1327 = vmax.f32 %v1323, %v860
      %1328 = xla_tuple %v1327
      %1329 = xla_tuple %v1327, %v19
      %1330 = xla_tuple %1329
      %v1331 = vmax.f32 %v1327, %v19
      %1332 = xla_tuple %v1331
      %s1333 = scalar_lea.vmem [#allocation28], 84
      %v1334 = vpack.c.bf16 0.0, %v1331
      %s1336 = ssub.s32 16, 1
      %1337 = vst [vmem:[%s1333] sm:%s1336] %v1334
      %s1338 = scalar_lea.vmem %s369, 24
      %s1339 = scalar_lea.vmem %s382, 24
      %s1340 = scalar_lea.vmem %s395, 24
      %1341 = xla_tuple %v34, %v29
      %1342 = xla_tuple %1341
      %v1343 = vmax.f32 %v34, %v29
      %1344 = xla_tuple %v1343
      %1345 = xla_tuple %v1343, %v938
      %1346 = xla_tuple %1345
      %v1347 = vmax.f32 %v1343, %v938
      %1348 = xla_tuple %v1347
      %1349 = xla_tuple %v1347, %v19
      %1350 = xla_tuple %1349
      %v1351 = vmax.f32 %v1347, %v19
      %1352 = xla_tuple %v1351
      %s1353 = scalar_lea.vmem [#allocation28], 88
      %v1354 = vpack.c.bf16 0.0, %v1351
      %s1356 = ssub.s32 16, 1
      %1357 = vst [vmem:[%s1353] sm:%s1356] %v1354
      %s1358 = scalar_lea.vmem %s369, 28
      %s1359 = scalar_lea.vmem %s382, 28
      %s1360 = scalar_lea.vmem %s395, 28
      %1361 = xla_tuple %v34, %v29
      %1362 = xla_tuple %1361
      %v1363 = vmax.f32 %v34, %v29
      %1364 = xla_tuple %v1363
      %1365 = xla_tuple %v1363, %v1016
      %1366 = xla_tuple %1365
      %v1367 = vmax.f32 %v1363, %v1016
      %1368 = xla_tuple %v1367
      %1369 = xla_tuple %v1367, %v19
      %1370 = xla_tuple %1369
      %v1371 = vmax.f32 %v1367, %v19
      %1372 = xla_tuple %v1371
      %s1373 = scalar_lea.vmem [#allocation28], 92
      %v1374 = vpack.c.bf16 0.0, %v1371
      %s1376 = ssub.s32 16, 1
      %1377 = vst [vmem:[%s1373] sm:%s1376] %v1374
      %1378 = xla_tuple %v34, %v29
      %1379 = xla_tuple %1378
      %v1380 = vmax.f32 %v34, %v29
      %1381 = xla_tuple %v1380
      %1382 = xla_tuple %v1380, %v24
      %1383 = xla_tuple %1382
      %v1384 = vmax.f32 %v1380, %v24
      %1385 = xla_tuple %v1384
      %1386 = xla_tuple %v1384, %v458
      %1387 = xla_tuple %1386
      %v1388 = vmax.f32 %v1384, %v458
      %1389 = xla_tuple %v1388
      %s1390 = scalar_lea.vmem [#allocation28], 96
      %v1391 = vpack.c.bf16 0.0, %v1388
      %s1393 = ssub.s32 16, 1
      %1394 = vst [vmem:[%s1390] sm:%s1393] %v1391
      %s1395 = scalar_lea.vmem %s369, 4
      %s1396 = scalar_lea.vmem %s382, 4
      %s1397 = scalar_lea.vmem %s395, 4
      %1398 = xla_tuple %v34, %v29
      %1399 = xla_tuple %1398
      %v1400 = vmax.f32 %v34, %v29
      %1401 = xla_tuple %v1400
      %1402 = xla_tuple %v1400, %v24
      %1403 = xla_tuple %1402
      %v1404 = vmax.f32 %v1400, %v24
      %1405 = xla_tuple %v1404
      %1406 = xla_tuple %v1404, %v532
      %1407 = xla_tuple %1406
      %v1408 = vmax.f32 %v1404, %v532
      %1409 = xla_tuple %v1408
      %s1410 = scalar_lea.vmem [#allocation28], 100
      %v1411 = vpack.c.bf16 0.0, %v1408
      %s1413 = ssub.s32 16, 1
      %1414 = vst [vmem:[%s1410] sm:%s1413] %v1411
      %s1415 = scalar_lea.vmem %s369, 8
      %s1416 = scalar_lea.vmem %s382, 8
      %s1417 = scalar_lea.vmem %s395, 8
      %1418 = xla_tuple %v34, %v29
      %1419 = xla_tuple %1418
      %v1420 = vmax.f32 %v34, %v29
      %1421 = xla_tuple %v1420
      %1422 = xla_tuple %v1420, %v24
      %1423 = xla_tuple %1422
      %v1424 = vmax.f32 %v1420, %v24
      %1425 = xla_tuple %v1424
      %1426 = xla_tuple %v1424, %v610
      %1427 = xla_tuple %1426
      %v1428 = vmax.f32 %v1424, %v610
      %1429 = xla_tuple %v1428
      %s1430 = scalar_lea.vmem [#allocation28], 104
      %v1431 = vpack.c.bf16 0.0, %v1428
      %s1433 = ssub.s32 16, 1
      %1434 = vst [vmem:[%s1430] sm:%s1433] %v1431
      %s1435 = scalar_lea.vmem %s369, 12
      %s1436 = scalar_lea.vmem %s382, 12
      %s1437 = scalar_lea.vmem %s395, 12
      %1438 = xla_tuple %v34, %v29
      %1439 = xla_tuple %1438
      %v1440 = vmax.f32 %v34, %v29
      %1441 = xla_tuple %v1440
      %1442 = xla_tuple %v1440, %v24
      %1443 = xla_tuple %1442
      %v1444 = vmax.f32 %v1440, %v24
      %1445 = xla_tuple %v1444
      %1446 = xla_tuple %v1444, %v688
      %1447 = xla_tuple %1446
      %v1448 = vmax.f32 %v1444, %v688
      %1449 = xla_tuple %v1448
      %s1450 = scalar_lea.vmem [#allocation28], 108
      %v1451 = vpack.c.bf16 0.0, %v1448
      %s1453 = ssub.s32 16, 1
      %1454 = vst [vmem:[%s1450] sm:%s1453] %v1451
      %s1455 = scalar_lea.vmem %s369, 16
      %s1456 = scalar_lea.vmem %s382, 16
      %s1457 = scalar_lea.vmem %s395, 16
      %1458 = xla_tuple %v34, %v29
      %1459 = xla_tuple %1458
      %v1460 = vmax.f32 %v34, %v29
      %1461 = xla_tuple %v1460
      %1462 = xla_tuple %v1460, %v24
      %1463 = xla_tuple %1462
      %v1464 = vmax.f32 %v1460, %v24
      %1465 = xla_tuple %v1464
      %1466 = xla_tuple %v1464, %v766
      %1467 = xla_tuple %1466
      %v1468 = vmax.f32 %v1464, %v766
      %1469 = xla_tuple %v1468
      %s1470 = scalar_lea.vmem [#allocation28], 112
      %v1471 = vpack.c.bf16 0.0, %v1468
      %s1473 = ssub.s32 16, 1
      %1474 = vst [vmem:[%s1470] sm:%s1473] %v1471
      %s1475 = scalar_lea.vmem %s369, 20
      %s1476 = scalar_lea.vmem %s382, 20
      %s1477 = scalar_lea.vmem %s395, 20
      %1478 = xla_tuple %v34, %v29
      %1479 = xla_tuple %1478
      %v1480 = vmax.f32 %v34, %v29
      %1481 = xla_tuple %v1480
      %1482 = xla_tuple %v1480, %v24
      %1483 = xla_tuple %1482
      %v1484 = vmax.f32 %v1480, %v24
      %1485 = xla_tuple %v1484
      %1486 = xla_tuple %v1484, %v844
      %1487 = xla_tuple %1486
      %v1488 = vmax.f32 %v1484, %v844
      %1489 = xla_tuple %v1488
      %s1490 = scalar_lea.vmem [#allocation28], 116
      %v1491 = vpack.c.bf16 0.0, %v1488
      %s1493 = ssub.s32 16, 1
      %1494 = vst [vmem:[%s1490] sm:%s1493] %v1491
      %s1495 = scalar_lea.vmem %s369, 24
      %s1496 = scalar_lea.vmem %s382, 24
      %s1497 = scalar_lea.vmem %s395, 24
      %1498 = xla_tuple %v34, %v29
      %1499 = xla_tuple %1498
      %v1500 = vmax.f32 %v34, %v29
      %1501 = xla_tuple %v1500
      %1502 = xla_tuple %v1500, %v24
      %1503 = xla_tuple %1502
      %v1504 = vmax.f32 %v1500, %v24
      %1505 = xla_tuple %v1504
      %1506 = xla_tuple %v1504, %v922
      %1507 = xla_tuple %1506
      %v1508 = vmax.f32 %v1504, %v922
      %1509 = xla_tuple %v1508
      %s1510 = scalar_lea.vmem [#allocation28], 120
      %v1511 = vpack.c.bf16 0.0, %v1508
      %s1513 = ssub.s32 16, 1
      %1514 = vst [vmem:[%s1510] sm:%s1513] %v1511
      %s1515 = scalar_lea.vmem %s369, 28
      %s1516 = scalar_lea.vmem %s382, 28
      %s1517 = scalar_lea.vmem %s395, 28
      %1518 = xla_tuple %v34, %v29
      %1519 = xla_tuple %1518
      %v1520 = vmax.f32 %v34, %v29
      %1521 = xla_tuple %v1520
      %1522 = xla_tuple %v1520, %v24
      %1523 = xla_tuple %1522
      %v1524 = vmax.f32 %v1520, %v24
      %1525 = xla_tuple %v1524
      %1526 = xla_tuple %v1524, %v1000
      %1527 = xla_tuple %1526
      %v1528 = vmax.f32 %v1524, %v1000
      %1529 = xla_tuple %v1528
      %s1530 = scalar_lea.vmem [#allocation28], 124
      %v1531 = vpack.c.bf16 0.0, %v1528
      %s1533 = ssub.s32 16, 1
      %1534 = vst [vmem:[%s1530] sm:%s1533] %v1531
      %v1536 = vld [vmem:[#allocation27] sm:$0xf]
      %v1537 = vld [vmem:[#allocation27 + $0x4] sm:$0x3]
      %v1538 = vld [vmem:[#allocation28] sm:$0xf]
      %v1539 = vld [vmem:[#allocation28 + $0x4] sm:$0xf]
      %v1540 = vld [vmem:[#allocation28 + $0x8] sm:$0xf]
      %v1541 = vld [vmem:[#allocation28 + $0xc] sm:$0xf]
      %v1542 = vld [vmem:[#allocation28 + $0x10] sm:$0xf]
      %v1543 = vld [vmem:[#allocation28 + $0x14] sm:$0xf]
      %v1544 = vld [vmem:[#allocation28 + $0x18] sm:$0xf]
      %v1545 = vld [vmem:[#allocation28 + $0x1c] sm:$0xf]
      %v1546 = vld [vmem:[#allocation27 + $0x4] sm:$0x7]
      %s1547 = scalar_lea.vmem [#allocation28], 32
      %v1548 = vld [vmem:[%s1547] sm:$0xf]
      %v1549 = vld [vmem:[%s1547 + $0x4] sm:$0xf]
      %v1550 = vld [vmem:[%s1547 + $0x8] sm:$0xf]
      %v1551 = vld [vmem:[%s1547 + $0xc] sm:$0xf]
      %v1552 = vld [vmem:[%s1547 + $0x10] sm:$0xf]
      %v1553 = vld [vmem:[%s1547 + $0x14] sm:$0xf]
      %v1554 = vld [vmem:[%s1547 + $0x18] sm:$0xf]
      %v1555 = vld [vmem:[%s1547 + $0x1c] sm:$0xf]
      %v1558 = vunpack.c.l.b16 %v1536
      %v1559 = vunpack.c.l.b16 %v1546
      %v1560 = vpack.c.b16 %v1559, %v1558
      %v1562 = vshrl.u32 %v1560, 16
      %v1564 = vshll.u32 %v1560, 16
      %v1566 = vrot.slane %v1564, 1
      %v1567 = vor.u32 %v1562, %v1566
      %v1576 = vunpack.c.l.b16 %v1548
      %v1577 = vunpack.c.l.b16 %v1549
      %v1578 = vunpack.c.l.b16 %v1550
      %v1579 = vunpack.c.l.b16 %v1551
      %v1580 = vunpack.c.l.b16 %v1552
      %v1581 = vunpack.c.l.b16 %v1553
      %v1582 = vunpack.c.l.b16 %v1554
      %v1583 = vunpack.c.l.b16 %v1555
      %v1584 = vpack.c.b16 %v1577, %v1576
      %v1585 = vpack.c.b16 %v1579, %v1578
      %v1586 = vpack.c.b16 %v1581, %v1580
      %v1587 = vpack.c.b16 %v1583, %v1582
      %vm1592 = vcmask 523264
      %v1594 = vsel %vm1592, %v1567, 0
      %1596 = vmatpush.bf16.msra.mxu0 0
      %1597 = vmatpush.bf16.msra.mxu0 0
      %1598 = vmatpush.bf16.msra.mxu0 0
      %1599 = vmatpush.bf16.msra.mxu0 0
      %1600 = vmatpush.bf16.msra.mxu0 %v1587
      %1601 = vmatpush.bf16.msra.mxu0 %v1586
      %1602 = vmatpush.bf16.msra.mxu0 %v1585
      %1603 = vmatpush.bf16.msra.mxu0 %v1584
      %1604 = vmatmul.bf16.gmra.mxu0 %v1594
      %v1605 = vpop.f32.mrf.mxu0
      %v1606 = vadd.f32 0.0, %v1605
      %v1607 = vpop.f32.mrf.mxu0
      %v1608 = vadd.f32 0.0, %v1607
      %1609 = vdwg.mxu0
      %v1611 = vunpack.c.l.b16 %v1537
      %v1612 = vpack.c.b16 %v1611, %v1558
      %v1621 = vunpack.c.l.b16 %v1538
      %v1622 = vunpack.c.l.b16 %v1539
      %v1623 = vunpack.c.l.b16 %v1540
      %v1624 = vunpack.c.l.b16 %v1541
      %v1625 = vunpack.c.l.b16 %v1542
      %v1626 = vunpack.c.l.b16 %v1543
      %v1627 = vunpack.c.l.b16 %v1544
      %v1628 = vunpack.c.l.b16 %v1545
      %v1629 = vpack.c.b16 %v1622, %v1621
      %v1630 = vpack.c.b16 %v1624, %v1623
      %v1631 = vpack.c.b16 %v1626, %v1625
      %v1632 = vpack.c.b16 %v1628, %v1627
      %v1638 = vsel %vm1592, %v1612, 0
      %1640 = vmatpush.bf16.msra.mxu0 0
      %1641 = vmatpush.bf16.msra.mxu0 0
      %1642 = vmatpush.bf16.msra.mxu0 0
      %1643 = vmatpush.bf16.msra.mxu0 0
      %1644 = vmatpush.bf16.msra.mxu0 %v1632
      %1645 = vmatpush.bf16.msra.mxu0 %v1631
      %1646 = vmatpush.bf16.msra.mxu0 %v1630
      %1647 = vmatpush.bf16.msra.mxu0 %v1629
      %1648 = vmatmul.bf16.gmra.mxu0 %v1638
      %v1649 = vpop.f32.mrf.mxu0
      %v1650 = vadd.f32 %v1606, %v1649
      %v1651 = vpop.f32.mrf.mxu0
      %v1652 = vadd.f32 %v1608, %v1651
      %1653 = vdwg.mxu0
      %v1654 = vld [vmem:[#allocation27] sm:$0xc]
      %v1655 = vld [vmem:[#allocation27 + $0x4] sm:$0xf]
      %s1656 = scalar_lea.vmem [#allocation28], 64
      %v1657 = vld [vmem:[%s1656] sm:$0xf]
      %v1658 = vld [vmem:[%s1656 + $0x4] sm:$0xf]
      %v1659 = vld [vmem:[%s1656 + $0x8] sm:$0xf]
      %v1660 = vld [vmem:[%s1656 + $0xc] sm:$0xf]
      %v1661 = vld [vmem:[%s1656 + $0x10] sm:$0xf]
      %v1662 = vld [vmem:[%s1656 + $0x14] sm:$0xf]
      %v1663 = vld [vmem:[%s1656 + $0x18] sm:$0xf]
      %v1664 = vld [vmem:[%s1656 + $0x1c] sm:$0xf]
      %v1665 = vld [vmem:[#allocation27 + $0x8] sm:$0x1]
      %s1666 = scalar_lea.vmem [#allocation28], 96
      %v1667 = vld [vmem:[%s1666] sm:$0xf]
      %v1668 = vld [vmem:[%s1666 + $0x4] sm:$0xf]
      %v1669 = vld [vmem:[%s1666 + $0x8] sm:$0xf]
      %v1670 = vld [vmem:[%s1666 + $0xc] sm:$0xf]
      %v1671 = vld [vmem:[%s1666 + $0x10] sm:$0xf]
      %v1672 = vld [vmem:[%s1666 + $0x14] sm:$0xf]
      %v1673 = vld [vmem:[%s1666 + $0x18] sm:$0xf]
      %v1674 = vld [vmem:[%s1666 + $0x1c] sm:$0xf]
      %v1678 = vunpack.c.l.b16 %v1654
      %v1679 = vunpack.c.l.b16 %v1655
      %v1680 = vunpack.c.l.b16 %v1665
      %v1681 = vpack.c.b16 %v1679, %v1678
      %v1682 = vpack.c.b16 %v1680, %v1680
      %vm1683 = vsmask.f32 5376
      %v1685 = vshrl.u32 %v1681, 16
      %v1687 = vrot.slane %v1685, 2
      %v1688 = vshll.u32 %v1681, 16
      %v1690 = vrot.slane %v1688, 3
      %v1691 = vor.u32 %v1687, %v1690
      %v1693 = vshll.u32 %v1682, 16
      %v1695 = vrot.slane %v1693, 3
      %v1696 = vsel %vm1683, %v1691, %v1695
      %v1705 = vunpack.c.l.b16 %v1667
      %v1706 = vunpack.c.l.b16 %v1668
      %v1707 = vunpack.c.l.b16 %v1669
      %v1708 = vunpack.c.l.b16 %v1670
      %v1709 = vunpack.c.l.b16 %v1671
      %v1710 = vunpack.c.l.b16 %v1672
      %v1711 = vunpack.c.l.b16 %v1673
      %v1712 = vunpack.c.l.b16 %v1674
      %v1713 = vpack.c.b16 %v1706, %v1705
      %v1714 = vpack.c.b16 %v1708, %v1707
      %v1715 = vpack.c.b16 %v1710, %v1709
      %v1716 = vpack.c.b16 %v1712, %v1711
      %v1722 = vsel %vm1592, %v1696, 0
      %1724 = vmatpush.bf16.msra.mxu0 0
      %1725 = vmatpush.bf16.msra.mxu0 0
      %1726 = vmatpush.bf16.msra.mxu0 0
      %1727 = vmatpush.bf16.msra.mxu0 0
      %1728 = vmatpush.bf16.msra.mxu0 %v1716
      %1729 = vmatpush.bf16.msra.mxu0 %v1715
      %1730 = vmatpush.bf16.msra.mxu0 %v1714
      %1731 = vmatpush.bf16.msra.mxu0 %v1713
      %1732 = vmatmul.bf16.gmra.mxu0 %v1722
      %v1733 = vpop.f32.mrf.mxu0
      %v1734 = vadd.f32 0.0, %v1733
      %v1735 = vpop.f32.mrf.mxu0
      %v1736 = vadd.f32 0.0, %v1735
      %1737 = vdwg.mxu0
      %v1738 = vrot.slane %v1681, 2
      %v1747 = vunpack.c.l.b16 %v1657
      %v1748 = vunpack.c.l.b16 %v1658
      %v1749 = vunpack.c.l.b16 %v1659
      %v1750 = vunpack.c.l.b16 %v1660
      %v1751 = vunpack.c.l.b16 %v1661
      %v1752 = vunpack.c.l.b16 %v1662
      %v1753 = vunpack.c.l.b16 %v1663
      %v1754 = vunpack.c.l.b16 %v1664
      %v1755 = vpack.c.b16 %v1748, %v1747
      %v1756 = vpack.c.b16 %v1750, %v1749
      %v1757 = vpack.c.b16 %v1752, %v1751
      %v1758 = vpack.c.b16 %v1754, %v1753
      %v1764 = vsel %vm1592, %v1738, 0
      %1766 = vmatpush.bf16.msra.mxu0 0
      %1767 = vmatpush.bf16.msra.mxu0 0
      %1768 = vmatpush.bf16.msra.mxu0 0
      %1769 = vmatpush.bf16.msra.mxu0 0
      %1770 = vmatpush.bf16.msra.mxu0 %v1758
      %1771 = vmatpush.bf16.msra.mxu0 %v1757
      %1772 = vmatpush.bf16.msra.mxu0 %v1756
      %1773 = vmatpush.bf16.msra.mxu0 %v1755
      %1774 = vmatmul.bf16.gmra.mxu0 %v1764
      %v1775 = vpop.f32.mrf.mxu0
      %v1776 = vadd.f32 %v1734, %v1775
      %v1777 = vpop.f32.mrf.mxu0
      %v1778 = vadd.f32 %v1736, %v1777
      %1779 = vdwg.mxu0
      %v1780 = vadd.f32 %v1650, %v1776
      %v1781 = vadd.f32 %v1652, %v1778
      %v1782 = vld [vmem:[%s0] sm:$0x1]
      %v1784 = vperm.slane %v1782, 0
      %v1786 = vadd.f32 %v1780, %v1784
      %v1787 = vadd.f32 %v1781, %v1784
      %v1788 = vmax.f32 %v1786, 0.0
      %v1789 = vmax.f32 %v1787, 0.0
      %v1790 = vpack.c.bf16 %v1788, %v1788
      %v1791 = vpack.c.bf16 %v1789, %v1789
      %1792 = vst [vmem:[%s404] sm:$0xf] %v1790
      %1793 = vst [vmem:[%s404 + $0x4] sm:$0x3] %v1791
      %p1794 = scmp.lt.s32.totalorder %s44, 1
      %s1795 = scalar_select %p1794, %s44, 1
      %s1796 = smul.addr %s1795, 2
      %s1797 = smul.addr %s1796, 4
      %s1798 = scalar_lea.vmem %s8, %s1797
      // Predicated region
      $region45: #{baseline_forward.15} parent=43 // pred_check
        %p1799 = pneg %p214
      $region46: #{baseline_forward.15} parent=43 // pred_check_branch
        %1801 = sbr.rel (%p1799) target = $region48
      $region47: #{baseline_forward.15} parent=43 // pred_region
        _
      $region48: #{baseline_forward.15} parent=43 // pred_fallthru
        _
    $region44: #{baseline_forward.15} parent=5 // pred_fallthru
      _
    %p1802 = scmp.le.s32.totalorder 2, %s39
    // Predicated region
    $region49: #{baseline_forward.15} parent=5 // pred_check
      %p1803 = pneg %p1802
    $region50: #{baseline_forward.15} parent=5 // pred_check_branch
      %1805 = sbr.rel (%p1803) target = $region52
    $region51: #{baseline_forward.15} parent=5 // pred_region
      %s1806 = ssub.s32 %s39, 2
      // Predicated region
      $region53: #{baseline_forward.15} parent=51 // pred_check
        %p1807 = pneg %p220
      $region54: #{baseline_forward.15} parent=51 // pred_check_branch
        %1809 = sbr.rel (%p1807) target = $region56
      $region55: #{baseline_forward.15} parent=51 // pred_region
        %p1810 = scmp.lt.s32.totalorder %s45, 1
        %s1811 = scalar_select %p1810, %s45, 1
        %s1812 = smul.addr %s1811, 2
        %s1813 = smul.addr %s1812, 4
        %s1814 = scalar_lea.vmem %s8, %s1813
      $region56: #{baseline_forward.15} parent=51 // pred_fallthru
        _
    $region52: #{baseline_forward.15} parent=5 // pred_fallthru
      _
  $region6: #{baseline_forward.15} parent=0 // loop_footer
    %s43 = sadd.s32 1, %s39
  $region7: #{baseline_forward.15} parent=0 // loop_footer_branch
    %38 = sbr.rel target = $region3
  $region8: #{baseline_forward.15} parent=0 // loop_exit
    _

// kernel: tile.28
$region0: #{tile.28}
  #allocation0 [shape = 's32[1]{0}', space=sflag, size = 0x4, scoped, tag = 'scoped memory for tile.28']
  %s0 = inlined_call_operand.vmem [shape: f32[3], index: 0, kind: input, shape index: {}]
  %s1 = inlined_call_operand.vmem [shape: f32[4,3], index: 1, kind: output, shape index: {}]
  // Predicated region
  $region2: #{tile.28} parent=0 // pred_check
    _
  $region3: #{tile.28} parent=0 // pred_check_branch
    %3 = sbr.rel (0) target = $region5
  $region4: #{tile.28} parent=0 // pred_region
    _
  $region5: #{tile.28} parent=0 // pred_fallthru
    _
  %v4 = vld [vmem:[%s0] ss:$0 sm:$0xff]
  %5 = vst [vmem:[%s1] sm:$0xf] %v4

// kernel: tile.29
$region0: #{tile.29}
  %s0 = inlined_call_operand.vmem [shape: f32[4,3], index: 0, kind: input, shape index: {}]
  %s1 = inlined_call_operand.vmem [shape: f32[1,12], index: 1, kind: output, shape index: {}]
  $region1: #{tile.29} parent=0
    #allocation0 [shape = 'u8[4096]{0}', space=vmem, size = 0x1000, scoped, tag = 'scoped mem for output reshape']
    #allocation1 [shape = 'u8[4096]{0}', space=vmem, size = 0x1000, scoped, tag = 'scoped mem for input reshape']
    %s3 = ssub.s32 16, 1
    %v4 = vld [vmem:[%s0] sm:%s3]
    %5 = vst [vmem:[#allocation1] sm:%s3] %v4
    %v6 = vld [vmem:[#allocation1] sm:$0x1]
    %vm7 = vcmask 23552
    %8 = vst.msk [vmem:[#allocation0] sm:$0x1] %vm7, %v6
    %s9 = scalar_lea.vmem [#allocation1], 3
    %v10 = vld [vmem:[%s9] sm:$0x1]
    %11 = vrot.lane.b32.xlu0 %v10, 9
    %v12 = vpop.permute.xlu0 %11
    %vm13 = vcmask 97352
    %14 = vst.msk [vmem:[#allocation0] sm:$0x1] %vm13, %v12
    %s15 = scalar_lea.vmem [#allocation1], 2
    %v16 = vld [vmem:[%s15] sm:$0x1]
    %17 = vrot.lane.b32.xlu0 %v16, 6
    %v18 = vpop.permute.xlu0 %17
    %vm19 = vcmask 72752
    %20 = vst.msk [vmem:[#allocation0] sm:$0x1] %vm19, %v18
    %s21 = scalar_lea.vmem [#allocation1], 1
    %v22 = vld [vmem:[%s21] sm:$0x1]
    %23 = vrot.lane.b32.xlu0 %v22, 3
    %v24 = vpop.permute.xlu0 %23
    %vm25 = vcmask 48152
    %26 = vst.msk [vmem:[#allocation0] sm:$0x1] %vm25, %v24
    %s28 = ssub.s32 2, 1
    %v29 = vld [vmem:[#allocation0] sm:%s28]
    %s31 = ssub.s32 2, 1
    %32 = vst [vmem:[%s1] sm:%s31] %v29

// kernel: baseline_forward.17
$region0: #{baseline_forward.17}
  #allocation0 [shape = 'u32[]', space=smem, size = 0x4, offset = 0x4, fixed_abs, tag = 'smem constant byte address 0x4 - core index']
  #allocation1 [shape = 'u32[72,128]{1,0:T(1,128)}', space=vmem, size = 0x9000, scoped, tag = 'internal scratch']
  #allocation2 [shape = 'u32[2048]{0}', space=vmem, size = 0x2000, scoped, tag = 'scoped memory for baseline_forward.17']
  #allocation3 [shape = 'u32[2048]{0}', space=vmem, size = 0x2000, scoped, tag = 'scoped memory for baseline_forward.17']
  #allocation4 [shape = 'u32[2048]{0}', space=vmem, size = 0x2000, scoped, tag = 'scoped memory for baseline_forward.17']
  #allocation5 [shape = 'u32[2048]{0}', space=vmem, size = 0x2000, scoped, tag = 'scoped memory for baseline_forward.17']
  #allocation6 [shape = 'u32[2048]{0}', space=vmem, size = 0x2000, scoped, tag = 'scoped memory for baseline_forward.17']
  #allocation7 [shape = 'u32[2048]{0}', space=vmem, size = 0x2000, scoped, tag = 'scoped memory for baseline_forward.17']
  #allocation8 [shape = 'u32[2048]{0}', space=vmem, size = 0x2000, scoped, tag = 'scoped memory for baseline_forward.17']
  #allocation9 [shape = 'u32[2048]{0}', space=vmem, size = 0x2000, scoped, tag = 'scoped memory for baseline_forward.17']
  #allocation10 [shape = 'u32[2048]{0}', space=vmem, size = 0x2000, scoped, tag = 'scoped memory for baseline_forward.17']
  #allocation11 [shape = 'u32[2048]{0}', space=vmem, size = 0x2000, scoped, tag = 'scoped memory for baseline_forward.17']
  #allocation12 [shape = 'u32[2048]{0}', space=vmem, size = 0x2000, scoped, tag = 'scoped memory for baseline_forward.17']
  #allocation13 [shape = 'u32[2048]{0}', space=vmem, size = 0x2000, scoped, tag = 'scoped memory for baseline_forward.17']
  #allocation14 [shape = 'u32[2048]{0}', space=vmem, size = 0x2000, scoped, tag = 'scoped memory for baseline_forward.17']
  #allocation15 [shape = 'u32[2048]{0}', space=vmem, size = 0x2000, scoped, tag = 'scoped memory for baseline_forward.17']
  #allocation16 [shape = 'u32[2048]{0}', space=vmem, size = 0x2000, scoped, tag = 'scoped memory for baseline_forward.17']
  #allocation17 [shape = 'u32[2048]{0}', space=vmem, size = 0x2000, scoped, tag = 'scoped memory for baseline_forward.17']
  #allocation18 [shape = 'u32[2048]{0}', space=vmem, size = 0x2000, scoped, tag = 'scoped memory for baseline_forward.17']
  #allocation19 [shape = 'u32[2048]{0}', space=vmem, size = 0x2000, scoped, tag = 'scoped memory for baseline_forward.17']
  #allocation20 [shape = 'u32[2048]{0}', space=vmem, size = 0x2000, scoped, tag = 'scoped memory for baseline_forward.17']
  #allocation21 [shape = 'u32[2048]{0}', space=vmem, size = 0x2000, scoped, tag = 'scoped memory for baseline_forward.17']
  #allocation22 [shape = 'u32[2048]{0}', space=vmem, size = 0x2000, scoped, tag = 'scoped memory for baseline_forward.17']
  #allocation23 [shape = 'u32[2048]{0}', space=vmem, size = 0x2000, scoped, tag = 'scoped memory for baseline_forward.17']
  #allocation24 [shape = 'u32[2048]{0}', space=vmem, size = 0x2000, scoped, tag = 'scoped memory for baseline_forward.17']
  #allocation25 [shape = 'u32[2048]{0}', space=vmem, size = 0x2000, scoped, tag = 'scoped memory for baseline_forward.17']
  #allocation26 [shape = 'u32[2048]{0}', space=vmem, size = 0x2000, scoped, tag = 'scoped memory for baseline_forward.17']
  %s0 = inlined_call_operand.vmem [shape: f32[1,64], index: 0, kind: input, shape index: {}]
  %s1 = inlined_call_operand.vmem [shape: bf16[1,32,64], index: 1, kind: input, shape index: {}]
  %s2 = inlined_call_operand.<no memory space> [shape: bf16[], index: 2, kind: input, shape index: {}]
  %s3 = inlined_call_operand.vmem [shape: bf16[1,32,64], index: 3, kind: input, shape index: {}]
  %s4 = inlined_call_operand.vmem [shape: bf16[1,32,64], index: 4, kind: input, shape index: {}]
  %s5 = inlined_call_operand.vmem [shape: bf16[1,32,64], index: 5, kind: input, shape index: {}]
  %s6 = inlined_call_operand.vmem [shape: bf16[2,36,32], index: 6, kind: input, shape index: {}]
  %s7 = inlined_call_operand.<no memory space> [shape: bf16[], index: 7, kind: input, shape index: {}]
  %s8 = inlined_call_operand.vmem [shape: bf16[2,30,64], index: 8, kind: output, shape index: {}]
  %s9 = sld [smem:[#allocation0]]
  $region57: #{baseline_forward.17} parent=0
    _
  %s11 = ssub.s32 1, %s9
  %s12 = scalar_select 0, %s11, %s9
  %v13 = vstv %s7
  %v14 = vunpack.i.l.bf16 %v13
  %v16 = vunpack.i.h.bf16 %v13
  %v18 = vstv %s2
  %v19 = vunpack.i.l.bf16 %v18
  %v21 = vunpack.i.h.bf16 %v18
  %v23 = vstv %s2
  %v24 = vunpack.i.l.bf16 %v23
  %v26 = vunpack.i.h.bf16 %v23
  %v28 = vstv %s2
  %v29 = vunpack.i.l.bf16 %v28
  %v31 = vunpack.i.h.bf16 %v28
  %v33 = vstv %s2
  %v34 = vunpack.i.l.bf16 %v33
  %v36 = vunpack.i.h.bf16 %v33
  loop: start=0, step=1, limit=4
  $region2: #{baseline_forward.17} parent=0 // loop_pre_header
    _
  $region3: #{baseline_forward.17} parent=0 // loop_header
    %s39 = sphi 0, %s43
    %p40 = scmp.ge.s32.totalorder %s39, 4
    %s49 = sphi 0, %s51
    %s52 = sphi 0, %s49
    %s53 = sphi 0, %s52
    %s69 = sphi 0, %s53
    %s77 = sphi 0, %s79
    %s80 = sphi 0, %s77
    %s81 = sphi 0, %s80
    %s97 = sphi 0, %s81
    %s105 = sphi 0, %s107
    %s108 = sphi 0, %s105
    %s109 = sphi 0, %s108
    %s125 = sphi 0, %s109
    %s133 = sphi 0, %s135
    %s136 = sphi 0, %s133
    %s137 = sphi 0, %s136
    %s153 = sphi 0, %s137
    %s157 = sphi 0, %s157
    %s159 = sphi 0, %s157
    %s160 = sphi 0, %s159
    %s174 = sphi 0, %s160
    %s178 = sphi 0, %s178
    %s180 = sphi 0, %s178
    %s181 = sphi 0, %s180
    %s195 = sphi 0, %s181
    %s201 = sphi 0, %s203
    %s204 = sphi 0, %s201
    %s205 = sphi 0, %s204
    %s221 = sphi 0, %s205
  $region4: #{baseline_forward.17} parent=0 // loop_header_branch
    %42 = sbr.rel (%p40) target = $region8
  $region5: #{baseline_forward.17} parent=0 // loop_body
    %s44 = ssub.s32 %s39, 1
    %s45 = ssub.s32 %s39, 2
    %s46 = sadd.s32 %s39, 1
    %s47 = ssub.s32 %s39, %s46
    %p48 = scmp.eq.s32.totalorder %s47, 0
    %s50 = sadd.s32 %s49, 1
    %s51 = scalar_select %p48, %s49, %s50
    %p54 = pneg %p48
    %p55 = scmp.eq.s32.totalorder %s39, 1
    %p56 = por %p54, %p55
    %p57 = scmp.ne.s32.totalorder %s49, %s52
    %p58 = scmp.eq.s32.totalorder %s39, 0
    %p59 = por %p57, %p58
    %p60 = scmp.ne.s32.totalorder %s49, %s52
    %p61 = scmp.eq.s32.totalorder %s44, 1
    %p62 = por %p60, %p61
    %p63 = scmp.ne.s32.totalorder %s52, %s53
    %p64 = scmp.eq.s32.totalorder %s44, 0
    %p65 = por %p63, %p64
    %p66 = scmp.ne.s32.totalorder %s52, %s53
    %p67 = scmp.eq.s32.totalorder %s45, 1
    %p68 = por %p66, %p67
    %p70 = scmp.ne.s32.totalorder %s53, %s69
    %p71 = scmp.eq.s32.totalorder %s45, 0
    %p72 = por %p70, %p71
    %s75 = ssub.s32 0, 0
    %p76 = scmp.eq.s32.totalorder %s75, 0
    %s78 = sadd.s32 %s77, 1
    %s79 = scalar_select %p76, %s77, %s78
    %p82 = pneg %p76
    %p83 = scmp.eq.s32.totalorder %s39, 1
    %p84 = por %p82, %p83
    %p85 = scmp.ne.s32.totalorder %s77, %s80
    %p86 = scmp.eq.s32.totalorder %s39, 0
    %p87 = por %p85, %p86
    %p88 = scmp.ne.s32.totalorder %s77, %s80
    %p89 = scmp.eq.s32.totalorder %s44, 1
    %p90 = por %p88, %p89
    %p91 = scmp.ne.s32.totalorder %s80, %s81
    %p92 = scmp.eq.s32.totalorder %s44, 0
    %p93 = por %p91, %p92
    %p94 = scmp.ne.s32.totalorder %s80, %s81
    %p95 = scmp.eq.s32.totalorder %s45, 1
    %p96 = por %p94, %p95
    %p98 = scmp.ne.s32.totalorder %s81, %s97
    %p99 = scmp.eq.s32.totalorder %s45, 0
    %p100 = por %p98, %p99
    %s103 = ssub.s32 0, 0
    %p104 = scmp.eq.s32.totalorder %s103, 0
    %s106 = sadd.s32 %s105, 1
    %s107 = scalar_select %p104, %s105, %s106
    %p110 = pneg %p104
    %p111 = scmp.eq.s32.totalorder %s39, 1
    %p112 = por %p110, %p111
    %p113 = scmp.ne.s32.totalorder %s105, %s108
    %p114 = scmp.eq.s32.totalorder %s39, 0
    %p115 = por %p113, %p114
    %p116 = scmp.ne.s32.totalorder %s105, %s108
    %p117 = scmp.eq.s32.totalorder %s44, 1
    %p118 = por %p116, %p117
    %p119 = scmp.ne.s32.totalorder %s108, %s109
    %p120 = scmp.eq.s32.totalorder %s44, 0
    %p121 = por %p119, %p120
    %p122 = scmp.ne.s32.totalorder %s108, %s109
    %p123 = scmp.eq.s32.totalorder %s45, 1
    %p124 = por %p122, %p123
    %p126 = scmp.ne.s32.totalorder %s109, %s125
    %p127 = scmp.eq.s32.totalorder %s45, 0
    %p128 = por %p126, %p127
    %s131 = ssub.s32 0, 0
    %p132 = scmp.eq.s32.totalorder %s131, 0
    %s134 = sadd.s32 %s133, 1
    %s135 = scalar_select %p132, %s133, %s134
    %p138 = pneg %p132
    %p139 = scmp.eq.s32.totalorder %s39, 1
    %p140 = por %p138, %p139
    %p141 = scmp.ne.s32.totalorder %s133, %s136
    %p142 = scmp.eq.s32.totalorder %s39, 0
    %p143 = por %p141, %p142
    %p144 = scmp.ne.s32.totalorder %s133, %s136
    %p145 = scmp.eq.s32.totalorder %s44, 1
    %p146 = por %p144, %p145
    %p147 = scmp.ne.s32.totalorder %s136, %s137
    %p148 = scmp.eq.s32.totalorder %s44, 0
    %p149 = por %p147, %p148
    %p150 = scmp.ne.s32.totalorder %s136, %s137
    %p151 = scmp.eq.s32.totalorder %s45, 1
    %p152 = por %p150, %p151
    %p154 = scmp.ne.s32.totalorder %s137, %s153
    %p155 = scmp.eq.s32.totalorder %s45, 0
    %p156 = por %p154, %p155
    %s158 = sadd.s32 %s157, 1
    %p161 = scmp.eq.s32.totalorder %s39, 1
    %p162 = scmp.ne.s32.totalorder %s157, %s159
    %p163 = scmp.eq.s32.totalorder %s39, 0
    %p164 = por %p162, %p163
    %p165 = scmp.ne.s32.totalorder %s157, %s159
    %p166 = scmp.eq.s32.totalorder %s44, 1
    %p167 = por %p165, %p166
    %p168 = scmp.ne.s32.totalorder %s159, %s160
    %p169 = scmp.eq.s32.totalorder %s44, 0
    %p170 = por %p168, %p169
    %p171 = scmp.ne.s32.totalorder %s159, %s160
    %p172 = scmp.eq.s32.totalorder %s45, 1
    %p173 = por %p171, %p172
    %p175 = scmp.ne.s32.totalorder %s160, %s174
    %p176 = scmp.eq.s32.totalorder %s45, 0
    %p177 = por %p175, %p176
    %s179 = sadd.s32 %s178, 1
    %p182 = scmp.eq.s32.totalorder %s39, 1
    %p183 = scmp.ne.s32.totalorder %s178, %s180
    %p184 = scmp.eq.s32.totalorder %s39, 0
    %p185 = por %p183, %p184
    %p186 = scmp.ne.s32.totalorder %s178, %s180
    %p187 = scmp.eq.s32.totalorder %s44, 1
    %p188 = por %p186, %p187
    %p189 = scmp.ne.s32.totalorder %s180, %s181
    %p190 = scmp.eq.s32.totalorder %s44, 0
    %p191 = por %p189, %p190
    %p192 = scmp.ne.s32.totalorder %s180, %s181
    %p193 = scmp.eq.s32.totalorder %s45, 1
    %p194 = por %p192, %p193
    %p196 = scmp.ne.s32.totalorder %s181, %s195
    %p197 = scmp.eq.s32.totalorder %s45, 0
    %p198 = por %p196, %p197
    %s199 = ssub.s32 %s39, %s46
    %p200 = scmp.eq.s32.totalorder %s199, 0
    %s202 = sadd.s32 %s201, 1
    %s203 = scalar_select %p200, %s201, %s202
    %p206 = pneg %p200
    %p207 = scmp.eq.s32.totalorder %s39, 1
    %p208 = por %p206, %p207
    %p209 = scmp.ne.s32.totalorder %s201, %s204
    %p210 = scmp.eq.s32.totalorder %s39, 0
    %p211 = por %p209, %p210
    %p212 = scmp.ne.s32.totalorder %s201, %s204
    %p213 = scmp.eq.s32.totalorder %s44, 1
    %p214 = por %p212, %p213
    %p215 = scmp.ne.s32.totalorder %s204, %s205
    %p216 = scmp.eq.s32.totalorder %s44, 0
    %p217 = por %p215, %p216
    %p218 = scmp.ne.s32.totalorder %s204, %s205
    %p219 = scmp.eq.s32.totalorder %s45, 1
    %p220 = por %p218, %p219
    %p222 = scmp.ne.s32.totalorder %s205, %s221
    %p223 = scmp.eq.s32.totalorder %s45, 0
    %p224 = por %p222, %p223
    %p225 = scmp.le.s32.totalorder 1, %s39
    %p226 = scmp.lt.s32.totalorder %s39, 3
    %p227 = pnand %p225, %p226
    %p228 = pneg %p227
    // Predicated region
    $region9: #{baseline_forward.17} parent=5 // pred_check
      _
    $region10: #{baseline_forward.17} parent=5 // pred_check_branch
      %230 = sbr.rel (%p227) target = $region12
    $region11: #{baseline_forward.17} parent=5 // pred_region
      %s231 = ssub.s32 %s39, 1
      // Predicated region
      $region13: #{baseline_forward.17} parent=11 // pred_check
        %p232 = pneg %p93
      $region14: #{baseline_forward.17} parent=11 // pred_check_branch
        %234 = sbr.rel (%p232) target = $region16
      $region15: #{baseline_forward.17} parent=11 // pred_region
        %s236 = ssub.s32 1, 0
        %s237 = smul.u32 4, %s236
        %s238 = smul.u32 %s237, 4
        %p239 = scmp.lt.s32.totalorder 0, 0
        %s240 = scalar_select %p239, 0, 0
        %s241 = smul.addr %s240, 4
        %s242 = smul.addr %s241, 4
        %s243 = scalar_lea.vmem %s1, %s242
        %s245 = ssub.s32 1, 0
        %s246 = smul.u32 4, %s245
        %s247 = smul.u32 %s246, 4
      $region16: #{baseline_forward.17} parent=11 // pred_fallthru
        _
      // Predicated region
      $region17: #{baseline_forward.17} parent=11 // pred_check
        %p248 = pneg %p121
      $region18: #{baseline_forward.17} parent=11 // pred_check_branch
        %250 = sbr.rel (%p248) target = $region20
      $region19: #{baseline_forward.17} parent=11 // pred_region
        %s252 = ssub.s32 1, 0
        %s253 = smul.u32 4, %s252
        %s254 = smul.u32 %s253, 4
        %p255 = scmp.lt.s32.totalorder 0, 0
        %s256 = scalar_select %p255, 0, 0
        %s257 = smul.addr %s256, 4
        %s258 = smul.addr %s257, 4
        %s259 = scalar_lea.vmem %s3, %s258
        %s261 = ssub.s32 1, 0
        %s262 = smul.u32 4, %s261
        %s263 = smul.u32 %s262, 4
      $region20: #{baseline_forward.17} parent=11 // pred_fallthru
        _
      // Predicated region
      $region21: #{baseline_forward.17} parent=11 // pred_check
        %p264 = pneg %p149
      $region22: #{baseline_forward.17} parent=11 // pred_check_branch
        %266 = sbr.rel (%p264) target = $region24
      $region23: #{baseline_forward.17} parent=11 // pred_region
        %s268 = ssub.s32 1, 0
        %s269 = smul.u32 4, %s268
        %s270 = smul.u32 %s269, 4
        %p271 = scmp.lt.s32.totalorder 0, 0
        %s272 = scalar_select %p271, 0, 0
        %s273 = smul.addr %s272, 4
        %s274 = smul.addr %s273, 4
        %s275 = scalar_lea.vmem %s4, %s274
        %s277 = ssub.s32 1, 0
        %s278 = smul.u32 4, %s277
        %s279 = smul.u32 %s278, 4
      $region24: #{baseline_forward.17} parent=11 // pred_fallthru
        _
      // Predicated region
      $region25: #{baseline_forward.17} parent=11 // pred_check
        %p280 = pneg %p170
      $region26: #{baseline_forward.17} parent=11 // pred_check_branch
        %282 = sbr.rel (%p280) target = $region28
      $region27: #{baseline_forward.17} parent=11 // pred_region
        _
      $region28: #{baseline_forward.17} parent=11 // pred_fallthru
        _
      // Predicated region
      $region29: #{baseline_forward.17} parent=11 // pred_check
        %p283 = pneg %p191
      $region30: #{baseline_forward.17} parent=11 // pred_check_branch
        %285 = sbr.rel (%p283) target = $region32
      $region31: #{baseline_forward.17} parent=11 // pred_region
        _
      $region32: #{baseline_forward.17} parent=11 // pred_fallthru
        _
    $region12: #{baseline_forward.17} parent=5 // pred_fallthru
      _
    %p286 = scmp.lt.s32.totalorder %s39, 2
    // Predicated region
    $region33: #{baseline_forward.17} parent=5 // pred_check
      %p287 = pneg %p286
    $region34: #{baseline_forward.17} parent=5 // pred_check_branch
      %289 = sbr.rel (%p287) target = $region36
    $region35: #{baseline_forward.17} parent=5 // pred_region
      // Predicated region
      $region37: #{baseline_forward.17} parent=35 // pred_check
        %p290 = pneg %p59
      $region38: #{baseline_forward.17} parent=35 // pred_check_branch
        %292 = sbr.rel (%p290) target = $region40
      $region39: #{baseline_forward.17} parent=35 // pred_region
        %p293 = scmp.lt.s32.totalorder %s39, 1
        %s294 = scalar_select %p293, %s39, 1
        %s295 = smul.addr %s294, 5
        %s296 = smul.addr %s295, 4
        %s297 = scalar_lea.vmem %s6, %s296
      $region40: #{baseline_forward.17} parent=35 // pred_fallthru
        _
    $region36: #{baseline_forward.17} parent=5 // pred_fallthru
      _
    %p298 = scmp.le.s32.totalorder 1, %s39
    %p299 = scmp.lt.s32.totalorder %s39, 3
    %p300 = pnand %p298, %p299
    %p301 = pneg %p300
    // Predicated region
    $region41: #{baseline_forward.17} parent=5 // pred_check
      _
    $region42: #{baseline_forward.17} parent=5 // pred_check_branch
      %303 = sbr.rel (%p300) target = $region44
    $region43: #{baseline_forward.17} parent=5 // pred_region
      #allocation27 [shape = 'u8[10240]{0}', space=vmem, size = 0x2800, dematerialized = true, scoped, tag = 'FusionAdapter Buffer %fusion.48 = bf16[2,40,32]{2,1,0:T(8,128)(2,1)} fusion(%param_6.16, %param_7.3), kind=kLoop, calls=%fused_computation.65.clone, metadata={op_name="jit(baseline_forward)/jit(_pad)/pad" stack_frame_id=96}']
      #allocation28 [shape = 'u8[32768]{0}', space=vmem, size = 0x8000, dematerialized = true, scoped, tag = 'FusionAdapter Buffer %fusion.41 = bf16[4,32,64]{2,1,0:T(8,128)(2,1)} fusion(%param_1.142, %param_2.71, %param_3.56, %param_4.36, %param_5.19), kind=kLoop, calls=%fused_computation.51.clone, metadata={op_name="jit(baseline_forward)/concatenate" stack_frame_id=91}']
      %s304 = ssub.s32 %s39, 1
      %p305 = scmp.lt.s32.totalorder %s44, 1
      %s306 = scalar_select %p305, %s44, 1
      %s307 = smul.addr %s306, 5
      %s308 = smul.addr %s307, 4
      %s309 = scalar_lea.vmem %s6, %s308
      %p310 = pneg %p65
      %p311 = pneg %p62
      %s313 = ssub.s32 1, 0
      %s314 = smul.u32 4, %s313
      %s315 = smul.u32 %s314, 4
      %p316 = scmp.lt.s32.totalorder 0, 0
      %s317 = scalar_select %p316, 0, 0
      %s318 = smul.addr %s317, 4
      %s319 = smul.addr %s318, 4
      %s320 = scalar_lea.vmem %s1, %s319
      %p321 = pneg %p93
      %p322 = pneg %p90
      %s324 = ssub.s32 1, 0
      %s325 = smul.u32 4, %s324
      %s326 = smul.u32 %s325, 4
      %p327 = scmp.lt.s32.totalorder 0, 0
      %s328 = scalar_select %p327, 0, 0
      %s329 = smul.addr %s328, 4
      %s330 = smul.addr %s329, 4
      %s331 = scalar_lea.vmem %s3, %s330
      %p332 = pneg %p121
      %p333 = pneg %p118
      %s335 = ssub.s32 1, 0
      %s336 = smul.u32 4, %s335
      %s337 = smul.u32 %s336, 4
      %p338 = scmp.lt.s32.totalorder 0, 0
      %s339 = scalar_select %p338, 0, 0
      %s340 = smul.addr %s339, 4
      %s341 = smul.addr %s340, 4
      %s342 = scalar_lea.vmem %s4, %s341
      %p343 = pneg %p149
      %p344 = pneg %p146
      %p345 = pneg %p170
      %p346 = pneg %p167
      %p347 = pneg %p191
      %p348 = pneg %p188
      %p349 = pneg %p217
      %p350 = pneg %p214
      %p351 = scmp.lt.s32.totalorder %s44, 1
      %s352 = scalar_select %p351, %s44, 1
      %s353 = smul.addr %s352, 4
      %s354 = smul.addr %s353, 4
      %s355 = scalar_lea.vmem %s8, %s354
      %p356 = scmp.lt.s32.totalorder %s44, 1
      %s357 = scalar_select %p356, %s44, 1
      %s358 = smul.addr %s357, 5
      %s359 = smul.addr %s358, 4
      %s360 = scalar_lea.vmem %s6, %s359
      %s362 = ssub.s32 1, 0
      %s363 = smul.u32 4, %s362
      %s364 = smul.u32 %s363, 4
      %p365 = scmp.lt.s32.totalorder 0, 0
      %s366 = scalar_select %p365, 0, 0
      %s367 = smul.addr %s366, 4
      %s368 = smul.addr %s367, 4
      %s369 = scalar_lea.vmem %s1, %s368
      %s371 = ssub.s32 1, 0
      %s372 = smul.u32 4, %s371
      %s373 = smul.u32 %s372, 4
      %s375 = ssub.s32 1, 0
      %s376 = smul.u32 4, %s375
      %s377 = smul.u32 %s376, 4
      %p378 = scmp.lt.s32.totalorder 0, 0
      %s379 = scalar_select %p378, 0, 0
      %s380 = smul.addr %s379, 4
      %s381 = smul.addr %s380, 4
      %s382 = scalar_lea.vmem %s3, %s381
      %s384 = ssub.s32 1, 0
      %s385 = smul.u32 4, %s384
      %s386 = smul.u32 %s385, 4
      %s388 = ssub.s32 1, 0
      %s389 = smul.u32 4, %s388
      %s390 = smul.u32 %s389, 4
      %p391 = scmp.lt.s32.totalorder 0, 0
      %s392 = scalar_select %p391, 0, 0
      %s393 = smul.addr %s392, 4
      %s394 = smul.addr %s393, 4
      %s395 = scalar_lea.vmem %s4, %s394
      %s397 = ssub.s32 1, 0
      %s398 = smul.u32 4, %s397
      %s399 = smul.u32 %s398, 4
      %p400 = scmp.lt.s32.totalorder %s44, 1
      %s401 = scalar_select %p400, %s44, 1
      %s402 = smul.addr %s401, 4
      %s403 = smul.addr %s402, 4
      %s404 = scalar_lea.vmem %s8, %s403
      %v405 = vld [vmem:[%s360] sm:$0xf]
      %v406 = vunpack.c.l.bf16 %v405
      %v407 = vunpack.c.h.bf16 %v405
      %v408 = vlaneseq
      %v409 = vshrl.u32 %v408, 7
      %vm411 = vcmp.lt.s32.totalorder %v409, 36
      %v412 = vsel %vm411, %v406, %v14
      %v413 = vlaneseq
      %v414 = vand.u32 %v413, 127
      %vm416 = vcmp.lt.s32.totalorder %v414, 32
      %v417 = vsel %vm416, %v412, %v14
      %v418 = vpack.c.bf16 0.0, %v417
      %s420 = ssub.s32 16, 1
      %421 = vst [vmem:[#allocation27] sm:%s420] %v418
      %s422 = scalar_lea.vmem %s360, 4
      %v423 = vld [vmem:[%s422] sm:$0xf]
      %v424 = vunpack.c.l.bf16 %v423
      %v425 = vunpack.c.h.bf16 %v423
      %v426 = vlaneseq
      %v427 = vshrl.u32 %v426, 7
      %v428 = vadd.s32 %v427, 8
      %vm429 = vcmp.lt.s32.totalorder %v428, 36
      %v430 = vsel %vm429, %v424, %v14
      %v431 = vlaneseq
      %v432 = vand.u32 %v431, 127
      %vm434 = vcmp.lt.s32.totalorder %v432, 32
      %v435 = vsel %vm434, %v430, %v14
      %s436 = scalar_lea.vmem [#allocation27], 4
      %v437 = vpack.c.bf16 0.0, %v435
      %s439 = ssub.s32 16, 1
      %440 = vst [vmem:[%s436] sm:%s439] %v437
      %s441 = scalar_lea.vmem %s360, 8
      %v442 = vld [vmem:[%s441] sm:$0xf]
      %v443 = vunpack.c.l.bf16 %v442
      %v444 = vunpack.c.h.bf16 %v442
      %v445 = vlaneseq
      %v446 = vshrl.u32 %v445, 7
      %v447 = vadd.s32 %v446, 16
      %vm448 = vcmp.lt.s32.totalorder %v447, 36
      %v449 = vsel %vm448, %v443, %v14
      %v450 = vlaneseq
      %v451 = vand.u32 %v450, 127
      %vm453 = vcmp.lt.s32.totalorder %v451, 32
      %v454 = vsel %vm453, %v449, %v14
      %s455 = scalar_lea.vmem [#allocation27], 8
      %v456 = vpack.c.bf16 0.0, %v454
      %s458 = ssub.s32 16, 1
      %459 = vst [vmem:[%s455] sm:%s458] %v456
      %s460 = scalar_lea.vmem %s360, 12
      %v461 = vld [vmem:[%s460] sm:$0xf]
      %v462 = vunpack.c.l.bf16 %v461
      %v463 = vunpack.c.h.bf16 %v461
      %v464 = vlaneseq
      %v465 = vshrl.u32 %v464, 7
      %v466 = vadd.s32 %v465, 24
      %vm467 = vcmp.lt.s32.totalorder %v466, 36
      %v468 = vsel %vm467, %v462, %v14
      %v469 = vlaneseq
      %v470 = vand.u32 %v469, 127
      %vm472 = vcmp.lt.s32.totalorder %v470, 32
      %v473 = vsel %vm472, %v468, %v14
      %s474 = scalar_lea.vmem [#allocation27], 12
      %v475 = vpack.c.bf16 0.0, %v473
      %s477 = ssub.s32 16, 1
      %478 = vst [vmem:[%s474] sm:%s477] %v475
      %s479 = scalar_lea.vmem %s360, 16
      %s481 = sor.u32 255, 127
      %s482 = sand.u32 %s481, 85
      %s483 = sshrl.u32 %s482, 1
      %s484 = sor.u32 %s482, %s483
      %s485 = sand.u32 51, %s484
      %s486 = sshrl.u32 %s485, 2
      %s487 = sor.u32 %s485, %s486
      %s488 = sand.u32 15, %s487
      %v489 = vld [vmem:[%s479] sm:%s488]
      %v490 = vunpack.c.l.bf16 %v489
      %v491 = vunpack.c.h.bf16 %v489
      %v492 = vlaneseq
      %v493 = vshrl.u32 %v492, 7
      %v494 = vadd.s32 %v493, 32
      %vm495 = vcmp.lt.s32.totalorder %v494, 36
      %v496 = vsel %vm495, %v490, %v14
      %v497 = vlaneseq
      %v498 = vand.u32 %v497, 127
      %vm500 = vcmp.lt.s32.totalorder %v498, 32
      %v501 = vsel %vm500, %v496, %v14
      %s502 = scalar_lea.vmem [#allocation27], 16
      %v503 = vpack.c.bf16 0.0, %v501
      %s505 = ssub.s32 16, 1
      %506 = vst [vmem:[%s502] sm:%s505] %v503
      %s507 = ssub.s32 0, 0
      %p508 = scmp.lt.s32.totalorder %s507, 0
      %s509 = scalar_select %p508, 0, 255
      %s510 = sshrl.u32 %s509, 1
      %s511 = sor.u32 %s509, %s510
      %s512 = sand.u32 %s511, 85
      %s513 = sshrl.u32 %s512, 1
      %s514 = sor.u32 %s512, %s513
      %s515 = sand.u32 51, %s514
      %s516 = sshrl.u32 %s515, 2
      %s517 = sor.u32 %s515, %s516
      %s518 = sand.u32 15, %s517
      %v519 = vld [vmem:[%s369] sm:%s518]
      %v520 = vunpack.c.l.bf16 %v519
      %v521 = vunpack.c.h.bf16 %v519
      %s522 = ssub.s32 0, 0
      %p523 = scmp.lt.s32.totalorder %s522, 0
      %s524 = scalar_select %p523, 0, 255
      %s525 = sshrl.u32 %s524, 1
      %s526 = sor.u32 %s524, %s525
      %s527 = sand.u32 %s526, 85
      %s528 = sshrl.u32 %s527, 1
      %s529 = sor.u32 %s527, %s528
      %s530 = sand.u32 51, %s529
      %s531 = sshrl.u32 %s530, 2
      %s532 = sor.u32 %s530, %s531
      %s533 = sand.u32 15, %s532
      %v534 = vld [vmem:[%s382] sm:%s533]
      %v535 = vunpack.c.l.bf16 %v534
      %v536 = vunpack.c.h.bf16 %v534
      %s537 = ssub.s32 0, 0
      %p538 = scmp.lt.s32.totalorder %s537, 0
      %s539 = scalar_select %p538, 0, 255
      %s540 = sshrl.u32 %s539, 1
      %s541 = sor.u32 %s539, %s540
      %s542 = sand.u32 %s541, 85
      %s543 = sshrl.u32 %s542, 1
      %s544 = sor.u32 %s542, %s543
      %s545 = sand.u32 51, %s544
      %s546 = sshrl.u32 %s545, 2
      %s547 = sor.u32 %s545, %s546
      %s548 = sand.u32 15, %s547
      %v549 = vld [vmem:[%s395] sm:%s548]
      %v550 = vunpack.c.l.bf16 %v549
      %v551 = vunpack.c.h.bf16 %v549
      %s553 = sor.u32 255, 127
      %s554 = sand.u32 %s553, 85
      %s555 = sshrl.u32 %s554, 1
      %s556 = sor.u32 %s554, %s555
      %s557 = sand.u32 51, %s556
      %s558 = sshrl.u32 %s557, 2
      %s559 = sor.u32 %s557, %s558
      %s560 = sand.u32 15, %s559
      %v561 = vld [vmem:[%s5] sm:%s560]
      %v562 = vunpack.c.l.bf16 %v561
      %v563 = vunpack.c.h.bf16 %v561
      %v564 = vlaneseq
      %v565 = vand.u32 %v564, 127
      %vm567 = vcmp.lt.s32.totalorder %v565, 64
      %v568 = vsel %vm567, %v562, %v34
      %569 = xla_tuple %v568, %v29
      %570 = xla_tuple %569
      %v571 = vmax.f32 %v568, %v29
      %572 = xla_tuple %v571
      %573 = xla_tuple %v571, %v24
      %574 = xla_tuple %573
      %v575 = vmax.f32 %v571, %v24
      %576 = xla_tuple %v575
      %577 = xla_tuple %v575, %v19
      %578 = xla_tuple %577
      %v579 = vmax.f32 %v575, %v19
      %580 = xla_tuple %v579
      %v581 = vpack.c.bf16 0.0, %v579
      %s583 = ssub.s32 16, 1
      %584 = vst [vmem:[#allocation28] sm:%s583] %v581
      %s585 = scalar_lea.vmem %s369, 4
      %s586 = ssub.s32 0, 0
      %p587 = scmp.lt.s32.totalorder %s586, 0
      %s588 = scalar_select %p587, 0, 255
      %s589 = sshrl.u32 %s588, 1
      %s590 = sor.u32 %s588, %s589
      %s591 = sand.u32 %s590, 85
      %s592 = sshrl.u32 %s591, 1
      %s593 = sor.u32 %s591, %s592
      %s594 = sand.u32 51, %s593
      %s595 = sshrl.u32 %s594, 2
      %s596 = sor.u32 %s594, %s595
      %s597 = sand.u32 15, %s596
      %v598 = vld [vmem:[%s585] sm:%s597]
      %v599 = vunpack.c.l.bf16 %v598
      %v600 = vunpack.c.h.bf16 %v598
      %s601 = scalar_lea.vmem %s382, 4
      %s602 = ssub.s32 0, 0
      %p603 = scmp.lt.s32.totalorder %s602, 0
      %s604 = scalar_select %p603, 0, 255
      %s605 = sshrl.u32 %s604, 1
      %s606 = sor.u32 %s604, %s605
      %s607 = sand.u32 %s606, 85
      %s608 = sshrl.u32 %s607, 1
      %s609 = sor.u32 %s607, %s608
      %s610 = sand.u32 51, %s609
      %s611 = sshrl.u32 %s610, 2
      %s612 = sor.u32 %s610, %s611
      %s613 = sand.u32 15, %s612
      %v614 = vld [vmem:[%s601] sm:%s613]
      %v615 = vunpack.c.l.bf16 %v614
      %v616 = vunpack.c.h.bf16 %v614
      %s617 = scalar_lea.vmem %s395, 4
      %s618 = ssub.s32 0, 0
      %p619 = scmp.lt.s32.totalorder %s618, 0
      %s620 = scalar_select %p619, 0, 255
      %s621 = sshrl.u32 %s620, 1
      %s622 = sor.u32 %s620, %s621
      %s623 = sand.u32 %s622, 85
      %s624 = sshrl.u32 %s623, 1
      %s625 = sor.u32 %s623, %s624
      %s626 = sand.u32 51, %s625
      %s627 = sshrl.u32 %s626, 2
      %s628 = sor.u32 %s626, %s627
      %s629 = sand.u32 15, %s628
      %v630 = vld [vmem:[%s617] sm:%s629]
      %v631 = vunpack.c.l.bf16 %v630
      %v632 = vunpack.c.h.bf16 %v630
      %s633 = scalar_lea.vmem %s5, 4
      %s635 = sor.u32 255, 127
      %s636 = sand.u32 %s635, 85
      %s637 = sshrl.u32 %s636, 1
      %s638 = sor.u32 %s636, %s637
      %s639 = sand.u32 51, %s638
      %s640 = sshrl.u32 %s639, 2
      %s641 = sor.u32 %s639, %s640
      %s642 = sand.u32 15, %s641
      %v643 = vld [vmem:[%s633] sm:%s642]
      %v644 = vunpack.c.l.bf16 %v643
      %v645 = vunpack.c.h.bf16 %v643
      %v646 = vlaneseq
      %v647 = vand.u32 %v646, 127
      %vm649 = vcmp.lt.s32.totalorder %v647, 64
      %v650 = vsel %vm649, %v644, %v34
      %651 = xla_tuple %v650, %v29
      %652 = xla_tuple %651
      %v653 = vmax.f32 %v650, %v29
      %654 = xla_tuple %v653
      %655 = xla_tuple %v653, %v24
      %656 = xla_tuple %655
      %v657 = vmax.f32 %v653, %v24
      %658 = xla_tuple %v657
      %659 = xla_tuple %v657, %v19
      %660 = xla_tuple %659
      %v661 = vmax.f32 %v657, %v19
      %662 = xla_tuple %v661
      %s663 = scalar_lea.vmem [#allocation28], 4
      %v664 = vpack.c.bf16 0.0, %v661
      %s666 = ssub.s32 16, 1
      %667 = vst [vmem:[%s663] sm:%s666] %v664
      %s668 = scalar_lea.vmem %s369, 8
      %s669 = ssub.s32 0, 0
      %p670 = scmp.lt.s32.totalorder %s669, 0
      %s671 = scalar_select %p670, 0, 255
      %s672 = sshrl.u32 %s671, 1
      %s673 = sor.u32 %s671, %s672
      %s674 = sand.u32 %s673, 85
      %s675 = sshrl.u32 %s674, 1
      %s676 = sor.u32 %s674, %s675
      %s677 = sand.u32 51, %s676
      %s678 = sshrl.u32 %s677, 2
      %s679 = sor.u32 %s677, %s678
      %s680 = sand.u32 15, %s679
      %v681 = vld [vmem:[%s668] sm:%s680]
      %v682 = vunpack.c.l.bf16 %v681
      %v683 = vunpack.c.h.bf16 %v681
      %s684 = scalar_lea.vmem %s382, 8
      %s685 = ssub.s32 0, 0
      %p686 = scmp.lt.s32.totalorder %s685, 0
      %s687 = scalar_select %p686, 0, 255
      %s688 = sshrl.u32 %s687, 1
      %s689 = sor.u32 %s687, %s688
      %s690 = sand.u32 %s689, 85
      %s691 = sshrl.u32 %s690, 1
      %s692 = sor.u32 %s690, %s691
      %s693 = sand.u32 51, %s692
      %s694 = sshrl.u32 %s693, 2
      %s695 = sor.u32 %s693, %s694
      %s696 = sand.u32 15, %s695
      %v697 = vld [vmem:[%s684] sm:%s696]
      %v698 = vunpack.c.l.bf16 %v697
      %v699 = vunpack.c.h.bf16 %v697
      %s700 = scalar_lea.vmem %s395, 8
      %s701 = ssub.s32 0, 0
      %p702 = scmp.lt.s32.totalorder %s701, 0
      %s703 = scalar_select %p702, 0, 255
      %s704 = sshrl.u32 %s703, 1
      %s705 = sor.u32 %s703, %s704
      %s706 = sand.u32 %s705, 85
      %s707 = sshrl.u32 %s706, 1
      %s708 = sor.u32 %s706, %s707
      %s709 = sand.u32 51, %s708
      %s710 = sshrl.u32 %s709, 2
      %s711 = sor.u32 %s709, %s710
      %s712 = sand.u32 15, %s711
      %v713 = vld [vmem:[%s700] sm:%s712]
      %v714 = vunpack.c.l.bf16 %v713
      %v715 = vunpack.c.h.bf16 %v713
      %s716 = scalar_lea.vmem %s5, 8
      %s718 = sor.u32 255, 127
      %s719 = sand.u32 %s718, 85
      %s720 = sshrl.u32 %s719, 1
      %s721 = sor.u32 %s719, %s720
      %s722 = sand.u32 51, %s721
      %s723 = sshrl.u32 %s722, 2
      %s724 = sor.u32 %s722, %s723
      %s725 = sand.u32 15, %s724
      %v726 = vld [vmem:[%s716] sm:%s725]
      %v727 = vunpack.c.l.bf16 %v726
      %v728 = vunpack.c.h.bf16 %v726
      %v729 = vlaneseq
      %v730 = vand.u32 %v729, 127
      %vm732 = vcmp.lt.s32.totalorder %v730, 64
      %v733 = vsel %vm732, %v727, %v34
      %734 = xla_tuple %v733, %v29
      %735 = xla_tuple %734
      %v736 = vmax.f32 %v733, %v29
      %737 = xla_tuple %v736
      %738 = xla_tuple %v736, %v24
      %739 = xla_tuple %738
      %v740 = vmax.f32 %v736, %v24
      %741 = xla_tuple %v740
      %742 = xla_tuple %v740, %v19
      %743 = xla_tuple %742
      %v744 = vmax.f32 %v740, %v19
      %745 = xla_tuple %v744
      %s746 = scalar_lea.vmem [#allocation28], 8
      %v747 = vpack.c.bf16 0.0, %v744
      %s749 = ssub.s32 16, 1
      %750 = vst [vmem:[%s746] sm:%s749] %v747
      %s751 = scalar_lea.vmem %s369, 12
      %s752 = ssub.s32 0, 0
      %p753 = scmp.lt.s32.totalorder %s752, 0
      %s754 = scalar_select %p753, 0, 255
      %s755 = sshrl.u32 %s754, 1
      %s756 = sor.u32 %s754, %s755
      %s757 = sand.u32 %s756, 85
      %s758 = sshrl.u32 %s757, 1
      %s759 = sor.u32 %s757, %s758
      %s760 = sand.u32 51, %s759
      %s761 = sshrl.u32 %s760, 2
      %s762 = sor.u32 %s760, %s761
      %s763 = sand.u32 15, %s762
      %v764 = vld [vmem:[%s751] sm:%s763]
      %v765 = vunpack.c.l.bf16 %v764
      %v766 = vunpack.c.h.bf16 %v764
      %s767 = scalar_lea.vmem %s382, 12
      %s768 = ssub.s32 0, 0
      %p769 = scmp.lt.s32.totalorder %s768, 0
      %s770 = scalar_select %p769, 0, 255
      %s771 = sshrl.u32 %s770, 1
      %s772 = sor.u32 %s770, %s771
      %s773 = sand.u32 %s772, 85
      %s774 = sshrl.u32 %s773, 1
      %s775 = sor.u32 %s773, %s774
      %s776 = sand.u32 51, %s775
      %s777 = sshrl.u32 %s776, 2
      %s778 = sor.u32 %s776, %s777
      %s779 = sand.u32 15, %s778
      %v780 = vld [vmem:[%s767] sm:%s779]
      %v781 = vunpack.c.l.bf16 %v780
      %v782 = vunpack.c.h.bf16 %v780
      %s783 = scalar_lea.vmem %s395, 12
      %s784 = ssub.s32 0, 0
      %p785 = scmp.lt.s32.totalorder %s784, 0
      %s786 = scalar_select %p785, 0, 255
      %s787 = sshrl.u32 %s786, 1
      %s788 = sor.u32 %s786, %s787
      %s789 = sand.u32 %s788, 85
      %s790 = sshrl.u32 %s789, 1
      %s791 = sor.u32 %s789, %s790
      %s792 = sand.u32 51, %s791
      %s793 = sshrl.u32 %s792, 2
      %s794 = sor.u32 %s792, %s793
      %s795 = sand.u32 15, %s794
      %v796 = vld [vmem:[%s783] sm:%s795]
      %v797 = vunpack.c.l.bf16 %v796
      %v798 = vunpack.c.h.bf16 %v796
      %s799 = scalar_lea.vmem %s5, 12
      %s801 = sor.u32 255, 127
      %s802 = sand.u32 %s801, 85
      %s803 = sshrl.u32 %s802, 1
      %s804 = sor.u32 %s802, %s803
      %s805 = sand.u32 51, %s804
      %s806 = sshrl.u32 %s805, 2
      %s807 = sor.u32 %s805, %s806
      %s808 = sand.u32 15, %s807
      %v809 = vld [vmem:[%s799] sm:%s808]
      %v810 = vunpack.c.l.bf16 %v809
      %v811 = vunpack.c.h.bf16 %v809
      %v812 = vlaneseq
      %v813 = vand.u32 %v812, 127
      %vm815 = vcmp.lt.s32.totalorder %v813, 64
      %v816 = vsel %vm815, %v810, %v34
      %817 = xla_tuple %v816, %v29
      %818 = xla_tuple %817
      %v819 = vmax.f32 %v816, %v29
      %820 = xla_tuple %v819
      %821 = xla_tuple %v819, %v24
      %822 = xla_tuple %821
      %v823 = vmax.f32 %v819, %v24
      %824 = xla_tuple %v823
      %825 = xla_tuple %v823, %v19
      %826 = xla_tuple %825
      %v827 = vmax.f32 %v823, %v19
      %828 = xla_tuple %v827
      %s829 = scalar_lea.vmem [#allocation28], 12
      %v830 = vpack.c.bf16 0.0, %v827
      %s832 = ssub.s32 16, 1
      %833 = vst [vmem:[%s829] sm:%s832] %v830
      %v834 = vlaneseq
      %v835 = vand.u32 %v834, 127
      %vm837 = vcmp.lt.s32.totalorder %v835, 64
      %v838 = vsel %vm837, %v550, %v29
      %839 = xla_tuple %v34, %v838
      %840 = xla_tuple %839
      %v841 = vmax.f32 %v34, %v838
      %842 = xla_tuple %v841
      %843 = xla_tuple %v841, %v24
      %844 = xla_tuple %843
      %v845 = vmax.f32 %v841, %v24
      %846 = xla_tuple %v845
      %847 = xla_tuple %v845, %v19
      %848 = xla_tuple %847
      %v849 = vmax.f32 %v845, %v19
      %850 = xla_tuple %v849
      %s851 = scalar_lea.vmem [#allocation28], 16
      %v852 = vpack.c.bf16 0.0, %v849
      %s854 = ssub.s32 16, 1
      %855 = vst [vmem:[%s851] sm:%s854] %v852
      %s856 = scalar_lea.vmem %s369, 4
      %s857 = scalar_lea.vmem %s382, 4
      %s858 = scalar_lea.vmem %s395, 4
      %v859 = vlaneseq
      %v860 = vand.u32 %v859, 127
      %vm862 = vcmp.lt.s32.totalorder %v860, 64
      %v863 = vsel %vm862, %v631, %v29
      %864 = xla_tuple %v34, %v863
      %865 = xla_tuple %864
      %v866 = vmax.f32 %v34, %v863
      %867 = xla_tuple %v866
      %868 = xla_tuple %v866, %v24
      %869 = xla_tuple %868
      %v870 = vmax.f32 %v866, %v24
      %871 = xla_tuple %v870
      %872 = xla_tuple %v870, %v19
      %873 = xla_tuple %872
      %v874 = vmax.f32 %v870, %v19
      %875 = xla_tuple %v874
      %s876 = scalar_lea.vmem [#allocation28], 20
      %v877 = vpack.c.bf16 0.0, %v874
      %s879 = ssub.s32 16, 1
      %880 = vst [vmem:[%s876] sm:%s879] %v877
      %s881 = scalar_lea.vmem %s369, 8
      %s882 = scalar_lea.vmem %s382, 8
      %s883 = scalar_lea.vmem %s395, 8
      %v884 = vlaneseq
      %v885 = vand.u32 %v884, 127
      %vm887 = vcmp.lt.s32.totalorder %v885, 64
      %v888 = vsel %vm887, %v714, %v29
      %889 = xla_tuple %v34, %v888
      %890 = xla_tuple %889
      %v891 = vmax.f32 %v34, %v888
      %892 = xla_tuple %v891
      %893 = xla_tuple %v891, %v24
      %894 = xla_tuple %893
      %v895 = vmax.f32 %v891, %v24
      %896 = xla_tuple %v895
      %897 = xla_tuple %v895, %v19
      %898 = xla_tuple %897
      %v899 = vmax.f32 %v895, %v19
      %900 = xla_tuple %v899
      %s901 = scalar_lea.vmem [#allocation28], 24
      %v902 = vpack.c.bf16 0.0, %v899
      %s904 = ssub.s32 16, 1
      %905 = vst [vmem:[%s901] sm:%s904] %v902
      %s906 = scalar_lea.vmem %s369, 12
      %s907 = scalar_lea.vmem %s382, 12
      %s908 = scalar_lea.vmem %s395, 12
      %v909 = vlaneseq
      %v910 = vand.u32 %v909, 127
      %vm912 = vcmp.lt.s32.totalorder %v910, 64
      %v913 = vsel %vm912, %v797, %v29
      %914 = xla_tuple %v34, %v913
      %915 = xla_tuple %914
      %v916 = vmax.f32 %v34, %v913
      %917 = xla_tuple %v916
      %918 = xla_tuple %v916, %v24
      %919 = xla_tuple %918
      %v920 = vmax.f32 %v916, %v24
      %921 = xla_tuple %v920
      %922 = xla_tuple %v920, %v19
      %923 = xla_tuple %922
      %v924 = vmax.f32 %v920, %v19
      %925 = xla_tuple %v924
      %s926 = scalar_lea.vmem [#allocation28], 28
      %v927 = vpack.c.bf16 0.0, %v924
      %s929 = ssub.s32 16, 1
      %930 = vst [vmem:[%s926] sm:%s929] %v927
      %v931 = vlaneseq
      %v932 = vand.u32 %v931, 127
      %vm934 = vcmp.lt.s32.totalorder %v932, 64
      %v935 = vsel %vm934, %v535, %v24
      %936 = xla_tuple %v34, %v29
      %937 = xla_tuple %936
      %v938 = vmax.f32 %v34, %v29
      %939 = xla_tuple %v938
      %940 = xla_tuple %v938, %v935
      %941 = xla_tuple %940
      %v942 = vmax.f32 %v938, %v935
      %943 = xla_tuple %v942
      %944 = xla_tuple %v942, %v19
      %945 = xla_tuple %944
      %v946 = vmax.f32 %v942, %v19
      %947 = xla_tuple %v946
      %s948 = scalar_lea.vmem [#allocation28], 32
      %v949 = vpack.c.bf16 0.0, %v946
      %s951 = ssub.s32 16, 1
      %952 = vst [vmem:[%s948] sm:%s951] %v949
      %s953 = scalar_lea.vmem %s369, 4
      %s954 = scalar_lea.vmem %s382, 4
      %v955 = vlaneseq
      %v956 = vand.u32 %v955, 127
      %vm958 = vcmp.lt.s32.totalorder %v956, 64
      %v959 = vsel %vm958, %v615, %v24
      %s960 = scalar_lea.vmem %s395, 4
      %961 = xla_tuple %v34, %v29
      %962 = xla_tuple %961
      %v963 = vmax.f32 %v34, %v29
      %964 = xla_tuple %v963
      %965 = xla_tuple %v963, %v959
      %966 = xla_tuple %965
      %v967 = vmax.f32 %v963, %v959
      %968 = xla_tuple %v967
      %969 = xla_tuple %v967, %v19
      %970 = xla_tuple %969
      %v971 = vmax.f32 %v967, %v19
      %972 = xla_tuple %v971
      %s973 = scalar_lea.vmem [#allocation28], 36
      %v974 = vpack.c.bf16 0.0, %v971
      %s976 = ssub.s32 16, 1
      %977 = vst [vmem:[%s973] sm:%s976] %v974
      %s978 = scalar_lea.vmem %s369, 8
      %s979 = scalar_lea.vmem %s382, 8
      %v980 = vlaneseq
      %v981 = vand.u32 %v980, 127
      %vm983 = vcmp.lt.s32.totalorder %v981, 64
      %v984 = vsel %vm983, %v698, %v24
      %s985 = scalar_lea.vmem %s395, 8
      %986 = xla_tuple %v34, %v29
      %987 = xla_tuple %986
      %v988 = vmax.f32 %v34, %v29
      %989 = xla_tuple %v988
      %990 = xla_tuple %v988, %v984
      %991 = xla_tuple %990
      %v992 = vmax.f32 %v988, %v984
      %993 = xla_tuple %v992
      %994 = xla_tuple %v992, %v19
      %995 = xla_tuple %994
      %v996 = vmax.f32 %v992, %v19
      %997 = xla_tuple %v996
      %s998 = scalar_lea.vmem [#allocation28], 40
      %v999 = vpack.c.bf16 0.0, %v996
      %s1001 = ssub.s32 16, 1
      %1002 = vst [vmem:[%s998] sm:%s1001] %v999
      %s1003 = scalar_lea.vmem %s369, 12
      %s1004 = scalar_lea.vmem %s382, 12
      %v1005 = vlaneseq
      %v1006 = vand.u32 %v1005, 127
      %vm1008 = vcmp.lt.s32.totalorder %v1006, 64
      %v1009 = vsel %vm1008, %v781, %v24
      %s1010 = scalar_lea.vmem %s395, 12
      %1011 = xla_tuple %v34, %v29
      %1012 = xla_tuple %1011
      %v1013 = vmax.f32 %v34, %v29
      %1014 = xla_tuple %v1013
      %1015 = xla_tuple %v1013, %v1009
      %1016 = xla_tuple %1015
      %v1017 = vmax.f32 %v1013, %v1009
      %1018 = xla_tuple %v1017
      %1019 = xla_tuple %v1017, %v19
      %1020 = xla_tuple %1019
      %v1021 = vmax.f32 %v1017, %v19
      %1022 = xla_tuple %v1021
      %s1023 = scalar_lea.vmem [#allocation28], 44
      %v1024 = vpack.c.bf16 0.0, %v1021
      %s1026 = ssub.s32 16, 1
      %1027 = vst [vmem:[%s1023] sm:%s1026] %v1024
      %v1028 = vlaneseq
      %v1029 = vand.u32 %v1028, 127
      %vm1031 = vcmp.lt.s32.totalorder %v1029, 64
      %v1032 = vsel %vm1031, %v520, %v19
      %1033 = xla_tuple %v34, %v29
      %1034 = xla_tuple %1033
      %v1035 = vmax.f32 %v34, %v29
      %1036 = xla_tuple %v1035
      %1037 = xla_tuple %v1035, %v24
      %1038 = xla_tuple %1037
      %v1039 = vmax.f32 %v1035, %v24
      %1040 = xla_tuple %v1039
      %1041 = xla_tuple %v1039, %v1032
      %1042 = xla_tuple %1041
      %v1043 = vmax.f32 %v1039, %v1032
      %1044 = xla_tuple %v1043
      %s1045 = scalar_lea.vmem [#allocation28], 48
      %v1046 = vpack.c.bf16 0.0, %v1043
      %s1048 = ssub.s32 16, 1
      %1049 = vst [vmem:[%s1045] sm:%s1048] %v1046
      %s1050 = scalar_lea.vmem %s369, 4
      %v1051 = vlaneseq
      %v1052 = vand.u32 %v1051, 127
      %vm1054 = vcmp.lt.s32.totalorder %v1052, 64
      %v1055 = vsel %vm1054, %v599, %v19
      %s1056 = scalar_lea.vmem %s382, 4
      %s1057 = scalar_lea.vmem %s395, 4
      %1058 = xla_tuple %v34, %v29
      %1059 = xla_tuple %1058
      %v1060 = vmax.f32 %v34, %v29
      %1061 = xla_tuple %v1060
      %1062 = xla_tuple %v1060, %v24
      %1063 = xla_tuple %1062
      %v1064 = vmax.f32 %v1060, %v24
      %1065 = xla_tuple %v1064
      %1066 = xla_tuple %v1064, %v1055
      %1067 = xla_tuple %1066
      %v1068 = vmax.f32 %v1064, %v1055
      %1069 = xla_tuple %v1068
      %s1070 = scalar_lea.vmem [#allocation28], 52
      %v1071 = vpack.c.bf16 0.0, %v1068
      %s1073 = ssub.s32 16, 1
      %1074 = vst [vmem:[%s1070] sm:%s1073] %v1071
      %s1075 = scalar_lea.vmem %s369, 8
      %v1076 = vlaneseq
      %v1077 = vand.u32 %v1076, 127
      %vm1079 = vcmp.lt.s32.totalorder %v1077, 64
      %v1080 = vsel %vm1079, %v682, %v19
      %s1081 = scalar_lea.vmem %s382, 8
      %s1082 = scalar_lea.vmem %s395, 8
      %1083 = xla_tuple %v34, %v29
      %1084 = xla_tuple %1083
      %v1085 = vmax.f32 %v34, %v29
      %1086 = xla_tuple %v1085
      %1087 = xla_tuple %v1085, %v24
      %1088 = xla_tuple %1087
      %v1089 = vmax.f32 %v1085, %v24
      %1090 = xla_tuple %v1089
      %1091 = xla_tuple %v1089, %v1080
      %1092 = xla_tuple %1091
      %v1093 = vmax.f32 %v1089, %v1080
      %1094 = xla_tuple %v1093
      %s1095 = scalar_lea.vmem [#allocation28], 56
      %v1096 = vpack.c.bf16 0.0, %v1093
      %s1098 = ssub.s32 16, 1
      %1099 = vst [vmem:[%s1095] sm:%s1098] %v1096
      %s1100 = scalar_lea.vmem %s369, 12
      %v1101 = vlaneseq
      %v1102 = vand.u32 %v1101, 127
      %vm1104 = vcmp.lt.s32.totalorder %v1102, 64
      %v1105 = vsel %vm1104, %v765, %v19
      %s1106 = scalar_lea.vmem %s382, 12
      %s1107 = scalar_lea.vmem %s395, 12
      %1108 = xla_tuple %v34, %v29
      %1109 = xla_tuple %1108
      %v1110 = vmax.f32 %v34, %v29
      %1111 = xla_tuple %v1110
      %1112 = xla_tuple %v1110, %v24
      %1113 = xla_tuple %1112
      %v1114 = vmax.f32 %v1110, %v24
      %1115 = xla_tuple %v1114
      %1116 = xla_tuple %v1114, %v1105
      %1117 = xla_tuple %1116
      %v1118 = vmax.f32 %v1114, %v1105
      %1119 = xla_tuple %v1118
      %s1120 = scalar_lea.vmem [#allocation28], 60
      %v1121 = vpack.c.bf16 0.0, %v1118
      %s1123 = ssub.s32 16, 1
      %1124 = vst [vmem:[%s1120] sm:%s1123] %v1121
      %v1126 = vld [vmem:[#allocation27] sm:$0xf]
      %v1127 = vld [vmem:[#allocation27 + $0x4] sm:$0xf]
      %v1128 = vld [vmem:[#allocation27 + $0x8] sm:$0xf]
      %v1129 = vld [vmem:[#allocation27 + $0xc] sm:$0x7]
      %v1130 = vld [vmem:[#allocation28] sm:$0xf]
      %v1131 = vld [vmem:[#allocation28 + $0x4] sm:$0xf]
      %v1132 = vld [vmem:[#allocation28 + $0x8] sm:$0xf]
      %v1133 = vld [vmem:[#allocation28 + $0xc] sm:$0xf]
      %v1134 = vld [vmem:[#allocation27 + $0xc] sm:$0xf]
      %s1135 = scalar_lea.vmem [#allocation28], 16
      %v1136 = vld [vmem:[%s1135] sm:$0xf]
      %v1137 = vld [vmem:[%s1135 + $0x4] sm:$0xf]
      %v1138 = vld [vmem:[%s1135 + $0x8] sm:$0xf]
      %v1139 = vld [vmem:[%s1135 + $0xc] sm:$0xf]
      %v1144 = vunpack.c.l.b16 %v1126
      %v1145 = vunpack.c.l.b16 %v1127
      %v1146 = vunpack.c.l.b16 %v1128
      %v1147 = vunpack.c.l.b16 %v1134
      %v1148 = vpack.c.b16 %v1145, %v1144
      %v1149 = vpack.c.b16 %v1147, %v1146
      %vm1150 = vsmask.f32 7424
      %v1152 = vshrl.u32 %v1148, 16
      %v1154 = vshll.u32 %v1148, 16
      %v1156 = vrot.slane %v1154, 1
      %v1157 = vor.u32 %v1152, %v1156
      %v1159 = vshll.u32 %v1149, 16
      %v1161 = vrot.slane %v1159, 1
      %v1162 = vsel %vm1150, %v1157, %v1161
      %v1163 = vshrl.u32 %v1149, 16
      %v1165 = vor.u32 %v1163, %v1161
      %v1170 = vunpack.c.l.b16 %v1136
      %v1171 = vunpack.c.l.b16 %v1137
      %v1172 = vunpack.c.l.b16 %v1138
      %v1173 = vunpack.c.l.b16 %v1139
      %v1174 = vpack.c.b16 %v1171, %v1170
      %v1175 = vpack.c.b16 %v1173, %v1172
      %vm1178 = vcmask 261120
      %v1180 = vsel %vm1178, %v1162, 0
      %v1183 = vsel %vm1178, %v1165, 0
      %1185 = vmatpush.bf16.msra.mxu0 0
      %1186 = vmatpush.bf16.msra.mxu0 0
      %1187 = vmatpush.bf16.msra.mxu0 0
      %1188 = vmatpush.bf16.msra.mxu0 0
      %1189 = vmatpush.bf16.msra.mxu0 0
      %1190 = vmatpush.bf16.msra.mxu0 0
      %1191 = vmatpush.bf16.msra.mxu0 %v1175
      %1192 = vmatpush.bf16.msra.mxu0 %v1174
      %1193 = vmatmul.bf16.gmra.mxu0 %v1180
      %v1194 = vpop.f32.mrf.mxu0
      %v1195 = vadd.f32 0.0, %v1194
      %v1196 = vpop.f32.mrf.mxu0
      %v1197 = vadd.f32 0.0, %v1196
      %1198 = vmatmul.bf16.gmra.mxu0 %v1183
      %v1199 = vpop.f32.mrf.mxu0
      %v1200 = vadd.f32 0.0, %v1199
      %v1201 = vpop.f32.mrf.mxu0
      %v1202 = vadd.f32 0.0, %v1201
      %1203 = vdwg.mxu0
      %v1205 = vunpack.c.l.b16 %v1129
      %v1206 = vpack.c.b16 %v1205, %v1146
      %v1211 = vunpack.c.l.b16 %v1130
      %v1212 = vunpack.c.l.b16 %v1131
      %v1213 = vunpack.c.l.b16 %v1132
      %v1214 = vunpack.c.l.b16 %v1133
      %v1215 = vpack.c.b16 %v1212, %v1211
      %v1216 = vpack.c.b16 %v1214, %v1213
      %v1219 = vsel %vm1178, %v1148, 0
      %v1222 = vsel %vm1178, %v1206, 0
      %1224 = vmatpush.bf16.msra.mxu0 0
      %1225 = vmatpush.bf16.msra.mxu0 0
      %1226 = vmatpush.bf16.msra.mxu0 0
      %1227 = vmatpush.bf16.msra.mxu0 0
      %1228 = vmatpush.bf16.msra.mxu0 0
      %1229 = vmatpush.bf16.msra.mxu0 0
      %1230 = vmatpush.bf16.msra.mxu0 %v1216
      %1231 = vmatpush.bf16.msra.mxu0 %v1215
      %1232 = vmatmul.bf16.gmra.mxu0 %v1219
      %v1233 = vpop.f32.mrf.mxu0
      %v1234 = vadd.f32 %v1195, %v1233
      %v1235 = vpop.f32.mrf.mxu0
      %v1236 = vadd.f32 %v1197, %v1235
      %1237 = vmatmul.bf16.gmra.mxu0 %v1222
      %v1238 = vpop.f32.mrf.mxu0
      %v1239 = vadd.f32 %v1200, %v1238
      %v1240 = vpop.f32.mrf.mxu0
      %v1241 = vadd.f32 %v1202, %v1240
      %1242 = vdwg.mxu0
      %v1243 = vld [vmem:[#allocation27] sm:$0x8]
      %v1244 = vld [vmem:[#allocation27 + $0x4] sm:$0xf]
      %v1245 = vld [vmem:[#allocation27 + $0x8] sm:$0xf]
      %v1246 = vld [vmem:[#allocation27 + $0xc] sm:$0xf]
      %v1247 = vld [vmem:[#allocation27 + $0x10] sm:$0x3]
      %s1248 = scalar_lea.vmem [#allocation28], 32
      %v1249 = vld [vmem:[%s1248] sm:$0xf]
      %v1250 = vld [vmem:[%s1248 + $0x4] sm:$0xf]
      %v1251 = vld [vmem:[%s1248 + $0x8] sm:$0xf]
      %v1252 = vld [vmem:[%s1248 + $0xc] sm:$0xf]
      %v1253 = vld [vmem:[#allocation27 + $0x10] sm:$0x7]
      %s1254 = scalar_lea.vmem [#allocation28], 48
      %v1255 = vld [vmem:[%s1254] sm:$0xf]
      %v1256 = vld [vmem:[%s1254 + $0x4] sm:$0xf]
      %v1257 = vld [vmem:[%s1254 + $0x8] sm:$0xf]
      %v1258 = vld [vmem:[%s1254 + $0xc] sm:$0xf]
      %v1264 = vunpack.c.l.b16 %v1243
      %v1265 = vunpack.c.l.b16 %v1244
      %v1266 = vunpack.c.l.b16 %v1245
      %v1267 = vunpack.c.l.b16 %v1246
      %v1268 = vunpack.c.l.b16 %v1253
      %v1269 = vpack.c.b16 %v1265, %v1264
      %v1270 = vpack.c.b16 %v1267, %v1266
      %v1271 = vpack.c.b16 %v1268, %v1268
      %vm1272 = vsmask.f32 4352
      %v1274 = vshrl.u32 %v1269, 16
      %v1276 = vrot.slane %v1274, 3
      %v1277 = vshll.u32 %v1269, 16
      %v1279 = vrot.slane %v1277, 4
      %v1280 = vor.u32 %v1276, %v1279
      %v1282 = vshrl.u32 %v1270, 16
      %v1284 = vrot.slane %v1282, 3
      %v1285 = vshll.u32 %v1270, 16
      %v1287 = vrot.slane %v1285, 4
      %v1288 = vor.u32 %v1284, %v1287
      %v1289 = vsel %vm1272, %v1280, %v1288
      %v1291 = vshrl.u32 %v1271, 16
      %v1293 = vrot.slane %v1291, 3
      %v1294 = vshll.u32 %v1271, 16
      %v1296 = vrot.slane %v1294, 4
      %v1297 = vor.u32 %v1293, %v1296
      %v1298 = vsel %vm1272, %v1288, %v1297
      %v1303 = vunpack.c.l.b16 %v1255
      %v1304 = vunpack.c.l.b16 %v1256
      %v1305 = vunpack.c.l.b16 %v1257
      %v1306 = vunpack.c.l.b16 %v1258
      %v1307 = vpack.c.b16 %v1304, %v1303
      %v1308 = vpack.c.b16 %v1306, %v1305
      %v1312 = vsel %vm1178, %v1289, 0
      %v1315 = vsel %vm1178, %v1298, 0
      %1317 = vmatpush.bf16.msra.mxu0 0
      %1318 = vmatpush.bf16.msra.mxu0 0
      %1319 = vmatpush.bf16.msra.mxu0 0
      %1320 = vmatpush.bf16.msra.mxu0 0
      %1321 = vmatpush.bf16.msra.mxu0 0
      %1322 = vmatpush.bf16.msra.mxu0 0
      %1323 = vmatpush.bf16.msra.mxu0 %v1308
      %1324 = vmatpush.bf16.msra.mxu0 %v1307
      %1325 = vmatmul.bf16.gmra.mxu0 %v1312
      %v1326 = vpop.f32.mrf.mxu0
      %v1327 = vadd.f32 0.0, %v1326
      %v1328 = vpop.f32.mrf.mxu0
      %v1329 = vadd.f32 0.0, %v1328
      %1330 = vmatmul.bf16.gmra.mxu0 %v1315
      %v1331 = vpop.f32.mrf.mxu0
      %v1332 = vadd.f32 0.0, %v1331
      %v1333 = vpop.f32.mrf.mxu0
      %v1334 = vadd.f32 0.0, %v1333
      %1335 = vdwg.mxu0
      %v1337 = vunpack.c.l.b16 %v1247
      %v1338 = vpack.c.b16 %v1337, %v1337
      %vm1339 = vcmask 1044480
      %v1340 = vrot.slane %v1269, 3
      %v1341 = vrot.slane %v1270, 3
      %v1342 = vsel %vm1339, %v1340, %v1341
      %v1343 = vrot.slane %v1338, 3
      %v1344 = vsel %vm1339, %v1341, %v1343
      %v1349 = vunpack.c.l.b16 %v1249
      %v1350 = vunpack.c.l.b16 %v1250
      %v1351 = vunpack.c.l.b16 %v1251
      %v1352 = vunpack.c.l.b16 %v1252
      %v1353 = vpack.c.b16 %v1350, %v1349
      %v1354 = vpack.c.b16 %v1352, %v1351
      %v1358 = vsel %vm1178, %v1342, 0
      %v1361 = vsel %vm1178, %v1344, 0
      %1363 = vmatpush.bf16.msra.mxu0 0
      %1364 = vmatpush.bf16.msra.mxu0 0
      %1365 = vmatpush.bf16.msra.mxu0 0
      %1366 = vmatpush.bf16.msra.mxu0 0
      %1367 = vmatpush.bf16.msra.mxu0 0
      %1368 = vmatpush.bf16.msra.mxu0 0
      %1369 = vmatpush.bf16.msra.mxu0 %v1354
      %1370 = vmatpush.bf16.msra.mxu0 %v1353
      %1371 = vmatmul.bf16.gmra.mxu0 %v1358
      %v1372 = vpop.f32.mrf.mxu0
      %v1373 = vadd.f32 %v1327, %v1372
      %v1374 = vpop.f32.mrf.mxu0
      %v1375 = vadd.f32 %v1329, %v1374
      %1376 = vmatmul.bf16.gmra.mxu0 %v1361
      %v1377 = vpop.f32.mrf.mxu0
      %v1378 = vadd.f32 %v1332, %v1377
      %v1379 = vpop.f32.mrf.mxu0
      %v1380 = vadd.f32 %v1334, %v1379
      %1381 = vdwg.mxu0
      %v1382 = vadd.f32 %v1234, %v1373
      %v1383 = vadd.f32 %v1236, %v1375
      %v1384 = vadd.f32 %v1239, %v1378
      %v1385 = vadd.f32 %v1241, %v1380
      %v1386 = vld [vmem:[%s0] sm:$0x1]
      %v1388 = vperm.slane %v1386, 0
      %v1390 = vadd.f32 %v1382, %v1388
      %v1391 = vadd.f32 %v1383, %v1388
      %v1392 = vadd.f32 %v1384, %v1388
      %v1393 = vadd.f32 %v1385, %v1388
      %v1394 = vmax.f32 %v1390, 0.0
      %v1395 = vmax.f32 %v1391, 0.0
      %v1396 = vmax.f32 %v1392, 0.0
      %v1397 = vmax.f32 %v1393, 0.0
      %v1398 = vpack.c.bf16 %v1394, %v1394
      %v1399 = vpack.c.bf16 %v1395, %v1395
      %v1400 = vpack.c.bf16 %v1396, %v1396
      %v1401 = vpack.c.bf16 %v1397, %v1397
      %vm1402 = vcmask 519168
      %1403 = vst.msk [vmem:[%s404] sm:$0xf] %vm1402, %v1398
      %1404 = vst.msk [vmem:[%s404 + $0x4] sm:$0xf] %vm1402, %v1399
      %1405 = vst.msk [vmem:[%s404 + $0x8] sm:$0xf] %vm1402, %v1400
      %vm1406 = vcmask 518144
      %1407 = vst.msk [vmem:[%s404 + $0xc] sm:$0x7] %vm1406, %v1401
      %p1408 = scmp.lt.s32.totalorder %s44, 1
      %s1409 = scalar_select %p1408, %s44, 1
      %s1410 = smul.addr %s1409, 4
      %s1411 = smul.addr %s1410, 4
      %s1412 = scalar_lea.vmem %s8, %s1411
      // Predicated region
      $region45: #{baseline_forward.17} parent=43 // pred_check
        %p1413 = pneg %p214
      $region46: #{baseline_forward.17} parent=43 // pred_check_branch
        %1415 = sbr.rel (%p1413) target = $region48
      $region47: #{baseline_forward.17} parent=43 // pred_region
        _
      $region48: #{baseline_forward.17} parent=43 // pred_fallthru
        _
    $region44: #{baseline_forward.17} parent=5 // pred_fallthru
      _
    %p1416 = scmp.le.s32.totalorder 2, %s39
    // Predicated region
    $region49: #{baseline_forward.17} parent=5 // pred_check
      %p1417 = pneg %p1416
    $region50: #{baseline_forward.17} parent=5 // pred_check_branch
      %1419 = sbr.rel (%p1417) target = $region52
    $region51: #{baseline_forward.17} parent=5 // pred_region
      %s1420 = ssub.s32 %s39, 2
      // Predicated region
      $region53: #{baseline_forward.17} parent=51 // pred_check
        %p1421 = pneg %p220
      $region54: #{baseline_forward.17} parent=51 // pred_check_branch
        %1423 = sbr.rel (%p1421) target = $region56
      $region55: #{baseline_forward.17} parent=51 // pred_region
        %p1424 = scmp.lt.s32.totalorder %s45, 1
        %s1425 = scalar_select %p1424, %s45, 1
        %s1426 = smul.addr %s1425, 4
        %s1427 = smul.addr %s1426, 4
        %s1428 = scalar_lea.vmem %s8, %s1427
      $region56: #{baseline_forward.17} parent=51 // pred_fallthru
        _
    $region52: #{baseline_forward.17} parent=5 // pred_fallthru
      _
  $region6: #{baseline_forward.17} parent=0 // loop_footer
    %s43 = sadd.s32 1, %s39
  $region7: #{baseline_forward.17} parent=0 // loop_footer_branch
    %38 = sbr.rel target = $region3
  $region8: #{baseline_forward.17} parent=0 // loop_exit
    _

// kernel: baseline_forward.13
$region0: #{baseline_forward.13}
  #allocation0 [shape = 'u32[]', space=smem, size = 0x4, offset = 0x4, fixed_abs, tag = 'smem constant byte address 0x4 - core index']
  #allocation1 [shape = 'u32[72,128]{1,0:T(1,128)}', space=vmem, size = 0x9000, scoped, tag = 'internal scratch']
  #allocation2 [shape = 'u32[2048]{0}', space=vmem, size = 0x2000, scoped, tag = 'scoped memory for baseline_forward.13']
  #allocation3 [shape = 'u32[2048]{0}', space=vmem, size = 0x2000, scoped, tag = 'scoped memory for baseline_forward.13']
  #allocation4 [shape = 'u32[2048]{0}', space=vmem, size = 0x2000, scoped, tag = 'scoped memory for baseline_forward.13']
  #allocation5 [shape = 'u32[2048]{0}', space=vmem, size = 0x2000, scoped, tag = 'scoped memory for baseline_forward.13']
  #allocation6 [shape = 'u32[2048]{0}', space=vmem, size = 0x2000, scoped, tag = 'scoped memory for baseline_forward.13']
  #allocation7 [shape = 'u32[2048]{0}', space=vmem, size = 0x2000, scoped, tag = 'scoped memory for baseline_forward.13']
  #allocation8 [shape = 'u32[2048]{0}', space=vmem, size = 0x2000, scoped, tag = 'scoped memory for baseline_forward.13']
  #allocation9 [shape = 'u32[2048]{0}', space=vmem, size = 0x2000, scoped, tag = 'scoped memory for baseline_forward.13']
  #allocation10 [shape = 'u32[2048]{0}', space=vmem, size = 0x2000, scoped, tag = 'scoped memory for baseline_forward.13']
  #allocation11 [shape = 'u32[2048]{0}', space=vmem, size = 0x2000, scoped, tag = 'scoped memory for baseline_forward.13']
  #allocation12 [shape = 'u32[2048]{0}', space=vmem, size = 0x2000, scoped, tag = 'scoped memory for baseline_forward.13']
  #allocation13 [shape = 'u32[2048]{0}', space=vmem, size = 0x2000, scoped, tag = 'scoped memory for baseline_forward.13']
  #allocation14 [shape = 'u32[2048]{0}', space=vmem, size = 0x2000, scoped, tag = 'scoped memory for baseline_forward.13']
  #allocation15 [shape = 'u32[2048]{0}', space=vmem, size = 0x2000, scoped, tag = 'scoped memory for baseline_forward.13']
  #allocation16 [shape = 'u32[2048]{0}', space=vmem, size = 0x2000, scoped, tag = 'scoped memory for baseline_forward.13']
  #allocation17 [shape = 'u32[2048]{0}', space=vmem, size = 0x2000, scoped, tag = 'scoped memory for baseline_forward.13']
  #allocation18 [shape = 'u32[2048]{0}', space=vmem, size = 0x2000, scoped, tag = 'scoped memory for baseline_forward.13']
  #allocation19 [shape = 'u32[2048]{0}', space=vmem, size = 0x2000, scoped, tag = 'scoped memory for baseline_forward.13']
  #allocation20 [shape = 'u32[2048]{0}', space=vmem, size = 0x2000, scoped, tag = 'scoped memory for baseline_forward.13']
  #allocation21 [shape = 'u32[2048]{0}', space=vmem, size = 0x2000, scoped, tag = 'scoped memory for baseline_forward.13']
  #allocation22 [shape = 'u32[2048]{0}', space=vmem, size = 0x2000, scoped, tag = 'scoped memory for baseline_forward.13']
  #allocation23 [shape = 'u32[2048]{0}', space=vmem, size = 0x2000, scoped, tag = 'scoped memory for baseline_forward.13']
  #allocation24 [shape = 'u32[2048]{0}', space=vmem, size = 0x2000, scoped, tag = 'scoped memory for baseline_forward.13']
  #allocation25 [shape = 'u32[2048]{0}', space=vmem, size = 0x2000, scoped, tag = 'scoped memory for baseline_forward.13']
  #allocation26 [shape = 'u32[2048]{0}', space=vmem, size = 0x2000, scoped, tag = 'scoped memory for baseline_forward.13']
  %s0 = inlined_call_operand.vmem [shape: f32[1,12], index: 0, kind: input, shape index: {}]
  %s1 = inlined_call_operand.vmem [shape: f32[2,100,17], index: 1, kind: input, shape index: {}]
  %s2 = inlined_call_operand.<no memory space> [shape: f32[], index: 2, kind: input, shape index: {}]
  %s3 = inlined_call_operand.vmem [shape: f32[1,17,12], index: 3, kind: input, shape index: {}]
  %s4 = inlined_call_operand.<no memory space> [shape: f32[], index: 4, kind: input, shape index: {}]
  %s5 = inlined_call_operand.vmem [shape: f32[1,17,12], index: 5, kind: input, shape index: {}]
  %s6 = inlined_call_operand.vmem [shape: f32[1,17,12], index: 6, kind: input, shape index: {}]
  %s7 = inlined_call_operand.vmem [shape: f32[1,17,12], index: 7, kind: input, shape index: {}]
  %s8 = inlined_call_operand.vmem [shape: f32[2,90,12], index: 8, kind: output, shape index: {}]
  %s9 = sld [smem:[#allocation0]]
  $region57: #{baseline_forward.13} parent=0
    _
  %s11 = ssub.s32 1, %s9
  %s12 = scalar_select 0, %s11, %s9
  %v13 = vstv %s2
  %v14 = vstv %s4
  %v15 = vstv %s4
  %v16 = vstv %s4
  %v17 = vstv %s4
  loop: start=0, step=1, limit=4
  $region2: #{baseline_forward.13} parent=0 // loop_pre_header
    _
  $region3: #{baseline_forward.13} parent=0 // loop_header
    %s19 = sphi 0, %s23
    %p20 = scmp.ge.s32.totalorder %s19, 4
    %s29 = sphi 0, %s31
    %s32 = sphi 0, %s29
    %s33 = sphi 0, %s32
    %s49 = sphi 0, %s33
    %s57 = sphi 0, %s59
    %s60 = sphi 0, %s57
    %s61 = sphi 0, %s60
    %s77 = sphi 0, %s61
    %s85 = sphi 0, %s87
    %s88 = sphi 0, %s85
    %s89 = sphi 0, %s88
    %s105 = sphi 0, %s89
    %s113 = sphi 0, %s115
    %s116 = sphi 0, %s113
    %s117 = sphi 0, %s116
    %s133 = sphi 0, %s117
    %s137 = sphi 0, %s137
    %s139 = sphi 0, %s137
    %s140 = sphi 0, %s139
    %s154 = sphi 0, %s140
    %s158 = sphi 0, %s158
    %s160 = sphi 0, %s158
    %s161 = sphi 0, %s160
    %s175 = sphi 0, %s161
    %s181 = sphi 0, %s183
    %s184 = sphi 0, %s181
    %s185 = sphi 0, %s184
    %s201 = sphi 0, %s185
  $region4: #{baseline_forward.13} parent=0 // loop_header_branch
    %22 = sbr.rel (%p20) target = $region8
  $region5: #{baseline_forward.13} parent=0 // loop_body
    %s24 = ssub.s32 %s19, 1
    %s25 = ssub.s32 %s19, 2
    %s26 = sadd.s32 %s19, 1
    %s27 = ssub.s32 %s19, %s26
    %p28 = scmp.eq.s32.totalorder %s27, 0
    %s30 = sadd.s32 %s29, 1
    %s31 = scalar_select %p28, %s29, %s30
    %p34 = pneg %p28
    %p35 = scmp.eq.s32.totalorder %s19, 1
    %p36 = por %p34, %p35
    %p37 = scmp.ne.s32.totalorder %s29, %s32
    %p38 = scmp.eq.s32.totalorder %s19, 0
    %p39 = por %p37, %p38
    %p40 = scmp.ne.s32.totalorder %s29, %s32
    %p41 = scmp.eq.s32.totalorder %s24, 1
    %p42 = por %p40, %p41
    %p43 = scmp.ne.s32.totalorder %s32, %s33
    %p44 = scmp.eq.s32.totalorder %s24, 0
    %p45 = por %p43, %p44
    %p46 = scmp.ne.s32.totalorder %s32, %s33
    %p47 = scmp.eq.s32.totalorder %s25, 1
    %p48 = por %p46, %p47
    %p50 = scmp.ne.s32.totalorder %s33, %s49
    %p51 = scmp.eq.s32.totalorder %s25, 0
    %p52 = por %p50, %p51
    %s55 = ssub.s32 0, 0
    %p56 = scmp.eq.s32.totalorder %s55, 0
    %s58 = sadd.s32 %s57, 1
    %s59 = scalar_select %p56, %s57, %s58
    %p62 = pneg %p56
    %p63 = scmp.eq.s32.totalorder %s19, 1
    %p64 = por %p62, %p63
    %p65 = scmp.ne.s32.totalorder %s57, %s60
    %p66 = scmp.eq.s32.totalorder %s19, 0
    %p67 = por %p65, %p66
    %p68 = scmp.ne.s32.totalorder %s57, %s60
    %p69 = scmp.eq.s32.totalorder %s24, 1
    %p70 = por %p68, %p69
    %p71 = scmp.ne.s32.totalorder %s60, %s61
    %p72 = scmp.eq.s32.totalorder %s24, 0
    %p73 = por %p71, %p72
    %p74 = scmp.ne.s32.totalorder %s60, %s61
    %p75 = scmp.eq.s32.totalorder %s25, 1
    %p76 = por %p74, %p75
    %p78 = scmp.ne.s32.totalorder %s61, %s77
    %p79 = scmp.eq.s32.totalorder %s25, 0
    %p80 = por %p78, %p79
    %s83 = ssub.s32 0, 0
    %p84 = scmp.eq.s32.totalorder %s83, 0
    %s86 = sadd.s32 %s85, 1
    %s87 = scalar_select %p84, %s85, %s86
    %p90 = pneg %p84
    %p91 = scmp.eq.s32.totalorder %s19, 1
    %p92 = por %p90, %p91
    %p93 = scmp.ne.s32.totalorder %s85, %s88
    %p94 = scmp.eq.s32.totalorder %s19, 0
    %p95 = por %p93, %p94
    %p96 = scmp.ne.s32.totalorder %s85, %s88
    %p97 = scmp.eq.s32.totalorder %s24, 1
    %p98 = por %p96, %p97
    %p99 = scmp.ne.s32.totalorder %s88, %s89
    %p100 = scmp.eq.s32.totalorder %s24, 0
    %p101 = por %p99, %p100
    %p102 = scmp.ne.s32.totalorder %s88, %s89
    %p103 = scmp.eq.s32.totalorder %s25, 1
    %p104 = por %p102, %p103
    %p106 = scmp.ne.s32.totalorder %s89, %s105
    %p107 = scmp.eq.s32.totalorder %s25, 0
    %p108 = por %p106, %p107
    %s111 = ssub.s32 0, 0
    %p112 = scmp.eq.s32.totalorder %s111, 0
    %s114 = sadd.s32 %s113, 1
    %s115 = scalar_select %p112, %s113, %s114
    %p118 = pneg %p112
    %p119 = scmp.eq.s32.totalorder %s19, 1
    %p120 = por %p118, %p119
    %p121 = scmp.ne.s32.totalorder %s113, %s116
    %p122 = scmp.eq.s32.totalorder %s19, 0
    %p123 = por %p121, %p122
    %p124 = scmp.ne.s32.totalorder %s113, %s116
    %p125 = scmp.eq.s32.totalorder %s24, 1
    %p126 = por %p124, %p125
    %p127 = scmp.ne.s32.totalorder %s116, %s117
    %p128 = scmp.eq.s32.totalorder %s24, 0
    %p129 = por %p127, %p128
    %p130 = scmp.ne.s32.totalorder %s116, %s117
    %p131 = scmp.eq.s32.totalorder %s25, 1
    %p132 = por %p130, %p131
    %p134 = scmp.ne.s32.totalorder %s117, %s133
    %p135 = scmp.eq.s32.totalorder %s25, 0
    %p136 = por %p134, %p135
    %s138 = sadd.s32 %s137, 1
    %p141 = scmp.eq.s32.totalorder %s19, 1
    %p142 = scmp.ne.s32.totalorder %s137, %s139
    %p143 = scmp.eq.s32.totalorder %s19, 0
    %p144 = por %p142, %p143
    %p145 = scmp.ne.s32.totalorder %s137, %s139
    %p146 = scmp.eq.s32.totalorder %s24, 1
    %p147 = por %p145, %p146
    %p148 = scmp.ne.s32.totalorder %s139, %s140
    %p149 = scmp.eq.s32.totalorder %s24, 0
    %p150 = por %p148, %p149
    %p151 = scmp.ne.s32.totalorder %s139, %s140
    %p152 = scmp.eq.s32.totalorder %s25, 1
    %p153 = por %p151, %p152
    %p155 = scmp.ne.s32.totalorder %s140, %s154
    %p156 = scmp.eq.s32.totalorder %s25, 0
    %p157 = por %p155, %p156
    %s159 = sadd.s32 %s158, 1
    %p162 = scmp.eq.s32.totalorder %s19, 1
    %p163 = scmp.ne.s32.totalorder %s158, %s160
    %p164 = scmp.eq.s32.totalorder %s19, 0
    %p165 = por %p163, %p164
    %p166 = scmp.ne.s32.totalorder %s158, %s160
    %p167 = scmp.eq.s32.totalorder %s24, 1
    %p168 = por %p166, %p167
    %p169 = scmp.ne.s32.totalorder %s160, %s161
    %p170 = scmp.eq.s32.totalorder %s24, 0
    %p171 = por %p169, %p170
    %p172 = scmp.ne.s32.totalorder %s160, %s161
    %p173 = scmp.eq.s32.totalorder %s25, 1
    %p174 = por %p172, %p173
    %p176 = scmp.ne.s32.totalorder %s161, %s175
    %p177 = scmp.eq.s32.totalorder %s25, 0
    %p178 = por %p176, %p177
    %s179 = ssub.s32 %s19, %s26
    %p180 = scmp.eq.s32.totalorder %s179, 0
    %s182 = sadd.s32 %s181, 1
    %s183 = scalar_select %p180, %s181, %s182
    %p186 = pneg %p180
    %p187 = scmp.eq.s32.totalorder %s19, 1
    %p188 = por %p186, %p187
    %p189 = scmp.ne.s32.totalorder %s181, %s184
    %p190 = scmp.eq.s32.totalorder %s19, 0
    %p191 = por %p189, %p190
    %p192 = scmp.ne.s32.totalorder %s181, %s184
    %p193 = scmp.eq.s32.totalorder %s24, 1
    %p194 = por %p192, %p193
    %p195 = scmp.ne.s32.totalorder %s184, %s185
    %p196 = scmp.eq.s32.totalorder %s24, 0
    %p197 = por %p195, %p196
    %p198 = scmp.ne.s32.totalorder %s184, %s185
    %p199 = scmp.eq.s32.totalorder %s25, 1
    %p200 = por %p198, %p199
    %p202 = scmp.ne.s32.totalorder %s185, %s201
    %p203 = scmp.eq.s32.totalorder %s25, 0
    %p204 = por %p202, %p203
    %p205 = scmp.le.s32.totalorder 1, %s19
    %p206 = scmp.lt.s32.totalorder %s19, 3
    %p207 = pnand %p205, %p206
    %p208 = pneg %p207
    // Predicated region
    $region9: #{baseline_forward.13} parent=5 // pred_check
      _
    $region10: #{baseline_forward.13} parent=5 // pred_check_branch
      %210 = sbr.rel (%p207) target = $region12
    $region11: #{baseline_forward.13} parent=5 // pred_region
      %s211 = ssub.s32 %s19, 1
      // Predicated region
      $region13: #{baseline_forward.13} parent=11 // pred_check
        %p212 = pneg %p73
      $region14: #{baseline_forward.13} parent=11 // pred_check_branch
        %214 = sbr.rel (%p212) target = $region16
      $region15: #{baseline_forward.13} parent=11 // pred_region
        %s216 = ssub.s32 1, 0
        %s217 = smul.u32 8, %s216
        %s218 = smul.u32 %s217, 3
        %p219 = scmp.lt.s32.totalorder 0, 0
        %s220 = scalar_select %p219, 0, 0
        %s221 = smul.addr %s220, 3
        %s222 = smul.addr %s221, 8
        %s223 = scalar_lea.vmem %s3, %s222
        %s225 = ssub.s32 1, 0
        %s226 = smul.u32 8, %s225
        %s227 = smul.u32 %s226, 3
      $region16: #{baseline_forward.13} parent=11 // pred_fallthru
        _
      // Predicated region
      $region17: #{baseline_forward.13} parent=11 // pred_check
        %p228 = pneg %p101
      $region18: #{baseline_forward.13} parent=11 // pred_check_branch
        %230 = sbr.rel (%p228) target = $region20
      $region19: #{baseline_forward.13} parent=11 // pred_region
        %s232 = ssub.s32 1, 0
        %s233 = smul.u32 8, %s232
        %s234 = smul.u32 %s233, 3
        %p235 = scmp.lt.s32.totalorder 0, 0
        %s236 = scalar_select %p235, 0, 0
        %s237 = smul.addr %s236, 3
        %s238 = smul.addr %s237, 8
        %s239 = scalar_lea.vmem %s5, %s238
        %s241 = ssub.s32 1, 0
        %s242 = smul.u32 8, %s241
        %s243 = smul.u32 %s242, 3
      $region20: #{baseline_forward.13} parent=11 // pred_fallthru
        _
      // Predicated region
      $region21: #{baseline_forward.13} parent=11 // pred_check
        %p244 = pneg %p129
      $region22: #{baseline_forward.13} parent=11 // pred_check_branch
        %246 = sbr.rel (%p244) target = $region24
      $region23: #{baseline_forward.13} parent=11 // pred_region
        %s248 = ssub.s32 1, 0
        %s249 = smul.u32 8, %s248
        %s250 = smul.u32 %s249, 3
        %p251 = scmp.lt.s32.totalorder 0, 0
        %s252 = scalar_select %p251, 0, 0
        %s253 = smul.addr %s252, 3
        %s254 = smul.addr %s253, 8
        %s255 = scalar_lea.vmem %s6, %s254
        %s257 = ssub.s32 1, 0
        %s258 = smul.u32 8, %s257
        %s259 = smul.u32 %s258, 3
      $region24: #{baseline_forward.13} parent=11 // pred_fallthru
        _
      // Predicated region
      $region25: #{baseline_forward.13} parent=11 // pred_check
        %p260 = pneg %p150
      $region26: #{baseline_forward.13} parent=11 // pred_check_branch
        %262 = sbr.rel (%p260) target = $region28
      $region27: #{baseline_forward.13} parent=11 // pred_region
        _
      $region28: #{baseline_forward.13} parent=11 // pred_fallthru
        _
      // Predicated region
      $region29: #{baseline_forward.13} parent=11 // pred_check
        %p263 = pneg %p171
      $region30: #{baseline_forward.13} parent=11 // pred_check_branch
        %265 = sbr.rel (%p263) target = $region32
      $region31: #{baseline_forward.13} parent=11 // pred_region
        _
      $region32: #{baseline_forward.13} parent=11 // pred_fallthru
        _
    $region12: #{baseline_forward.13} parent=5 // pred_fallthru
      _
    %p266 = scmp.lt.s32.totalorder %s19, 2
    // Predicated region
    $region33: #{baseline_forward.13} parent=5 // pred_check
      %p267 = pneg %p266
    $region34: #{baseline_forward.13} parent=5 // pred_check_branch
      %269 = sbr.rel (%p267) target = $region36
    $region35: #{baseline_forward.13} parent=5 // pred_region
      // Predicated region
      $region37: #{baseline_forward.13} parent=35 // pred_check
        %p270 = pneg %p39
      $region38: #{baseline_forward.13} parent=35 // pred_check_branch
        %272 = sbr.rel (%p270) target = $region40
      $region39: #{baseline_forward.13} parent=35 // pred_region
        %p273 = scmp.lt.s32.totalorder %s19, 1
        %s274 = scalar_select %p273, %s19, 1
        %s275 = smul.addr %s274, 13
        %s276 = smul.addr %s275, 8
        %s277 = scalar_lea.vmem %s1, %s276
      $region40: #{baseline_forward.13} parent=35 // pred_fallthru
        _
    $region36: #{baseline_forward.13} parent=5 // pred_fallthru
      _
    %p278 = scmp.le.s32.totalorder 1, %s19
    %p279 = scmp.lt.s32.totalorder %s19, 3
    %p280 = pnand %p278, %p279
    %p281 = pneg %p280
    // Predicated region
    $region41: #{baseline_forward.13} parent=5 // pred_check
      _
    $region42: #{baseline_forward.13} parent=5 // pred_check_branch
      %283 = sbr.rel (%p280) target = $region44
    $region43: #{baseline_forward.13} parent=5 // pred_region
      #allocation27 [shape = 'u8[53248]{0}', space=vmem, size = 0xd000, dematerialized = true, scoped, tag = 'FusionAdapter Buffer %fusion.9 = f32[2,104,17]{2,1,0:T(8,128)} fusion(%param_1.60, %param_2.24), kind=kLoop, calls=%fused_computation.9.clone, metadata={op_name="jit(baseline_forward)/jit(_pad)/pad" stack_frame_id=119}']
      #allocation28 [shape = 'u8[49152]{0}', space=vmem, size = 0xc000, dematerialized = true, scoped, tag = 'FusionAdapter Buffer %fusion.26 = f32[4,17,12]{2,1,0:T(8,128)} fusion(%param_3.23, %param_4.20, %param_5.14, %param_6.12, %param_7.2), kind=kLoop, calls=%fused_computation.28.clone, metadata={op_name="jit(baseline_forward)/concatenate" stack_frame_id=114}']
      %s284 = ssub.s32 %s19, 1
      %p285 = scmp.lt.s32.totalorder %s24, 1
      %s286 = scalar_select %p285, %s24, 1
      %s287 = smul.addr %s286, 13
      %s288 = smul.addr %s287, 8
      %s289 = scalar_lea.vmem %s1, %s288
      %p290 = pneg %p45
      %p291 = pneg %p42
      %s293 = ssub.s32 1, 0
      %s294 = smul.u32 8, %s293
      %s295 = smul.u32 %s294, 3
      %p296 = scmp.lt.s32.totalorder 0, 0
      %s297 = scalar_select %p296, 0, 0
      %s298 = smul.addr %s297, 3
      %s299 = smul.addr %s298, 8
      %s300 = scalar_lea.vmem %s3, %s299
      %p301 = pneg %p73
      %p302 = pneg %p70
      %s304 = ssub.s32 1, 0
      %s305 = smul.u32 8, %s304
      %s306 = smul.u32 %s305, 3
      %p307 = scmp.lt.s32.totalorder 0, 0
      %s308 = scalar_select %p307, 0, 0
      %s309 = smul.addr %s308, 3
      %s310 = smul.addr %s309, 8
      %s311 = scalar_lea.vmem %s5, %s310
      %p312 = pneg %p101
      %p313 = pneg %p98
      %s315 = ssub.s32 1, 0
      %s316 = smul.u32 8, %s315
      %s317 = smul.u32 %s316, 3
      %p318 = scmp.lt.s32.totalorder 0, 0
      %s319 = scalar_select %p318, 0, 0
      %s320 = smul.addr %s319, 3
      %s321 = smul.addr %s320, 8
      %s322 = scalar_lea.vmem %s6, %s321
      %p323 = pneg %p129
      %p324 = pneg %p126
      %p325 = pneg %p150
      %p326 = pneg %p147
      %p327 = pneg %p171
      %p328 = pneg %p168
      %p329 = pneg %p197
      %p330 = pneg %p194
      %p331 = scmp.lt.s32.totalorder %s24, 1
      %s332 = scalar_select %p331, %s24, 1
      %s333 = smul.addr %s332, 12
      %s334 = smul.addr %s333, 8
      %s335 = scalar_lea.vmem %s8, %s334
      %p336 = scmp.lt.s32.totalorder %s24, 1
      %s337 = scalar_select %p336, %s24, 1
      %s338 = smul.addr %s337, 13
      %s339 = smul.addr %s338, 8
      %s340 = scalar_lea.vmem %s1, %s339
      %s342 = ssub.s32 1, 0
      %s343 = smul.u32 8, %s342
      %s344 = smul.u32 %s343, 3
      %p345 = scmp.lt.s32.totalorder 0, 0
      %s346 = scalar_select %p345, 0, 0
      %s347 = smul.addr %s346, 3
      %s348 = smul.addr %s347, 8
      %s349 = scalar_lea.vmem %s3, %s348
      %s351 = ssub.s32 1, 0
      %s352 = smul.u32 8, %s351
      %s353 = smul.u32 %s352, 3
      %s355 = ssub.s32 1, 0
      %s356 = smul.u32 8, %s355
      %s357 = smul.u32 %s356, 3
      %p358 = scmp.lt.s32.totalorder 0, 0
      %s359 = scalar_select %p358, 0, 0
      %s360 = smul.addr %s359, 3
      %s361 = smul.addr %s360, 8
      %s362 = scalar_lea.vmem %s5, %s361
      %s364 = ssub.s32 1, 0
      %s365 = smul.u32 8, %s364
      %s366 = smul.u32 %s365, 3
      %s368 = ssub.s32 1, 0
      %s369 = smul.u32 8, %s368
      %s370 = smul.u32 %s369, 3
      %p371 = scmp.lt.s32.totalorder 0, 0
      %s372 = scalar_select %p371, 0, 0
      %s373 = smul.addr %s372, 3
      %s374 = smul.addr %s373, 8
      %s375 = scalar_lea.vmem %s6, %s374
      %s377 = ssub.s32 1, 0
      %s378 = smul.u32 8, %s377
      %s379 = smul.u32 %s378, 3
      %p380 = scmp.lt.s32.totalorder %s24, 1
      %s381 = scalar_select %p380, %s24, 1
      %s382 = smul.addr %s381, 12
      %s383 = smul.addr %s382, 8
      %s384 = scalar_lea.vmem %s8, %s383
      %v385 = vld [vmem:[%s340] sm:$0xff]
      %v386 = vlaneseq
      %v387 = vshrl.u32 %v386, 7
      %vm389 = vcmp.lt.s32.totalorder %v387, 100
      %v390 = vsel %vm389, %v385, %v13
      %v391 = vlaneseq
      %v392 = vand.u32 %v391, 127
      %vm394 = vcmp.lt.s32.totalorder %v392, 17
      %v395 = vsel %vm394, %v390, %v13
      %s397 = ssub.s32 256, 1
      %398 = vst [vmem:[#allocation27] sm:%s397] %v395
      %s399 = scalar_lea.vmem %s340, 8
      %v400 = vld [vmem:[%s399] sm:$0xff]
      %v401 = vlaneseq
      %v402 = vshrl.u32 %v401, 7
      %v403 = vadd.s32 %v402, 8
      %vm404 = vcmp.lt.s32.totalorder %v403, 100
      %v405 = vsel %vm404, %v400, %v13
      %v406 = vlaneseq
      %v407 = vand.u32 %v406, 127
      %vm409 = vcmp.lt.s32.totalorder %v407, 17
      %v410 = vsel %vm409, %v405, %v13
      %s411 = scalar_lea.vmem [#allocation27], 8
      %s413 = ssub.s32 256, 1
      %414 = vst [vmem:[%s411] sm:%s413] %v410
      %s415 = scalar_lea.vmem %s340, 16
      %v416 = vld [vmem:[%s415] sm:$0xff]
      %v417 = vlaneseq
      %v418 = vshrl.u32 %v417, 7
      %v419 = vadd.s32 %v418, 16
      %vm420 = vcmp.lt.s32.totalorder %v419, 100
      %v421 = vsel %vm420, %v416, %v13
      %v422 = vlaneseq
      %v423 = vand.u32 %v422, 127
      %vm425 = vcmp.lt.s32.totalorder %v423, 17
      %v426 = vsel %vm425, %v421, %v13
      %s427 = scalar_lea.vmem [#allocation27], 16
      %s429 = ssub.s32 256, 1
      %430 = vst [vmem:[%s427] sm:%s429] %v426
      %s431 = scalar_lea.vmem %s340, 24
      %v432 = vld [vmem:[%s431] sm:$0xff]
      %v433 = vlaneseq
      %v434 = vshrl.u32 %v433, 7
      %v435 = vadd.s32 %v434, 24
      %vm436 = vcmp.lt.s32.totalorder %v435, 100
      %v437 = vsel %vm436, %v432, %v13
      %v438 = vlaneseq
      %v439 = vand.u32 %v438, 127
      %vm441 = vcmp.lt.s32.totalorder %v439, 17
      %v442 = vsel %vm441, %v437, %v13
      %s443 = scalar_lea.vmem [#allocation27], 24
      %s445 = ssub.s32 256, 1
      %446 = vst [vmem:[%s443] sm:%s445] %v442
      %s447 = scalar_lea.vmem %s340, 32
      %v448 = vld [vmem:[%s447] sm:$0xff]
      %v449 = vlaneseq
      %v450 = vshrl.u32 %v449, 7
      %v451 = vadd.s32 %v450, 32
      %vm452 = vcmp.lt.s32.totalorder %v451, 100
      %v453 = vsel %vm452, %v448, %v13
      %v454 = vlaneseq
      %v455 = vand.u32 %v454, 127
      %vm457 = vcmp.lt.s32.totalorder %v455, 17
      %v458 = vsel %vm457, %v453, %v13
      %s459 = scalar_lea.vmem [#allocation27], 32
      %s461 = ssub.s32 256, 1
      %462 = vst [vmem:[%s459] sm:%s461] %v458
      %s463 = scalar_lea.vmem %s340, 40
      %v464 = vld [vmem:[%s463] sm:$0xff]
      %v465 = vlaneseq
      %v466 = vshrl.u32 %v465, 7
      %v467 = vadd.s32 %v466, 40
      %vm468 = vcmp.lt.s32.totalorder %v467, 100
      %v469 = vsel %vm468, %v464, %v13
      %v470 = vlaneseq
      %v471 = vand.u32 %v470, 127
      %vm473 = vcmp.lt.s32.totalorder %v471, 17
      %v474 = vsel %vm473, %v469, %v13
      %s475 = scalar_lea.vmem [#allocation27], 40
      %s477 = ssub.s32 256, 1
      %478 = vst [vmem:[%s475] sm:%s477] %v474
      %s479 = scalar_lea.vmem %s340, 48
      %v480 = vld [vmem:[%s479] sm:$0xff]
      %v481 = vlaneseq
      %v482 = vshrl.u32 %v481, 7
      %v483 = vadd.s32 %v482, 48
      %vm484 = vcmp.lt.s32.totalorder %v483, 100
      %v485 = vsel %vm484, %v480, %v13
      %v486 = vlaneseq
      %v487 = vand.u32 %v486, 127
      %vm489 = vcmp.lt.s32.totalorder %v487, 17
      %v490 = vsel %vm489, %v485, %v13
      %s491 = scalar_lea.vmem [#allocation27], 48
      %s493 = ssub.s32 256, 1
      %494 = vst [vmem:[%s491] sm:%s493] %v490
      %s495 = scalar_lea.vmem %s340, 56
      %v496 = vld [vmem:[%s495] sm:$0xff]
      %v497 = vlaneseq
      %v498 = vshrl.u32 %v497, 7
      %v499 = vadd.s32 %v498, 56
      %vm500 = vcmp.lt.s32.totalorder %v499, 100
      %v501 = vsel %vm500, %v496, %v13
      %v502 = vlaneseq
      %v503 = vand.u32 %v502, 127
      %vm505 = vcmp.lt.s32.totalorder %v503, 17
      %v506 = vsel %vm505, %v501, %v13
      %s507 = scalar_lea.vmem [#allocation27], 56
      %s509 = ssub.s32 256, 1
      %510 = vst [vmem:[%s507] sm:%s509] %v506
      %s511 = scalar_lea.vmem %s340, 64
      %v512 = vld [vmem:[%s511] sm:$0xff]
      %v513 = vlaneseq
      %v514 = vshrl.u32 %v513, 7
      %v515 = vadd.s32 %v514, 64
      %vm516 = vcmp.lt.s32.totalorder %v515, 100
      %v517 = vsel %vm516, %v512, %v13
      %v518 = vlaneseq
      %v519 = vand.u32 %v518, 127
      %vm521 = vcmp.lt.s32.totalorder %v519, 17
      %v522 = vsel %vm521, %v517, %v13
      %s523 = scalar_lea.vmem [#allocation27], 64
      %s525 = ssub.s32 256, 1
      %526 = vst [vmem:[%s523] sm:%s525] %v522
      %s527 = scalar_lea.vmem %s340, 72
      %v528 = vld [vmem:[%s527] sm:$0xff]
      %v529 = vlaneseq
      %v530 = vshrl.u32 %v529, 7
      %v531 = vadd.s32 %v530, 72
      %vm532 = vcmp.lt.s32.totalorder %v531, 100
      %v533 = vsel %vm532, %v528, %v13
      %v534 = vlaneseq
      %v535 = vand.u32 %v534, 127
      %vm537 = vcmp.lt.s32.totalorder %v535, 17
      %v538 = vsel %vm537, %v533, %v13
      %s539 = scalar_lea.vmem [#allocation27], 72
      %s541 = ssub.s32 256, 1
      %542 = vst [vmem:[%s539] sm:%s541] %v538
      %s543 = scalar_lea.vmem %s340, 80
      %v544 = vld [vmem:[%s543] sm:$0xff]
      %v545 = vlaneseq
      %v546 = vshrl.u32 %v545, 7
      %v547 = vadd.s32 %v546, 80
      %vm548 = vcmp.lt.s32.totalorder %v547, 100
      %v549 = vsel %vm548, %v544, %v13
      %v550 = vlaneseq
      %v551 = vand.u32 %v550, 127
      %vm553 = vcmp.lt.s32.totalorder %v551, 17
      %v554 = vsel %vm553, %v549, %v13
      %s555 = scalar_lea.vmem [#allocation27], 80
      %s557 = ssub.s32 256, 1
      %558 = vst [vmem:[%s555] sm:%s557] %v554
      %s559 = scalar_lea.vmem %s340, 88
      %v560 = vld [vmem:[%s559] sm:$0xff]
      %v561 = vlaneseq
      %v562 = vshrl.u32 %v561, 7
      %v563 = vadd.s32 %v562, 88
      %vm564 = vcmp.lt.s32.totalorder %v563, 100
      %v565 = vsel %vm564, %v560, %v13
      %v566 = vlaneseq
      %v567 = vand.u32 %v566, 127
      %vm569 = vcmp.lt.s32.totalorder %v567, 17
      %v570 = vsel %vm569, %v565, %v13
      %s571 = scalar_lea.vmem [#allocation27], 88
      %s573 = ssub.s32 256, 1
      %574 = vst [vmem:[%s571] sm:%s573] %v570
      %s575 = scalar_lea.vmem %s340, 96
      %v576 = vld [vmem:[%s575] sm:$0xff]
      %v577 = vlaneseq
      %v578 = vshrl.u32 %v577, 7
      %v579 = vadd.s32 %v578, 96
      %vm580 = vcmp.lt.s32.totalorder %v579, 100
      %v581 = vsel %vm580, %v576, %v13
      %v582 = vlaneseq
      %v583 = vand.u32 %v582, 127
      %vm585 = vcmp.lt.s32.totalorder %v583, 17
      %v586 = vsel %vm585, %v581, %v13
      %s587 = scalar_lea.vmem [#allocation27], 96
      %s589 = ssub.s32 256, 1
      %590 = vst [vmem:[%s587] sm:%s589] %v586
      %s591 = ssub.s32 0, 0
      %p592 = scmp.lt.s32.totalorder %s591, 0
      %s593 = scalar_select %p592, 0, 255
      %v594 = vld [vmem:[%s349] sm:%s593]
      %s595 = ssub.s32 0, 0
      %p596 = scmp.lt.s32.totalorder %s595, 0
      %s597 = scalar_select %p596, 0, 255
      %v598 = vld [vmem:[%s362] sm:%s597]
      %s599 = ssub.s32 0, 0
      %p600 = scmp.lt.s32.totalorder %s599, 0
      %s601 = scalar_select %p600, 0, 255
      %v602 = vld [vmem:[%s375] sm:%s601]
      %v603 = vld [vmem:[%s7] sm:$0xff]
      %v604 = vlaneseq
      %v605 = vshrl.u32 %v604, 7
      %vm607 = vcmp.lt.s32.totalorder %v605, 17
      %v608 = vsel %vm607, %v603, %v17
      %v609 = vlaneseq
      %v610 = vand.u32 %v609, 127
      %vm612 = vcmp.lt.s32.totalorder %v610, 12
      %v613 = vsel %vm612, %v608, %v17
      %614 = xla_tuple %v613, %v16
      %615 = xla_tuple %614
      %v616 = vmax.f32 %v613, %v16
      %617 = xla_tuple %v616
      %618 = xla_tuple %v616, %v15
      %619 = xla_tuple %618
      %v620 = vmax.f32 %v616, %v15
      %621 = xla_tuple %v620
      %622 = xla_tuple %v620, %v14
      %623 = xla_tuple %622
      %v624 = vmax.f32 %v620, %v14
      %625 = xla_tuple %v624
      %s627 = ssub.s32 256, 1
      %628 = vst [vmem:[#allocation28] sm:%s627] %v624
      %s629 = scalar_lea.vmem %s349, 8
      %s630 = ssub.s32 0, 0
      %p631 = scmp.lt.s32.totalorder %s630, 0
      %s632 = scalar_select %p631, 0, 255
      %v633 = vld [vmem:[%s629] sm:%s632]
      %s634 = scalar_lea.vmem %s362, 8
      %s635 = ssub.s32 0, 0
      %p636 = scmp.lt.s32.totalorder %s635, 0
      %s637 = scalar_select %p636, 0, 255
      %v638 = vld [vmem:[%s634] sm:%s637]
      %s639 = scalar_lea.vmem %s375, 8
      %s640 = ssub.s32 0, 0
      %p641 = scmp.lt.s32.totalorder %s640, 0
      %s642 = scalar_select %p641, 0, 255
      %v643 = vld [vmem:[%s639] sm:%s642]
      %s644 = scalar_lea.vmem %s7, 8
      %v645 = vld [vmem:[%s644] sm:$0xff]
      %v646 = vlaneseq
      %v647 = vshrl.u32 %v646, 7
      %v648 = vadd.s32 %v647, 8
      %vm649 = vcmp.lt.s32.totalorder %v648, 17
      %v650 = vsel %vm649, %v645, %v17
      %v651 = vlaneseq
      %v652 = vand.u32 %v651, 127
      %vm654 = vcmp.lt.s32.totalorder %v652, 12
      %v655 = vsel %vm654, %v650, %v17
      %656 = xla_tuple %v655, %v16
      %657 = xla_tuple %656
      %v658 = vmax.f32 %v655, %v16
      %659 = xla_tuple %v658
      %660 = xla_tuple %v658, %v15
      %661 = xla_tuple %660
      %v662 = vmax.f32 %v658, %v15
      %663 = xla_tuple %v662
      %664 = xla_tuple %v662, %v14
      %665 = xla_tuple %664
      %v666 = vmax.f32 %v662, %v14
      %667 = xla_tuple %v666
      %s668 = scalar_lea.vmem [#allocation28], 8
      %s670 = ssub.s32 256, 1
      %671 = vst [vmem:[%s668] sm:%s670] %v666
      %s672 = scalar_lea.vmem %s349, 16
      %s673 = ssub.s32 0, 0
      %p674 = scmp.lt.s32.totalorder %s673, 0
      %s675 = scalar_select %p674, 0, 255
      %v676 = vld [vmem:[%s672] sm:%s675]
      %s677 = scalar_lea.vmem %s362, 16
      %s678 = ssub.s32 0, 0
      %p679 = scmp.lt.s32.totalorder %s678, 0
      %s680 = scalar_select %p679, 0, 255
      %v681 = vld [vmem:[%s677] sm:%s680]
      %s682 = scalar_lea.vmem %s375, 16
      %s683 = ssub.s32 0, 0
      %p684 = scmp.lt.s32.totalorder %s683, 0
      %s685 = scalar_select %p684, 0, 255
      %v686 = vld [vmem:[%s682] sm:%s685]
      %s687 = scalar_lea.vmem %s7, 16
      %v688 = vld [vmem:[%s687] sm:$0xff]
      %v689 = vlaneseq
      %v690 = vshrl.u32 %v689, 7
      %v691 = vadd.s32 %v690, 16
      %vm692 = vcmp.lt.s32.totalorder %v691, 17
      %v693 = vsel %vm692, %v688, %v17
      %v694 = vlaneseq
      %v695 = vand.u32 %v694, 127
      %vm697 = vcmp.lt.s32.totalorder %v695, 12
      %v698 = vsel %vm697, %v693, %v17
      %699 = xla_tuple %v698, %v16
      %700 = xla_tuple %699
      %v701 = vmax.f32 %v698, %v16
      %702 = xla_tuple %v701
      %703 = xla_tuple %v701, %v15
      %704 = xla_tuple %703
      %v705 = vmax.f32 %v701, %v15
      %706 = xla_tuple %v705
      %707 = xla_tuple %v705, %v14
      %708 = xla_tuple %707
      %v709 = vmax.f32 %v705, %v14
      %710 = xla_tuple %v709
      %s711 = scalar_lea.vmem [#allocation28], 16
      %s713 = ssub.s32 256, 1
      %714 = vst [vmem:[%s711] sm:%s713] %v709
      %v715 = vlaneseq
      %v716 = vshrl.u32 %v715, 7
      %vm718 = vcmp.lt.s32.totalorder %v716, 17
      %v719 = vsel %vm718, %v602, %v16
      %v720 = vlaneseq
      %v721 = vand.u32 %v720, 127
      %vm723 = vcmp.lt.s32.totalorder %v721, 12
      %v724 = vsel %vm723, %v719, %v16
      %725 = xla_tuple %v17, %v724
      %726 = xla_tuple %725
      %v727 = vmax.f32 %v17, %v724
      %728 = xla_tuple %v727
      %729 = xla_tuple %v727, %v15
      %730 = xla_tuple %729
      %v731 = vmax.f32 %v727, %v15
      %732 = xla_tuple %v731
      %733 = xla_tuple %v731, %v14
      %734 = xla_tuple %733
      %v735 = vmax.f32 %v731, %v14
      %736 = xla_tuple %v735
      %s737 = scalar_lea.vmem [#allocation28], 24
      %s739 = ssub.s32 256, 1
      %740 = vst [vmem:[%s737] sm:%s739] %v735
      %s741 = scalar_lea.vmem %s349, 8
      %s742 = scalar_lea.vmem %s362, 8
      %s743 = scalar_lea.vmem %s375, 8
      %v744 = vlaneseq
      %v745 = vshrl.u32 %v744, 7
      %v746 = vadd.s32 %v745, 8
      %vm747 = vcmp.lt.s32.totalorder %v746, 17
      %v748 = vsel %vm747, %v643, %v16
      %v749 = vlaneseq
      %v750 = vand.u32 %v749, 127
      %vm752 = vcmp.lt.s32.totalorder %v750, 12
      %v753 = vsel %vm752, %v748, %v16
      %754 = xla_tuple %v17, %v753
      %755 = xla_tuple %754
      %v756 = vmax.f32 %v17, %v753
      %757 = xla_tuple %v756
      %758 = xla_tuple %v756, %v15
      %759 = xla_tuple %758
      %v760 = vmax.f32 %v756, %v15
      %761 = xla_tuple %v760
      %762 = xla_tuple %v760, %v14
      %763 = xla_tuple %762
      %v764 = vmax.f32 %v760, %v14
      %765 = xla_tuple %v764
      %s766 = scalar_lea.vmem [#allocation28], 32
      %s768 = ssub.s32 256, 1
      %769 = vst [vmem:[%s766] sm:%s768] %v764
      %s770 = scalar_lea.vmem %s349, 16
      %s771 = scalar_lea.vmem %s362, 16
      %s772 = scalar_lea.vmem %s375, 16
      %v773 = vlaneseq
      %v774 = vshrl.u32 %v773, 7
      %v775 = vadd.s32 %v774, 16
      %vm776 = vcmp.lt.s32.totalorder %v775, 17
      %v777 = vsel %vm776, %v686, %v16
      %v778 = vlaneseq
      %v779 = vand.u32 %v778, 127
      %vm781 = vcmp.lt.s32.totalorder %v779, 12
      %v782 = vsel %vm781, %v777, %v16
      %783 = xla_tuple %v17, %v782
      %784 = xla_tuple %783
      %v785 = vmax.f32 %v17, %v782
      %786 = xla_tuple %v785
      %787 = xla_tuple %v785, %v15
      %788 = xla_tuple %787
      %v789 = vmax.f32 %v785, %v15
      %790 = xla_tuple %v789
      %791 = xla_tuple %v789, %v14
      %792 = xla_tuple %791
      %v793 = vmax.f32 %v789, %v14
      %794 = xla_tuple %v793
      %s795 = scalar_lea.vmem [#allocation28], 40
      %s797 = ssub.s32 256, 1
      %798 = vst [vmem:[%s795] sm:%s797] %v793
      %v799 = vlaneseq
      %v800 = vshrl.u32 %v799, 7
      %vm802 = vcmp.lt.s32.totalorder %v800, 17
      %v803 = vsel %vm802, %v598, %v15
      %v804 = vlaneseq
      %v805 = vand.u32 %v804, 127
      %vm807 = vcmp.lt.s32.totalorder %v805, 12
      %v808 = vsel %vm807, %v803, %v15
      %809 = xla_tuple %v17, %v16
      %810 = xla_tuple %809
      %v811 = vmax.f32 %v17, %v16
      %812 = xla_tuple %v811
      %813 = xla_tuple %v811, %v808
      %814 = xla_tuple %813
      %v815 = vmax.f32 %v811, %v808
      %816 = xla_tuple %v815
      %817 = xla_tuple %v815, %v14
      %818 = xla_tuple %817
      %v819 = vmax.f32 %v815, %v14
      %820 = xla_tuple %v819
      %s821 = scalar_lea.vmem [#allocation28], 48
      %s823 = ssub.s32 256, 1
      %824 = vst [vmem:[%s821] sm:%s823] %v819
      %s825 = scalar_lea.vmem %s349, 8
      %s826 = scalar_lea.vmem %s362, 8
      %v827 = vlaneseq
      %v828 = vshrl.u32 %v827, 7
      %v829 = vadd.s32 %v828, 8
      %vm830 = vcmp.lt.s32.totalorder %v829, 17
      %v831 = vsel %vm830, %v638, %v15
      %v832 = vlaneseq
      %v833 = vand.u32 %v832, 127
      %vm835 = vcmp.lt.s32.totalorder %v833, 12
      %v836 = vsel %vm835, %v831, %v15
      %s837 = scalar_lea.vmem %s375, 8
      %838 = xla_tuple %v17, %v16
      %839 = xla_tuple %838
      %v840 = vmax.f32 %v17, %v16
      %841 = xla_tuple %v840
      %842 = xla_tuple %v840, %v836
      %843 = xla_tuple %842
      %v844 = vmax.f32 %v840, %v836
      %845 = xla_tuple %v844
      %846 = xla_tuple %v844, %v14
      %847 = xla_tuple %846
      %v848 = vmax.f32 %v844, %v14
      %849 = xla_tuple %v848
      %s850 = scalar_lea.vmem [#allocation28], 56
      %s852 = ssub.s32 256, 1
      %853 = vst [vmem:[%s850] sm:%s852] %v848
      %s854 = scalar_lea.vmem %s349, 16
      %s855 = scalar_lea.vmem %s362, 16
      %v856 = vlaneseq
      %v857 = vshrl.u32 %v856, 7
      %v858 = vadd.s32 %v857, 16
      %vm859 = vcmp.lt.s32.totalorder %v858, 17
      %v860 = vsel %vm859, %v681, %v15
      %v861 = vlaneseq
      %v862 = vand.u32 %v861, 127
      %vm864 = vcmp.lt.s32.totalorder %v862, 12
      %v865 = vsel %vm864, %v860, %v15
      %s866 = scalar_lea.vmem %s375, 16
      %867 = xla_tuple %v17, %v16
      %868 = xla_tuple %867
      %v869 = vmax.f32 %v17, %v16
      %870 = xla_tuple %v869
      %871 = xla_tuple %v869, %v865
      %872 = xla_tuple %871
      %v873 = vmax.f32 %v869, %v865
      %874 = xla_tuple %v873
      %875 = xla_tuple %v873, %v14
      %876 = xla_tuple %875
      %v877 = vmax.f32 %v873, %v14
      %878 = xla_tuple %v877
      %s879 = scalar_lea.vmem [#allocation28], 64
      %s881 = ssub.s32 256, 1
      %882 = vst [vmem:[%s879] sm:%s881] %v877
      %v883 = vlaneseq
      %v884 = vshrl.u32 %v883, 7
      %vm886 = vcmp.lt.s32.totalorder %v884, 17
      %v887 = vsel %vm886, %v594, %v14
      %v888 = vlaneseq
      %v889 = vand.u32 %v888, 127
      %vm891 = vcmp.lt.s32.totalorder %v889, 12
      %v892 = vsel %vm891, %v887, %v14
      %893 = xla_tuple %v17, %v16
      %894 = xla_tuple %893
      %v895 = vmax.f32 %v17, %v16
      %896 = xla_tuple %v895
      %897 = xla_tuple %v895, %v15
      %898 = xla_tuple %897
      %v899 = vmax.f32 %v895, %v15
      %900 = xla_tuple %v899
      %901 = xla_tuple %v899, %v892
      %902 = xla_tuple %901
      %v903 = vmax.f32 %v899, %v892
      %904 = xla_tuple %v903
      %s905 = scalar_lea.vmem [#allocation28], 72
      %s907 = ssub.s32 256, 1
      %908 = vst [vmem:[%s905] sm:%s907] %v903
      %s909 = scalar_lea.vmem %s349, 8
      %v910 = vlaneseq
      %v911 = vshrl.u32 %v910, 7
      %v912 = vadd.s32 %v911, 8
      %vm913 = vcmp.lt.s32.totalorder %v912, 17
      %v914 = vsel %vm913, %v633, %v14
      %v915 = vlaneseq
      %v916 = vand.u32 %v915, 127
      %vm918 = vcmp.lt.s32.totalorder %v916, 12
      %v919 = vsel %vm918, %v914, %v14
      %s920 = scalar_lea.vmem %s362, 8
      %s921 = scalar_lea.vmem %s375, 8
      %922 = xla_tuple %v17, %v16
      %923 = xla_tuple %922
      %v924 = vmax.f32 %v17, %v16
      %925 = xla_tuple %v924
      %926 = xla_tuple %v924, %v15
      %927 = xla_tuple %926
      %v928 = vmax.f32 %v924, %v15
      %929 = xla_tuple %v928
      %930 = xla_tuple %v928, %v919
      %931 = xla_tuple %930
      %v932 = vmax.f32 %v928, %v919
      %933 = xla_tuple %v932
      %s934 = scalar_lea.vmem [#allocation28], 80
      %s936 = ssub.s32 256, 1
      %937 = vst [vmem:[%s934] sm:%s936] %v932
      %s938 = scalar_lea.vmem %s349, 16
      %v939 = vlaneseq
      %v940 = vshrl.u32 %v939, 7
      %v941 = vadd.s32 %v940, 16
      %vm942 = vcmp.lt.s32.totalorder %v941, 17
      %v943 = vsel %vm942, %v676, %v14
      %v944 = vlaneseq
      %v945 = vand.u32 %v944, 127
      %vm947 = vcmp.lt.s32.totalorder %v945, 12
      %v948 = vsel %vm947, %v943, %v14
      %s949 = scalar_lea.vmem %s362, 16
      %s950 = scalar_lea.vmem %s375, 16
      %951 = xla_tuple %v17, %v16
      %952 = xla_tuple %951
      %v953 = vmax.f32 %v17, %v16
      %954 = xla_tuple %v953
      %955 = xla_tuple %v953, %v15
      %956 = xla_tuple %955
      %v957 = vmax.f32 %v953, %v15
      %958 = xla_tuple %v957
      %959 = xla_tuple %v957, %v948
      %960 = xla_tuple %959
      %v961 = vmax.f32 %v957, %v948
      %962 = xla_tuple %v961
      %s963 = scalar_lea.vmem [#allocation28], 88
      %s965 = ssub.s32 256, 1
      %966 = vst [vmem:[%s963] sm:%s965] %v961
      %v967 = vld [vmem:[#allocation27] sm:$0xff]
      %v968 = vld [vmem:[#allocation27 + $0x8] sm:$0xff]
      %v969 = vld [vmem:[#allocation27 + $0x10] sm:$0xff]
      %v970 = vld [vmem:[#allocation27 + $0x18] sm:$0xff]
      %v971 = vld [vmem:[#allocation27 + $0x20] sm:$0xff]
      %v972 = vld [vmem:[#allocation27 + $0x28] sm:$0xff]
      %v973 = vld [vmem:[#allocation27 + $0x30] sm:$0xff]
      %v974 = vld [vmem:[#allocation27 + $0x38] sm:$0xff]
      %v975 = vld [vmem:[#allocation27 + $0x40] sm:$0xff]
      %v976 = vld [vmem:[#allocation27 + $0x48] sm:$0xff]
      %v977 = vld [vmem:[#allocation27 + $0x50] sm:$0xff]
      %v978 = vld [vmem:[#allocation27 + $0x58] sm:$0x3]
      %v979 = vld [vmem:[#allocation28] sm:$0xff]
      %v980 = vld [vmem:[#allocation28 + $0x8] sm:$0xff]
      %v981 = vld [vmem:[#allocation28 + $0x10] sm:$0x1]
      %v982 = vld [vmem:[#allocation27 + $0x1] sm:$0xff]
      %v983 = vld [vmem:[#allocation27 + $0x9] sm:$0xff]
      %v984 = vld [vmem:[#allocation27 + $0x11] sm:$0xff]
      %v985 = vld [vmem:[#allocation27 + $0x19] sm:$0xff]
      %v986 = vld [vmem:[#allocation27 + $0x21] sm:$0xff]
      %v987 = vld [vmem:[#allocation27 + $0x29] sm:$0xff]
      %v988 = vld [vmem:[#allocation27 + $0x31] sm:$0xff]
      %v989 = vld [vmem:[#allocation27 + $0x39] sm:$0xff]
      %v990 = vld [vmem:[#allocation27 + $0x41] sm:$0xff]
      %v991 = vld [vmem:[#allocation27 + $0x49] sm:$0xff]
      %v992 = vld [vmem:[#allocation27 + $0x51] sm:$0xff]
      %v993 = vld [vmem:[#allocation27 + $0x59] sm:$0x3]
      %s994 = scalar_lea.vmem [#allocation28], 24
      %v995 = vld [vmem:[%s994] sm:$0xff]
      %v996 = vld [vmem:[%s994 + $0x8] sm:$0xff]
      %v997 = vld [vmem:[%s994 + $0x10] sm:$0x1]
      %vm998 = vcmask 138240
      %v1000 = vsel %vm998, %v982, 0
      %v1003 = vsel %vm998, %v983, 0
      %v1006 = vsel %vm998, %v984, 0
      %v1009 = vsel %vm998, %v985, 0
      %v1012 = vsel %vm998, %v986, 0
      %v1015 = vsel %vm998, %v987, 0
      %v1018 = vsel %vm998, %v988, 0
      %v1021 = vsel %vm998, %v989, 0
      %v1024 = vsel %vm998, %v990, 0
      %v1027 = vsel %vm998, %v991, 0
      %v1030 = vsel %vm998, %v992, 0
      %v1033 = vsel %vm998, %v993, 0
      %vm1035 = vcmask 1040384
      %v1037 = vsel %vm1035, %v997, 0
      %1039 = vmatpush.msra.mxu0 0.0
      %1040 = vmatpush.msra.mxu0 0.0
      %1041 = vmatpush.msra.mxu0 0.0
      %1042 = vmatpush.msra.mxu0 0.0
      %1043 = vmatpush.msra.mxu0 0.0
      %1044 = vmatpush.msra.mxu0 0.0
      %1045 = vmatpush.msra.mxu0 0.0
      %1046 = vmatpush.msra.mxu0 0.0
      %1047 = vmatpush.msra.mxu0 0.0
      %1048 = vmatpush.msra.mxu0 0.0
      %1049 = vmatpush.msra.mxu0 0.0
      %1050 = vmatpush.msra.mxu0 0.0
      %1051 = vmatpush.msra.mxu0 0.0
      %1052 = vmatpush.msra.mxu0 %v1037
      %1053 = vmatpush.msra.mxu0 %v996
      %1054 = vmatpush.msra.mxu0 %v995
      %1055 = vmatmul.f32.gmra.mxu0 %v1000
      %v1056 = vpop.f32.mrf.mxu0
      %v1057 = vadd.f32 0.0, %v1056
      %1058 = vmatmul.f32.gmra.mxu0 %v1003
      %v1059 = vpop.f32.mrf.mxu0
      %v1060 = vadd.f32 0.0, %v1059
      %1061 = vmatmul.f32.gmra.mxu0 %v1006
      %v1062 = vpop.f32.mrf.mxu0
      %v1063 = vadd.f32 0.0, %v1062
      %1064 = vmatmul.f32.gmra.mxu0 %v1009
      %v1065 = vpop.f32.mrf.mxu0
      %v1066 = vadd.f32 0.0, %v1065
      %1067 = vmatmul.f32.gmra.mxu0 %v1012
      %v1068 = vpop.f32.mrf.mxu0
      %v1069 = vadd.f32 0.0, %v1068
      %1070 = vmatmul.f32.gmra.mxu0 %v1015
      %v1071 = vpop.f32.mrf.mxu0
      %v1072 = vadd.f32 0.0, %v1071
      %1073 = vmatmul.f32.gmra.mxu0 %v1018
      %v1074 = vpop.f32.mrf.mxu0
      %v1075 = vadd.f32 0.0, %v1074
      %1076 = vmatmul.f32.gmra.mxu0 %v1021
      %v1077 = vpop.f32.mrf.mxu0
      %v1078 = vadd.f32 0.0, %v1077
      %1079 = vmatmul.f32.gmra.mxu0 %v1024
      %v1080 = vpop.f32.mrf.mxu0
      %v1081 = vadd.f32 0.0, %v1080
      %1082 = vmatmul.f32.gmra.mxu0 %v1027
      %v1083 = vpop.f32.mrf.mxu0
      %v1084 = vadd.f32 0.0, %v1083
      %1085 = vmatmul.f32.gmra.mxu0 %v1030
      %v1086 = vpop.f32.mrf.mxu0
      %v1087 = vadd.f32 0.0, %v1086
      %1088 = vmatmul.f32.gmra.mxu0 %v1033
      %v1089 = vpop.f32.mrf.mxu0
      %v1090 = vadd.f32 0.0, %v1089
      %1091 = vdwg.mxu0
      %v1093 = vsel %vm998, %v967, 0
      %v1096 = vsel %vm998, %v968, 0
      %v1099 = vsel %vm998, %v969, 0
      %v1102 = vsel %vm998, %v970, 0
      %v1105 = vsel %vm998, %v971, 0
      %v1108 = vsel %vm998, %v972, 0
      %v1111 = vsel %vm998, %v973, 0
      %v1114 = vsel %vm998, %v974, 0
      %v1117 = vsel %vm998, %v975, 0
      %v1120 = vsel %vm998, %v976, 0
      %v1123 = vsel %vm998, %v977, 0
      %v1126 = vsel %vm998, %v978, 0
      %v1129 = vsel %vm1035, %v981, 0
      %1131 = vmatpush.msra.mxu0 0.0
      %1132 = vmatpush.msra.mxu0 0.0
      %1133 = vmatpush.msra.mxu0 0.0
      %1134 = vmatpush.msra.mxu0 0.0
      %1135 = vmatpush.msra.mxu0 0.0
      %1136 = vmatpush.msra.mxu0 0.0
      %1137 = vmatpush.msra.mxu0 0.0
      %1138 = vmatpush.msra.mxu0 0.0
      %1139 = vmatpush.msra.mxu0 0.0
      %1140 = vmatpush.msra.mxu0 0.0
      %1141 = vmatpush.msra.mxu0 0.0
      %1142 = vmatpush.msra.mxu0 0.0
      %1143 = vmatpush.msra.mxu0 0.0
      %1144 = vmatpush.msra.mxu0 %v1129
      %1145 = vmatpush.msra.mxu0 %v980
      %1146 = vmatpush.msra.mxu0 %v979
      %1147 = vmatmul.f32.gmra.mxu0 %v1093
      %v1148 = vpop.f32.mrf.mxu0
      %v1149 = vadd.f32 %v1057, %v1148
      %1150 = vmatmul.f32.gmra.mxu0 %v1096
      %v1151 = vpop.f32.mrf.mxu0
      %v1152 = vadd.f32 %v1060, %v1151
      %1153 = vmatmul.f32.gmra.mxu0 %v1099
      %v1154 = vpop.f32.mrf.mxu0
      %v1155 = vadd.f32 %v1063, %v1154
      %1156 = vmatmul.f32.gmra.mxu0 %v1102
      %v1157 = vpop.f32.mrf.mxu0
      %v1158 = vadd.f32 %v1066, %v1157
      %1159 = vmatmul.f32.gmra.mxu0 %v1105
      %v1160 = vpop.f32.mrf.mxu0
      %v1161 = vadd.f32 %v1069, %v1160
      %1162 = vmatmul.f32.gmra.mxu0 %v1108
      %v1163 = vpop.f32.mrf.mxu0
      %v1164 = vadd.f32 %v1072, %v1163
      %1165 = vmatmul.f32.gmra.mxu0 %v1111
      %v1166 = vpop.f32.mrf.mxu0
      %v1167 = vadd.f32 %v1075, %v1166
      %1168 = vmatmul.f32.gmra.mxu0 %v1114
      %v1169 = vpop.f32.mrf.mxu0
      %v1170 = vadd.f32 %v1078, %v1169
      %1171 = vmatmul.f32.gmra.mxu0 %v1117
      %v1172 = vpop.f32.mrf.mxu0
      %v1173 = vadd.f32 %v1081, %v1172
      %1174 = vmatmul.f32.gmra.mxu0 %v1120
      %v1175 = vpop.f32.mrf.mxu0
      %v1176 = vadd.f32 %v1084, %v1175
      %1177 = vmatmul.f32.gmra.mxu0 %v1123
      %v1178 = vpop.f32.mrf.mxu0
      %v1179 = vadd.f32 %v1087, %v1178
      %1180 = vmatmul.f32.gmra.mxu0 %v1126
      %v1181 = vpop.f32.mrf.mxu0
      %v1182 = vadd.f32 %v1090, %v1181
      %1183 = vdwg.mxu0
      %v1184 = vld [vmem:[#allocation27 + $0xa] sm:$0xff]
      %v1185 = vld [vmem:[#allocation27 + $0x12] sm:$0xff]
      %v1186 = vld [vmem:[#allocation27 + $0x1a] sm:$0xff]
      %v1187 = vld [vmem:[#allocation27 + $0x22] sm:$0xff]
      %v1188 = vld [vmem:[#allocation27 + $0x2a] sm:$0xff]
      %v1189 = vld [vmem:[#allocation27 + $0x32] sm:$0xff]
      %v1190 = vld [vmem:[#allocation27 + $0x3a] sm:$0xff]
      %v1191 = vld [vmem:[#allocation27 + $0x42] sm:$0xff]
      %v1192 = vld [vmem:[#allocation27 + $0x4a] sm:$0xff]
      %v1193 = vld [vmem:[#allocation27 + $0x52] sm:$0xff]
      %v1194 = vld [vmem:[#allocation27 + $0x5a] sm:$0xff]
      %v1195 = vld [vmem:[#allocation27 + $0x62] sm:$0x3]
      %s1196 = scalar_lea.vmem [#allocation28], 48
      %v1197 = vld [vmem:[%s1196] sm:$0xff]
      %v1198 = vld [vmem:[%s1196 + $0x8] sm:$0xff]
      %v1199 = vld [vmem:[%s1196 + $0x10] sm:$0x1]
      %v1200 = vld [vmem:[#allocation27 + $0xb] sm:$0xff]
      %v1201 = vld [vmem:[#allocation27 + $0x13] sm:$0xff]
      %v1202 = vld [vmem:[#allocation27 + $0x1b] sm:$0xff]
      %v1203 = vld [vmem:[#allocation27 + $0x23] sm:$0xff]
      %v1204 = vld [vmem:[#allocation27 + $0x2b] sm:$0xff]
      %v1205 = vld [vmem:[#allocation27 + $0x33] sm:$0xff]
      %v1206 = vld [vmem:[#allocation27 + $0x3b] sm:$0xff]
      %v1207 = vld [vmem:[#allocation27 + $0x43] sm:$0xff]
      %v1208 = vld [vmem:[#allocation27 + $0x4b] sm:$0xff]
      %v1209 = vld [vmem:[#allocation27 + $0x53] sm:$0xff]
      %v1210 = vld [vmem:[#allocation27 + $0x5b] sm:$0xff]
      %v1211 = vld [vmem:[#allocation27 + $0x63] sm:$0x3]
      %s1212 = scalar_lea.vmem [#allocation28], 72
      %v1213 = vld [vmem:[%s1212] sm:$0xff]
      %v1214 = vld [vmem:[%s1212 + $0x8] sm:$0xff]
      %v1215 = vld [vmem:[%s1212 + $0x10] sm:$0x1]
      %v1217 = vsel %vm998, %v1200, 0
      %v1220 = vsel %vm998, %v1201, 0
      %v1223 = vsel %vm998, %v1202, 0
      %v1226 = vsel %vm998, %v1203, 0
      %v1229 = vsel %vm998, %v1204, 0
      %v1232 = vsel %vm998, %v1205, 0
      %v1235 = vsel %vm998, %v1206, 0
      %v1238 = vsel %vm998, %v1207, 0
      %v1241 = vsel %vm998, %v1208, 0
      %v1244 = vsel %vm998, %v1209, 0
      %v1247 = vsel %vm998, %v1210, 0
      %v1250 = vsel %vm998, %v1211, 0
      %v1253 = vsel %vm1035, %v1215, 0
      %1255 = vmatpush.msra.mxu0 0.0
      %1256 = vmatpush.msra.mxu0 0.0
      %1257 = vmatpush.msra.mxu0 0.0
      %1258 = vmatpush.msra.mxu0 0.0
      %1259 = vmatpush.msra.mxu0 0.0
      %1260 = vmatpush.msra.mxu0 0.0
      %1261 = vmatpush.msra.mxu0 0.0
      %1262 = vmatpush.msra.mxu0 0.0
      %1263 = vmatpush.msra.mxu0 0.0
      %1264 = vmatpush.msra.mxu0 0.0
      %1265 = vmatpush.msra.mxu0 0.0
      %1266 = vmatpush.msra.mxu0 0.0
      %1267 = vmatpush.msra.mxu0 0.0
      %1268 = vmatpush.msra.mxu0 %v1253
      %1269 = vmatpush.msra.mxu0 %v1214
      %1270 = vmatpush.msra.mxu0 %v1213
      %1271 = vmatmul.f32.gmra.mxu0 %v1217
      %v1272 = vpop.f32.mrf.mxu0
      %v1273 = vadd.f32 0.0, %v1272
      %1274 = vmatmul.f32.gmra.mxu0 %v1220
      %v1275 = vpop.f32.mrf.mxu0
      %v1276 = vadd.f32 0.0, %v1275
      %1277 = vmatmul.f32.gmra.mxu0 %v1223
      %v1278 = vpop.f32.mrf.mxu0
      %v1279 = vadd.f32 0.0, %v1278
      %1280 = vmatmul.f32.gmra.mxu0 %v1226
      %v1281 = vpop.f32.mrf.mxu0
      %v1282 = vadd.f32 0.0, %v1281
      %1283 = vmatmul.f32.gmra.mxu0 %v1229
      %v1284 = vpop.f32.mrf.mxu0
      %v1285 = vadd.f32 0.0, %v1284
      %1286 = vmatmul.f32.gmra.mxu0 %v1232
      %v1287 = vpop.f32.mrf.mxu0
      %v1288 = vadd.f32 0.0, %v1287
      %1289 = vmatmul.f32.gmra.mxu0 %v1235
      %v1290 = vpop.f32.mrf.mxu0
      %v1291 = vadd.f32 0.0, %v1290
      %1292 = vmatmul.f32.gmra.mxu0 %v1238
      %v1293 = vpop.f32.mrf.mxu0
      %v1294 = vadd.f32 0.0, %v1293
      %1295 = vmatmul.f32.gmra.mxu0 %v1241
      %v1296 = vpop.f32.mrf.mxu0
      %v1297 = vadd.f32 0.0, %v1296
      %1298 = vmatmul.f32.gmra.mxu0 %v1244
      %v1299 = vpop.f32.mrf.mxu0
      %v1300 = vadd.f32 0.0, %v1299
      %1301 = vmatmul.f32.gmra.mxu0 %v1247
      %v1302 = vpop.f32.mrf.mxu0
      %v1303 = vadd.f32 0.0, %v1302
      %1304 = vmatmul.f32.gmra.mxu0 %v1250
      %v1305 = vpop.f32.mrf.mxu0
      %v1306 = vadd.f32 0.0, %v1305
      %1307 = vdwg.mxu0
      %v1309 = vsel %vm998, %v1184, 0
      %v1312 = vsel %vm998, %v1185, 0
      %v1315 = vsel %vm998, %v1186, 0
      %v1318 = vsel %vm998, %v1187, 0
      %v1321 = vsel %vm998, %v1188, 0
      %v1324 = vsel %vm998, %v1189, 0
      %v1327 = vsel %vm998, %v1190, 0
      %v1330 = vsel %vm998, %v1191, 0
      %v1333 = vsel %vm998, %v1192, 0
      %v1336 = vsel %vm998, %v1193, 0
      %v1339 = vsel %vm998, %v1194, 0
      %v1342 = vsel %vm998, %v1195, 0
      %v1345 = vsel %vm1035, %v1199, 0
      %1347 = vmatpush.msra.mxu0 0.0
      %1348 = vmatpush.msra.mxu0 0.0
      %1349 = vmatpush.msra.mxu0 0.0
      %1350 = vmatpush.msra.mxu0 0.0
      %1351 = vmatpush.msra.mxu0 0.0
      %1352 = vmatpush.msra.mxu0 0.0
      %1353 = vmatpush.msra.mxu0 0.0
      %1354 = vmatpush.msra.mxu0 0.0
      %1355 = vmatpush.msra.mxu0 0.0
      %1356 = vmatpush.msra.mxu0 0.0
      %1357 = vmatpush.msra.mxu0 0.0
      %1358 = vmatpush.msra.mxu0 0.0
      %1359 = vmatpush.msra.mxu0 0.0
      %1360 = vmatpush.msra.mxu0 %v1345
      %1361 = vmatpush.msra.mxu0 %v1198
      %1362 = vmatpush.msra.mxu0 %v1197
      %1363 = vmatmul.f32.gmra.mxu0 %v1309
      %v1364 = vpop.f32.mrf.mxu0
      %v1365 = vadd.f32 %v1273, %v1364
      %1366 = vmatmul.f32.gmra.mxu0 %v1312
      %v1367 = vpop.f32.mrf.mxu0
      %v1368 = vadd.f32 %v1276, %v1367
      %1369 = vmatmul.f32.gmra.mxu0 %v1315
      %v1370 = vpop.f32.mrf.mxu0
      %v1371 = vadd.f32 %v1279, %v1370
      %1372 = vmatmul.f32.gmra.mxu0 %v1318
      %v1373 = vpop.f32.mrf.mxu0
      %v1374 = vadd.f32 %v1282, %v1373
      %1375 = vmatmul.f32.gmra.mxu0 %v1321
      %v1376 = vpop.f32.mrf.mxu0
      %v1377 = vadd.f32 %v1285, %v1376
      %1378 = vmatmul.f32.gmra.mxu0 %v1324
      %v1379 = vpop.f32.mrf.mxu0
      %v1380 = vadd.f32 %v1288, %v1379
      %1381 = vmatmul.f32.gmra.mxu0 %v1327
      %v1382 = vpop.f32.mrf.mxu0
      %v1383 = vadd.f32 %v1291, %v1382
      %1384 = vmatmul.f32.gmra.mxu0 %v1330
      %v1385 = vpop.f32.mrf.mxu0
      %v1386 = vadd.f32 %v1294, %v1385
      %1387 = vmatmul.f32.gmra.mxu0 %v1333
      %v1388 = vpop.f32.mrf.mxu0
      %v1389 = vadd.f32 %v1297, %v1388
      %1390 = vmatmul.f32.gmra.mxu0 %v1336
      %v1391 = vpop.f32.mrf.mxu0
      %v1392 = vadd.f32 %v1300, %v1391
      %1393 = vmatmul.f32.gmra.mxu0 %v1339
      %v1394 = vpop.f32.mrf.mxu0
      %v1395 = vadd.f32 %v1303, %v1394
      %1396 = vmatmul.f32.gmra.mxu0 %v1342
      %v1397 = vpop.f32.mrf.mxu0
      %v1398 = vadd.f32 %v1306, %v1397
      %1399 = vdwg.mxu0
      %v1400 = vadd.f32 %v1149, %v1365
      %v1401 = vadd.f32 %v1152, %v1368
      %v1402 = vadd.f32 %v1155, %v1371
      %v1403 = vadd.f32 %v1158, %v1374
      %v1404 = vadd.f32 %v1161, %v1377
      %v1405 = vadd.f32 %v1164, %v1380
      %v1406 = vadd.f32 %v1167, %v1383
      %v1407 = vadd.f32 %v1170, %v1386
      %v1408 = vadd.f32 %v1173, %v1389
      %v1409 = vadd.f32 %v1176, %v1392
      %v1410 = vadd.f32 %v1179, %v1395
      %v1411 = vadd.f32 %v1182, %v1398
      %v1412 = vld [vmem:[%s0] sm:$0x1]
      %v1414 = vperm.slane %v1412, 0
      %v1416 = vadd.f32 %v1400, %v1414
      %v1417 = vadd.f32 %v1401, %v1414
      %v1418 = vadd.f32 %v1402, %v1414
      %v1419 = vadd.f32 %v1403, %v1414
      %v1420 = vadd.f32 %v1404, %v1414
      %v1421 = vadd.f32 %v1405, %v1414
      %v1422 = vadd.f32 %v1406, %v1414
      %v1423 = vadd.f32 %v1407, %v1414
      %v1424 = vadd.f32 %v1408, %v1414
      %v1425 = vadd.f32 %v1409, %v1414
      %v1426 = vadd.f32 %v1410, %v1414
      %v1427 = vadd.f32 %v1411, %v1414
      %vm1428 = vcmask 97280
      %1429 = vst.msk [vmem:[%s384] sm:$0xff] %vm1428, %v1416
      %1430 = vst.msk [vmem:[%s384 + $0x8] sm:$0xff] %vm1428, %v1417
      %1431 = vst.msk [vmem:[%s384 + $0x10] sm:$0xff] %vm1428, %v1418
      %1432 = vst.msk [vmem:[%s384 + $0x18] sm:$0xff] %vm1428, %v1419
      %1433 = vst.msk [vmem:[%s384 + $0x20] sm:$0xff] %vm1428, %v1420
      %1434 = vst.msk [vmem:[%s384 + $0x28] sm:$0xff] %vm1428, %v1421
      %1435 = vst.msk [vmem:[%s384 + $0x30] sm:$0xff] %vm1428, %v1422
      %1436 = vst.msk [vmem:[%s384 + $0x38] sm:$0xff] %vm1428, %v1423
      %1437 = vst.msk [vmem:[%s384 + $0x40] sm:$0xff] %vm1428, %v1424
      %1438 = vst.msk [vmem:[%s384 + $0x48] sm:$0xff] %vm1428, %v1425
      %1439 = vst.msk [vmem:[%s384 + $0x50] sm:$0xff] %vm1428, %v1426
      %vm1440 = vcmask 91136
      %1441 = vst.msk [vmem:[%s384 + $0x58] sm:$0x3] %vm1440, %v1427
      %p1442 = scmp.lt.s32.totalorder %s24, 1
      %s1443 = scalar_select %p1442, %s24, 1
      %s1444 = smul.addr %s1443, 12
      %s1445 = smul.addr %s1444, 8
      %s1446 = scalar_lea.vmem %s8, %s1445
      // Predicated region
      $region45: #{baseline_forward.13} parent=43 // pred_check
        %p1447 = pneg %p194
      $region46: #{baseline_forward.13} parent=43 // pred_check_branch
        %1449 = sbr.rel (%p1447) target = $region48
      $region47: #{baseline_forward.13} parent=43 // pred_region
        _
      $region48: #{baseline_forward.13} parent=43 // pred_fallthru
        _
    $region44: #{baseline_forward.13} parent=5 // pred_fallthru
      _
    %p1450 = scmp.le.s32.totalorder 2, %s19
    // Predicated region
    $region49: #{baseline_forward.13} parent=5 // pred_check
      %p1451 = pneg %p1450
    $region50: #{baseline_forward.13} parent=5 // pred_check_branch
      %1453 = sbr.rel (%p1451) target = $region52
    $region51: #{baseline_forward.13} parent=5 // pred_region
      %s1454 = ssub.s32 %s19, 2
      // Predicated region
      $region53: #{baseline_forward.13} parent=51 // pred_check
        %p1455 = pneg %p200
      $region54: #{baseline_forward.13} parent=51 // pred_check_branch
        %1457 = sbr.rel (%p1455) target = $region56
      $region55: #{baseline_forward.13} parent=51 // pred_region
        %p1458 = scmp.lt.s32.totalorder %s25, 1
        %s1459 = scalar_select %p1458, %s25, 1
        %s1460 = smul.addr %s1459, 12
        %s1461 = smul.addr %s1460, 8
        %s1462 = scalar_lea.vmem %s8, %s1461
      $region56: #{baseline_forward.13} parent=51 // pred_fallthru
        _
    $region52: #{baseline_forward.13} parent=5 // pred_fallthru
      _
  $region6: #{baseline_forward.13} parent=0 // loop_footer
    %s23 = sadd.s32 1, %s19
  $region7: #{baseline_forward.13} parent=0 // loop_footer_branch
    %18 = sbr.rel target = $region3
  $region8: #{baseline_forward.13} parent=0 // loop_exit
    _

</llo_original>
